<compile_context>
chip_gen: v5e
topology: v5e:2x2
jax: 0.10.0
libtpu: 0.0.40
codegen_flags: <defaults>
</compile_context>

<pallas_src>
import functools

import jax
import jax.numpy as jnp
from jax import lax
from jax.experimental import pallas as pl
from jax.experimental.pallas import tpu as pltpu

POOL_KERNELS = (5, 9, 13)     # realized as a cascade of 5x5 pools (SPPF identity)
_NEG = -jnp.inf


# ----------------------------------------------------------------------------- helpers

def _mish(x):
    """Mish via a single exp + approx reciprocal (EUP), PyTorch x>20 clamp."""
    e = jnp.exp(jnp.minimum(x, 20.0))
    n = e * (e + 2.0)
    y = x * n * pl.reciprocal(n + 2.0, approx=True)
    return jnp.where(x > 20.0, x, y)


def _shift_h(a, d, fill):
    """out[y, x, c] = a[y + d, x, c], `fill` outside.  a: (H, W, C)."""
    H, W, C = a.shape
    pad = jnp.full((abs(d), W, C), fill, a.dtype)
    if d > 0:
        return jnp.concatenate([a[d:], pad], axis=0)
    return jnp.concatenate([pad, a[:H + d]], axis=0)


def _shift_w(a, d, fill):
    """out[y, x, c] = a[y, x + d, c], `fill` outside.  a: (H, W, C)."""
    H, W, C = a.shape
    pad = jnp.full((H, abs(d), C), fill, a.dtype)
    if d > 0:
        return jnp.concatenate([a[:, d:], pad], axis=1)
    return jnp.concatenate([pad, a[:, :W + d]], axis=1)


def _maxpool5(a):
    """5x5 stride-1 'same' max pool (separable, -inf padded).  a: (H, W, C) f32."""
    r = a
    for d in (-2, -1, 1, 2):            # W pass: 4 maxima
        r = jnp.maximum(r, _shift_w(a, d, _NEG))
    out = r
    for d in (-2, -1, 1, 2):            # H pass: 4 maxima
        out = jnp.maximum(out, _shift_h(r, d, _NEG))
    return out


def _conv3x3(h, w_ref):
    """3x3 'same' conv as 9 shifted MXU matmuls.

    h: (H, W, C) f32, w_ref: (9, C, Cout) bf16  ->  (H*W, Cout) f32.
    """
    H, W, C = h.shape
    acc = None
    for j, dy in enumerate((-1, 0, 1)):
        g = h if dy == 0 else _shift_h(h, dy, 0.0)
        for i, dx in enumerate((-1, 0, 1)):
            s = g if dx == 0 else _shift_w(g, dx, 0.0)
            t = jnp.dot(s.reshape(H * W, C).astype(jnp.bfloat16),
                        w_ref[j * 3 + i],
                        preferred_element_type=jnp.float32)
            acc = t if acc is None else acc + t
    return acc


# ----------------------------------------------------------------------------- kernel

def _spp_csp_kernel(x_ref,
                    w1t_ref, s1_ref, b1_ref,
                    w2t_ref,
                    w3_ref, s3_ref, b3_ref,
                    w4_ref, s4_ref, b4_ref,
                    w5_ref, s5_ref, b5_ref,
                    w6_ref, s6_ref, b6_ref,
                    sbn1_ref, bbn1_ref, sbn2_ref, bbn2_ref,
                    w7at_ref, w7bt_ref, s7_ref, b7_ref,
                    o_ref, *, H, W):
    HW = H * W
    Ch = w1t_ref.shape[0]
    bf16 = jnp.bfloat16

    x_cm = x_ref[0]                                           # (Cin, HW) bf16, channel-major

    # conv1 (1x1) + BN + Mish, channel-major (x needs no transpose)
    h = jnp.dot(w1t_ref[...], x_cm, preferred_element_type=jnp.float32)   # (Ch, HW)
    h = _mish(h * s1_ref[...] + b1_ref[...])
    # relayout to spatial-major on the resident VMEM tile
    h_sp = jnp.transpose(h).reshape(H, W, Ch)                 # (H, W, Ch) f32

    # conv3 (3x3) + BN + Mish
    t = _conv3x3(h_sp, w3_ref)                                # (HW, Ch)
    t = _mish(t * s3_ref[...] + b3_ref[...])

    # conv4 (1x1) + BN + Mish
    x1 = jnp.dot(t.astype(bf16), w4_ref[...], preferred_element_type=jnp.float32)
    x1 = _mish(x1 * s4_ref[...] + b4_ref[...])                # (HW, Ch)

    # SPP (SPPF cascade) + conv5: each branch accumulated into conv5 immediately.
    acc = jnp.dot(x1.astype(bf16), w5_ref[0:Ch, :],
                  preferred_element_type=jnp.float32)         # identity branch
    m = x1.reshape(H, W, Ch)
    for i in range(len(POOL_KERNELS)):
        m = _maxpool5(m)                                      # == pool 5 / 9 / 13 of x1
        acc = acc + jnp.dot(m.reshape(HW, Ch).astype(bf16),
                            w5_ref[(i + 1) * Ch:(i + 2) * Ch, :],
                            preferred_element_type=jnp.float32)
    y = _mish(acc * s5_ref[...] + b5_ref[...])                # (HW, Ch)

    # conv6 (3x3) + BN + Mish
    y1 = _conv3x3(y.reshape(H, W, Ch), w6_ref)
    y1 = _mish(y1 * s6_ref[...] + b6_ref[...])                # (HW, Ch)

    # CSP shortcut: conv2 (plain 1x1, no BN / act), channel-major
    y2 = jnp.dot(w2t_ref[...], x_cm, preferred_element_type=jnp.float32)  # (Ch, HW)

    # BN + Mish over the (y1, y2) channel concat, done per half (no concat).
    a1 = _mish(y1 * sbn1_ref[...] + bbn1_ref[...])            # (HW, Ch) spatial-major
    a2 = _mish(y2 * sbn2_ref[...] + bbn2_ref[...])            # (Ch, HW) channel-major

    # conv7 (1x1) + BN + Mish, channel-major so the store is lane dense (HW lanes).
    a1_cm = jnp.transpose(a1)                                 # (Ch, HW)
    out = (jnp.dot(w7at_ref[...], a1_cm.astype(bf16), preferred_element_type=jnp.float32)
           + jnp.dot(w7bt_ref[...], a2.astype(bf16), preferred_element_type=jnp.float32))
    out = _mish(out * s7_ref[...] + b7_ref[...])              # (Ch, HW) f32
    o_ref[0] = out


# ----------------------------------------------------------------------------- wrapper

def spatial_pyramid_pooling_csp(x_nchw, params):
    """x_nchw: (N, Cin, H, W) float32.  Returns (N, Ch, H, W) float32."""
    (w1, s1, b1, w2, w3, s3, b3, w4, s4, b4, w5, s5, b5,
     w6, s6, b6, s_bn, b_bn, w7, s7, b7) = params
    N, Cin, H, W = x_nchw.shape
    Ch = w1.shape[1]
    HW = H * W
    bf16 = jnp.bfloat16

    # HBM layout stays NCHW: only a free reshape + dtype cast on the wrapper side.
    x_cm = x_nchw.reshape(N, Cin, HW).astype(bf16)

    kernel_args = (
        x_cm,
        w1.T.astype(bf16), s1.reshape(Ch, 1), b1.reshape(Ch, 1),
        w2.T.astype(bf16),
        w3.reshape(9, Ch, Ch).astype(bf16), s3.reshape(1, Ch), b3.reshape(1, Ch),
        w4.astype(bf16), s4.reshape(1, Ch), b4.reshape(1, Ch),
        w5.astype(bf16), s5.reshape(1, Ch), b5.reshape(1, Ch),
        w6.reshape(9, Ch, Ch).astype(bf16), s6.reshape(1, Ch), b6.reshape(1, Ch),
        s_bn[:Ch].reshape(1, Ch), b_bn[:Ch].reshape(1, Ch),
        s_bn[Ch:].reshape(Ch, 1), b_bn[Ch:].reshape(Ch, 1),
        w7[:Ch].T.astype(bf16), w7[Ch:].T.astype(bf16),
        s7.reshape(Ch, 1), b7.reshape(Ch, 1),
    )

    def rep(shape):
        # full-array block with a constant index_map -> stays VMEM-resident
        # across the batch grid (no per-step re-DMA of weights / BN vectors).
        return pl.BlockSpec(shape, lambda b: (0,) * len(shape))

    in_specs = [pl.BlockSpec((1, Cin, HW), lambda b: (b, 0, 0))]
    in_specs += [rep(a.shape) for a in kernel_args[1:]]

    out_cm = pl.pallas_call(
        functools.partial(_spp_csp_kernel, H=H, W=W),
        out_shape=jax.ShapeDtypeStruct((N, Ch, HW), jnp.float32),
        grid=(N,),
        in_specs=in_specs,
        out_specs=pl.BlockSpec((1, Ch, HW), lambda b: (b, 0, 0)),
        compiler_params=pltpu.CompilerParams(
            dimension_semantics=("parallel",),
            vmem_limit_bytes=32 * 1024 * 1024),
    )(*kernel_args)

    return out_cm.reshape(N, Ch, H, W)


# ----------------------------------------------------------------------------- params / reference

def init_params(key, in_channels, out_channels, expansion=0.5):
    """Deterministic synthetic Conv + folded-BatchNorm (inference) parameters."""
    hidden = int(2 * out_channels * expansion)
    eps = 1e-5

    def conv_bn(k, cin, cout, ksize):
        kw, kg, kb, km, kv = jax.random.split(k, 5)
        std = 1.0 / jnp.sqrt(float(cin * ksize * ksize))
        if ksize == 1:
            w = std * jax.random.normal(kw, (cin, cout), jnp.float32)
        else:
            w = std * jax.random.normal(kw, (ksize, ksize, cin, cout), jnp.float32)
        gamma = 1.0 + 0.1 * jax.random.normal(kg, (cout,), jnp.float32)
        beta = 0.1 * jax.random.normal(kb, (cout,), jnp.float32)
        mean = 0.1 * jax.random.normal(km, (cout,), jnp.float32)
        var = jnp.abs(jax.random.normal(kv, (cout,), jnp.float32)) + 0.5
        s = gamma / jnp.sqrt(var + eps)
        b = beta - mean * s
        return w, s, b

    k1, k2, k3, k4, k5, k6, k7, kbn = jax.random.split(key, 8)
    w1, s1, b1 = conv_bn(k1, in_channels, hidden, 1)
    w3, s3, b3 = conv_bn(k3, hidden, hidden, 3)
    w4, s4, b4 = conv_bn(k4, hidden, hidden, 1)
    w5, s5, b5 = conv_bn(k5, 4 * hidden, hidden, 1)
    w6, s6, b6 = conv_bn(k6, hidden, hidden, 3)
    w7, s7, b7 = conv_bn(k7, 2 * hidden, hidden, 1)
    # conv2: plain 1x1 conv, bias=False, no BN / activation
    w2 = (1.0 / jnp.sqrt(float(in_channels))) * jax.random.normal(
        k2, (in_channels, hidden), jnp.float32)
    # self.bn over the (y1, y2) concat
    kg, kb, km, kv = jax.random.split(kbn, 4)
    gamma = 1.0 + 0.1 * jax.random.normal(kg, (2 * hidden,), jnp.float32)
    beta = 0.1 * jax.random.normal(kb, (2 * hidden,), jnp.float32)
    mean = 0.1 * jax.random.normal(km, (2 * hidden,), jnp.float32)
    var = jnp.abs(jax.random.normal(kv, (2 * hidden,), jnp.float32)) + 0.5
    s_bn = gamma / jnp.sqrt(var + eps)
    b_bn = beta - mean * s_bn
    return (w1, s1, b1, w2, w3, s3, b3, w4, s4, b4,
            w5, s5, b5, w6, s6, b6, s_bn, b_bn, w7, s7, b7)


def _mish_ref(x):
    return x * jnp.tanh(jax.nn.softplus(x))


def reference(x_nchw, params):
    """Pure-JAX f32 reference of the CSP-SPP forward (NCHW in / NCHW out)."""
    (w1, s1, b1, w2, w3, s3, b3, w4, s4, b4, w5, s5, b5,
     w6, s6, b6, s_bn, b_bn, w7, s7, b7) = params
    x = jnp.transpose(x_nchw, (0, 2, 3, 1))                   # NHWC

    def cbm1(h, w, s, b):
        return _mish_ref(jnp.einsum('nhwc,cd->nhwd', h, w) * s + b)

    def conv3(h, k):
        return lax.conv_general_dilated(
            h, k, (1, 1), ((1, 1), (1, 1)),
            dimension_numbers=('NHWC', 'HWIO', 'NHWC'))

    t = cbm1(x, w1, s1, b1)
    t = _mish_ref(conv3(t, w3) * s3 + b3)
    x1 = cbm1(t, w4, s4, b4)

    pools = [x1]
    for k in POOL_KERNELS:
        p = k // 2
        pools.append(lax.reduce_window(
            x1, -jnp.inf, lax.max, (1, k, k, 1), (1, 1, 1, 1),
            [(0, 0), (p, p), (p, p), (0, 0)]))
    cat = jnp.concatenate(pools, axis=-1)

    y = cbm1(cat, w5, s5, b5)
    y1 = _mish_ref(conv3(y, w6) * s6 + b6)
    y2 = jnp.einsum('nhwc,cd->nhwd', x, w2)
    z = _mish_ref(jnp.concatenate([y1, y2], axis=-1) * s_bn + b_bn)
    out = cbm1(z, w7, s7, b7)
    return jnp.transpose(out, (0, 3, 1, 2))                   # NCHW


if __name__ == "__main__":
    N, Cin, H, W = 2, 16, 16, 16
    Cout = 32    # hidden == out_channels (expansion = 0.5)

    key = jax.random.PRNGKey(0)
    kx, kp = jax.random.split(key)
    x = jax.random.normal(kx, (N, Cin, H, W), jnp.float32)
    params = init_params(kp, Cin, Cout)

    out = jax.block_until_ready(spatial_pyramid_pooling_csp(x, params))
    ref = jax.block_until_ready(reference(x, params))

    assert out.shape == (N, Cout, H, W), out.shape
    # Tolerance covers the bf16 MXU path + approx reciprocal in Mish vs. a pure
    # f32 reference (7 conv layers + 8 Mish evaluations chained).
    max_err = float(jnp.max(jnp.abs(out - ref)))
    assert jnp.allclose(out, ref, atol=5e-2, rtol=5e-2), max_err
    print("KERNEL_OK")
</pallas_src>

<mosaic_0001>
module attributes {stable_mosaic.version = 11 : i64} {
  func.func @_spp_csp_kernel(%arg0: i32, %arg1: memref<1x16x256xbf16, #tpu.memory_space<vmem>>, %arg2: memref<32x16xbf16, #tpu.memory_space<vmem>>, %arg3: memref<32x1xf32, #tpu.memory_space<vmem>>, %arg4: memref<32x1xf32, #tpu.memory_space<vmem>>, %arg5: memref<32x16xbf16, #tpu.memory_space<vmem>>, %arg6: memref<9x32x32xbf16, #tpu.memory_space<vmem>>, %arg7: memref<1x32xf32, #tpu.memory_space<vmem>>, %arg8: memref<1x32xf32, #tpu.memory_space<vmem>>, %arg9: memref<32x32xbf16, #tpu.memory_space<vmem>>, %arg10: memref<1x32xf32, #tpu.memory_space<vmem>>, %arg11: memref<1x32xf32, #tpu.memory_space<vmem>>, %arg12: memref<128x32xbf16, #tpu.memory_space<vmem>>, %arg13: memref<1x32xf32, #tpu.memory_space<vmem>>, %arg14: memref<1x32xf32, #tpu.memory_space<vmem>>, %arg15: memref<9x32x32xbf16, #tpu.memory_space<vmem>>, %arg16: memref<1x32xf32, #tpu.memory_space<vmem>>, %arg17: memref<1x32xf32, #tpu.memory_space<vmem>>, %arg18: memref<1x32xf32, #tpu.memory_space<vmem>>, %arg19: memref<1x32xf32, #tpu.memory_space<vmem>>, %arg20: memref<32x1xf32, #tpu.memory_space<vmem>>, %arg21: memref<32x1xf32, #tpu.memory_space<vmem>>, %arg22: memref<32x32xbf16, #tpu.memory_space<vmem>>, %arg23: memref<32x32xbf16, #tpu.memory_space<vmem>>, %arg24: memref<32x1xf32, #tpu.memory_space<vmem>>, %arg25: memref<32x1xf32, #tpu.memory_space<vmem>>, %arg26: memref<1x32x256xf32, #tpu.memory_space<vmem>>) attributes {dimension_semantics = [#tpu.dimension_semantics<parallel>], iteration_bounds = array<i64: 2>, scalar_prefetch = 0 : i64, scratch_operands = 0 : i64, tpu.core_type = #tpu.core_type<tc>, window_params = [{transform_indices = @transform_0, window_bounds = array<i64: 1, 16, 256>}, {pipeline_mode = #tpu.pipeline_mode<synchronous>, transform_indices = @transform_1, window_bounds = array<i64: 32, 16>}, {pipeline_mode = #tpu.pipeline_mode<synchronous>, transform_indices = @transform_2, window_bounds = array<i64: 32, 1>}, {pipeline_mode = #tpu.pipeline_mode<synchronous>, transform_indices = @transform_3, window_bounds = array<i64: 32, 1>}, {pipeline_mode = #tpu.pipeline_mode<synchronous>, transform_indices = @transform_4, window_bounds = array<i64: 32, 16>}, {pipeline_mode = #tpu.pipeline_mode<synchronous>, transform_indices = @transform_5, window_bounds = array<i64: 9, 32, 32>}, {pipeline_mode = #tpu.pipeline_mode<synchronous>, transform_indices = @transform_6, window_bounds = array<i64: 1, 32>}, {pipeline_mode = #tpu.pipeline_mode<synchronous>, transform_indices = @transform_7, window_bounds = array<i64: 1, 32>}, {pipeline_mode = #tpu.pipeline_mode<synchronous>, transform_indices = @transform_8, window_bounds = array<i64: 32, 32>}, {pipeline_mode = #tpu.pipeline_mode<synchronous>, transform_indices = @transform_9, window_bounds = array<i64: 1, 32>}, {pipeline_mode = #tpu.pipeline_mode<synchronous>, transform_indices = @transform_10, window_bounds = array<i64: 1, 32>}, {pipeline_mode = #tpu.pipeline_mode<synchronous>, transform_indices = @transform_11, window_bounds = array<i64: 128, 32>}, {pipeline_mode = #tpu.pipeline_mode<synchronous>, transform_indices = @transform_12, window_bounds = array<i64: 1, 32>}, {pipeline_mode = #tpu.pipeline_mode<synchronous>, transform_indices = @transform_13, window_bounds = array<i64: 1, 32>}, {pipeline_mode = #tpu.pipeline_mode<synchronous>, transform_indices = @transform_14, window_bounds = array<i64: 9, 32, 32>}, {pipeline_mode = #tpu.pipeline_mode<synchronous>, transform_indices = @transform_15, window_bounds = array<i64: 1, 32>}, {pipeline_mode = #tpu.pipeline_mode<synchronous>, transform_indices = @transform_16, window_bounds = array<i64: 1, 32>}, {pipeline_mode = #tpu.pipeline_mode<synchronous>, transform_indices = @transform_17, window_bounds = array<i64: 1, 32>}, {pipeline_mode = #tpu.pipeline_mode<synchronous>, transform_indices = @transform_18, window_bounds = array<i64: 1, 32>}, {pipeline_mode = #tpu.pipeline_mode<synchronous>, transform_indices = @transform_19, window_bounds = array<i64: 32, 1>}, {pipeline_mode = #tpu.pipeline_mode<synchronous>, transform_indices = @transform_20, window_bounds = array<i64: 32, 1>}, {pipeline_mode = #tpu.pipeline_mode<synchronous>, transform_indices = @transform_21, window_bounds = array<i64: 32, 32>}, {pipeline_mode = #tpu.pipeline_mode<synchronous>, transform_indices = @transform_22, window_bounds = array<i64: 32, 32>}, {pipeline_mode = #tpu.pipeline_mode<synchronous>, transform_indices = @transform_23, window_bounds = array<i64: 32, 1>}, {pipeline_mode = #tpu.pipeline_mode<synchronous>, transform_indices = @transform_24, window_bounds = array<i64: 32, 1>}, {transform_indices = @transform_25, window_bounds = array<i64: 1, 32, 256>}]} {
    %c0 = arith.constant 0 : index
    %c0_0 = arith.constant 0 : index
    %c0_1 = arith.constant 0 : index
    %0 = vector.load %arg1[%c0, %c0_0, %c0_1] : memref<1x16x256xbf16, #tpu.memory_space<vmem>>, vector<1x16x256xbf16>
    %1 = vector.shape_cast %0 : vector<1x16x256xbf16> to vector<16x256xbf16>
    %c0_2 = arith.constant 0 : index
    %c0_3 = arith.constant 0 : index
    %2 = vector.load %arg2[%c0_2, %c0_3] : memref<32x16xbf16, #tpu.memory_space<vmem>>, vector<32x16xbf16>
    %cst = arith.constant dense<0.000000e+00> : vector<32x256xf32>
    %3 = tpu.matmul %2, %1, %cst {dimension_numbers = #tpu.dot_dimension_numbers<[1], [0], [0], [1], [0, 0, 1, 1], [], []>} : vector<32x16xbf16>, vector<16x256xbf16>, vector<32x256xf32> -> vector<32x256xf32>
    %c0_4 = arith.constant 0 : index
    %c0_5 = arith.constant 0 : index
    %4 = vector.load %arg3[%c0_4, %c0_5] : memref<32x1xf32, #tpu.memory_space<vmem>>, vector<32x1xf32>
    %5 = vector.broadcast %4 : vector<32x1xf32> to vector<32x256xf32>
    %6 = arith.mulf %3, %5 : vector<32x256xf32>
    %c0_6 = arith.constant 0 : index
    %c0_7 = arith.constant 0 : index
    %7 = vector.load %arg4[%c0_6, %c0_7] : memref<32x1xf32, #tpu.memory_space<vmem>>, vector<32x1xf32>
    %8 = vector.broadcast %7 : vector<32x1xf32> to vector<32x256xf32>
    %9 = arith.addf %6, %8 : vector<32x256xf32>
    %cst_8 = arith.constant 2.000000e+01 : f32
    %10 = vector.broadcast %cst_8 : f32 to vector<32x256xf32>
    %11 = arith.minimumf %9, %10 : vector<32x256xf32>
    %12 = math.exp %11 : vector<32x256xf32>
    %cst_9 = arith.constant 2.000000e+00 : f32
    %13 = vector.broadcast %cst_9 : f32 to vector<32x256xf32>
    %14 = arith.addf %12, %13 : vector<32x256xf32>
    %15 = arith.mulf %12, %14 : vector<32x256xf32>
    %16 = arith.mulf %9, %15 : vector<32x256xf32>
    %cst_10 = arith.constant 2.000000e+00 : f32
    %17 = vector.broadcast %cst_10 : f32 to vector<32x256xf32>
    %18 = arith.addf %15, %17 : vector<32x256xf32>
    %19 = tpu.reciprocal %18 {approx = true} : vector<32x256xf32> -> vector<32x256xf32>
    %20 = arith.mulf %16, %19 : vector<32x256xf32>
    %cst_11 = arith.constant 2.000000e+01 : f32
    %21 = vector.broadcast %cst_11 : f32 to vector<32x256xf32>
    %22 = arith.cmpf ogt, %9, %21 : vector<32x256xf32>
    %23 = arith.select %22, %9, %20 : vector<32x256xi1>, vector<32x256xf32>
    %24 = tpu.transpose %23, [1, 0] : vector<32x256xf32> -> vector<256x32xf32>
    %25 = vector.shape_cast %24 : vector<256x32xf32> to vector<16x16x32xf32>
    %cst_12 = arith.constant 0.000000e+00 : f32
    %26 = vector.broadcast %cst_12 : f32 to vector<1x16x32xf32>
    %27 = vector.extract_strided_slice %25 {offsets = [0, 0, 0], sizes = [15, 16, 32], strides = [1, 1, 1]} : vector<16x16x32xf32> to vector<15x16x32xf32>
    %28 = tpu.concatenate %26, %27 in 0 : vector<1x16x32xf32>, vector<15x16x32xf32> -> vector<16x16x32xf32>
    %cst_13 = arith.constant 0.000000e+00 : f32
    %29 = vector.broadcast %cst_13 : f32 to vector<16x1x32xf32>
    %30 = vector.extract_strided_slice %28 {offsets = [0, 0, 0], sizes = [16, 15, 32], strides = [1, 1, 1]} : vector<16x16x32xf32> to vector<16x15x32xf32>
    %31 = tpu.concatenate %29, %30 in 1 : vector<16x1x32xf32>, vector<16x15x32xf32> -> vector<16x16x32xf32>
    %32 = vector.shape_cast %31 : vector<16x16x32xf32> to vector<256x32xf32>
    %33 = arith.truncf %32 : vector<256x32xf32> to vector<256x32xbf16>
    %c0_14 = arith.constant 0 : index
    %c0_15 = arith.constant 0 : index
    %c0_16 = arith.constant 0 : index
    %34 = vector.load %arg6[%c0_14, %c0_15, %c0_16] : memref<9x32x32xbf16, #tpu.memory_space<vmem>>, vector<1x32x32xbf16>
    %35 = vector.shape_cast %34 : vector<1x32x32xbf16> to vector<32x32xbf16>
    %cst_17 = arith.constant dense<0.000000e+00> : vector<256x32xf32>
    %36 = tpu.matmul %33, %35, %cst_17 {dimension_numbers = #tpu.dot_dimension_numbers<[1], [0], [0], [1], [0, 0, 1, 1], [], []>} : vector<256x32xbf16>, vector<32x32xbf16>, vector<256x32xf32> -> vector<256x32xf32>
    %37 = vector.shape_cast %28 : vector<16x16x32xf32> to vector<256x32xf32>
    %38 = arith.truncf %37 : vector<256x32xf32> to vector<256x32xbf16>
    %c1 = arith.constant 1 : index
    %c0_18 = arith.constant 0 : index
    %c0_19 = arith.constant 0 : index
    %39 = vector.load %arg6[%c1, %c0_18, %c0_19] : memref<9x32x32xbf16, #tpu.memory_space<vmem>>, vector<1x32x32xbf16>
    %40 = vector.shape_cast %39 : vector<1x32x32xbf16> to vector<32x32xbf16>
    %cst_20 = arith.constant dense<0.000000e+00> : vector<256x32xf32>
    %41 = tpu.matmul %38, %40, %cst_20 {dimension_numbers = #tpu.dot_dimension_numbers<[1], [0], [0], [1], [0, 0, 1, 1], [], []>} : vector<256x32xbf16>, vector<32x32xbf16>, vector<256x32xf32> -> vector<256x32xf32>
    %42 = arith.addf %36, %41 : vector<256x32xf32>
    %cst_21 = arith.constant 0.000000e+00 : f32
    %43 = vector.broadcast %cst_21 : f32 to vector<16x1x32xf32>
    %44 = vector.extract_strided_slice %28 {offsets = [0, 1, 0], sizes = [16, 15, 32], strides = [1, 1, 1]} : vector<16x16x32xf32> to vector<16x15x32xf32>
    %45 = tpu.concatenate %44, %43 in 1 : vector<16x15x32xf32>, vector<16x1x32xf32> -> vector<16x16x32xf32>
    %46 = vector.shape_cast %45 : vector<16x16x32xf32> to vector<256x32xf32>
    %47 = arith.truncf %46 : vector<256x32xf32> to vector<256x32xbf16>
    %c2 = arith.constant 2 : index
    %c0_22 = arith.constant 0 : index
    %c0_23 = arith.constant 0 : index
    %48 = vector.load %arg6[%c2, %c0_22, %c0_23] : memref<9x32x32xbf16, #tpu.memory_space<vmem>>, vector<1x32x32xbf16>
    %49 = vector.shape_cast %48 : vector<1x32x32xbf16> to vector<32x32xbf16>
    %cst_24 = arith.constant dense<0.000000e+00> : vector<256x32xf32>
    %50 = tpu.matmul %47, %49, %cst_24 {dimension_numbers = #tpu.dot_dimension_numbers<[1], [0], [0], [1], [0, 0, 1, 1], [], []>} : vector<256x32xbf16>, vector<32x32xbf16>, vector<256x32xf32> -> vector<256x32xf32>
    %51 = arith.addf %42, %50 : vector<256x32xf32>
    %cst_25 = arith.constant 0.000000e+00 : f32
    %52 = vector.broadcast %cst_25 : f32 to vector<16x1x32xf32>
    %53 = vector.extract_strided_slice %25 {offsets = [0, 0, 0], sizes = [16, 15, 32], strides = [1, 1, 1]} : vector<16x16x32xf32> to vector<16x15x32xf32>
    %54 = tpu.concatenate %52, %53 in 1 : vector<16x1x32xf32>, vector<16x15x32xf32> -> vector<16x16x32xf32>
    %55 = vector.shape_cast %54 : vector<16x16x32xf32> to vector<256x32xf32>
    %56 = arith.truncf %55 : vector<256x32xf32> to vector<256x32xbf16>
    %c3 = arith.constant 3 : index
    %c0_26 = arith.constant 0 : index
    %c0_27 = arith.constant 0 : index
    %57 = vector.load %arg6[%c3, %c0_26, %c0_27] : memref<9x32x32xbf16, #tpu.memory_space<vmem>>, vector<1x32x32xbf16>
    %58 = vector.shape_cast %57 : vector<1x32x32xbf16> to vector<32x32xbf16>
    %cst_28 = arith.constant dense<0.000000e+00> : vector<256x32xf32>
    %59 = tpu.matmul %56, %58, %cst_28 {dimension_numbers = #tpu.dot_dimension_numbers<[1], [0], [0], [1], [0, 0, 1, 1], [], []>} : vector<256x32xbf16>, vector<32x32xbf16>, vector<256x32xf32> -> vector<256x32xf32>
    %60 = arith.addf %51, %59 : vector<256x32xf32>
    %61 = vector.shape_cast %25 : vector<16x16x32xf32> to vector<256x32xf32>
    %62 = arith.truncf %61 : vector<256x32xf32> to vector<256x32xbf16>
    %c4 = arith.constant 4 : index
    %c0_29 = arith.constant 0 : index
    %c0_30 = arith.constant 0 : index
    %63 = vector.load %arg6[%c4, %c0_29, %c0_30] : memref<9x32x32xbf16, #tpu.memory_space<vmem>>, vector<1x32x32xbf16>
    %64 = vector.shape_cast %63 : vector<1x32x32xbf16> to vector<32x32xbf16>
    %cst_31 = arith.constant dense<0.000000e+00> : vector<256x32xf32>
    %65 = tpu.matmul %62, %64, %cst_31 {dimension_numbers = #tpu.dot_dimension_numbers<[1], [0], [0], [1], [0, 0, 1, 1], [], []>} : vector<256x32xbf16>, vector<32x32xbf16>, vector<256x32xf32> -> vector<256x32xf32>
    %66 = arith.addf %60, %65 : vector<256x32xf32>
    %cst_32 = arith.constant 0.000000e+00 : f32
    %67 = vector.broadcast %cst_32 : f32 to vector<16x1x32xf32>
    %68 = vector.extract_strided_slice %25 {offsets = [0, 1, 0], sizes = [16, 15, 32], strides = [1, 1, 1]} : vector<16x16x32xf32> to vector<16x15x32xf32>
    %69 = tpu.concatenate %68, %67 in 1 : vector<16x15x32xf32>, vector<16x1x32xf32> -> vector<16x16x32xf32>
    %70 = vector.shape_cast %69 : vector<16x16x32xf32> to vector<256x32xf32>
    %71 = arith.truncf %70 : vector<256x32xf32> to vector<256x32xbf16>
    %c5 = arith.constant 5 : index
    %c0_33 = arith.constant 0 : index
    %c0_34 = arith.constant 0 : index
    %72 = vector.load %arg6[%c5, %c0_33, %c0_34] : memref<9x32x32xbf16, #tpu.memory_space<vmem>>, vector<1x32x32xbf16>
    %73 = vector.shape_cast %72 : vector<1x32x32xbf16> to vector<32x32xbf16>
    %cst_35 = arith.constant dense<0.000000e+00> : vector<256x32xf32>
    %74 = tpu.matmul %71, %73, %cst_35 {dimension_numbers = #tpu.dot_dimension_numbers<[1], [0], [0], [1], [0, 0, 1, 1], [], []>} : vector<256x32xbf16>, vector<32x32xbf16>, vector<256x32xf32> -> vector<256x32xf32>
    %75 = arith.addf %66, %74 : vector<256x32xf32>
    %cst_36 = arith.constant 0.000000e+00 : f32
    %76 = vector.broadcast %cst_36 : f32 to vector<1x16x32xf32>
    %77 = vector.extract_strided_slice %25 {offsets = [1, 0, 0], sizes = [15, 16, 32], strides = [1, 1, 1]} : vector<16x16x32xf32> to vector<15x16x32xf32>
    %78 = tpu.concatenate %77, %76 in 0 : vector<15x16x32xf32>, vector<1x16x32xf32> -> vector<16x16x32xf32>
    %cst_37 = arith.constant 0.000000e+00 : f32
    %79 = vector.broadcast %cst_37 : f32 to vector<16x1x32xf32>
    %80 = vector.extract_strided_slice %78 {offsets = [0, 0, 0], sizes = [16, 15, 32], strides = [1, 1, 1]} : vector<16x16x32xf32> to vector<16x15x32xf32>
    %81 = tpu.concatenate %79, %80 in 1 : vector<16x1x32xf32>, vector<16x15x32xf32> -> vector<16x16x32xf32>
    %82 = vector.shape_cast %81 : vector<16x16x32xf32> to vector<256x32xf32>
    %83 = arith.truncf %82 : vector<256x32xf32> to vector<256x32xbf16>
    %c6 = arith.constant 6 : index
    %c0_38 = arith.constant 0 : index
    %c0_39 = arith.constant 0 : index
    %84 = vector.load %arg6[%c6, %c0_38, %c0_39] : memref<9x32x32xbf16, #tpu.memory_space<vmem>>, vector<1x32x32xbf16>
    %85 = vector.shape_cast %84 : vector<1x32x32xbf16> to vector<32x32xbf16>
    %cst_40 = arith.constant dense<0.000000e+00> : vector<256x32xf32>
    %86 = tpu.matmul %83, %85, %cst_40 {dimension_numbers = #tpu.dot_dimension_numbers<[1], [0], [0], [1], [0, 0, 1, 1], [], []>} : vector<256x32xbf16>, vector<32x32xbf16>, vector<256x32xf32> -> vector<256x32xf32>
    %87 = arith.addf %75, %86 : vector<256x32xf32>
    %88 = vector.shape_cast %78 : vector<16x16x32xf32> to vector<256x32xf32>
    %89 = arith.truncf %88 : vector<256x32xf32> to vector<256x32xbf16>
    %c7 = arith.constant 7 : index
    %c0_41 = arith.constant 0 : index
    %c0_42 = arith.constant 0 : index
    %90 = vector.load %arg6[%c7, %c0_41, %c0_42] : memref<9x32x32xbf16, #tpu.memory_space<vmem>>, vector<1x32x32xbf16>
    %91 = vector.shape_cast %90 : vector<1x32x32xbf16> to vector<32x32xbf16>
    %cst_43 = arith.constant dense<0.000000e+00> : vector<256x32xf32>
    %92 = tpu.matmul %89, %91, %cst_43 {dimension_numbers = #tpu.dot_dimension_numbers<[1], [0], [0], [1], [0, 0, 1, 1], [], []>} : vector<256x32xbf16>, vector<32x32xbf16>, vector<256x32xf32> -> vector<256x32xf32>
    %93 = arith.addf %87, %92 : vector<256x32xf32>
    %cst_44 = arith.constant 0.000000e+00 : f32
    %94 = vector.broadcast %cst_44 : f32 to vector<16x1x32xf32>
    %95 = vector.extract_strided_slice %78 {offsets = [0, 1, 0], sizes = [16, 15, 32], strides = [1, 1, 1]} : vector<16x16x32xf32> to vector<16x15x32xf32>
    %96 = tpu.concatenate %95, %94 in 1 : vector<16x15x32xf32>, vector<16x1x32xf32> -> vector<16x16x32xf32>
    %97 = vector.shape_cast %96 : vector<16x16x32xf32> to vector<256x32xf32>
    %98 = arith.truncf %97 : vector<256x32xf32> to vector<256x32xbf16>
    %c8 = arith.constant 8 : index
    %c0_45 = arith.constant 0 : index
    %c0_46 = arith.constant 0 : index
    %99 = vector.load %arg6[%c8, %c0_45, %c0_46] : memref<9x32x32xbf16, #tpu.memory_space<vmem>>, vector<1x32x32xbf16>
    %100 = vector.shape_cast %99 : vector<1x32x32xbf16> to vector<32x32xbf16>
    %cst_47 = arith.constant dense<0.000000e+00> : vector<256x32xf32>
    %101 = tpu.matmul %98, %100, %cst_47 {dimension_numbers = #tpu.dot_dimension_numbers<[1], [0], [0], [1], [0, 0, 1, 1], [], []>} : vector<256x32xbf16>, vector<32x32xbf16>, vector<256x32xf32> -> vector<256x32xf32>
    %102 = arith.addf %93, %101 : vector<256x32xf32>
    %c0_48 = arith.constant 0 : index
    %c0_49 = arith.constant 0 : index
    %103 = vector.load %arg7[%c0_48, %c0_49] : memref<1x32xf32, #tpu.memory_space<vmem>>, vector<1x32xf32>
    %104 = vector.broadcast %103 : vector<1x32xf32> to vector<256x32xf32>
    %105 = arith.mulf %102, %104 : vector<256x32xf32>
    %c0_50 = arith.constant 0 : index
    %c0_51 = arith.constant 0 : index
    %106 = vector.load %arg8[%c0_50, %c0_51] : memref<1x32xf32, #tpu.memory_space<vmem>>, vector<1x32xf32>
    %107 = vector.broadcast %106 : vector<1x32xf32> to vector<256x32xf32>
    %108 = arith.addf %105, %107 : vector<256x32xf32>
    %cst_52 = arith.constant 2.000000e+01 : f32
    %109 = vector.broadcast %cst_52 : f32 to vector<256x32xf32>
    %110 = arith.minimumf %108, %109 : vector<256x32xf32>
    %111 = math.exp %110 : vector<256x32xf32>
    %cst_53 = arith.constant 2.000000e+00 : f32
    %112 = vector.broadcast %cst_53 : f32 to vector<256x32xf32>
    %113 = arith.addf %111, %112 : vector<256x32xf32>
    %114 = arith.mulf %111, %113 : vector<256x32xf32>
    %115 = arith.mulf %108, %114 : vector<256x32xf32>
    %cst_54 = arith.constant 2.000000e+00 : f32
    %116 = vector.broadcast %cst_54 : f32 to vector<256x32xf32>
    %117 = arith.addf %114, %116 : vector<256x32xf32>
    %118 = tpu.reciprocal %117 {approx = true} : vector<256x32xf32> -> vector<256x32xf32>
    %119 = arith.mulf %115, %118 : vector<256x32xf32>
    %cst_55 = arith.constant 2.000000e+01 : f32
    %120 = vector.broadcast %cst_55 : f32 to vector<256x32xf32>
    %121 = arith.cmpf ogt, %108, %120 : vector<256x32xf32>
    %122 = arith.select %121, %108, %119 : vector<256x32xi1>, vector<256x32xf32>
    %123 = arith.truncf %122 : vector<256x32xf32> to vector<256x32xbf16>
    %c0_56 = arith.constant 0 : index
    %c0_57 = arith.constant 0 : index
    %124 = vector.load %arg9[%c0_56, %c0_57] : memref<32x32xbf16, #tpu.memory_space<vmem>>, vector<32x32xbf16>
    %cst_58 = arith.constant dense<0.000000e+00> : vector<256x32xf32>
    %125 = tpu.matmul %123, %124, %cst_58 {dimension_numbers = #tpu.dot_dimension_numbers<[1], [0], [0], [1], [0, 0, 1, 1], [], []>} : vector<256x32xbf16>, vector<32x32xbf16>, vector<256x32xf32> -> vector<256x32xf32>
    %c0_59 = arith.constant 0 : index
    %c0_60 = arith.constant 0 : index
    %126 = vector.load %arg10[%c0_59, %c0_60] : memref<1x32xf32, #tpu.memory_space<vmem>>, vector<1x32xf32>
    %127 = vector.broadcast %126 : vector<1x32xf32> to vector<256x32xf32>
    %128 = arith.mulf %125, %127 : vector<256x32xf32>
    %c0_61 = arith.constant 0 : index
    %c0_62 = arith.constant 0 : index
    %129 = vector.load %arg11[%c0_61, %c0_62] : memref<1x32xf32, #tpu.memory_space<vmem>>, vector<1x32xf32>
    %130 = vector.broadcast %129 : vector<1x32xf32> to vector<256x32xf32>
    %131 = arith.addf %128, %130 : vector<256x32xf32>
    %cst_63 = arith.constant 2.000000e+01 : f32
    %132 = vector.broadcast %cst_63 : f32 to vector<256x32xf32>
    %133 = arith.minimumf %131, %132 : vector<256x32xf32>
    %134 = math.exp %133 : vector<256x32xf32>
    %cst_64 = arith.constant 2.000000e+00 : f32
    %135 = vector.broadcast %cst_64 : f32 to vector<256x32xf32>
    %136 = arith.addf %134, %135 : vector<256x32xf32>
    %137 = arith.mulf %134, %136 : vector<256x32xf32>
    %138 = arith.mulf %131, %137 : vector<256x32xf32>
    %cst_65 = arith.constant 2.000000e+00 : f32
    %139 = vector.broadcast %cst_65 : f32 to vector<256x32xf32>
    %140 = arith.addf %137, %139 : vector<256x32xf32>
    %141 = tpu.reciprocal %140 {approx = true} : vector<256x32xf32> -> vector<256x32xf32>
    %142 = arith.mulf %138, %141 : vector<256x32xf32>
    %cst_66 = arith.constant 2.000000e+01 : f32
    %143 = vector.broadcast %cst_66 : f32 to vector<256x32xf32>
    %144 = arith.cmpf ogt, %131, %143 : vector<256x32xf32>
    %145 = arith.select %144, %131, %142 : vector<256x32xi1>, vector<256x32xf32>
    %146 = arith.truncf %145 : vector<256x32xf32> to vector<256x32xbf16>
    %c0_67 = arith.constant 0 : index
    %c0_68 = arith.constant 0 : index
    %147 = vector.load %arg12[%c0_67, %c0_68] : memref<128x32xbf16, #tpu.memory_space<vmem>>, vector<32x32xbf16>
    %cst_69 = arith.constant dense<0.000000e+00> : vector<256x32xf32>
    %148 = tpu.matmul %146, %147, %cst_69 {dimension_numbers = #tpu.dot_dimension_numbers<[1], [0], [0], [1], [0, 0, 1, 1], [], []>} : vector<256x32xbf16>, vector<32x32xbf16>, vector<256x32xf32> -> vector<256x32xf32>
    %149 = vector.shape_cast %145 : vector<256x32xf32> to vector<16x16x32xf32>
    %cst_70 = arith.constant 0xFF800000 : f32
    %150 = vector.broadcast %cst_70 : f32 to vector<16x2x32xf32>
    %151 = vector.extract_strided_slice %149 {offsets = [0, 0, 0], sizes = [16, 14, 32], strides = [1, 1, 1]} : vector<16x16x32xf32> to vector<16x14x32xf32>
    %152 = tpu.concatenate %150, %151 in 1 : vector<16x2x32xf32>, vector<16x14x32xf32> -> vector<16x16x32xf32>
    %153 = arith.maximumf %149, %152 : vector<16x16x32xf32>
    %cst_71 = arith.constant 0xFF800000 : f32
    %154 = vector.broadcast %cst_71 : f32 to vector<16x1x32xf32>
    %155 = vector.extract_strided_slice %149 {offsets = [0, 0, 0], sizes = [16, 15, 32], strides = [1, 1, 1]} : vector<16x16x32xf32> to vector<16x15x32xf32>
    %156 = tpu.concatenate %154, %155 in 1 : vector<16x1x32xf32>, vector<16x15x32xf32> -> vector<16x16x32xf32>
    %157 = arith.maximumf %153, %156 : vector<16x16x32xf32>
    %cst_72 = arith.constant 0xFF800000 : f32
    %158 = vector.broadcast %cst_72 : f32 to vector<16x1x32xf32>
    %159 = vector.extract_strided_slice %149 {offsets = [0, 1, 0], sizes = [16, 15, 32], strides = [1, 1, 1]} : vector<16x16x32xf32> to vector<16x15x32xf32>
    %160 = tpu.concatenate %159, %158 in 1 : vector<16x15x32xf32>, vector<16x1x32xf32> -> vector<16x16x32xf32>
    %161 = arith.maximumf %157, %160 : vector<16x16x32xf32>
    %cst_73 = arith.constant 0xFF800000 : f32
    %162 = vector.broadcast %cst_73 : f32 to vector<16x2x32xf32>
    %163 = vector.extract_strided_slice %149 {offsets = [0, 2, 0], sizes = [16, 14, 32], strides = [1, 1, 1]} : vector<16x16x32xf32> to vector<16x14x32xf32>
    %164 = tpu.concatenate %163, %162 in 1 : vector<16x14x32xf32>, vector<16x2x32xf32> -> vector<16x16x32xf32>
    %165 = arith.maximumf %161, %164 : vector<16x16x32xf32>
    %cst_74 = arith.constant 0xFF800000 : f32
    %166 = vector.broadcast %cst_74 : f32 to vector<2x16x32xf32>
    %167 = vector.extract_strided_slice %165 {offsets = [0, 0, 0], sizes = [14, 16, 32], strides = [1, 1, 1]} : vector<16x16x32xf32> to vector<14x16x32xf32>
    %168 = tpu.concatenate %166, %167 in 0 : vector<2x16x32xf32>, vector<14x16x32xf32> -> vector<16x16x32xf32>
    %169 = arith.maximumf %165, %168 : vector<16x16x32xf32>
    %cst_75 = arith.constant 0xFF800000 : f32
    %170 = vector.broadcast %cst_75 : f32 to vector<1x16x32xf32>
    %171 = vector.extract_strided_slice %165 {offsets = [0, 0, 0], sizes = [15, 16, 32], strides = [1, 1, 1]} : vector<16x16x32xf32> to vector<15x16x32xf32>
    %172 = tpu.concatenate %170, %171 in 0 : vector<1x16x32xf32>, vector<15x16x32xf32> -> vector<16x16x32xf32>
    %173 = arith.maximumf %169, %172 : vector<16x16x32xf32>
    %cst_76 = arith.constant 0xFF800000 : f32
    %174 = vector.broadcast %cst_76 : f32 to vector<1x16x32xf32>
    %175 = vector.extract_strided_slice %165 {offsets = [1, 0, 0], sizes = [15, 16, 32], strides = [1, 1, 1]} : vector<16x16x32xf32> to vector<15x16x32xf32>
    %176 = tpu.concatenate %175, %174 in 0 : vector<15x16x32xf32>, vector<1x16x32xf32> -> vector<16x16x32xf32>
    %177 = arith.maximumf %173, %176 : vector<16x16x32xf32>
    %cst_77 = arith.constant 0xFF800000 : f32
    %178 = vector.broadcast %cst_77 : f32 to vector<2x16x32xf32>
    %179 = vector.extract_strided_slice %165 {offsets = [2, 0, 0], sizes = [14, 16, 32], strides = [1, 1, 1]} : vector<16x16x32xf32> to vector<14x16x32xf32>
    %180 = tpu.concatenate %179, %178 in 0 : vector<14x16x32xf32>, vector<2x16x32xf32> -> vector<16x16x32xf32>
    %181 = arith.maximumf %177, %180 : vector<16x16x32xf32>
    %182 = vector.shape_cast %181 : vector<16x16x32xf32> to vector<256x32xf32>
    %183 = arith.truncf %182 : vector<256x32xf32> to vector<256x32xbf16>
    %c32 = arith.constant 32 : index
    %c0_78 = arith.constant 0 : index
    %184 = vector.load %arg12[%c32, %c0_78] : memref<128x32xbf16, #tpu.memory_space<vmem>>, vector<32x32xbf16>
    %cst_79 = arith.constant dense<0.000000e+00> : vector<256x32xf32>
    %185 = tpu.matmul %183, %184, %cst_79 {dimension_numbers = #tpu.dot_dimension_numbers<[1], [0], [0], [1], [0, 0, 1, 1], [], []>} : vector<256x32xbf16>, vector<32x32xbf16>, vector<256x32xf32> -> vector<256x32xf32>
    %186 = arith.addf %148, %185 : vector<256x32xf32>
    %cst_80 = arith.constant 0xFF800000 : f32
    %187 = vector.broadcast %cst_80 : f32 to vector<16x2x32xf32>
    %188 = vector.extract_strided_slice %181 {offsets = [0, 0, 0], sizes = [16, 14, 32], strides = [1, 1, 1]} : vector<16x16x32xf32> to vector<16x14x32xf32>
    %189 = tpu.concatenate %187, %188 in 1 : vector<16x2x32xf32>, vector<16x14x32xf32> -> vector<16x16x32xf32>
    %190 = arith.maximumf %181, %189 : vector<16x16x32xf32>
    %cst_81 = arith.constant 0xFF800000 : f32
    %191 = vector.broadcast %cst_81 : f32 to vector<16x1x32xf32>
    %192 = vector.extract_strided_slice %181 {offsets = [0, 0, 0], sizes = [16, 15, 32], strides = [1, 1, 1]} : vector<16x16x32xf32> to vector<16x15x32xf32>
    %193 = tpu.concatenate %191, %192 in 1 : vector<16x1x32xf32>, vector<16x15x32xf32> -> vector<16x16x32xf32>
    %194 = arith.maximumf %190, %193 : vector<16x16x32xf32>
    %cst_82 = arith.constant 0xFF800000 : f32
    %195 = vector.broadcast %cst_82 : f32 to vector<16x1x32xf32>
    %196 = vector.extract_strided_slice %181 {offsets = [0, 1, 0], sizes = [16, 15, 32], strides = [1, 1, 1]} : vector<16x16x32xf32> to vector<16x15x32xf32>
    %197 = tpu.concatenate %196, %195 in 1 : vector<16x15x32xf32>, vector<16x1x32xf32> -> vector<16x16x32xf32>
    %198 = arith.maximumf %194, %197 : vector<16x16x32xf32>
    %cst_83 = arith.constant 0xFF800000 : f32
    %199 = vector.broadcast %cst_83 : f32 to vector<16x2x32xf32>
    %200 = vector.extract_strided_slice %181 {offsets = [0, 2, 0], sizes = [16, 14, 32], strides = [1, 1, 1]} : vector<16x16x32xf32> to vector<16x14x32xf32>
    %201 = tpu.concatenate %200, %199 in 1 : vector<16x14x32xf32>, vector<16x2x32xf32> -> vector<16x16x32xf32>
    %202 = arith.maximumf %198, %201 : vector<16x16x32xf32>
    %cst_84 = arith.constant 0xFF800000 : f32
    %203 = vector.broadcast %cst_84 : f32 to vector<2x16x32xf32>
    %204 = vector.extract_strided_slice %202 {offsets = [0, 0, 0], sizes = [14, 16, 32], strides = [1, 1, 1]} : vector<16x16x32xf32> to vector<14x16x32xf32>
    %205 = tpu.concatenate %203, %204 in 0 : vector<2x16x32xf32>, vector<14x16x32xf32> -> vector<16x16x32xf32>
    %206 = arith.maximumf %202, %205 : vector<16x16x32xf32>
    %cst_85 = arith.constant 0xFF800000 : f32
    %207 = vector.broadcast %cst_85 : f32 to vector<1x16x32xf32>
    %208 = vector.extract_strided_slice %202 {offsets = [0, 0, 0], sizes = [15, 16, 32], strides = [1, 1, 1]} : vector<16x16x32xf32> to vector<15x16x32xf32>
    %209 = tpu.concatenate %207, %208 in 0 : vector<1x16x32xf32>, vector<15x16x32xf32> -> vector<16x16x32xf32>
    %210 = arith.maximumf %206, %209 : vector<16x16x32xf32>
    %cst_86 = arith.constant 0xFF800000 : f32
    %211 = vector.broadcast %cst_86 : f32 to vector<1x16x32xf32>
    %212 = vector.extract_strided_slice %202 {offsets = [1, 0, 0], sizes = [15, 16, 32], strides = [1, 1, 1]} : vector<16x16x32xf32> to vector<15x16x32xf32>
    %213 = tpu.concatenate %212, %211 in 0 : vector<15x16x32xf32>, vector<1x16x32xf32> -> vector<16x16x32xf32>
    %214 = arith.maximumf %210, %213 : vector<16x16x32xf32>
    %cst_87 = arith.constant 0xFF800000 : f32
    %215 = vector.broadcast %cst_87 : f32 to vector<2x16x32xf32>
    %216 = vector.extract_strided_slice %202 {offsets = [2, 0, 0], sizes = [14, 16, 32], strides = [1, 1, 1]} : vector<16x16x32xf32> to vector<14x16x32xf32>
    %217 = tpu.concatenate %216, %215 in 0 : vector<14x16x32xf32>, vector<2x16x32xf32> -> vector<16x16x32xf32>
    %218 = arith.maximumf %214, %217 : vector<16x16x32xf32>
    %219 = vector.shape_cast %218 : vector<16x16x32xf32> to vector<256x32xf32>
    %220 = arith.truncf %219 : vector<256x32xf32> to vector<256x32xbf16>
    %c64 = arith.constant 64 : index
    %c0_88 = arith.constant 0 : index
    %221 = vector.load %arg12[%c64, %c0_88] : memref<128x32xbf16, #tpu.memory_space<vmem>>, vector<32x32xbf16>
    %cst_89 = arith.constant dense<0.000000e+00> : vector<256x32xf32>
    %222 = tpu.matmul %220, %221, %cst_89 {dimension_numbers = #tpu.dot_dimension_numbers<[1], [0], [0], [1], [0, 0, 1, 1], [], []>} : vector<256x32xbf16>, vector<32x32xbf16>, vector<256x32xf32> -> vector<256x32xf32>
    %223 = arith.addf %186, %222 : vector<256x32xf32>
    %cst_90 = arith.constant 0xFF800000 : f32
    %224 = vector.broadcast %cst_90 : f32 to vector<16x2x32xf32>
    %225 = vector.extract_strided_slice %218 {offsets = [0, 0, 0], sizes = [16, 14, 32], strides = [1, 1, 1]} : vector<16x16x32xf32> to vector<16x14x32xf32>
    %226 = tpu.concatenate %224, %225 in 1 : vector<16x2x32xf32>, vector<16x14x32xf32> -> vector<16x16x32xf32>
    %227 = arith.maximumf %218, %226 : vector<16x16x32xf32>
    %cst_91 = arith.constant 0xFF800000 : f32
    %228 = vector.broadcast %cst_91 : f32 to vector<16x1x32xf32>
    %229 = vector.extract_strided_slice %218 {offsets = [0, 0, 0], sizes = [16, 15, 32], strides = [1, 1, 1]} : vector<16x16x32xf32> to vector<16x15x32xf32>
    %230 = tpu.concatenate %228, %229 in 1 : vector<16x1x32xf32>, vector<16x15x32xf32> -> vector<16x16x32xf32>
    %231 = arith.maximumf %227, %230 : vector<16x16x32xf32>
    %cst_92 = arith.constant 0xFF800000 : f32
    %232 = vector.broadcast %cst_92 : f32 to vector<16x1x32xf32>
    %233 = vector.extract_strided_slice %218 {offsets = [0, 1, 0], sizes = [16, 15, 32], strides = [1, 1, 1]} : vector<16x16x32xf32> to vector<16x15x32xf32>
    %234 = tpu.concatenate %233, %232 in 1 : vector<16x15x32xf32>, vector<16x1x32xf32> -> vector<16x16x32xf32>
    %235 = arith.maximumf %231, %234 : vector<16x16x32xf32>
    %cst_93 = arith.constant 0xFF800000 : f32
    %236 = vector.broadcast %cst_93 : f32 to vector<16x2x32xf32>
    %237 = vector.extract_strided_slice %218 {offsets = [0, 2, 0], sizes = [16, 14, 32], strides = [1, 1, 1]} : vector<16x16x32xf32> to vector<16x14x32xf32>
    %238 = tpu.concatenate %237, %236 in 1 : vector<16x14x32xf32>, vector<16x2x32xf32> -> vector<16x16x32xf32>
    %239 = arith.maximumf %235, %238 : vector<16x16x32xf32>
    %cst_94 = arith.constant 0xFF800000 : f32
    %240 = vector.broadcast %cst_94 : f32 to vector<2x16x32xf32>
    %241 = vector.extract_strided_slice %239 {offsets = [0, 0, 0], sizes = [14, 16, 32], strides = [1, 1, 1]} : vector<16x16x32xf32> to vector<14x16x32xf32>
    %242 = tpu.concatenate %240, %241 in 0 : vector<2x16x32xf32>, vector<14x16x32xf32> -> vector<16x16x32xf32>
    %243 = arith.maximumf %239, %242 : vector<16x16x32xf32>
    %cst_95 = arith.constant 0xFF800000 : f32
    %244 = vector.broadcast %cst_95 : f32 to vector<1x16x32xf32>
    %245 = vector.extract_strided_slice %239 {offsets = [0, 0, 0], sizes = [15, 16, 32], strides = [1, 1, 1]} : vector<16x16x32xf32> to vector<15x16x32xf32>
    %246 = tpu.concatenate %244, %245 in 0 : vector<1x16x32xf32>, vector<15x16x32xf32> -> vector<16x16x32xf32>
    %247 = arith.maximumf %243, %246 : vector<16x16x32xf32>
    %cst_96 = arith.constant 0xFF800000 : f32
    %248 = vector.broadcast %cst_96 : f32 to vector<1x16x32xf32>
    %249 = vector.extract_strided_slice %239 {offsets = [1, 0, 0], sizes = [15, 16, 32], strides = [1, 1, 1]} : vector<16x16x32xf32> to vector<15x16x32xf32>
    %250 = tpu.concatenate %249, %248 in 0 : vector<15x16x32xf32>, vector<1x16x32xf32> -> vector<16x16x32xf32>
    %251 = arith.maximumf %247, %250 : vector<16x16x32xf32>
    %cst_97 = arith.constant 0xFF800000 : f32
    %252 = vector.broadcast %cst_97 : f32 to vector<2x16x32xf32>
    %253 = vector.extract_strided_slice %239 {offsets = [2, 0, 0], sizes = [14, 16, 32], strides = [1, 1, 1]} : vector<16x16x32xf32> to vector<14x16x32xf32>
    %254 = tpu.concatenate %253, %252 in 0 : vector<14x16x32xf32>, vector<2x16x32xf32> -> vector<16x16x32xf32>
    %255 = arith.maximumf %251, %254 : vector<16x16x32xf32>
    %256 = vector.shape_cast %255 : vector<16x16x32xf32> to vector<256x32xf32>
    %257 = arith.truncf %256 : vector<256x32xf32> to vector<256x32xbf16>
    %c96 = arith.constant 96 : index
    %c0_98 = arith.constant 0 : index
    %258 = vector.load %arg12[%c96, %c0_98] : memref<128x32xbf16, #tpu.memory_space<vmem>>, vector<32x32xbf16>
    %cst_99 = arith.constant dense<0.000000e+00> : vector<256x32xf32>
    %259 = tpu.matmul %257, %258, %cst_99 {dimension_numbers = #tpu.dot_dimension_numbers<[1], [0], [0], [1], [0, 0, 1, 1], [], []>} : vector<256x32xbf16>, vector<32x32xbf16>, vector<256x32xf32> -> vector<256x32xf32>
    %260 = arith.addf %223, %259 : vector<256x32xf32>
    %c0_100 = arith.constant 0 : index
    %c0_101 = arith.constant 0 : index
    %261 = vector.load %arg13[%c0_100, %c0_101] : memref<1x32xf32, #tpu.memory_space<vmem>>, vector<1x32xf32>
    %262 = vector.broadcast %261 : vector<1x32xf32> to vector<256x32xf32>
    %263 = arith.mulf %260, %262 : vector<256x32xf32>
    %c0_102 = arith.constant 0 : index
    %c0_103 = arith.constant 0 : index
    %264 = vector.load %arg14[%c0_102, %c0_103] : memref<1x32xf32, #tpu.memory_space<vmem>>, vector<1x32xf32>
    %265 = vector.broadcast %264 : vector<1x32xf32> to vector<256x32xf32>
    %266 = arith.addf %263, %265 : vector<256x32xf32>
    %cst_104 = arith.constant 2.000000e+01 : f32
    %267 = vector.broadcast %cst_104 : f32 to vector<256x32xf32>
    %268 = arith.minimumf %266, %267 : vector<256x32xf32>
    %269 = math.exp %268 : vector<256x32xf32>
    %cst_105 = arith.constant 2.000000e+00 : f32
    %270 = vector.broadcast %cst_105 : f32 to vector<256x32xf32>
    %271 = arith.addf %269, %270 : vector<256x32xf32>
    %272 = arith.mulf %269, %271 : vector<256x32xf32>
    %273 = arith.mulf %266, %272 : vector<256x32xf32>
    %cst_106 = arith.constant 2.000000e+00 : f32
    %274 = vector.broadcast %cst_106 : f32 to vector<256x32xf32>
    %275 = arith.addf %272, %274 : vector<256x32xf32>
    %276 = tpu.reciprocal %275 {approx = true} : vector<256x32xf32> -> vector<256x32xf32>
    %277 = arith.mulf %273, %276 : vector<256x32xf32>
    %cst_107 = arith.constant 2.000000e+01 : f32
    %278 = vector.broadcast %cst_107 : f32 to vector<256x32xf32>
    %279 = arith.cmpf ogt, %266, %278 : vector<256x32xf32>
    %280 = arith.select %279, %266, %277 : vector<256x32xi1>, vector<256x32xf32>
    %281 = vector.shape_cast %280 : vector<256x32xf32> to vector<16x16x32xf32>
    %cst_108 = arith.constant 0.000000e+00 : f32
    %282 = vector.broadcast %cst_108 : f32 to vector<1x16x32xf32>
    %283 = vector.extract_strided_slice %281 {offsets = [0, 0, 0], sizes = [15, 16, 32], strides = [1, 1, 1]} : vector<16x16x32xf32> to vector<15x16x32xf32>
    %284 = tpu.concatenate %282, %283 in 0 : vector<1x16x32xf32>, vector<15x16x32xf32> -> vector<16x16x32xf32>
    %cst_109 = arith.constant 0.000000e+00 : f32
    %285 = vector.broadcast %cst_109 : f32 to vector<16x1x32xf32>
    %286 = vector.extract_strided_slice %284 {offsets = [0, 0, 0], sizes = [16, 15, 32], strides = [1, 1, 1]} : vector<16x16x32xf32> to vector<16x15x32xf32>
    %287 = tpu.concatenate %285, %286 in 1 : vector<16x1x32xf32>, vector<16x15x32xf32> -> vector<16x16x32xf32>
    %288 = vector.shape_cast %287 : vector<16x16x32xf32> to vector<256x32xf32>
    %289 = arith.truncf %288 : vector<256x32xf32> to vector<256x32xbf16>
    %c0_110 = arith.constant 0 : index
    %c0_111 = arith.constant 0 : index
    %c0_112 = arith.constant 0 : index
    %290 = vector.load %arg15[%c0_110, %c0_111, %c0_112] : memref<9x32x32xbf16, #tpu.memory_space<vmem>>, vector<1x32x32xbf16>
    %291 = vector.shape_cast %290 : vector<1x32x32xbf16> to vector<32x32xbf16>
    %cst_113 = arith.constant dense<0.000000e+00> : vector<256x32xf32>
    %292 = tpu.matmul %289, %291, %cst_113 {dimension_numbers = #tpu.dot_dimension_numbers<[1], [0], [0], [1], [0, 0, 1, 1], [], []>} : vector<256x32xbf16>, vector<32x32xbf16>, vector<256x32xf32> -> vector<256x32xf32>
    %293 = vector.shape_cast %284 : vector<16x16x32xf32> to vector<256x32xf32>
    %294 = arith.truncf %293 : vector<256x32xf32> to vector<256x32xbf16>
    %c1_114 = arith.constant 1 : index
    %c0_115 = arith.constant 0 : index
    %c0_116 = arith.constant 0 : index
    %295 = vector.load %arg15[%c1_114, %c0_115, %c0_116] : memref<9x32x32xbf16, #tpu.memory_space<vmem>>, vector<1x32x32xbf16>
    %296 = vector.shape_cast %295 : vector<1x32x32xbf16> to vector<32x32xbf16>
    %cst_117 = arith.constant dense<0.000000e+00> : vector<256x32xf32>
    %297 = tpu.matmul %294, %296, %cst_117 {dimension_numbers = #tpu.dot_dimension_numbers<[1], [0], [0], [1], [0, 0, 1, 1], [], []>} : vector<256x32xbf16>, vector<32x32xbf16>, vector<256x32xf32> -> vector<256x32xf32>
    %298 = arith.addf %292, %297 : vector<256x32xf32>
    %cst_118 = arith.constant 0.000000e+00 : f32
    %299 = vector.broadcast %cst_118 : f32 to vector<16x1x32xf32>
    %300 = vector.extract_strided_slice %284 {offsets = [0, 1, 0], sizes = [16, 15, 32], strides = [1, 1, 1]} : vector<16x16x32xf32> to vector<16x15x32xf32>
    %301 = tpu.concatenate %300, %299 in 1 : vector<16x15x32xf32>, vector<16x1x32xf32> -> vector<16x16x32xf32>
    %302 = vector.shape_cast %301 : vector<16x16x32xf32> to vector<256x32xf32>
    %303 = arith.truncf %302 : vector<256x32xf32> to vector<256x32xbf16>
    %c2_119 = arith.constant 2 : index
    %c0_120 = arith.constant 0 : index
    %c0_121 = arith.constant 0 : index
    %304 = vector.load %arg15[%c2_119, %c0_120, %c0_121] : memref<9x32x32xbf16, #tpu.memory_space<vmem>>, vector<1x32x32xbf16>
    %305 = vector.shape_cast %304 : vector<1x32x32xbf16> to vector<32x32xbf16>
    %cst_122 = arith.constant dense<0.000000e+00> : vector<256x32xf32>
    %306 = tpu.matmul %303, %305, %cst_122 {dimension_numbers = #tpu.dot_dimension_numbers<[1], [0], [0], [1], [0, 0, 1, 1], [], []>} : vector<256x32xbf16>, vector<32x32xbf16>, vector<256x32xf32> -> vector<256x32xf32>
    %307 = arith.addf %298, %306 : vector<256x32xf32>
    %cst_123 = arith.constant 0.000000e+00 : f32
    %308 = vector.broadcast %cst_123 : f32 to vector<16x1x32xf32>
    %309 = vector.extract_strided_slice %281 {offsets = [0, 0, 0], sizes = [16, 15, 32], strides = [1, 1, 1]} : vector<16x16x32xf32> to vector<16x15x32xf32>
    %310 = tpu.concatenate %308, %309 in 1 : vector<16x1x32xf32>, vector<16x15x32xf32> -> vector<16x16x32xf32>
    %311 = vector.shape_cast %310 : vector<16x16x32xf32> to vector<256x32xf32>
    %312 = arith.truncf %311 : vector<256x32xf32> to vector<256x32xbf16>
    %c3_124 = arith.constant 3 : index
    %c0_125 = arith.constant 0 : index
    %c0_126 = arith.constant 0 : index
    %313 = vector.load %arg15[%c3_124, %c0_125, %c0_126] : memref<9x32x32xbf16, #tpu.memory_space<vmem>>, vector<1x32x32xbf16>
    %314 = vector.shape_cast %313 : vector<1x32x32xbf16> to vector<32x32xbf16>
    %cst_127 = arith.constant dense<0.000000e+00> : vector<256x32xf32>
    %315 = tpu.matmul %312, %314, %cst_127 {dimension_numbers = #tpu.dot_dimension_numbers<[1], [0], [0], [1], [0, 0, 1, 1], [], []>} : vector<256x32xbf16>, vector<32x32xbf16>, vector<256x32xf32> -> vector<256x32xf32>
    %316 = arith.addf %307, %315 : vector<256x32xf32>
    %317 = vector.shape_cast %281 : vector<16x16x32xf32> to vector<256x32xf32>
    %318 = arith.truncf %317 : vector<256x32xf32> to vector<256x32xbf16>
    %c4_128 = arith.constant 4 : index
    %c0_129 = arith.constant 0 : index
    %c0_130 = arith.constant 0 : index
    %319 = vector.load %arg15[%c4_128, %c0_129, %c0_130] : memref<9x32x32xbf16, #tpu.memory_space<vmem>>, vector<1x32x32xbf16>
    %320 = vector.shape_cast %319 : vector<1x32x32xbf16> to vector<32x32xbf16>
    %cst_131 = arith.constant dense<0.000000e+00> : vector<256x32xf32>
    %321 = tpu.matmul %318, %320, %cst_131 {dimension_numbers = #tpu.dot_dimension_numbers<[1], [0], [0], [1], [0, 0, 1, 1], [], []>} : vector<256x32xbf16>, vector<32x32xbf16>, vector<256x32xf32> -> vector<256x32xf32>
    %322 = arith.addf %316, %321 : vector<256x32xf32>
    %cst_132 = arith.constant 0.000000e+00 : f32
    %323 = vector.broadcast %cst_132 : f32 to vector<16x1x32xf32>
    %324 = vector.extract_strided_slice %281 {offsets = [0, 1, 0], sizes = [16, 15, 32], strides = [1, 1, 1]} : vector<16x16x32xf32> to vector<16x15x32xf32>
    %325 = tpu.concatenate %324, %323 in 1 : vector<16x15x32xf32>, vector<16x1x32xf32> -> vector<16x16x32xf32>
    %326 = vector.shape_cast %325 : vector<16x16x32xf32> to vector<256x32xf32>
    %327 = arith.truncf %326 : vector<256x32xf32> to vector<256x32xbf16>
    %c5_133 = arith.constant 5 : index
    %c0_134 = arith.constant 0 : index
    %c0_135 = arith.constant 0 : index
    %328 = vector.load %arg15[%c5_133, %c0_134, %c0_135] : memref<9x32x32xbf16, #tpu.memory_space<vmem>>, vector<1x32x32xbf16>
    %329 = vector.shape_cast %328 : vector<1x32x32xbf16> to vector<32x32xbf16>
    %cst_136 = arith.constant dense<0.000000e+00> : vector<256x32xf32>
    %330 = tpu.matmul %327, %329, %cst_136 {dimension_numbers = #tpu.dot_dimension_numbers<[1], [0], [0], [1], [0, 0, 1, 1], [], []>} : vector<256x32xbf16>, vector<32x32xbf16>, vector<256x32xf32> -> vector<256x32xf32>
    %331 = arith.addf %322, %330 : vector<256x32xf32>
    %cst_137 = arith.constant 0.000000e+00 : f32
    %332 = vector.broadcast %cst_137 : f32 to vector<1x16x32xf32>
    %333 = vector.extract_strided_slice %281 {offsets = [1, 0, 0], sizes = [15, 16, 32], strides = [1, 1, 1]} : vector<16x16x32xf32> to vector<15x16x32xf32>
    %334 = tpu.concatenate %333, %332 in 0 : vector<15x16x32xf32>, vector<1x16x32xf32> -> vector<16x16x32xf32>
    %cst_138 = arith.constant 0.000000e+00 : f32
    %335 = vector.broadcast %cst_138 : f32 to vector<16x1x32xf32>
    %336 = vector.extract_strided_slice %334 {offsets = [0, 0, 0], sizes = [16, 15, 32], strides = [1, 1, 1]} : vector<16x16x32xf32> to vector<16x15x32xf32>
    %337 = tpu.concatenate %335, %336 in 1 : vector<16x1x32xf32>, vector<16x15x32xf32> -> vector<16x16x32xf32>
    %338 = vector.shape_cast %337 : vector<16x16x32xf32> to vector<256x32xf32>
    %339 = arith.truncf %338 : vector<256x32xf32> to vector<256x32xbf16>
    %c6_139 = arith.constant 6 : index
    %c0_140 = arith.constant 0 : index
    %c0_141 = arith.constant 0 : index
    %340 = vector.load %arg15[%c6_139, %c0_140, %c0_141] : memref<9x32x32xbf16, #tpu.memory_space<vmem>>, vector<1x32x32xbf16>
    %341 = vector.shape_cast %340 : vector<1x32x32xbf16> to vector<32x32xbf16>
    %cst_142 = arith.constant dense<0.000000e+00> : vector<256x32xf32>
    %342 = tpu.matmul %339, %341, %cst_142 {dimension_numbers = #tpu.dot_dimension_numbers<[1], [0], [0], [1], [0, 0, 1, 1], [], []>} : vector<256x32xbf16>, vector<32x32xbf16>, vector<256x32xf32> -> vector<256x32xf32>
    %343 = arith.addf %331, %342 : vector<256x32xf32>
    %344 = vector.shape_cast %334 : vector<16x16x32xf32> to vector<256x32xf32>
    %345 = arith.truncf %344 : vector<256x32xf32> to vector<256x32xbf16>
    %c7_143 = arith.constant 7 : index
    %c0_144 = arith.constant 0 : index
    %c0_145 = arith.constant 0 : index
    %346 = vector.load %arg15[%c7_143, %c0_144, %c0_145] : memref<9x32x32xbf16, #tpu.memory_space<vmem>>, vector<1x32x32xbf16>
    %347 = vector.shape_cast %346 : vector<1x32x32xbf16> to vector<32x32xbf16>
    %cst_146 = arith.constant dense<0.000000e+00> : vector<256x32xf32>
    %348 = tpu.matmul %345, %347, %cst_146 {dimension_numbers = #tpu.dot_dimension_numbers<[1], [0], [0], [1], [0, 0, 1, 1], [], []>} : vector<256x32xbf16>, vector<32x32xbf16>, vector<256x32xf32> -> vector<256x32xf32>
    %349 = arith.addf %343, %348 : vector<256x32xf32>
    %cst_147 = arith.constant 0.000000e+00 : f32
    %350 = vector.broadcast %cst_147 : f32 to vector<16x1x32xf32>
    %351 = vector.extract_strided_slice %334 {offsets = [0, 1, 0], sizes = [16, 15, 32], strides = [1, 1, 1]} : vector<16x16x32xf32> to vector<16x15x32xf32>
    %352 = tpu.concatenate %351, %350 in 1 : vector<16x15x32xf32>, vector<16x1x32xf32> -> vector<16x16x32xf32>
    %353 = vector.shape_cast %352 : vector<16x16x32xf32> to vector<256x32xf32>
    %354 = arith.truncf %353 : vector<256x32xf32> to vector<256x32xbf16>
    %c8_148 = arith.constant 8 : index
    %c0_149 = arith.constant 0 : index
    %c0_150 = arith.constant 0 : index
    %355 = vector.load %arg15[%c8_148, %c0_149, %c0_150] : memref<9x32x32xbf16, #tpu.memory_space<vmem>>, vector<1x32x32xbf16>
    %356 = vector.shape_cast %355 : vector<1x32x32xbf16> to vector<32x32xbf16>
    %cst_151 = arith.constant dense<0.000000e+00> : vector<256x32xf32>
    %357 = tpu.matmul %354, %356, %cst_151 {dimension_numbers = #tpu.dot_dimension_numbers<[1], [0], [0], [1], [0, 0, 1, 1], [], []>} : vector<256x32xbf16>, vector<32x32xbf16>, vector<256x32xf32> -> vector<256x32xf32>
    %358 = arith.addf %349, %357 : vector<256x32xf32>
    %c0_152 = arith.constant 0 : index
    %c0_153 = arith.constant 0 : index
    %359 = vector.load %arg16[%c0_152, %c0_153] : memref<1x32xf32, #tpu.memory_space<vmem>>, vector<1x32xf32>
    %360 = vector.broadcast %359 : vector<1x32xf32> to vector<256x32xf32>
    %361 = arith.mulf %358, %360 : vector<256x32xf32>
    %c0_154 = arith.constant 0 : index
    %c0_155 = arith.constant 0 : index
    %362 = vector.load %arg17[%c0_154, %c0_155] : memref<1x32xf32, #tpu.memory_space<vmem>>, vector<1x32xf32>
    %363 = vector.broadcast %362 : vector<1x32xf32> to vector<256x32xf32>
    %364 = arith.addf %361, %363 : vector<256x32xf32>
    %cst_156 = arith.constant 2.000000e+01 : f32
    %365 = vector.broadcast %cst_156 : f32 to vector<256x32xf32>
    %366 = arith.minimumf %364, %365 : vector<256x32xf32>
    %367 = math.exp %366 : vector<256x32xf32>
    %cst_157 = arith.constant 2.000000e+00 : f32
    %368 = vector.broadcast %cst_157 : f32 to vector<256x32xf32>
    %369 = arith.addf %367, %368 : vector<256x32xf32>
    %370 = arith.mulf %367, %369 : vector<256x32xf32>
    %371 = arith.mulf %364, %370 : vector<256x32xf32>
    %cst_158 = arith.constant 2.000000e+00 : f32
    %372 = vector.broadcast %cst_158 : f32 to vector<256x32xf32>
    %373 = arith.addf %370, %372 : vector<256x32xf32>
    %374 = tpu.reciprocal %373 {approx = true} : vector<256x32xf32> -> vector<256x32xf32>
    %375 = arith.mulf %371, %374 : vector<256x32xf32>
    %cst_159 = arith.constant 2.000000e+01 : f32
    %376 = vector.broadcast %cst_159 : f32 to vector<256x32xf32>
    %377 = arith.cmpf ogt, %364, %376 : vector<256x32xf32>
    %378 = arith.select %377, %364, %375 : vector<256x32xi1>, vector<256x32xf32>
    %c0_160 = arith.constant 0 : index
    %c0_161 = arith.constant 0 : index
    %379 = vector.load %arg5[%c0_160, %c0_161] : memref<32x16xbf16, #tpu.memory_space<vmem>>, vector<32x16xbf16>
    %cst_162 = arith.constant dense<0.000000e+00> : vector<32x256xf32>
    %380 = tpu.matmul %379, %1, %cst_162 {dimension_numbers = #tpu.dot_dimension_numbers<[1], [0], [0], [1], [0, 0, 1, 1], [], []>} : vector<32x16xbf16>, vector<16x256xbf16>, vector<32x256xf32> -> vector<32x256xf32>
    %c0_163 = arith.constant 0 : index
    %c0_164 = arith.constant 0 : index
    %381 = vector.load %arg18[%c0_163, %c0_164] : memref<1x32xf32, #tpu.memory_space<vmem>>, vector<1x32xf32>
    %382 = vector.broadcast %381 : vector<1x32xf32> to vector<256x32xf32>
    %383 = arith.mulf %378, %382 : vector<256x32xf32>
    %c0_165 = arith.constant 0 : index
    %c0_166 = arith.constant 0 : index
    %384 = vector.load %arg19[%c0_165, %c0_166] : memref<1x32xf32, #tpu.memory_space<vmem>>, vector<1x32xf32>
    %385 = vector.broadcast %384 : vector<1x32xf32> to vector<256x32xf32>
    %386 = arith.addf %383, %385 : vector<256x32xf32>
    %cst_167 = arith.constant 2.000000e+01 : f32
    %387 = vector.broadcast %cst_167 : f32 to vector<256x32xf32>
    %388 = arith.minimumf %386, %387 : vector<256x32xf32>
    %389 = math.exp %388 : vector<256x32xf32>
    %cst_168 = arith.constant 2.000000e+00 : f32
    %390 = vector.broadcast %cst_168 : f32 to vector<256x32xf32>
    %391 = arith.addf %389, %390 : vector<256x32xf32>
    %392 = arith.mulf %389, %391 : vector<256x32xf32>
    %393 = arith.mulf %386, %392 : vector<256x32xf32>
    %cst_169 = arith.constant 2.000000e+00 : f32
    %394 = vector.broadcast %cst_169 : f32 to vector<256x32xf32>
    %395 = arith.addf %392, %394 : vector<256x32xf32>
    %396 = tpu.reciprocal %395 {approx = true} : vector<256x32xf32> -> vector<256x32xf32>
    %397 = arith.mulf %393, %396 : vector<256x32xf32>
    %cst_170 = arith.constant 2.000000e+01 : f32
    %398 = vector.broadcast %cst_170 : f32 to vector<256x32xf32>
    %399 = arith.cmpf ogt, %386, %398 : vector<256x32xf32>
    %400 = arith.select %399, %386, %397 : vector<256x32xi1>, vector<256x32xf32>
    %c0_171 = arith.constant 0 : index
    %c0_172 = arith.constant 0 : index
    %401 = vector.load %arg20[%c0_171, %c0_172] : memref<32x1xf32, #tpu.memory_space<vmem>>, vector<32x1xf32>
    %402 = vector.broadcast %401 : vector<32x1xf32> to vector<32x256xf32>
    %403 = arith.mulf %380, %402 : vector<32x256xf32>
    %c0_173 = arith.constant 0 : index
    %c0_174 = arith.constant 0 : index
    %404 = vector.load %arg21[%c0_173, %c0_174] : memref<32x1xf32, #tpu.memory_space<vmem>>, vector<32x1xf32>
    %405 = vector.broadcast %404 : vector<32x1xf32> to vector<32x256xf32>
    %406 = arith.addf %403, %405 : vector<32x256xf32>
    %cst_175 = arith.constant 2.000000e+01 : f32
    %407 = vector.broadcast %cst_175 : f32 to vector<32x256xf32>
    %408 = arith.minimumf %406, %407 : vector<32x256xf32>
    %409 = math.exp %408 : vector<32x256xf32>
    %cst_176 = arith.constant 2.000000e+00 : f32
    %410 = vector.broadcast %cst_176 : f32 to vector<32x256xf32>
    %411 = arith.addf %409, %410 : vector<32x256xf32>
    %412 = arith.mulf %409, %411 : vector<32x256xf32>
    %413 = arith.mulf %406, %412 : vector<32x256xf32>
    %cst_177 = arith.constant 2.000000e+00 : f32
    %414 = vector.broadcast %cst_177 : f32 to vector<32x256xf32>
    %415 = arith.addf %412, %414 : vector<32x256xf32>
    %416 = tpu.reciprocal %415 {approx = true} : vector<32x256xf32> -> vector<32x256xf32>
    %417 = arith.mulf %413, %416 : vector<32x256xf32>
    %cst_178 = arith.constant 2.000000e+01 : f32
    %418 = vector.broadcast %cst_178 : f32 to vector<32x256xf32>
    %419 = arith.cmpf ogt, %406, %418 : vector<32x256xf32>
    %420 = arith.select %419, %406, %417 : vector<32x256xi1>, vector<32x256xf32>
    %421 = tpu.transpose %400, [1, 0] : vector<256x32xf32> -> vector<32x256xf32>
    %c0_179 = arith.constant 0 : index
    %c0_180 = arith.constant 0 : index
    %422 = vector.load %arg22[%c0_179, %c0_180] : memref<32x32xbf16, #tpu.memory_space<vmem>>, vector<32x32xbf16>
    %423 = arith.truncf %421 : vector<32x256xf32> to vector<32x256xbf16>
    %cst_181 = arith.constant dense<0.000000e+00> : vector<32x256xf32>
    %424 = tpu.matmul %422, %423, %cst_181 {dimension_numbers = #tpu.dot_dimension_numbers<[1], [0], [0], [1], [0, 0, 1, 1], [], []>} : vector<32x32xbf16>, vector<32x256xbf16>, vector<32x256xf32> -> vector<32x256xf32>
    %c0_182 = arith.constant 0 : index
    %c0_183 = arith.constant 0 : index
    %425 = vector.load %arg23[%c0_182, %c0_183] : memref<32x32xbf16, #tpu.memory_space<vmem>>, vector<32x32xbf16>
    %426 = arith.truncf %420 : vector<32x256xf32> to vector<32x256xbf16>
    %cst_184 = arith.constant dense<0.000000e+00> : vector<32x256xf32>
    %427 = tpu.matmul %425, %426, %cst_184 {dimension_numbers = #tpu.dot_dimension_numbers<[1], [0], [0], [1], [0, 0, 1, 1], [], []>} : vector<32x32xbf16>, vector<32x256xbf16>, vector<32x256xf32> -> vector<32x256xf32>
    %428 = arith.addf %424, %427 : vector<32x256xf32>
    %c0_185 = arith.constant 0 : index
    %c0_186 = arith.constant 0 : index
    %429 = vector.load %arg24[%c0_185, %c0_186] : memref<32x1xf32, #tpu.memory_space<vmem>>, vector<32x1xf32>
    %430 = vector.broadcast %429 : vector<32x1xf32> to vector<32x256xf32>
    %431 = arith.mulf %428, %430 : vector<32x256xf32>
    %c0_187 = arith.constant 0 : index
    %c0_188 = arith.constant 0 : index
    %432 = vector.load %arg25[%c0_187, %c0_188] : memref<32x1xf32, #tpu.memory_space<vmem>>, vector<32x1xf32>
    %433 = vector.broadcast %432 : vector<32x1xf32> to vector<32x256xf32>
    %434 = arith.addf %431, %433 : vector<32x256xf32>
    %cst_189 = arith.constant 2.000000e+01 : f32
    %435 = vector.broadcast %cst_189 : f32 to vector<32x256xf32>
    %436 = arith.minimumf %434, %435 : vector<32x256xf32>
    %437 = math.exp %436 : vector<32x256xf32>
    %cst_190 = arith.constant 2.000000e+00 : f32
    %438 = vector.broadcast %cst_190 : f32 to vector<32x256xf32>
    %439 = arith.addf %437, %438 : vector<32x256xf32>
    %440 = arith.mulf %437, %439 : vector<32x256xf32>
    %441 = arith.mulf %434, %440 : vector<32x256xf32>
    %cst_191 = arith.constant 2.000000e+00 : f32
    %442 = vector.broadcast %cst_191 : f32 to vector<32x256xf32>
    %443 = arith.addf %440, %442 : vector<32x256xf32>
    %444 = tpu.reciprocal %443 {approx = true} : vector<32x256xf32> -> vector<32x256xf32>
    %445 = arith.mulf %441, %444 : vector<32x256xf32>
    %cst_192 = arith.constant 2.000000e+01 : f32
    %446 = vector.broadcast %cst_192 : f32 to vector<32x256xf32>
    %447 = arith.cmpf ogt, %434, %446 : vector<32x256xf32>
    %448 = arith.select %447, %434, %445 : vector<32x256xi1>, vector<32x256xf32>
    %c0_193 = arith.constant 0 : index
    %c0_194 = arith.constant 0 : index
    %c0_195 = arith.constant 0 : index
    %449 = vector.load %arg26[%c0_193, %c0_194, %c0_195] : memref<1x32x256xf32, #tpu.memory_space<vmem>>, vector<1x32x256xf32>
    %450 = vector.shape_cast %449 : vector<1x32x256xf32> to vector<32x256xf32>
    %451 = vector.shape_cast %448 : vector<32x256xf32> to vector<1x32x256xf32>
    tpu.vector_store %arg26[%c0_193, %c0_194, %c0_195], %451 {strides = array<i32>} : memref<1x32x256xf32, #tpu.memory_space<vmem>>, vector<1x32x256xf32>,
    return
  }
  func.func @transform_0(%arg0: i32) -> (i32, i32, i32) {
    %c0_i32 = arith.constant 0 : i32
    %c0_i32_0 = arith.constant 0 : i32
    %c0_i32_1 = arith.constant 0 : i32
    return %arg0, %c0_i32, %c0_i32_0 : i32, i32, i32
  }
  func.func @transform_1(%arg0: i32) -> (i32, i32) {
    %c0_i32 = arith.constant 0 : i32
    %c0_i32_0 = arith.constant 0 : i32
    %c0_i32_1 = arith.constant 0 : i32
    return %c0_i32, %c0_i32_0 : i32, i32
  }
  func.func @transform_2(%arg0: i32) -> (i32, i32) {
    %c0_i32 = arith.constant 0 : i32
    %c0_i32_0 = arith.constant 0 : i32
    %c0_i32_1 = arith.constant 0 : i32
    return %c0_i32, %c0_i32_0 : i32, i32
  }
  func.func @transform_3(%arg0: i32) -> (i32, i32) {
    %c0_i32 = arith.constant 0 : i32
    %c0_i32_0 = arith.constant 0 : i32
    %c0_i32_1 = arith.constant 0 : i32
    return %c0_i32, %c0_i32_0 : i32, i32
  }
  func.func @transform_4(%arg0: i32) -> (i32, i32) {
    %c0_i32 = arith.constant 0 : i32
    %c0_i32_0 = arith.constant 0 : i32
    %c0_i32_1 = arith.constant 0 : i32
    return %c0_i32, %c0_i32_0 : i32, i32
  }
  func.func @transform_5(%arg0: i32) -> (i32, i32, i32) {
    %c0_i32 = arith.constant 0 : i32
    %c0_i32_0 = arith.constant 0 : i32
    %c0_i32_1 = arith.constant 0 : i32
    %c0_i32_2 = arith.constant 0 : i32
    return %c0_i32, %c0_i32_0, %c0_i32_1 : i32, i32, i32
  }
  func.func @transform_6(%arg0: i32) -> (i32, i32) {
    %c0_i32 = arith.constant 0 : i32
    %c0_i32_0 = arith.constant 0 : i32
    %c0_i32_1 = arith.constant 0 : i32
    return %c0_i32, %c0_i32_0 : i32, i32
  }
  func.func @transform_7(%arg0: i32) -> (i32, i32) {
    %c0_i32 = arith.constant 0 : i32
    %c0_i32_0 = arith.constant 0 : i32
    %c0_i32_1 = arith.constant 0 : i32
    return %c0_i32, %c0_i32_0 : i32, i32
  }
  func.func @transform_8(%arg0: i32) -> (i32, i32) {
    %c0_i32 = arith.constant 0 : i32
    %c0_i32_0 = arith.constant 0 : i32
    %c0_i32_1 = arith.constant 0 : i32
    return %c0_i32, %c0_i32_0 : i32, i32
  }
  func.func @transform_9(%arg0: i32) -> (i32, i32) {
    %c0_i32 = arith.constant 0 : i32
    %c0_i32_0 = arith.constant 0 : i32
    %c0_i32_1 = arith.constant 0 : i32
    return %c0_i32, %c0_i32_0 : i32, i32
  }
  func.func @transform_10(%arg0: i32) -> (i32, i32) {
    %c0_i32 = arith.constant 0 : i32
    %c0_i32_0 = arith.constant 0 : i32
    %c0_i32_1 = arith.constant 0 : i32
    return %c0_i32, %c0_i32_0 : i32, i32
  }
  func.func @transform_11(%arg0: i32) -> (i32, i32) {
    %c0_i32 = arith.constant 0 : i32
    %c0_i32_0 = arith.constant 0 : i32
    %c0_i32_1 = arith.constant 0 : i32
    return %c0_i32, %c0_i32_0 : i32, i32
  }
  func.func @transform_12(%arg0: i32) -> (i32, i32) {
    %c0_i32 = arith.constant 0 : i32
    %c0_i32_0 = arith.constant 0 : i32
    %c0_i32_1 = arith.constant 0 : i32
    return %c0_i32, %c0_i32_0 : i32, i32
  }
  func.func @transform_13(%arg0: i32) -> (i32, i32) {
    %c0_i32 = arith.constant 0 : i32
    %c0_i32_0 = arith.constant 0 : i32
    %c0_i32_1 = arith.constant 0 : i32
    return %c0_i32, %c0_i32_0 : i32, i32
  }
  func.func @transform_14(%arg0: i32) -> (i32, i32, i32) {
    %c0_i32 = arith.constant 0 : i32
    %c0_i32_0 = arith.constant 0 : i32
    %c0_i32_1 = arith.constant 0 : i32
    %c0_i32_2 = arith.constant 0 : i32
    return %c0_i32, %c0_i32_0, %c0_i32_1 : i32, i32, i32
  }
  func.func @transform_15(%arg0: i32) -> (i32, i32) {
    %c0_i32 = arith.constant 0 : i32
    %c0_i32_0 = arith.constant 0 : i32
    %c0_i32_1 = arith.constant 0 : i32
    return %c0_i32, %c0_i32_0 : i32, i32
  }
  func.func @transform_16(%arg0: i32) -> (i32, i32) {
    %c0_i32 = arith.constant 0 : i32
    %c0_i32_0 = arith.constant 0 : i32
    %c0_i32_1 = arith.constant 0 : i32
    return %c0_i32, %c0_i32_0 : i32, i32
  }
  func.func @transform_17(%arg0: i32) -> (i32, i32) {
    %c0_i32 = arith.constant 0 : i32
    %c0_i32_0 = arith.constant 0 : i32
    %c0_i32_1 = arith.constant 0 : i32
    return %c0_i32, %c0_i32_0 : i32, i32
  }
  func.func @transform_18(%arg0: i32) -> (i32, i32) {
    %c0_i32 = arith.constant 0 : i32
    %c0_i32_0 = arith.constant 0 : i32
    %c0_i32_1 = arith.constant 0 : i32
    return %c0_i32, %c0_i32_0 : i32, i32
  }
  func.func @transform_19(%arg0: i32) -> (i32, i32) {
    %c0_i32 = arith.constant 0 : i32
    %c0_i32_0 = arith.constant 0 : i32
    %c0_i32_1 = arith.constant 0 : i32
    return %c0_i32, %c0_i32_0 : i32, i32
  }
  func.func @transform_20(%arg0: i32) -> (i32, i32) {
    %c0_i32 = arith.constant 0 : i32
    %c0_i32_0 = arith.constant 0 : i32
    %c0_i32_1 = arith.constant 0 : i32
    return %c0_i32, %c0_i32_0 : i32, i32
  }
  func.func @transform_21(%arg0: i32) -> (i32, i32) {
    %c0_i32 = arith.constant 0 : i32
    %c0_i32_0 = arith.constant 0 : i32
    %c0_i32_1 = arith.constant 0 : i32
    return %c0_i32, %c0_i32_0 : i32, i32
  }
  func.func @transform_22(%arg0: i32) -> (i32, i32) {
    %c0_i32 = arith.constant 0 : i32
    %c0_i32_0 = arith.constant 0 : i32
    %c0_i32_1 = arith.constant 0 : i32
    return %c0_i32, %c0_i32_0 : i32, i32
  }
  func.func @transform_23(%arg0: i32) -> (i32, i32) {
    %c0_i32 = arith.constant 0 : i32
    %c0_i32_0 = arith.constant 0 : i32
    %c0_i32_1 = arith.constant 0 : i32
    return %c0_i32, %c0_i32_0 : i32, i32
  }
  func.func @transform_24(%arg0: i32) -> (i32, i32) {
    %c0_i32 = arith.constant 0 : i32
    %c0_i32_0 = arith.constant 0 : i32
    %c0_i32_1 = arith.constant 0 : i32
    return %c0_i32, %c0_i32_0 : i32, i32
  }
  func.func @transform_25(%arg0: i32) -> (i32, i32, i32) {
    %c0_i32 = arith.constant 0 : i32
    %c0_i32_0 = arith.constant 0 : i32
    %c0_i32_1 = arith.constant 0 : i32
    return %arg0, %c0_i32, %c0_i32_0 : i32, i32, i32
  }
}

</mosaic_0001>

<llo_original>
// kernel: tpu_custom_call.1
$region0: #{tpu_custom_call.1}
  #allocation0 [shape = 'u32[]', space=smem, size = 0x4, offset = 0x4, fixed_abs, tag = 'smem constant byte address 0x4 - core index']
  #allocation1 [shape = 'u32[72,128]{1,0:T(1,128)}', space=vmem, size = 0x9000, scoped, tag = 'internal scratch']
  %s0 = inlined_call_operand.vmem [shape: bf16[2,16,256], index: 0, kind: input, shape index: {}]
  %s1 = inlined_call_operand.vmem [shape: bf16[32,16], index: 1, kind: input, shape index: {}]
  %s2 = inlined_call_operand.vmem [shape: f32[32,1], index: 2, kind: input, shape index: {}]
  %s3 = inlined_call_operand.vmem [shape: f32[32,1], index: 3, kind: input, shape index: {}]
  %s4 = inlined_call_operand.vmem [shape: bf16[32,16], index: 4, kind: input, shape index: {}]
  %s5 = inlined_call_operand.hbm [shape: bf16[9,32,32], index: 5, kind: input, shape index: {}]
  %s6 = inlined_call_operand.vmem [shape: f32[1,32], index: 6, kind: input, shape index: {}]
  %s7 = inlined_call_operand.vmem [shape: f32[1,32], index: 7, kind: input, shape index: {}]
  %s8 = inlined_call_operand.vmem [shape: bf16[32,32], index: 8, kind: input, shape index: {}]
  %s9 = inlined_call_operand.vmem [shape: f32[1,32], index: 9, kind: input, shape index: {}]
  %s10 = inlined_call_operand.vmem [shape: f32[1,32], index: 10, kind: input, shape index: {}]
  %s11 = inlined_call_operand.vmem [shape: bf16[128,32], index: 11, kind: input, shape index: {}]
  %s12 = inlined_call_operand.vmem [shape: f32[1,32], index: 12, kind: input, shape index: {}]
  %s13 = inlined_call_operand.vmem [shape: f32[1,32], index: 13, kind: input, shape index: {}]
  %s14 = inlined_call_operand.hbm [shape: bf16[9,32,32], index: 14, kind: input, shape index: {}]
  %s15 = inlined_call_operand.vmem [shape: f32[1,32], index: 15, kind: input, shape index: {}]
  %s16 = inlined_call_operand.vmem [shape: f32[1,32], index: 16, kind: input, shape index: {}]
  %s17 = inlined_call_operand.vmem [shape: f32[1,32], index: 17, kind: input, shape index: {}]
  %s18 = inlined_call_operand.vmem [shape: f32[1,32], index: 18, kind: input, shape index: {}]
  %s19 = inlined_call_operand.vmem [shape: f32[32,1], index: 19, kind: input, shape index: {}]
  %s20 = inlined_call_operand.vmem [shape: f32[32,1], index: 20, kind: input, shape index: {}]
  %s21 = inlined_call_operand.vmem [shape: bf16[32,32], index: 21, kind: input, shape index: {}]
  %s22 = inlined_call_operand.vmem [shape: bf16[32,32], index: 22, kind: input, shape index: {}]
  %s23 = inlined_call_operand.vmem [shape: f32[32,1], index: 23, kind: input, shape index: {}]
  %s24 = inlined_call_operand.vmem [shape: f32[32,1], index: 24, kind: input, shape index: {}]
  %s25 = inlined_call_operand.hbm [shape: f32[2,32,256], index: 25, kind: output, shape index: {}]
  %s26 = sld [smem:[#allocation0]]
  $region141: #{tpu_custom_call.1} parent=0
    _
  %s28 = ssub.s32 1, %s26
  %s29 = scalar_select 0, %s28, %s26
  $region1: #{tpu_custom_call.1} parent=0
    #allocation2 [shape = 'u8[73728]{0}', space=vmem, size = 0x12000, scoped, tag = 'input window, operand 5, single buffered']
    #allocation3 [shape = 's32[2]{0}', space=sflag, size = 0x8, scoped, tag = 'scoped memory for tpu_custom_call.1']
    #allocation4 [shape = 's32[2]{0}', space=sflag, size = 0x8, scoped, tag = 'scoped memory for tpu_custom_call.1']
    #allocation5 [shape = 'u8[73728]{0}', space=vmem, size = 0x12000, scoped, tag = 'input window, operand 14, single buffered']
    #allocation6 [shape = 's32[1]{0}', space=sflag, size = 0x4, scoped, tag = 'scoped memory for tpu_custom_call.1']
    #allocation7 [shape = 'u8[65536]{0}', space=vmem, size = 0x10000, scoped, tag = 'output window, operand 0']
    %30 = vsyncpa [#allocation3], 0
    %31 = vsyncpa [#allocation6], 0
    %32 = vsyncpa [#allocation4], 0
    %s33 = scalar_lea.sflag [#allocation4], 1
    %34 = vsyncpa %s33, 0
    loop: start=0, step=1, limit=4
    $region2: #{tpu_custom_call.1} parent=1 // loop_pre_header
      _
    $region3: #{tpu_custom_call.1} parent=1 // loop_header
      %s36 = sphi 0, %s40
      %p37 = scmp.ge.s32.totalorder %s36, 4
      %s46 = sphi 0, %s48
      %s49 = sphi 0, %s46
      %s50 = sphi 0, %s49
      %s66 = sphi 0, %s50
      %s70 = sphi 0, %s70
      %s72 = sphi 0, %s70
      %s73 = sphi 0, %s72
      %s87 = sphi 0, %s73
      %s91 = sphi 0, %s91
      %s93 = sphi 0, %s91
      %s94 = sphi 0, %s93
      %s108 = sphi 0, %s94
      %s112 = sphi 0, %s112
      %s114 = sphi 0, %s112
      %s115 = sphi 0, %s114
      %s129 = sphi 0, %s115
      %s133 = sphi 0, %s133
      %s135 = sphi 0, %s133
      %s136 = sphi 0, %s135
      %s150 = sphi 0, %s136
      %s154 = sphi 0, %s154
      %s156 = sphi 0, %s154
      %s157 = sphi 0, %s156
      %s171 = sphi 0, %s157
      %s175 = sphi 0, %s175
      %s177 = sphi 0, %s175
      %s178 = sphi 0, %s177
      %s192 = sphi 0, %s178
      %s196 = sphi 0, %s196
      %s198 = sphi 0, %s196
      %s199 = sphi 0, %s198
      %s213 = sphi 0, %s199
      %s217 = sphi 0, %s217
      %s219 = sphi 0, %s217
      %s220 = sphi 0, %s219
      %s234 = sphi 0, %s220
      %s238 = sphi 0, %s238
      %s240 = sphi 0, %s238
      %s241 = sphi 0, %s240
      %s255 = sphi 0, %s241
      %s259 = sphi 0, %s259
      %s261 = sphi 0, %s259
      %s262 = sphi 0, %s261
      %s276 = sphi 0, %s262
      %s280 = sphi 0, %s280
      %s282 = sphi 0, %s280
      %s283 = sphi 0, %s282
      %s297 = sphi 0, %s283
      %s301 = sphi 0, %s301
      %s303 = sphi 0, %s301
      %s304 = sphi 0, %s303
      %s318 = sphi 0, %s304
      %s322 = sphi 0, %s322
      %s324 = sphi 0, %s322
      %s325 = sphi 0, %s324
      %s339 = sphi 0, %s325
      %s343 = sphi 0, %s343
      %s345 = sphi 0, %s343
      %s346 = sphi 0, %s345
      %s360 = sphi 0, %s346
      %s364 = sphi 0, %s364
      %s366 = sphi 0, %s364
      %s367 = sphi 0, %s366
      %s381 = sphi 0, %s367
      %s385 = sphi 0, %s385
      %s387 = sphi 0, %s385
      %s388 = sphi 0, %s387
      %s402 = sphi 0, %s388
      %s406 = sphi 0, %s406
      %s408 = sphi 0, %s406
      %s409 = sphi 0, %s408
      %s423 = sphi 0, %s409
      %s427 = sphi 0, %s427
      %s429 = sphi 0, %s427
      %s430 = sphi 0, %s429
      %s444 = sphi 0, %s430
      %s448 = sphi 0, %s448
      %s450 = sphi 0, %s448
      %s451 = sphi 0, %s450
      %s465 = sphi 0, %s451
      %s469 = sphi 0, %s469
      %s471 = sphi 0, %s469
      %s472 = sphi 0, %s471
      %s486 = sphi 0, %s472
      %s490 = sphi 0, %s490
      %s492 = sphi 0, %s490
      %s493 = sphi 0, %s492
      %s507 = sphi 0, %s493
      %s511 = sphi 0, %s511
      %s513 = sphi 0, %s511
      %s514 = sphi 0, %s513
      %s528 = sphi 0, %s514
      %s532 = sphi 0, %s532
      %s534 = sphi 0, %s532
      %s535 = sphi 0, %s534
      %s549 = sphi 0, %s535
      %s553 = sphi 0, %s553
      %s555 = sphi 0, %s553
      %s556 = sphi 0, %s555
      %s570 = sphi 0, %s556
      %s576 = sphi 0, %s578
      %s579 = sphi 0, %s576
      %s580 = sphi 0, %s579
      %s596 = sphi 0, %s580
    $region4: #{tpu_custom_call.1} parent=1 // loop_header_branch
      %39 = sbr.rel (%p37) target = $region8
    $region5: #{tpu_custom_call.1} parent=1 // loop_body
      %s41 = ssub.s32 %s36, 1
      %s42 = ssub.s32 %s36, 2
      %s43 = sadd.s32 %s36, 1
      %s44 = ssub.s32 %s36, %s43
      %p45 = scmp.eq.s32.totalorder %s44, 0
      %s47 = sadd.s32 %s46, 1
      %s48 = scalar_select %p45, %s46, %s47
      %p51 = pneg %p45
      %p52 = scmp.eq.s32.totalorder %s36, 1
      %p53 = por %p51, %p52
      %p54 = scmp.ne.s32.totalorder %s46, %s49
      %p55 = scmp.eq.s32.totalorder %s36, 0
      %p56 = por %p54, %p55
      %p57 = scmp.ne.s32.totalorder %s46, %s49
      %p58 = scmp.eq.s32.totalorder %s41, 1
      %p59 = por %p57, %p58
      %p60 = scmp.ne.s32.totalorder %s49, %s50
      %p61 = scmp.eq.s32.totalorder %s41, 0
      %p62 = por %p60, %p61
      %p63 = scmp.ne.s32.totalorder %s49, %s50
      %p64 = scmp.eq.s32.totalorder %s42, 1
      %p65 = por %p63, %p64
      %p67 = scmp.ne.s32.totalorder %s50, %s66
      %p68 = scmp.eq.s32.totalorder %s42, 0
      %p69 = por %p67, %p68
      %s71 = sadd.s32 %s70, 1
      %p74 = scmp.eq.s32.totalorder %s36, 1
      %p75 = scmp.ne.s32.totalorder %s70, %s72
      %p76 = scmp.eq.s32.totalorder %s36, 0
      %p77 = por %p75, %p76
      %p78 = scmp.ne.s32.totalorder %s70, %s72
      %p79 = scmp.eq.s32.totalorder %s41, 1
      %p80 = por %p78, %p79
      %p81 = scmp.ne.s32.totalorder %s72, %s73
      %p82 = scmp.eq.s32.totalorder %s41, 0
      %p83 = por %p81, %p82
      %p84 = scmp.ne.s32.totalorder %s72, %s73
      %p85 = scmp.eq.s32.totalorder %s42, 1
      %p86 = por %p84, %p85
      %p88 = scmp.ne.s32.totalorder %s73, %s87
      %p89 = scmp.eq.s32.totalorder %s42, 0
      %p90 = por %p88, %p89
      %s92 = sadd.s32 %s91, 1
      %p95 = scmp.eq.s32.totalorder %s36, 1
      %p96 = scmp.ne.s32.totalorder %s91, %s93
      %p97 = scmp.eq.s32.totalorder %s36, 0
      %p98 = por %p96, %p97
      %p99 = scmp.ne.s32.totalorder %s91, %s93
      %p100 = scmp.eq.s32.totalorder %s41, 1
      %p101 = por %p99, %p100
      %p102 = scmp.ne.s32.totalorder %s93, %s94
      %p103 = scmp.eq.s32.totalorder %s41, 0
      %p104 = por %p102, %p103
      %p105 = scmp.ne.s32.totalorder %s93, %s94
      %p106 = scmp.eq.s32.totalorder %s42, 1
      %p107 = por %p105, %p106
      %p109 = scmp.ne.s32.totalorder %s94, %s108
      %p110 = scmp.eq.s32.totalorder %s42, 0
      %p111 = por %p109, %p110
      %s113 = sadd.s32 %s112, 1
      %p116 = scmp.eq.s32.totalorder %s36, 1
      %p117 = scmp.ne.s32.totalorder %s112, %s114
      %p118 = scmp.eq.s32.totalorder %s36, 0
      %p119 = por %p117, %p118
      %p120 = scmp.ne.s32.totalorder %s112, %s114
      %p121 = scmp.eq.s32.totalorder %s41, 1
      %p122 = por %p120, %p121
      %p123 = scmp.ne.s32.totalorder %s114, %s115
      %p124 = scmp.eq.s32.totalorder %s41, 0
      %p125 = por %p123, %p124
      %p126 = scmp.ne.s32.totalorder %s114, %s115
      %p127 = scmp.eq.s32.totalorder %s42, 1
      %p128 = por %p126, %p127
      %p130 = scmp.ne.s32.totalorder %s115, %s129
      %p131 = scmp.eq.s32.totalorder %s42, 0
      %p132 = por %p130, %p131
      %s134 = sadd.s32 %s133, 1
      %p137 = scmp.eq.s32.totalorder %s36, 1
      %p138 = scmp.ne.s32.totalorder %s133, %s135
      %p139 = scmp.eq.s32.totalorder %s36, 0
      %p140 = por %p138, %p139
      %p141 = scmp.ne.s32.totalorder %s133, %s135
      %p142 = scmp.eq.s32.totalorder %s41, 1
      %p143 = por %p141, %p142
      %p144 = scmp.ne.s32.totalorder %s135, %s136
      %p145 = scmp.eq.s32.totalorder %s41, 0
      %p146 = por %p144, %p145
      %p147 = scmp.ne.s32.totalorder %s135, %s136
      %p148 = scmp.eq.s32.totalorder %s42, 1
      %p149 = por %p147, %p148
      %p151 = scmp.ne.s32.totalorder %s136, %s150
      %p152 = scmp.eq.s32.totalorder %s42, 0
      %p153 = por %p151, %p152
      %s155 = sadd.s32 %s154, 1
      %p158 = scmp.eq.s32.totalorder %s36, 1
      %p159 = scmp.ne.s32.totalorder %s154, %s156
      %p160 = scmp.eq.s32.totalorder %s36, 0
      %p161 = por %p159, %p160
      %p162 = scmp.ne.s32.totalorder %s154, %s156
      %p163 = scmp.eq.s32.totalorder %s41, 1
      %p164 = por %p162, %p163
      %p165 = scmp.ne.s32.totalorder %s156, %s157
      %p166 = scmp.eq.s32.totalorder %s41, 0
      %p167 = por %p165, %p166
      %p168 = scmp.ne.s32.totalorder %s156, %s157
      %p169 = scmp.eq.s32.totalorder %s42, 1
      %p170 = por %p168, %p169
      %p172 = scmp.ne.s32.totalorder %s157, %s171
      %p173 = scmp.eq.s32.totalorder %s42, 0
      %p174 = por %p172, %p173
      %s176 = sadd.s32 %s175, 1
      %p179 = scmp.eq.s32.totalorder %s36, 1
      %p180 = scmp.ne.s32.totalorder %s175, %s177
      %p181 = scmp.eq.s32.totalorder %s36, 0
      %p182 = por %p180, %p181
      %p183 = scmp.ne.s32.totalorder %s175, %s177
      %p184 = scmp.eq.s32.totalorder %s41, 1
      %p185 = por %p183, %p184
      %p186 = scmp.ne.s32.totalorder %s177, %s178
      %p187 = scmp.eq.s32.totalorder %s41, 0
      %p188 = por %p186, %p187
      %p189 = scmp.ne.s32.totalorder %s177, %s178
      %p190 = scmp.eq.s32.totalorder %s42, 1
      %p191 = por %p189, %p190
      %p193 = scmp.ne.s32.totalorder %s178, %s192
      %p194 = scmp.eq.s32.totalorder %s42, 0
      %p195 = por %p193, %p194
      %s197 = sadd.s32 %s196, 1
      %p200 = scmp.eq.s32.totalorder %s36, 1
      %p201 = scmp.ne.s32.totalorder %s196, %s198
      %p202 = scmp.eq.s32.totalorder %s36, 0
      %p203 = por %p201, %p202
      %p204 = scmp.ne.s32.totalorder %s196, %s198
      %p205 = scmp.eq.s32.totalorder %s41, 1
      %p206 = por %p204, %p205
      %p207 = scmp.ne.s32.totalorder %s198, %s199
      %p208 = scmp.eq.s32.totalorder %s41, 0
      %p209 = por %p207, %p208
      %p210 = scmp.ne.s32.totalorder %s198, %s199
      %p211 = scmp.eq.s32.totalorder %s42, 1
      %p212 = por %p210, %p211
      %p214 = scmp.ne.s32.totalorder %s199, %s213
      %p215 = scmp.eq.s32.totalorder %s42, 0
      %p216 = por %p214, %p215
      %s218 = sadd.s32 %s217, 1
      %p221 = scmp.eq.s32.totalorder %s36, 1
      %p222 = scmp.ne.s32.totalorder %s217, %s219
      %p223 = scmp.eq.s32.totalorder %s36, 0
      %p224 = por %p222, %p223
      %p225 = scmp.ne.s32.totalorder %s217, %s219
      %p226 = scmp.eq.s32.totalorder %s41, 1
      %p227 = por %p225, %p226
      %p228 = scmp.ne.s32.totalorder %s219, %s220
      %p229 = scmp.eq.s32.totalorder %s41, 0
      %p230 = por %p228, %p229
      %p231 = scmp.ne.s32.totalorder %s219, %s220
      %p232 = scmp.eq.s32.totalorder %s42, 1
      %p233 = por %p231, %p232
      %p235 = scmp.ne.s32.totalorder %s220, %s234
      %p236 = scmp.eq.s32.totalorder %s42, 0
      %p237 = por %p235, %p236
      %s239 = sadd.s32 %s238, 1
      %p242 = scmp.eq.s32.totalorder %s36, 1
      %p243 = scmp.ne.s32.totalorder %s238, %s240
      %p244 = scmp.eq.s32.totalorder %s36, 0
      %p245 = por %p243, %p244
      %p246 = scmp.ne.s32.totalorder %s238, %s240
      %p247 = scmp.eq.s32.totalorder %s41, 1
      %p248 = por %p246, %p247
      %p249 = scmp.ne.s32.totalorder %s240, %s241
      %p250 = scmp.eq.s32.totalorder %s41, 0
      %p251 = por %p249, %p250
      %p252 = scmp.ne.s32.totalorder %s240, %s241
      %p253 = scmp.eq.s32.totalorder %s42, 1
      %p254 = por %p252, %p253
      %p256 = scmp.ne.s32.totalorder %s241, %s255
      %p257 = scmp.eq.s32.totalorder %s42, 0
      %p258 = por %p256, %p257
      %s260 = sadd.s32 %s259, 1
      %p263 = scmp.eq.s32.totalorder %s36, 1
      %p264 = scmp.ne.s32.totalorder %s259, %s261
      %p265 = scmp.eq.s32.totalorder %s36, 0
      %p266 = por %p264, %p265
      %p267 = scmp.ne.s32.totalorder %s259, %s261
      %p268 = scmp.eq.s32.totalorder %s41, 1
      %p269 = por %p267, %p268
      %p270 = scmp.ne.s32.totalorder %s261, %s262
      %p271 = scmp.eq.s32.totalorder %s41, 0
      %p272 = por %p270, %p271
      %p273 = scmp.ne.s32.totalorder %s261, %s262
      %p274 = scmp.eq.s32.totalorder %s42, 1
      %p275 = por %p273, %p274
      %p277 = scmp.ne.s32.totalorder %s262, %s276
      %p278 = scmp.eq.s32.totalorder %s42, 0
      %p279 = por %p277, %p278
      %s281 = sadd.s32 %s280, 1
      %p284 = scmp.eq.s32.totalorder %s36, 1
      %p285 = scmp.ne.s32.totalorder %s280, %s282
      %p286 = scmp.eq.s32.totalorder %s36, 0
      %p287 = por %p285, %p286
      %p288 = scmp.ne.s32.totalorder %s280, %s282
      %p289 = scmp.eq.s32.totalorder %s41, 1
      %p290 = por %p288, %p289
      %p291 = scmp.ne.s32.totalorder %s282, %s283
      %p292 = scmp.eq.s32.totalorder %s41, 0
      %p293 = por %p291, %p292
      %p294 = scmp.ne.s32.totalorder %s282, %s283
      %p295 = scmp.eq.s32.totalorder %s42, 1
      %p296 = por %p294, %p295
      %p298 = scmp.ne.s32.totalorder %s283, %s297
      %p299 = scmp.eq.s32.totalorder %s42, 0
      %p300 = por %p298, %p299
      %s302 = sadd.s32 %s301, 1
      %p305 = scmp.eq.s32.totalorder %s36, 1
      %p306 = scmp.ne.s32.totalorder %s301, %s303
      %p307 = scmp.eq.s32.totalorder %s36, 0
      %p308 = por %p306, %p307
      %p309 = scmp.ne.s32.totalorder %s301, %s303
      %p310 = scmp.eq.s32.totalorder %s41, 1
      %p311 = por %p309, %p310
      %p312 = scmp.ne.s32.totalorder %s303, %s304
      %p313 = scmp.eq.s32.totalorder %s41, 0
      %p314 = por %p312, %p313
      %p315 = scmp.ne.s32.totalorder %s303, %s304
      %p316 = scmp.eq.s32.totalorder %s42, 1
      %p317 = por %p315, %p316
      %p319 = scmp.ne.s32.totalorder %s304, %s318
      %p320 = scmp.eq.s32.totalorder %s42, 0
      %p321 = por %p319, %p320
      %s323 = sadd.s32 %s322, 1
      %p326 = scmp.eq.s32.totalorder %s36, 1
      %p327 = scmp.ne.s32.totalorder %s322, %s324
      %p328 = scmp.eq.s32.totalorder %s36, 0
      %p329 = por %p327, %p328
      %p330 = scmp.ne.s32.totalorder %s322, %s324
      %p331 = scmp.eq.s32.totalorder %s41, 1
      %p332 = por %p330, %p331
      %p333 = scmp.ne.s32.totalorder %s324, %s325
      %p334 = scmp.eq.s32.totalorder %s41, 0
      %p335 = por %p333, %p334
      %p336 = scmp.ne.s32.totalorder %s324, %s325
      %p337 = scmp.eq.s32.totalorder %s42, 1
      %p338 = por %p336, %p337
      %p340 = scmp.ne.s32.totalorder %s325, %s339
      %p341 = scmp.eq.s32.totalorder %s42, 0
      %p342 = por %p340, %p341
      %s344 = sadd.s32 %s343, 1
      %p347 = scmp.eq.s32.totalorder %s36, 1
      %p348 = scmp.ne.s32.totalorder %s343, %s345
      %p349 = scmp.eq.s32.totalorder %s36, 0
      %p350 = por %p348, %p349
      %p351 = scmp.ne.s32.totalorder %s343, %s345
      %p352 = scmp.eq.s32.totalorder %s41, 1
      %p353 = por %p351, %p352
      %p354 = scmp.ne.s32.totalorder %s345, %s346
      %p355 = scmp.eq.s32.totalorder %s41, 0
      %p356 = por %p354, %p355
      %p357 = scmp.ne.s32.totalorder %s345, %s346
      %p358 = scmp.eq.s32.totalorder %s42, 1
      %p359 = por %p357, %p358
      %p361 = scmp.ne.s32.totalorder %s346, %s360
      %p362 = scmp.eq.s32.totalorder %s42, 0
      %p363 = por %p361, %p362
      %s365 = sadd.s32 %s364, 1
      %p368 = scmp.eq.s32.totalorder %s36, 1
      %p369 = scmp.ne.s32.totalorder %s364, %s366
      %p370 = scmp.eq.s32.totalorder %s36, 0
      %p371 = por %p369, %p370
      %p372 = scmp.ne.s32.totalorder %s364, %s366
      %p373 = scmp.eq.s32.totalorder %s41, 1
      %p374 = por %p372, %p373
      %p375 = scmp.ne.s32.totalorder %s366, %s367
      %p376 = scmp.eq.s32.totalorder %s41, 0
      %p377 = por %p375, %p376
      %p378 = scmp.ne.s32.totalorder %s366, %s367
      %p379 = scmp.eq.s32.totalorder %s42, 1
      %p380 = por %p378, %p379
      %p382 = scmp.ne.s32.totalorder %s367, %s381
      %p383 = scmp.eq.s32.totalorder %s42, 0
      %p384 = por %p382, %p383
      %s386 = sadd.s32 %s385, 1
      %p389 = scmp.eq.s32.totalorder %s36, 1
      %p390 = scmp.ne.s32.totalorder %s385, %s387
      %p391 = scmp.eq.s32.totalorder %s36, 0
      %p392 = por %p390, %p391
      %p393 = scmp.ne.s32.totalorder %s385, %s387
      %p394 = scmp.eq.s32.totalorder %s41, 1
      %p395 = por %p393, %p394
      %p396 = scmp.ne.s32.totalorder %s387, %s388
      %p397 = scmp.eq.s32.totalorder %s41, 0
      %p398 = por %p396, %p397
      %p399 = scmp.ne.s32.totalorder %s387, %s388
      %p400 = scmp.eq.s32.totalorder %s42, 1
      %p401 = por %p399, %p400
      %p403 = scmp.ne.s32.totalorder %s388, %s402
      %p404 = scmp.eq.s32.totalorder %s42, 0
      %p405 = por %p403, %p404
      %s407 = sadd.s32 %s406, 1
      %p410 = scmp.eq.s32.totalorder %s36, 1
      %p411 = scmp.ne.s32.totalorder %s406, %s408
      %p412 = scmp.eq.s32.totalorder %s36, 0
      %p413 = por %p411, %p412
      %p414 = scmp.ne.s32.totalorder %s406, %s408
      %p415 = scmp.eq.s32.totalorder %s41, 1
      %p416 = por %p414, %p415
      %p417 = scmp.ne.s32.totalorder %s408, %s409
      %p418 = scmp.eq.s32.totalorder %s41, 0
      %p419 = por %p417, %p418
      %p420 = scmp.ne.s32.totalorder %s408, %s409
      %p421 = scmp.eq.s32.totalorder %s42, 1
      %p422 = por %p420, %p421
      %p424 = scmp.ne.s32.totalorder %s409, %s423
      %p425 = scmp.eq.s32.totalorder %s42, 0
      %p426 = por %p424, %p425
      %s428 = sadd.s32 %s427, 1
      %p431 = scmp.eq.s32.totalorder %s36, 1
      %p432 = scmp.ne.s32.totalorder %s427, %s429
      %p433 = scmp.eq.s32.totalorder %s36, 0
      %p434 = por %p432, %p433
      %p435 = scmp.ne.s32.totalorder %s427, %s429
      %p436 = scmp.eq.s32.totalorder %s41, 1
      %p437 = por %p435, %p436
      %p438 = scmp.ne.s32.totalorder %s429, %s430
      %p439 = scmp.eq.s32.totalorder %s41, 0
      %p440 = por %p438, %p439
      %p441 = scmp.ne.s32.totalorder %s429, %s430
      %p442 = scmp.eq.s32.totalorder %s42, 1
      %p443 = por %p441, %p442
      %p445 = scmp.ne.s32.totalorder %s430, %s444
      %p446 = scmp.eq.s32.totalorder %s42, 0
      %p447 = por %p445, %p446
      %s449 = sadd.s32 %s448, 1
      %p452 = scmp.eq.s32.totalorder %s36, 1
      %p453 = scmp.ne.s32.totalorder %s448, %s450
      %p454 = scmp.eq.s32.totalorder %s36, 0
      %p455 = por %p453, %p454
      %p456 = scmp.ne.s32.totalorder %s448, %s450
      %p457 = scmp.eq.s32.totalorder %s41, 1
      %p458 = por %p456, %p457
      %p459 = scmp.ne.s32.totalorder %s450, %s451
      %p460 = scmp.eq.s32.totalorder %s41, 0
      %p461 = por %p459, %p460
      %p462 = scmp.ne.s32.totalorder %s450, %s451
      %p463 = scmp.eq.s32.totalorder %s42, 1
      %p464 = por %p462, %p463
      %p466 = scmp.ne.s32.totalorder %s451, %s465
      %p467 = scmp.eq.s32.totalorder %s42, 0
      %p468 = por %p466, %p467
      %s470 = sadd.s32 %s469, 1
      %p473 = scmp.eq.s32.totalorder %s36, 1
      %p474 = scmp.ne.s32.totalorder %s469, %s471
      %p475 = scmp.eq.s32.totalorder %s36, 0
      %p476 = por %p474, %p475
      %p477 = scmp.ne.s32.totalorder %s469, %s471
      %p478 = scmp.eq.s32.totalorder %s41, 1
      %p479 = por %p477, %p478
      %p480 = scmp.ne.s32.totalorder %s471, %s472
      %p481 = scmp.eq.s32.totalorder %s41, 0
      %p482 = por %p480, %p481
      %p483 = scmp.ne.s32.totalorder %s471, %s472
      %p484 = scmp.eq.s32.totalorder %s42, 1
      %p485 = por %p483, %p484
      %p487 = scmp.ne.s32.totalorder %s472, %s486
      %p488 = scmp.eq.s32.totalorder %s42, 0
      %p489 = por %p487, %p488
      %s491 = sadd.s32 %s490, 1
      %p494 = scmp.eq.s32.totalorder %s36, 1
      %p495 = scmp.ne.s32.totalorder %s490, %s492
      %p496 = scmp.eq.s32.totalorder %s36, 0
      %p497 = por %p495, %p496
      %p498 = scmp.ne.s32.totalorder %s490, %s492
      %p499 = scmp.eq.s32.totalorder %s41, 1
      %p500 = por %p498, %p499
      %p501 = scmp.ne.s32.totalorder %s492, %s493
      %p502 = scmp.eq.s32.totalorder %s41, 0
      %p503 = por %p501, %p502
      %p504 = scmp.ne.s32.totalorder %s492, %s493
      %p505 = scmp.eq.s32.totalorder %s42, 1
      %p506 = por %p504, %p505
      %p508 = scmp.ne.s32.totalorder %s493, %s507
      %p509 = scmp.eq.s32.totalorder %s42, 0
      %p510 = por %p508, %p509
      %s512 = sadd.s32 %s511, 1
      %p515 = scmp.eq.s32.totalorder %s36, 1
      %p516 = scmp.ne.s32.totalorder %s511, %s513
      %p517 = scmp.eq.s32.totalorder %s36, 0
      %p518 = por %p516, %p517
      %p519 = scmp.ne.s32.totalorder %s511, %s513
      %p520 = scmp.eq.s32.totalorder %s41, 1
      %p521 = por %p519, %p520
      %p522 = scmp.ne.s32.totalorder %s513, %s514
      %p523 = scmp.eq.s32.totalorder %s41, 0
      %p524 = por %p522, %p523
      %p525 = scmp.ne.s32.totalorder %s513, %s514
      %p526 = scmp.eq.s32.totalorder %s42, 1
      %p527 = por %p525, %p526
      %p529 = scmp.ne.s32.totalorder %s514, %s528
      %p530 = scmp.eq.s32.totalorder %s42, 0
      %p531 = por %p529, %p530
      %s533 = sadd.s32 %s532, 1
      %p536 = scmp.eq.s32.totalorder %s36, 1
      %p537 = scmp.ne.s32.totalorder %s532, %s534
      %p538 = scmp.eq.s32.totalorder %s36, 0
      %p539 = por %p537, %p538
      %p540 = scmp.ne.s32.totalorder %s532, %s534
      %p541 = scmp.eq.s32.totalorder %s41, 1
      %p542 = por %p540, %p541
      %p543 = scmp.ne.s32.totalorder %s534, %s535
      %p544 = scmp.eq.s32.totalorder %s41, 0
      %p545 = por %p543, %p544
      %p546 = scmp.ne.s32.totalorder %s534, %s535
      %p547 = scmp.eq.s32.totalorder %s42, 1
      %p548 = por %p546, %p547
      %p550 = scmp.ne.s32.totalorder %s535, %s549
      %p551 = scmp.eq.s32.totalorder %s42, 0
      %p552 = por %p550, %p551
      %s554 = sadd.s32 %s553, 1
      %p557 = scmp.eq.s32.totalorder %s36, 1
      %p558 = scmp.ne.s32.totalorder %s553, %s555
      %p559 = scmp.eq.s32.totalorder %s36, 0
      %p560 = por %p558, %p559
      %p561 = scmp.ne.s32.totalorder %s553, %s555
      %p562 = scmp.eq.s32.totalorder %s41, 1
      %p563 = por %p561, %p562
      %p564 = scmp.ne.s32.totalorder %s555, %s556
      %p565 = scmp.eq.s32.totalorder %s41, 0
      %p566 = por %p564, %p565
      %p567 = scmp.ne.s32.totalorder %s555, %s556
      %p568 = scmp.eq.s32.totalorder %s42, 1
      %p569 = por %p567, %p568
      %p571 = scmp.ne.s32.totalorder %s556, %s570
      %p572 = scmp.eq.s32.totalorder %s42, 0
      %p573 = por %p571, %p572
      %s574 = ssub.s32 %s36, %s43
      %p575 = scmp.eq.s32.totalorder %s574, 0
      %s577 = sadd.s32 %s576, 1
      %s578 = scalar_select %p575, %s576, %s577
      %p581 = pneg %p575
      %p582 = scmp.eq.s32.totalorder %s36, 1
      %p583 = por %p581, %p582
      %p584 = scmp.ne.s32.totalorder %s576, %s579
      %p585 = scmp.eq.s32.totalorder %s36, 0
      %p586 = por %p584, %p585
      %p587 = scmp.ne.s32.totalorder %s576, %s579
      %p588 = scmp.eq.s32.totalorder %s41, 1
      %p589 = por %p587, %p588
      %p590 = scmp.ne.s32.totalorder %s579, %s580
      %p591 = scmp.eq.s32.totalorder %s41, 0
      %p592 = por %p590, %p591
      %p593 = scmp.ne.s32.totalorder %s579, %s580
      %p594 = scmp.eq.s32.totalorder %s42, 1
      %p595 = por %p593, %p594
      %p597 = scmp.ne.s32.totalorder %s580, %s596
      %p598 = scmp.eq.s32.totalorder %s42, 0
      %p599 = por %p597, %p598
      %p600 = scmp.le.s32.totalorder 1, %s36
      %p601 = scmp.lt.s32.totalorder %s36, 3
      %p602 = pnand %p600, %p601
      %p603 = pneg %p602
      // Predicated region
      $region9: #{tpu_custom_call.1} parent=5 // pred_check
        _
      $region10: #{tpu_custom_call.1} parent=5 // pred_check_branch
        %605 = sbr.rel (%p602) target = $region12
      $region11: #{tpu_custom_call.1} parent=5 // pred_region
        %s606 = ssub.s32 %s36, 1
        // Predicated region
        $region13: #{tpu_custom_call.1} parent=11 // pred_check
          %p607 = pneg %p83
        $region14: #{tpu_custom_call.1} parent=11 // pred_check_branch
          %609 = sbr.rel (%p607) target = $region16
        $region15: #{tpu_custom_call.1} parent=11 // pred_region
          _
        $region16: #{tpu_custom_call.1} parent=11 // pred_fallthru
          _
        // Predicated region
        $region17: #{tpu_custom_call.1} parent=11 // pred_check
          %p610 = pneg %p104
        $region18: #{tpu_custom_call.1} parent=11 // pred_check_branch
          %612 = sbr.rel (%p610) target = $region20
        $region19: #{tpu_custom_call.1} parent=11 // pred_region
          _
        $region20: #{tpu_custom_call.1} parent=11 // pred_fallthru
          _
        // Predicated region
        $region21: #{tpu_custom_call.1} parent=11 // pred_check
          %p613 = pneg %p125
        $region22: #{tpu_custom_call.1} parent=11 // pred_check_branch
          %615 = sbr.rel (%p613) target = $region24
        $region23: #{tpu_custom_call.1} parent=11 // pred_region
          _
        $region24: #{tpu_custom_call.1} parent=11 // pred_fallthru
          _
        // Predicated region
        $region25: #{tpu_custom_call.1} parent=11 // pred_check
          %p616 = pneg %p146
        $region26: #{tpu_custom_call.1} parent=11 // pred_check_branch
          %618 = sbr.rel (%p616) target = $region28
        $region27: #{tpu_custom_call.1} parent=11 // pred_region
          _
        $region28: #{tpu_custom_call.1} parent=11 // pred_fallthru
          _
        // Predicated region
        $region29: #{tpu_custom_call.1} parent=11 // pred_check
          %p619 = pneg %p167
        $region30: #{tpu_custom_call.1} parent=11 // pred_check_branch
          %621 = sbr.rel (%p619) target = $region32
        $region31: #{tpu_custom_call.1} parent=11 // pred_region
          %623 = vsyncadd [#allocation3], 0
          %s624 = sshll.u32 %s5, 4
          %s625 = int_to_ptr.hbm [resolvable:$true] %s624
          %s626 = sshll.u32 [#allocation2], 4
          %s627 = int_to_ptr.vmem [resolvable:$true] %s626
          %632 = dma.hbm_to_vmem [thread:$0]  %s625, 2304, %s627, [#allocation3], 64, 64, 4
        $region32: #{tpu_custom_call.1} parent=11 // pred_fallthru
          _
        // Predicated region
        $region33: #{tpu_custom_call.1} parent=11 // pred_check
          %p633 = pneg %p188
        $region34: #{tpu_custom_call.1} parent=11 // pred_check_branch
          %635 = sbr.rel (%p633) target = $region36
        $region35: #{tpu_custom_call.1} parent=11 // pred_region
          _
        $region36: #{tpu_custom_call.1} parent=11 // pred_fallthru
          _
        // Predicated region
        $region37: #{tpu_custom_call.1} parent=11 // pred_check
          %p636 = pneg %p209
        $region38: #{tpu_custom_call.1} parent=11 // pred_check_branch
          %638 = sbr.rel (%p636) target = $region40
        $region39: #{tpu_custom_call.1} parent=11 // pred_region
          _
        $region40: #{tpu_custom_call.1} parent=11 // pred_fallthru
          _
        // Predicated region
        $region41: #{tpu_custom_call.1} parent=11 // pred_check
          %p639 = pneg %p230
        $region42: #{tpu_custom_call.1} parent=11 // pred_check_branch
          %641 = sbr.rel (%p639) target = $region44
        $region43: #{tpu_custom_call.1} parent=11 // pred_region
          _
        $region44: #{tpu_custom_call.1} parent=11 // pred_fallthru
          _
        // Predicated region
        $region45: #{tpu_custom_call.1} parent=11 // pred_check
          %p642 = pneg %p251
        $region46: #{tpu_custom_call.1} parent=11 // pred_check_branch
          %644 = sbr.rel (%p642) target = $region48
        $region47: #{tpu_custom_call.1} parent=11 // pred_region
          _
        $region48: #{tpu_custom_call.1} parent=11 // pred_fallthru
          _
        // Predicated region
        $region49: #{tpu_custom_call.1} parent=11 // pred_check
          %p645 = pneg %p272
        $region50: #{tpu_custom_call.1} parent=11 // pred_check_branch
          %647 = sbr.rel (%p645) target = $region52
        $region51: #{tpu_custom_call.1} parent=11 // pred_region
          _
        $region52: #{tpu_custom_call.1} parent=11 // pred_fallthru
          _
        // Predicated region
        $region53: #{tpu_custom_call.1} parent=11 // pred_check
          %p648 = pneg %p293
        $region54: #{tpu_custom_call.1} parent=11 // pred_check_branch
          %650 = sbr.rel (%p648) target = $region56
        $region55: #{tpu_custom_call.1} parent=11 // pred_region
          _
        $region56: #{tpu_custom_call.1} parent=11 // pred_fallthru
          _
        // Predicated region
        $region57: #{tpu_custom_call.1} parent=11 // pred_check
          %p651 = pneg %p314
        $region58: #{tpu_custom_call.1} parent=11 // pred_check_branch
          %653 = sbr.rel (%p651) target = $region60
        $region59: #{tpu_custom_call.1} parent=11 // pred_region
          _
        $region60: #{tpu_custom_call.1} parent=11 // pred_fallthru
          _
        // Predicated region
        $region61: #{tpu_custom_call.1} parent=11 // pred_check
          %p654 = pneg %p335
        $region62: #{tpu_custom_call.1} parent=11 // pred_check_branch
          %656 = sbr.rel (%p654) target = $region64
        $region63: #{tpu_custom_call.1} parent=11 // pred_region
          _
        $region64: #{tpu_custom_call.1} parent=11 // pred_fallthru
          _
        // Predicated region
        $region65: #{tpu_custom_call.1} parent=11 // pred_check
          %p657 = pneg %p356
        $region66: #{tpu_custom_call.1} parent=11 // pred_check_branch
          %659 = sbr.rel (%p657) target = $region68
        $region67: #{tpu_custom_call.1} parent=11 // pred_region
          %661 = vsyncadd [#allocation6], 0
          %s662 = sshll.u32 %s14, 4
          %s663 = int_to_ptr.hbm [resolvable:$true] %s662
          %s664 = sshll.u32 [#allocation5], 4
          %s665 = int_to_ptr.vmem [resolvable:$true] %s664
          %670 = dma.hbm_to_vmem [thread:$0]  %s663, 2304, %s665, [#allocation6], 64, 64, 4
        $region68: #{tpu_custom_call.1} parent=11 // pred_fallthru
          _
        // Predicated region
        $region69: #{tpu_custom_call.1} parent=11 // pred_check
          %p671 = pneg %p377
        $region70: #{tpu_custom_call.1} parent=11 // pred_check_branch
          %673 = sbr.rel (%p671) target = $region72
        $region71: #{tpu_custom_call.1} parent=11 // pred_region
          _
        $region72: #{tpu_custom_call.1} parent=11 // pred_fallthru
          _
        // Predicated region
        $region73: #{tpu_custom_call.1} parent=11 // pred_check
          %p674 = pneg %p398
        $region74: #{tpu_custom_call.1} parent=11 // pred_check_branch
          %676 = sbr.rel (%p674) target = $region76
        $region75: #{tpu_custom_call.1} parent=11 // pred_region
          _
        $region76: #{tpu_custom_call.1} parent=11 // pred_fallthru
          _
        // Predicated region
        $region77: #{tpu_custom_call.1} parent=11 // pred_check
          %p677 = pneg %p419
        $region78: #{tpu_custom_call.1} parent=11 // pred_check_branch
          %679 = sbr.rel (%p677) target = $region80
        $region79: #{tpu_custom_call.1} parent=11 // pred_region
          _
        $region80: #{tpu_custom_call.1} parent=11 // pred_fallthru
          _
        // Predicated region
        $region81: #{tpu_custom_call.1} parent=11 // pred_check
          %p680 = pneg %p440
        $region82: #{tpu_custom_call.1} parent=11 // pred_check_branch
          %682 = sbr.rel (%p680) target = $region84
        $region83: #{tpu_custom_call.1} parent=11 // pred_region
          _
        $region84: #{tpu_custom_call.1} parent=11 // pred_fallthru
          _
        // Predicated region
        $region85: #{tpu_custom_call.1} parent=11 // pred_check
          %p683 = pneg %p461
        $region86: #{tpu_custom_call.1} parent=11 // pred_check_branch
          %685 = sbr.rel (%p683) target = $region88
        $region87: #{tpu_custom_call.1} parent=11 // pred_region
          _
        $region88: #{tpu_custom_call.1} parent=11 // pred_fallthru
          _
        // Predicated region
        $region89: #{tpu_custom_call.1} parent=11 // pred_check
          %p686 = pneg %p482
        $region90: #{tpu_custom_call.1} parent=11 // pred_check_branch
          %688 = sbr.rel (%p686) target = $region92
        $region91: #{tpu_custom_call.1} parent=11 // pred_region
          _
        $region92: #{tpu_custom_call.1} parent=11 // pred_fallthru
          _
        // Predicated region
        $region93: #{tpu_custom_call.1} parent=11 // pred_check
          %p689 = pneg %p503
        $region94: #{tpu_custom_call.1} parent=11 // pred_check_branch
          %691 = sbr.rel (%p689) target = $region96
        $region95: #{tpu_custom_call.1} parent=11 // pred_region
          _
        $region96: #{tpu_custom_call.1} parent=11 // pred_fallthru
          _
        // Predicated region
        $region97: #{tpu_custom_call.1} parent=11 // pred_check
          %p692 = pneg %p524
        $region98: #{tpu_custom_call.1} parent=11 // pred_check_branch
          %694 = sbr.rel (%p692) target = $region100
        $region99: #{tpu_custom_call.1} parent=11 // pred_region
          _
        $region100: #{tpu_custom_call.1} parent=11 // pred_fallthru
          _
        // Predicated region
        $region101: #{tpu_custom_call.1} parent=11 // pred_check
          %p695 = pneg %p545
        $region102: #{tpu_custom_call.1} parent=11 // pred_check_branch
          %697 = sbr.rel (%p695) target = $region104
        $region103: #{tpu_custom_call.1} parent=11 // pred_region
          _
        $region104: #{tpu_custom_call.1} parent=11 // pred_fallthru
          _
        // Predicated region
        $region105: #{tpu_custom_call.1} parent=11 // pred_check
          %p698 = pneg %p566
        $region106: #{tpu_custom_call.1} parent=11 // pred_check_branch
          %700 = sbr.rel (%p698) target = $region108
        $region107: #{tpu_custom_call.1} parent=11 // pred_region
          _
        $region108: #{tpu_custom_call.1} parent=11 // pred_fallthru
          _
      $region12: #{tpu_custom_call.1} parent=5 // pred_fallthru
        _
      %p701 = scmp.lt.s32.totalorder %s36, 2
      // Predicated region
      $region109: #{tpu_custom_call.1} parent=5 // pred_check
        %p702 = pneg %p701
      $region110: #{tpu_custom_call.1} parent=5 // pred_check_branch
        %704 = sbr.rel (%p702) target = $region112
      $region111: #{tpu_custom_call.1} parent=5 // pred_region
        // Predicated region
        $region113: #{tpu_custom_call.1} parent=111 // pred_check
          %p705 = pneg %p56
        $region114: #{tpu_custom_call.1} parent=111 // pred_check_branch
          %707 = sbr.rel (%p705) target = $region116
        $region115: #{tpu_custom_call.1} parent=111 // pred_region
          %p708 = scmp.lt.s32.totalorder %s36, 1
          %s709 = scalar_select %p708, %s36, 1
          %s710 = smul.addr %s709, 4
          %s711 = smul.addr %s710, 4
          %s712 = scalar_lea.vmem %s0, %s711
        $region116: #{tpu_custom_call.1} parent=111 // pred_fallthru
          _
      $region112: #{tpu_custom_call.1} parent=5 // pred_fallthru
        _
      %p713 = scmp.le.s32.totalorder 1, %s36
      %p714 = scmp.lt.s32.totalorder %s36, 3
      %p715 = pnand %p713, %p714
      %p716 = pneg %p715
      // Predicated region
      $region117: #{tpu_custom_call.1} parent=5 // pred_check
        _
      $region118: #{tpu_custom_call.1} parent=5 // pred_check_branch
        %718 = sbr.rel (%p715) target = $region120
      $region119: #{tpu_custom_call.1} parent=5 // pred_region
        %s719 = ssub.s32 %s36, 1
        // Predicated region
        $region121: #{tpu_custom_call.1} parent=119 // pred_check
          %p720 = pneg %p167
        $region122: #{tpu_custom_call.1} parent=119 // pred_check_branch
          %722 = sbr.rel (%p720) target = $region124
        $region123: #{tpu_custom_call.1} parent=119 // pred_region
          %724 = dma.done [#allocation3], 2304
        $region124: #{tpu_custom_call.1} parent=119 // pred_fallthru
          _
        // Predicated region
        $region125: #{tpu_custom_call.1} parent=119 // pred_check
          %p725 = pneg %p356
        $region126: #{tpu_custom_call.1} parent=119 // pred_check_branch
          %727 = sbr.rel (%p725) target = $region128
        $region127: #{tpu_custom_call.1} parent=119 // pred_region
          %729 = dma.done [#allocation6], 2304
        $region128: #{tpu_custom_call.1} parent=119 // pred_fallthru
          _
        %p730 = scmp.lt.s32.totalorder %s41, 1
        %s731 = scalar_select %p730, %s41, 1
        %s732 = smul.addr %s731, 4
        %s733 = smul.addr %s732, 4
        %s734 = scalar_lea.vmem %s0, %s733
        %p735 = pneg %p62
        %p736 = pneg %p59
        %p737 = pneg %p83
        %p738 = pneg %p80
        %p739 = pneg %p104
        %p740 = pneg %p101
        %p741 = pneg %p125
        %p742 = pneg %p122
        %p743 = pneg %p146
        %p744 = pneg %p143
        %p745 = pneg %p167
        %p746 = pneg %p164
        %p747 = pneg %p188
        %p748 = pneg %p185
        %p749 = pneg %p209
        %p750 = pneg %p206
        %p751 = pneg %p230
        %p752 = pneg %p227
        %p753 = pneg %p251
        %p754 = pneg %p248
        %p755 = pneg %p272
        %p756 = pneg %p269
        %p757 = pneg %p293
        %p758 = pneg %p290
        %p759 = pneg %p314
        %p760 = pneg %p311
        %p761 = pneg %p335
        %p762 = pneg %p332
        %p763 = pneg %p356
        %p764 = pneg %p353
        %p765 = pneg %p377
        %p766 = pneg %p374
        %p767 = pneg %p398
        %p768 = pneg %p395
        %p769 = pneg %p419
        %p770 = pneg %p416
        %p771 = pneg %p440
        %p772 = pneg %p437
        %p773 = pneg %p461
        %p774 = pneg %p458
        %p775 = pneg %p482
        %p776 = pneg %p479
        %p777 = pneg %p503
        %p778 = pneg %p500
        %p779 = pneg %p524
        %p780 = pneg %p521
        %p781 = pneg %p545
        %p782 = pneg %p542
        %p783 = pneg %p566
        %p784 = pneg %p563
        %p785 = pneg %p592
        %p786 = pneg %p589
        %s787 = sand.u32 %s579, 1
        %s788 = scalar_lea.sflag [#allocation4], %s787
        %s789 = sand.u32 %s579, 1
        %s790 = smul.addr %s789, 64
        %s791 = scalar_lea.vmem [#allocation7], %s790
        %p792 = scmp.lt.s32.totalorder %s41, 1
        %s793 = scalar_select %p792, %s41, 1
        %s794 = smul.addr %s793, 4
        %s795 = smul.addr %s794, 4
        %s796 = scalar_lea.vmem %s0, %s795
        %v798 = vld [vmem:[%s796] sm:$0xff]
        %v799 = vld [vmem:[%s796 + $0x8] sm:$0xff]
        %v800 = vld [vmem:[%s1] sm:$0xf]
        %v801 = vld [vmem:[%s1 + $0x4] sm:$0xf]
        %v802 = vld [vmem:[%s1 + $0x8] sm:$0xf]
        %v803 = vld [vmem:[%s1 + $0xc] sm:$0xf]
        %v808 = vunpack.c.l.b16 %v800
        %v809 = vunpack.c.l.b16 %v801
        %v810 = vunpack.c.l.b16 %v802
        %v811 = vunpack.c.l.b16 %v803
        %v812 = vpack.c.b16 %v809, %v808
        %v813 = vpack.c.b16 %v811, %v810
        %v816 = vunpack.c.l.b16 %v798
        %v817 = vunpack.c.h.b16 %v798
        %v818 = vunpack.c.l.b16 %v799
        %v819 = vunpack.c.h.b16 %v799
        %v820 = vpack.c.b16 %v818, %v816
        %v821 = vpack.c.b16 %v819, %v817
        %vm824 = vcmask 130048
        %v826 = vsel %vm824, %v812, 0
        %v829 = vsel %vm824, %v813, 0
        %831 = vmatpush.bf16.msra.mxu0 0
        %832 = vmatpush.bf16.msra.mxu0 0
        %833 = vmatpush.bf16.msra.mxu0 0
        %834 = vmatpush.bf16.msra.mxu0 0
        %835 = vmatpush.bf16.msra.mxu0 0
        %836 = vmatpush.bf16.msra.mxu0 0
        %837 = vmatpush.bf16.msra.mxu0 0
        %838 = vmatpush.bf16.msra.mxu0 %v820
        %839 = vmatmul.bf16.gmra.mxu0 %v826
        %v840 = vpop.f32.mrf.mxu0
        %v841 = vadd.f32 0.0, %v840
        %v842 = vpop.f32.mrf.mxu0
        %v843 = vadd.f32 0.0, %v842
        %844 = vmatmul.bf16.gmra.mxu0 %v829
        %v845 = vpop.f32.mrf.mxu0
        %v846 = vadd.f32 0.0, %v845
        %v847 = vpop.f32.mrf.mxu0
        %v848 = vadd.f32 0.0, %v847
        %849 = vdwg.mxu0
        %850 = vmatpush.bf16.msra.mxu0 0
        %851 = vmatpush.bf16.msra.mxu0 0
        %852 = vmatpush.bf16.msra.mxu0 0
        %853 = vmatpush.bf16.msra.mxu0 0
        %854 = vmatpush.bf16.msra.mxu0 0
        %855 = vmatpush.bf16.msra.mxu0 0
        %856 = vmatpush.bf16.msra.mxu0 0
        %857 = vmatpush.bf16.msra.mxu0 %v821
        %858 = vmatmul.bf16.gmra.mxu0 %v826
        %v859 = vpop.f32.mrf.mxu0
        %v860 = vadd.f32 0.0, %v859
        %v861 = vpop.f32.mrf.mxu0
        %v862 = vadd.f32 0.0, %v861
        %863 = vmatmul.bf16.gmra.mxu0 %v829
        %v864 = vpop.f32.mrf.mxu0
        %v865 = vadd.f32 0.0, %v864
        %v866 = vpop.f32.mrf.mxu0
        %v867 = vadd.f32 0.0, %v866
        %868 = vdwg.mxu0
        %v869 = vld [vmem:[%s2] sm:$0xff]
        %v870 = vld [vmem:[%s2 + $0x8] sm:$0xff]
        %v871 = vld [vmem:[%s2 + $0x10] sm:$0xff]
        %v872 = vld [vmem:[%s2 + $0x18] sm:$0xff]
        %874 = vset.pattern.permute.xlu0 0
        %875 = vperm.xlu0 %874, %v869
        %v876 = vpop.permute.xlu0 %875
        %879 = vset.pattern.permute.xlu0 0
        %880 = vperm.xlu0 %879, %v870
        %v881 = vpop.permute.xlu0 %880
        %884 = vset.pattern.permute.xlu0 0
        %885 = vperm.xlu0 %884, %v871
        %v886 = vpop.permute.xlu0 %885
        %889 = vset.pattern.permute.xlu0 0
        %890 = vperm.xlu0 %889, %v872
        %v891 = vpop.permute.xlu0 %890
        %v893 = vmul.f32 %v841, %v876
        %v894 = vmul.f32 %v860, %v876
        %v895 = vmul.f32 %v843, %v881
        %v896 = vmul.f32 %v862, %v881
        %v897 = vmul.f32 %v846, %v886
        %v898 = vmul.f32 %v865, %v886
        %v899 = vmul.f32 %v848, %v891
        %v900 = vmul.f32 %v867, %v891
        %v901 = vld [vmem:[%s3] sm:$0xff]
        %v902 = vld [vmem:[%s3 + $0x8] sm:$0xff]
        %v903 = vld [vmem:[%s3 + $0x10] sm:$0xff]
        %v904 = vld [vmem:[%s3 + $0x18] sm:$0xff]
        %906 = vset.pattern.permute.xlu0 0
        %907 = vperm.xlu0 %906, %v901
        %v908 = vpop.permute.xlu0 %907
        %911 = vset.pattern.permute.xlu0 0
        %912 = vperm.xlu0 %911, %v902
        %v913 = vpop.permute.xlu0 %912
        %916 = vset.pattern.permute.xlu0 0
        %917 = vperm.xlu0 %916, %v903
        %v918 = vpop.permute.xlu0 %917
        %921 = vset.pattern.permute.xlu0 0
        %922 = vperm.xlu0 %921, %v904
        %v923 = vpop.permute.xlu0 %922
        %v925 = vadd.f32 %v893, %v908
        %v926 = vadd.f32 %v894, %v908
        %v927 = vadd.f32 %v895, %v913
        %v928 = vadd.f32 %v896, %v913
        %v929 = vadd.f32 %v897, %v918
        %v930 = vadd.f32 %v898, %v918
        %v931 = vadd.f32 %v899, %v923
        %v932 = vadd.f32 %v900, %v923
        %v933 = vmin.f32 %v925, 20.0
        %v934 = vmin.f32 %v926, 20.0
        %v935 = vmin.f32 %v927, 20.0
        %v936 = vmin.f32 %v928, 20.0
        %v937 = vmin.f32 %v929, 20.0
        %v938 = vmin.f32 %v930, 20.0
        %v939 = vmin.f32 %v931, 20.0
        %v940 = vmin.f32 %v932, 20.0
        %v941 = vmul.f32 %v933, 1.442695
        %v942 = vpow.pop %v941
        %v943 = vmul.f32 %v934, 1.442695
        %v944 = vpow.pop %v943
        %v945 = vmul.f32 %v935, 1.442695
        %v946 = vpow.pop %v945
        %v947 = vmul.f32 %v936, 1.442695
        %v948 = vpow.pop %v947
        %v949 = vmul.f32 %v937, 1.442695
        %v950 = vpow.pop %v949
        %v951 = vmul.f32 %v938, 1.442695
        %v952 = vpow.pop %v951
        %v953 = vmul.f32 %v939, 1.442695
        %v954 = vpow.pop %v953
        %v955 = vmul.f32 %v940, 1.442695
        %v956 = vpow.pop %v955
        %v957 = vadd.f32 %v942, 2.0
        %v958 = vadd.f32 %v944, 2.0
        %v959 = vadd.f32 %v946, 2.0
        %v960 = vadd.f32 %v948, 2.0
        %v961 = vadd.f32 %v950, 2.0
        %v962 = vadd.f32 %v952, 2.0
        %v963 = vadd.f32 %v954, 2.0
        %v964 = vadd.f32 %v956, 2.0
        %v965 = vmul.f32 %v942, %v957
        %v966 = vmul.f32 %v944, %v958
        %v967 = vmul.f32 %v946, %v959
        %v968 = vmul.f32 %v948, %v960
        %v969 = vmul.f32 %v950, %v961
        %v970 = vmul.f32 %v952, %v962
        %v971 = vmul.f32 %v954, %v963
        %v972 = vmul.f32 %v956, %v964
        %v973 = vmul.f32 %v925, %v965
        %v974 = vmul.f32 %v926, %v966
        %v975 = vmul.f32 %v927, %v967
        %v976 = vmul.f32 %v928, %v968
        %v977 = vmul.f32 %v929, %v969
        %v978 = vmul.f32 %v930, %v970
        %v979 = vmul.f32 %v931, %v971
        %v980 = vmul.f32 %v932, %v972
        %v981 = vadd.f32 %v965, 2.0
        %v982 = vadd.f32 %v966, 2.0
        %v983 = vadd.f32 %v967, 2.0
        %v984 = vadd.f32 %v968, 2.0
        %v985 = vadd.f32 %v969, 2.0
        %v986 = vadd.f32 %v970, 2.0
        %v987 = vadd.f32 %v971, 2.0
        %v988 = vadd.f32 %v972, 2.0
        %v989 = vrcp.pop %v981
        %v990 = vrcp.pop %v982
        %v991 = vrcp.pop %v983
        %v992 = vrcp.pop %v984
        %v993 = vrcp.pop %v985
        %v994 = vrcp.pop %v986
        %v995 = vrcp.pop %v987
        %v996 = vrcp.pop %v988
        %v997 = vmul.f32 %v973, %v989
        %v998 = vmul.f32 %v974, %v990
        %v999 = vmul.f32 %v975, %v991
        %v1000 = vmul.f32 %v976, %v992
        %v1001 = vmul.f32 %v977, %v993
        %v1002 = vmul.f32 %v978, %v994
        %v1003 = vmul.f32 %v979, %v995
        %v1004 = vmul.f32 %v980, %v996
        %vm1005 = vcmp.gt.f32.partialorder %v925, 20.0
        %vm1006 = vcmp.gt.f32.partialorder %v926, 20.0
        %vm1007 = vcmp.gt.f32.partialorder %v927, 20.0
        %vm1008 = vcmp.gt.f32.partialorder %v928, 20.0
        %vm1009 = vcmp.gt.f32.partialorder %v929, 20.0
        %vm1010 = vcmp.gt.f32.partialorder %v930, 20.0
        %vm1011 = vcmp.gt.f32.partialorder %v931, 20.0
        %vm1012 = vcmp.gt.f32.partialorder %v932, 20.0
        %v1013 = vsel %vm1005, %v925, %v997
        %v1014 = vsel %vm1006, %v926, %v998
        %v1015 = vsel %vm1007, %v927, %v999
        %v1016 = vsel %vm1008, %v928, %v1000
        %v1017 = vsel %vm1009, %v929, %v1001
        %v1018 = vsel %vm1010, %v930, %v1002
        %v1019 = vsel %vm1011, %v931, %v1003
        %v1020 = vsel %vm1012, %v932, %v1004
        %1021 = vxpose.xlu0.b32.start [1/16] %v1013, 128
        %1022 = vxpose.xlu0.b32.cont [2/16] %v1015, 128
        %1023 = vxpose.xlu0.b32.cont [3/16] %v1017, 128
        %1024 = vxpose.xlu0.b32.cont [4/16] %v1019, 128
        %1025 = vxpose.xlu0.b32.cont [5/16] 0.0, 128
        %1026 = vxpose.xlu0.b32.cont [6/16] 0.0, 128
        %1027 = vxpose.xlu0.b32.cont [7/16] 0.0, 128
        %1028 = vxpose.xlu0.b32.cont [8/16] 0.0, 128
        %1029 = vxpose.xlu0.b32.cont [9/16] 0.0, 128
        %1030 = vxpose.xlu0.b32.cont [10/16] 0.0, 128
        %1031 = vxpose.xlu0.b32.cont [11/16] 0.0, 128
        %1032 = vxpose.xlu0.b32.cont [12/16] 0.0, 128
        %1033 = vxpose.xlu0.b32.cont [13/16] 0.0, 128
        %1034 = vxpose.xlu0.b32.cont [14/16] 0.0, 128
        %1035 = vxpose.xlu0.b32.cont [15/16] 0.0, 128
        %1036 = vxpose.xlu0.b32.end [16/16] 0.0, 128
        %v1037 = vpop.trf.xlu0
        %v1038 = vpop.trf.xlu0
        %v1039 = vpop.trf.xlu0
        %v1040 = vpop.trf.xlu0
        %v1041 = vpop.trf.xlu0
        %v1042 = vpop.trf.xlu0
        %v1043 = vpop.trf.xlu0
        %v1044 = vpop.trf.xlu0
        %v1045 = vpop.trf.xlu0
        %v1046 = vpop.trf.xlu0
        %v1047 = vpop.trf.xlu0
        %v1048 = vpop.trf.xlu0
        %v1049 = vpop.trf.xlu0
        %v1050 = vpop.trf.xlu0
        %v1051 = vpop.trf.xlu0
        %v1052 = vpop.trf.xlu0
        %1053 = vxpose.xlu0.b32.start [1/16] %v1014, 128
        %1054 = vxpose.xlu0.b32.cont [2/16] %v1016, 128
        %1055 = vxpose.xlu0.b32.cont [3/16] %v1018, 128
        %1056 = vxpose.xlu0.b32.cont [4/16] %v1020, 128
        %1057 = vxpose.xlu0.b32.cont [5/16] 0.0, 128
        %1058 = vxpose.xlu0.b32.cont [6/16] 0.0, 128
        %1059 = vxpose.xlu0.b32.cont [7/16] 0.0, 128
        %1060 = vxpose.xlu0.b32.cont [8/16] 0.0, 128
        %1061 = vxpose.xlu0.b32.cont [9/16] 0.0, 128
        %1062 = vxpose.xlu0.b32.cont [10/16] 0.0, 128
        %1063 = vxpose.xlu0.b32.cont [11/16] 0.0, 128
        %1064 = vxpose.xlu0.b32.cont [12/16] 0.0, 128
        %1065 = vxpose.xlu0.b32.cont [13/16] 0.0, 128
        %1066 = vxpose.xlu0.b32.cont [14/16] 0.0, 128
        %1067 = vxpose.xlu0.b32.cont [15/16] 0.0, 128
        %1068 = vxpose.xlu0.b32.end [16/16] 0.0, 128
        %v1069 = vpop.trf.xlu0
        %v1070 = vpop.trf.xlu0
        %v1071 = vpop.trf.xlu0
        %v1072 = vpop.trf.xlu0
        %v1073 = vpop.trf.xlu0
        %v1074 = vpop.trf.xlu0
        %v1075 = vpop.trf.xlu0
        %v1076 = vpop.trf.xlu0
        %v1077 = vpop.trf.xlu0
        %v1078 = vpop.trf.xlu0
        %v1079 = vpop.trf.xlu0
        %v1080 = vpop.trf.xlu0
        %v1081 = vpop.trf.xlu0
        %v1082 = vpop.trf.xlu0
        %v1083 = vpop.trf.xlu0
        %v1084 = vpop.trf.xlu0
        %vm1116 = vcmask 1040384
        %v1117 = vrot.slane 0.0, 7
        %v1118 = vsel %vm1116, %v1117, %v1117
        %v1119 = vrot.slane %v1037, 7
        %v1120 = vrot.slane %v1038, 7
        %v1121 = vsel %vm1116, %v1119, %v1120
        %v1122 = vrot.slane %v1039, 7
        %v1123 = vrot.slane %v1040, 7
        %v1124 = vsel %vm1116, %v1122, %v1123
        %v1125 = vrot.slane %v1041, 7
        %v1126 = vrot.slane %v1042, 7
        %v1127 = vsel %vm1116, %v1125, %v1126
        %v1128 = vrot.slane %v1043, 7
        %v1129 = vrot.slane %v1044, 7
        %v1130 = vsel %vm1116, %v1128, %v1129
        %v1131 = vrot.slane %v1045, 7
        %v1132 = vrot.slane %v1046, 7
        %v1133 = vsel %vm1116, %v1131, %v1132
        %v1134 = vrot.slane %v1047, 7
        %v1135 = vrot.slane %v1048, 7
        %v1136 = vsel %vm1116, %v1134, %v1135
        %v1137 = vrot.slane %v1049, 7
        %v1138 = vrot.slane %v1050, 7
        %v1139 = vsel %vm1116, %v1137, %v1138
        %v1140 = vrot.slane %v1051, 7
        %v1141 = vrot.slane %v1052, 7
        %v1142 = vsel %vm1116, %v1140, %v1141
        %v1143 = vrot.slane %v1069, 7
        %v1144 = vrot.slane %v1070, 7
        %v1145 = vsel %vm1116, %v1143, %v1144
        %v1146 = vrot.slane %v1071, 7
        %v1147 = vrot.slane %v1072, 7
        %v1148 = vsel %vm1116, %v1146, %v1147
        %v1149 = vrot.slane %v1073, 7
        %v1150 = vrot.slane %v1074, 7
        %v1151 = vsel %vm1116, %v1149, %v1150
        %v1152 = vrot.slane %v1075, 7
        %v1153 = vrot.slane %v1076, 7
        %v1154 = vsel %vm1116, %v1152, %v1153
        %v1155 = vrot.slane %v1077, 7
        %v1156 = vrot.slane %v1078, 7
        %v1157 = vsel %vm1116, %v1155, %v1156
        %v1158 = vrot.slane %v1079, 7
        %v1159 = vrot.slane %v1080, 7
        %v1160 = vsel %vm1116, %v1158, %v1159
        %v1161 = vrot.slane %v1081, 7
        %v1162 = vrot.slane %v1082, 7
        %v1163 = vsel %vm1116, %v1161, %v1162
        %v1196 = vsel %vm1116, 0.0, %v1117
        %v1197 = vsel %vm1116, 0.0, %v1119
        %v1198 = vsel %vm1116, 0.0, %v1122
        %v1199 = vsel %vm1116, 0.0, %v1125
        %v1200 = vsel %vm1116, 0.0, %v1128
        %v1201 = vsel %vm1116, 0.0, %v1131
        %v1202 = vsel %vm1116, 0.0, %v1134
        %v1203 = vsel %vm1116, 0.0, %v1137
        %v1204 = vsel %vm1116, 0.0, %v1140
        %v1205 = vsel %vm1116, 0.0, %v1143
        %v1206 = vsel %vm1116, 0.0, %v1146
        %v1207 = vsel %vm1116, 0.0, %v1149
        %v1208 = vsel %vm1116, 0.0, %v1152
        %v1209 = vsel %vm1116, 0.0, %v1155
        %v1210 = vsel %vm1116, 0.0, %v1158
        %v1211 = vsel %vm1116, 0.0, %v1161
        %v1212 = vpack.c.bf16 %v1118, %v1196
        %v1213 = vpack.c.bf16 %v1121, %v1197
        %v1214 = vpack.c.bf16 %v1124, %v1198
        %v1215 = vpack.c.bf16 %v1127, %v1199
        %v1216 = vpack.c.bf16 %v1130, %v1200
        %v1217 = vpack.c.bf16 %v1133, %v1201
        %v1218 = vpack.c.bf16 %v1136, %v1202
        %v1219 = vpack.c.bf16 %v1139, %v1203
        %v1220 = vpack.c.bf16 %v1142, %v1204
        %v1221 = vpack.c.bf16 %v1145, %v1205
        %v1222 = vpack.c.bf16 %v1148, %v1206
        %v1223 = vpack.c.bf16 %v1151, %v1207
        %v1224 = vpack.c.bf16 %v1154, %v1208
        %v1225 = vpack.c.bf16 %v1157, %v1209
        %v1226 = vpack.c.bf16 %v1160, %v1210
        %v1227 = vpack.c.bf16 %v1163, %v1211
        %v1228 = vld [vmem:[#allocation2] sm:$0xf]
        %v1229 = vld [vmem:[#allocation2 + $0x4] sm:$0xf]
        %v1230 = vld [vmem:[#allocation2 + $0x8] sm:$0xf]
        %v1231 = vld [vmem:[#allocation2 + $0xc] sm:$0xf]
        %v1232 = vpack.c.bf16 0.0, 0.0
        %v1233 = vpack.c.bf16 %v1038, %v1037
        %v1234 = vpack.c.bf16 %v1040, %v1039
        %v1235 = vpack.c.bf16 %v1042, %v1041
        %v1236 = vpack.c.bf16 %v1044, %v1043
        %v1237 = vpack.c.bf16 %v1046, %v1045
        %v1238 = vpack.c.bf16 %v1048, %v1047
        %v1239 = vpack.c.bf16 %v1050, %v1049
        %v1240 = vpack.c.bf16 %v1052, %v1051
        %v1241 = vpack.c.bf16 %v1070, %v1069
        %v1242 = vpack.c.bf16 %v1072, %v1071
        %v1243 = vpack.c.bf16 %v1074, %v1073
        %v1244 = vpack.c.bf16 %v1076, %v1075
        %v1245 = vpack.c.bf16 %v1078, %v1077
        %v1246 = vpack.c.bf16 %v1080, %v1079
        %v1247 = vpack.c.bf16 %v1082, %v1081
        %s1248 = scalar_lea.vmem [#allocation2], 16
        %v1249 = vld [vmem:[%s1248] sm:$0xf]
        %v1250 = vld [vmem:[%s1248 + $0x4] sm:$0xf]
        %v1251 = vld [vmem:[%s1248 + $0x8] sm:$0xf]
        %v1252 = vld [vmem:[%s1248 + $0xc] sm:$0xf]
        %v1257 = vunpack.c.l.b16 %v1249
        %v1258 = vunpack.c.l.b16 %v1250
        %v1259 = vunpack.c.l.b16 %v1251
        %v1260 = vunpack.c.l.b16 %v1252
        %v1261 = vpack.c.b16 %v1258, %v1257
        %v1262 = vpack.c.b16 %v1260, %v1259
        %vm1265 = vcmask 261120
        %v1267 = vsel %vm1265, %v1232, 0
        %v1270 = vsel %vm1265, %v1233, 0
        %v1273 = vsel %vm1265, %v1234, 0
        %v1276 = vsel %vm1265, %v1235, 0
        %v1279 = vsel %vm1265, %v1236, 0
        %v1282 = vsel %vm1265, %v1237, 0
        %v1285 = vsel %vm1265, %v1238, 0
        %v1288 = vsel %vm1265, %v1239, 0
        %v1291 = vsel %vm1265, %v1240, 0
        %v1294 = vsel %vm1265, %v1241, 0
        %v1297 = vsel %vm1265, %v1242, 0
        %v1300 = vsel %vm1265, %v1243, 0
        %v1303 = vsel %vm1265, %v1244, 0
        %v1306 = vsel %vm1265, %v1245, 0
        %v1309 = vsel %vm1265, %v1246, 0
        %v1312 = vsel %vm1265, %v1247, 0
        %1314 = vmatpush.bf16.msra.mxu0 0
        %1315 = vmatpush.bf16.msra.mxu0 0
        %1316 = vmatpush.bf16.msra.mxu0 0
        %1317 = vmatpush.bf16.msra.mxu0 0
        %1318 = vmatpush.bf16.msra.mxu0 0
        %1319 = vmatpush.bf16.msra.mxu0 0
        %1320 = vmatpush.bf16.msra.mxu0 %v1262
        %1321 = vmatpush.bf16.msra.mxu0 %v1261
        %1322 = vmatmul.bf16.gmra.mxu0 %v1267
        %v1323 = vpop.f32.mrf.mxu0
        %v1324 = vadd.f32 0.0, %v1323
        %v1325 = vpop.f32.mrf.mxu0
        %v1326 = vadd.f32 0.0, %v1325
        %1327 = vmatmul.bf16.gmra.mxu0 %v1270
        %v1328 = vpop.f32.mrf.mxu0
        %v1329 = vadd.f32 0.0, %v1328
        %v1330 = vpop.f32.mrf.mxu0
        %v1331 = vadd.f32 0.0, %v1330
        %1332 = vmatmul.bf16.gmra.mxu0 %v1273
        %v1333 = vpop.f32.mrf.mxu0
        %v1334 = vadd.f32 0.0, %v1333
        %v1335 = vpop.f32.mrf.mxu0
        %v1336 = vadd.f32 0.0, %v1335
        %1337 = vmatmul.bf16.gmra.mxu0 %v1276
        %v1338 = vpop.f32.mrf.mxu0
        %v1339 = vadd.f32 0.0, %v1338
        %v1340 = vpop.f32.mrf.mxu0
        %v1341 = vadd.f32 0.0, %v1340
        %1342 = vmatmul.bf16.gmra.mxu0 %v1279
        %v1343 = vpop.f32.mrf.mxu0
        %v1344 = vadd.f32 0.0, %v1343
        %v1345 = vpop.f32.mrf.mxu0
        %v1346 = vadd.f32 0.0, %v1345
        %1347 = vmatmul.bf16.gmra.mxu0 %v1282
        %v1348 = vpop.f32.mrf.mxu0
        %v1349 = vadd.f32 0.0, %v1348
        %v1350 = vpop.f32.mrf.mxu0
        %v1351 = vadd.f32 0.0, %v1350
        %1352 = vmatmul.bf16.gmra.mxu0 %v1285
        %v1353 = vpop.f32.mrf.mxu0
        %v1354 = vadd.f32 0.0, %v1353
        %v1355 = vpop.f32.mrf.mxu0
        %v1356 = vadd.f32 0.0, %v1355
        %1357 = vmatmul.bf16.gmra.mxu0 %v1288
        %v1358 = vpop.f32.mrf.mxu0
        %v1359 = vadd.f32 0.0, %v1358
        %v1360 = vpop.f32.mrf.mxu0
        %v1361 = vadd.f32 0.0, %v1360
        %1362 = vmatmul.bf16.gmra.mxu0 %v1291
        %v1363 = vpop.f32.mrf.mxu0
        %v1364 = vadd.f32 0.0, %v1363
        %v1365 = vpop.f32.mrf.mxu0
        %v1366 = vadd.f32 0.0, %v1365
        %1367 = vmatmul.bf16.gmra.mxu0 %v1294
        %v1368 = vpop.f32.mrf.mxu0
        %v1369 = vadd.f32 0.0, %v1368
        %v1370 = vpop.f32.mrf.mxu0
        %v1371 = vadd.f32 0.0, %v1370
        %1372 = vmatmul.bf16.gmra.mxu0 %v1297
        %v1373 = vpop.f32.mrf.mxu0
        %v1374 = vadd.f32 0.0, %v1373
        %v1375 = vpop.f32.mrf.mxu0
        %v1376 = vadd.f32 0.0, %v1375
        %1377 = vmatmul.bf16.gmra.mxu0 %v1300
        %v1378 = vpop.f32.mrf.mxu0
        %v1379 = vadd.f32 0.0, %v1378
        %v1380 = vpop.f32.mrf.mxu0
        %v1381 = vadd.f32 0.0, %v1380
        %1382 = vmatmul.bf16.gmra.mxu0 %v1303
        %v1383 = vpop.f32.mrf.mxu0
        %v1384 = vadd.f32 0.0, %v1383
        %v1385 = vpop.f32.mrf.mxu0
        %v1386 = vadd.f32 0.0, %v1385
        %1387 = vmatmul.bf16.gmra.mxu0 %v1306
        %v1388 = vpop.f32.mrf.mxu0
        %v1389 = vadd.f32 0.0, %v1388
        %v1390 = vpop.f32.mrf.mxu0
        %v1391 = vadd.f32 0.0, %v1390
        %1392 = vmatmul.bf16.gmra.mxu0 %v1309
        %v1393 = vpop.f32.mrf.mxu0
        %v1394 = vadd.f32 0.0, %v1393
        %v1395 = vpop.f32.mrf.mxu0
        %v1396 = vadd.f32 0.0, %v1395
        %1397 = vmatmul.bf16.gmra.mxu0 %v1312
        %v1398 = vpop.f32.mrf.mxu0
        %v1399 = vadd.f32 0.0, %v1398
        %v1400 = vpop.f32.mrf.mxu0
        %v1401 = vadd.f32 0.0, %v1400
        %1402 = vdwg.mxu0
        %v1407 = vunpack.c.l.b16 %v1228
        %v1408 = vunpack.c.l.b16 %v1229
        %v1409 = vunpack.c.l.b16 %v1230
        %v1410 = vunpack.c.l.b16 %v1231
        %v1411 = vpack.c.b16 %v1408, %v1407
        %v1412 = vpack.c.b16 %v1410, %v1409
        %v1416 = vsel %vm1265, %v1212, 0
        %v1419 = vsel %vm1265, %v1213, 0
        %v1422 = vsel %vm1265, %v1214, 0
        %v1425 = vsel %vm1265, %v1215, 0
        %v1428 = vsel %vm1265, %v1216, 0
        %v1431 = vsel %vm1265, %v1217, 0
        %v1434 = vsel %vm1265, %v1218, 0
        %v1437 = vsel %vm1265, %v1219, 0
        %v1440 = vsel %vm1265, %v1220, 0
        %v1443 = vsel %vm1265, %v1221, 0
        %v1446 = vsel %vm1265, %v1222, 0
        %v1449 = vsel %vm1265, %v1223, 0
        %v1452 = vsel %vm1265, %v1224, 0
        %v1455 = vsel %vm1265, %v1225, 0
        %v1458 = vsel %vm1265, %v1226, 0
        %v1461 = vsel %vm1265, %v1227, 0
        %1463 = vmatpush.bf16.msra.mxu0 0
        %1464 = vmatpush.bf16.msra.mxu0 0
        %1465 = vmatpush.bf16.msra.mxu0 0
        %1466 = vmatpush.bf16.msra.mxu0 0
        %1467 = vmatpush.bf16.msra.mxu0 0
        %1468 = vmatpush.bf16.msra.mxu0 0
        %1469 = vmatpush.bf16.msra.mxu0 %v1412
        %1470 = vmatpush.bf16.msra.mxu0 %v1411
        %1471 = vmatmul.bf16.gmra.mxu0 %v1416
        %v1472 = vpop.f32.mrf.mxu0
        %v1473 = vadd.f32 %v1324, %v1472
        %v1474 = vpop.f32.mrf.mxu0
        %v1475 = vadd.f32 %v1326, %v1474
        %1476 = vmatmul.bf16.gmra.mxu0 %v1419
        %v1477 = vpop.f32.mrf.mxu0
        %v1478 = vadd.f32 %v1329, %v1477
        %v1479 = vpop.f32.mrf.mxu0
        %v1480 = vadd.f32 %v1331, %v1479
        %1481 = vmatmul.bf16.gmra.mxu0 %v1422
        %v1482 = vpop.f32.mrf.mxu0
        %v1483 = vadd.f32 %v1334, %v1482
        %v1484 = vpop.f32.mrf.mxu0
        %v1485 = vadd.f32 %v1336, %v1484
        %1486 = vmatmul.bf16.gmra.mxu0 %v1425
        %v1487 = vpop.f32.mrf.mxu0
        %v1488 = vadd.f32 %v1339, %v1487
        %v1489 = vpop.f32.mrf.mxu0
        %v1490 = vadd.f32 %v1341, %v1489
        %1491 = vmatmul.bf16.gmra.mxu0 %v1428
        %v1492 = vpop.f32.mrf.mxu0
        %v1493 = vadd.f32 %v1344, %v1492
        %v1494 = vpop.f32.mrf.mxu0
        %v1495 = vadd.f32 %v1346, %v1494
        %1496 = vmatmul.bf16.gmra.mxu0 %v1431
        %v1497 = vpop.f32.mrf.mxu0
        %v1498 = vadd.f32 %v1349, %v1497
        %v1499 = vpop.f32.mrf.mxu0
        %v1500 = vadd.f32 %v1351, %v1499
        %1501 = vmatmul.bf16.gmra.mxu0 %v1434
        %v1502 = vpop.f32.mrf.mxu0
        %v1503 = vadd.f32 %v1354, %v1502
        %v1504 = vpop.f32.mrf.mxu0
        %v1505 = vadd.f32 %v1356, %v1504
        %1506 = vmatmul.bf16.gmra.mxu0 %v1437
        %v1507 = vpop.f32.mrf.mxu0
        %v1508 = vadd.f32 %v1359, %v1507
        %v1509 = vpop.f32.mrf.mxu0
        %v1510 = vadd.f32 %v1361, %v1509
        %1511 = vmatmul.bf16.gmra.mxu0 %v1440
        %v1512 = vpop.f32.mrf.mxu0
        %v1513 = vadd.f32 %v1364, %v1512
        %v1514 = vpop.f32.mrf.mxu0
        %v1515 = vadd.f32 %v1366, %v1514
        %1516 = vmatmul.bf16.gmra.mxu0 %v1443
        %v1517 = vpop.f32.mrf.mxu0
        %v1518 = vadd.f32 %v1369, %v1517
        %v1519 = vpop.f32.mrf.mxu0
        %v1520 = vadd.f32 %v1371, %v1519
        %1521 = vmatmul.bf16.gmra.mxu0 %v1446
        %v1522 = vpop.f32.mrf.mxu0
        %v1523 = vadd.f32 %v1374, %v1522
        %v1524 = vpop.f32.mrf.mxu0
        %v1525 = vadd.f32 %v1376, %v1524
        %1526 = vmatmul.bf16.gmra.mxu0 %v1449
        %v1527 = vpop.f32.mrf.mxu0
        %v1528 = vadd.f32 %v1379, %v1527
        %v1529 = vpop.f32.mrf.mxu0
        %v1530 = vadd.f32 %v1381, %v1529
        %1531 = vmatmul.bf16.gmra.mxu0 %v1452
        %v1532 = vpop.f32.mrf.mxu0
        %v1533 = vadd.f32 %v1384, %v1532
        %v1534 = vpop.f32.mrf.mxu0
        %v1535 = vadd.f32 %v1386, %v1534
        %1536 = vmatmul.bf16.gmra.mxu0 %v1455
        %v1537 = vpop.f32.mrf.mxu0
        %v1538 = vadd.f32 %v1389, %v1537
        %v1539 = vpop.f32.mrf.mxu0
        %v1540 = vadd.f32 %v1391, %v1539
        %1541 = vmatmul.bf16.gmra.mxu0 %v1458
        %v1542 = vpop.f32.mrf.mxu0
        %v1543 = vadd.f32 %v1394, %v1542
        %v1544 = vpop.f32.mrf.mxu0
        %v1545 = vadd.f32 %v1396, %v1544
        %1546 = vmatmul.bf16.gmra.mxu0 %v1461
        %v1547 = vpop.f32.mrf.mxu0
        %v1548 = vadd.f32 %v1399, %v1547
        %v1549 = vpop.f32.mrf.mxu0
        %v1550 = vadd.f32 %v1401, %v1549
        %1551 = vdwg.mxu0
        %vm1552 = vcmask 1046528
        %v1553 = vrot.slane 0.0, 1
        %v1554 = vsel %vm1552, %v1553, %v1553
        %v1555 = vrot.slane %v1037, 1
        %v1556 = vrot.slane %v1038, 1
        %v1557 = vsel %vm1552, %v1555, %v1556
        %v1558 = vrot.slane %v1039, 1
        %v1559 = vrot.slane %v1040, 1
        %v1560 = vsel %vm1552, %v1558, %v1559
        %v1561 = vrot.slane %v1041, 1
        %v1562 = vrot.slane %v1042, 1
        %v1563 = vsel %vm1552, %v1561, %v1562
        %v1564 = vrot.slane %v1043, 1
        %v1565 = vrot.slane %v1044, 1
        %v1566 = vsel %vm1552, %v1564, %v1565
        %v1567 = vrot.slane %v1045, 1
        %v1568 = vrot.slane %v1046, 1
        %v1569 = vsel %vm1552, %v1567, %v1568
        %v1570 = vrot.slane %v1047, 1
        %v1571 = vrot.slane %v1048, 1
        %v1572 = vsel %vm1552, %v1570, %v1571
        %v1573 = vrot.slane %v1049, 1
        %v1574 = vrot.slane %v1050, 1
        %v1575 = vsel %vm1552, %v1573, %v1574
        %v1576 = vrot.slane %v1051, 1
        %v1577 = vrot.slane %v1052, 1
        %v1578 = vsel %vm1552, %v1576, %v1577
        %v1579 = vrot.slane %v1069, 1
        %v1580 = vrot.slane %v1070, 1
        %v1581 = vsel %vm1552, %v1579, %v1580
        %v1582 = vrot.slane %v1071, 1
        %v1583 = vrot.slane %v1072, 1
        %v1584 = vsel %vm1552, %v1582, %v1583
        %v1585 = vrot.slane %v1073, 1
        %v1586 = vrot.slane %v1074, 1
        %v1587 = vsel %vm1552, %v1585, %v1586
        %v1588 = vrot.slane %v1075, 1
        %v1589 = vrot.slane %v1076, 1
        %v1590 = vsel %vm1552, %v1588, %v1589
        %v1591 = vrot.slane %v1077, 1
        %v1592 = vrot.slane %v1078, 1
        %v1593 = vsel %vm1552, %v1591, %v1592
        %v1594 = vrot.slane %v1079, 1
        %v1595 = vrot.slane %v1080, 1
        %v1596 = vsel %vm1552, %v1594, %v1595
        %v1597 = vrot.slane %v1081, 1
        %v1598 = vrot.slane %v1082, 1
        %v1599 = vsel %vm1552, %v1597, %v1598
        %v1632 = vsel %vm1552, %v1553, 0.0
        %v1633 = vsel %vm1552, %v1556, 0.0
        %v1634 = vsel %vm1552, %v1559, 0.0
        %v1635 = vsel %vm1552, %v1562, 0.0
        %v1636 = vsel %vm1552, %v1565, 0.0
        %v1637 = vsel %vm1552, %v1568, 0.0
        %v1638 = vsel %vm1552, %v1571, 0.0
        %v1639 = vsel %vm1552, %v1574, 0.0
        %v1640 = vsel %vm1552, %v1577, 0.0
        %v1641 = vsel %vm1552, %v1580, 0.0
        %v1642 = vsel %vm1552, %v1583, 0.0
        %v1643 = vsel %vm1552, %v1586, 0.0
        %v1644 = vsel %vm1552, %v1589, 0.0
        %v1645 = vsel %vm1552, %v1592, 0.0
        %v1646 = vsel %vm1552, %v1595, 0.0
        %v1647 = vsel %vm1552, %v1598, 0.0
        %v1648 = vpack.c.bf16 %v1632, %v1554
        %v1649 = vpack.c.bf16 %v1633, %v1557
        %v1650 = vpack.c.bf16 %v1634, %v1560
        %v1651 = vpack.c.bf16 %v1635, %v1563
        %v1652 = vpack.c.bf16 %v1636, %v1566
        %v1653 = vpack.c.bf16 %v1637, %v1569
        %v1654 = vpack.c.bf16 %v1638, %v1572
        %v1655 = vpack.c.bf16 %v1639, %v1575
        %v1656 = vpack.c.bf16 %v1640, %v1578
        %v1657 = vpack.c.bf16 %v1641, %v1581
        %v1658 = vpack.c.bf16 %v1642, %v1584
        %v1659 = vpack.c.bf16 %v1643, %v1587
        %v1660 = vpack.c.bf16 %v1644, %v1590
        %v1661 = vpack.c.bf16 %v1645, %v1593
        %v1662 = vpack.c.bf16 %v1646, %v1596
        %v1663 = vpack.c.bf16 %v1647, %v1599
        %s1664 = scalar_lea.vmem [#allocation2], 32
        %v1665 = vld [vmem:[%s1664] sm:$0xf]
        %v1666 = vld [vmem:[%s1664 + $0x4] sm:$0xf]
        %v1667 = vld [vmem:[%s1664 + $0x8] sm:$0xf]
        %v1668 = vld [vmem:[%s1664 + $0xc] sm:$0xf]
        %v1673 = vunpack.c.l.b16 %v1665
        %v1674 = vunpack.c.l.b16 %v1666
        %v1675 = vunpack.c.l.b16 %v1667
        %v1676 = vunpack.c.l.b16 %v1668
        %v1677 = vpack.c.b16 %v1674, %v1673
        %v1678 = vpack.c.b16 %v1676, %v1675
        %v1682 = vsel %vm1265, %v1648, 0
        %v1685 = vsel %vm1265, %v1649, 0
        %v1688 = vsel %vm1265, %v1650, 0
        %v1691 = vsel %vm1265, %v1651, 0
        %v1694 = vsel %vm1265, %v1652, 0
        %v1697 = vsel %vm1265, %v1653, 0
        %v1700 = vsel %vm1265, %v1654, 0
        %v1703 = vsel %vm1265, %v1655, 0
        %v1706 = vsel %vm1265, %v1656, 0
        %v1709 = vsel %vm1265, %v1657, 0
        %v1712 = vsel %vm1265, %v1658, 0
        %v1715 = vsel %vm1265, %v1659, 0
        %v1718 = vsel %vm1265, %v1660, 0
        %v1721 = vsel %vm1265, %v1661, 0
        %v1724 = vsel %vm1265, %v1662, 0
        %v1727 = vsel %vm1265, %v1663, 0
        %1729 = vmatpush.bf16.msra.mxu0 0
        %1730 = vmatpush.bf16.msra.mxu0 0
        %1731 = vmatpush.bf16.msra.mxu0 0
        %1732 = vmatpush.bf16.msra.mxu0 0
        %1733 = vmatpush.bf16.msra.mxu0 0
        %1734 = vmatpush.bf16.msra.mxu0 0
        %1735 = vmatpush.bf16.msra.mxu0 %v1678
        %1736 = vmatpush.bf16.msra.mxu0 %v1677
        %1737 = vmatmul.bf16.gmra.mxu0 %v1682
        %v1738 = vpop.f32.mrf.mxu0
        %v1739 = vadd.f32 0.0, %v1738
        %v1740 = vpop.f32.mrf.mxu0
        %v1741 = vadd.f32 0.0, %v1740
        %1742 = vmatmul.bf16.gmra.mxu0 %v1685
        %v1743 = vpop.f32.mrf.mxu0
        %v1744 = vadd.f32 0.0, %v1743
        %v1745 = vpop.f32.mrf.mxu0
        %v1746 = vadd.f32 0.0, %v1745
        %1747 = vmatmul.bf16.gmra.mxu0 %v1688
        %v1748 = vpop.f32.mrf.mxu0
        %v1749 = vadd.f32 0.0, %v1748
        %v1750 = vpop.f32.mrf.mxu0
        %v1751 = vadd.f32 0.0, %v1750
        %1752 = vmatmul.bf16.gmra.mxu0 %v1691
        %v1753 = vpop.f32.mrf.mxu0
        %v1754 = vadd.f32 0.0, %v1753
        %v1755 = vpop.f32.mrf.mxu0
        %v1756 = vadd.f32 0.0, %v1755
        %1757 = vmatmul.bf16.gmra.mxu0 %v1694
        %v1758 = vpop.f32.mrf.mxu0
        %v1759 = vadd.f32 0.0, %v1758
        %v1760 = vpop.f32.mrf.mxu0
        %v1761 = vadd.f32 0.0, %v1760
        %1762 = vmatmul.bf16.gmra.mxu0 %v1697
        %v1763 = vpop.f32.mrf.mxu0
        %v1764 = vadd.f32 0.0, %v1763
        %v1765 = vpop.f32.mrf.mxu0
        %v1766 = vadd.f32 0.0, %v1765
        %1767 = vmatmul.bf16.gmra.mxu0 %v1700
        %v1768 = vpop.f32.mrf.mxu0
        %v1769 = vadd.f32 0.0, %v1768
        %v1770 = vpop.f32.mrf.mxu0
        %v1771 = vadd.f32 0.0, %v1770
        %1772 = vmatmul.bf16.gmra.mxu0 %v1703
        %v1773 = vpop.f32.mrf.mxu0
        %v1774 = vadd.f32 0.0, %v1773
        %v1775 = vpop.f32.mrf.mxu0
        %v1776 = vadd.f32 0.0, %v1775
        %1777 = vmatmul.bf16.gmra.mxu0 %v1706
        %v1778 = vpop.f32.mrf.mxu0
        %v1779 = vadd.f32 0.0, %v1778
        %v1780 = vpop.f32.mrf.mxu0
        %v1781 = vadd.f32 0.0, %v1780
        %1782 = vmatmul.bf16.gmra.mxu0 %v1709
        %v1783 = vpop.f32.mrf.mxu0
        %v1784 = vadd.f32 0.0, %v1783
        %v1785 = vpop.f32.mrf.mxu0
        %v1786 = vadd.f32 0.0, %v1785
        %1787 = vmatmul.bf16.gmra.mxu0 %v1712
        %v1788 = vpop.f32.mrf.mxu0
        %v1789 = vadd.f32 0.0, %v1788
        %v1790 = vpop.f32.mrf.mxu0
        %v1791 = vadd.f32 0.0, %v1790
        %1792 = vmatmul.bf16.gmra.mxu0 %v1715
        %v1793 = vpop.f32.mrf.mxu0
        %v1794 = vadd.f32 0.0, %v1793
        %v1795 = vpop.f32.mrf.mxu0
        %v1796 = vadd.f32 0.0, %v1795
        %1797 = vmatmul.bf16.gmra.mxu0 %v1718
        %v1798 = vpop.f32.mrf.mxu0
        %v1799 = vadd.f32 0.0, %v1798
        %v1800 = vpop.f32.mrf.mxu0
        %v1801 = vadd.f32 0.0, %v1800
        %1802 = vmatmul.bf16.gmra.mxu0 %v1721
        %v1803 = vpop.f32.mrf.mxu0
        %v1804 = vadd.f32 0.0, %v1803
        %v1805 = vpop.f32.mrf.mxu0
        %v1806 = vadd.f32 0.0, %v1805
        %1807 = vmatmul.bf16.gmra.mxu0 %v1724
        %v1808 = vpop.f32.mrf.mxu0
        %v1809 = vadd.f32 0.0, %v1808
        %v1810 = vpop.f32.mrf.mxu0
        %v1811 = vadd.f32 0.0, %v1810
        %1812 = vmatmul.bf16.gmra.mxu0 %v1727
        %v1813 = vpop.f32.mrf.mxu0
        %v1814 = vadd.f32 0.0, %v1813
        %v1815 = vpop.f32.mrf.mxu0
        %v1816 = vadd.f32 0.0, %v1815
        %1817 = vdwg.mxu0
        %v1818 = vadd.f32 %v1473, %v1739
        %v1819 = vadd.f32 %v1475, %v1741
        %v1820 = vadd.f32 %v1478, %v1744
        %v1821 = vadd.f32 %v1480, %v1746
        %v1822 = vadd.f32 %v1483, %v1749
        %v1823 = vadd.f32 %v1485, %v1751
        %v1824 = vadd.f32 %v1488, %v1754
        %v1825 = vadd.f32 %v1490, %v1756
        %v1826 = vadd.f32 %v1493, %v1759
        %v1827 = vadd.f32 %v1495, %v1761
        %v1828 = vadd.f32 %v1498, %v1764
        %v1829 = vadd.f32 %v1500, %v1766
        %v1830 = vadd.f32 %v1503, %v1769
        %v1831 = vadd.f32 %v1505, %v1771
        %v1832 = vadd.f32 %v1508, %v1774
        %v1833 = vadd.f32 %v1510, %v1776
        %v1834 = vadd.f32 %v1513, %v1779
        %v1835 = vadd.f32 %v1515, %v1781
        %v1836 = vadd.f32 %v1518, %v1784
        %v1837 = vadd.f32 %v1520, %v1786
        %v1838 = vadd.f32 %v1523, %v1789
        %v1839 = vadd.f32 %v1525, %v1791
        %v1840 = vadd.f32 %v1528, %v1794
        %v1841 = vadd.f32 %v1530, %v1796
        %v1842 = vadd.f32 %v1533, %v1799
        %v1843 = vadd.f32 %v1535, %v1801
        %v1844 = vadd.f32 %v1538, %v1804
        %v1845 = vadd.f32 %v1540, %v1806
        %v1846 = vadd.f32 %v1543, %v1809
        %v1847 = vadd.f32 %v1545, %v1811
        %v1848 = vadd.f32 %v1548, %v1814
        %v1849 = vadd.f32 %v1550, %v1816
        %v1852 = vrot.slane %v1083, 7
        %v1853 = vrot.slane %v1084, 7
        %v1854 = vsel %vm1116, %v1852, %v1853
        %v1857 = vsel %vm1116, 0.0, %v1852
        %v1858 = vpack.c.bf16 %v1854, %v1857
        %s1859 = scalar_lea.vmem [#allocation2], 48
        %v1860 = vld [vmem:[%s1859] sm:$0xf]
        %v1861 = vld [vmem:[%s1859 + $0x4] sm:$0xf]
        %v1862 = vld [vmem:[%s1859 + $0x8] sm:$0xf]
        %v1863 = vld [vmem:[%s1859 + $0xc] sm:$0xf]
        %v1868 = vunpack.c.l.b16 %v1860
        %v1869 = vunpack.c.l.b16 %v1861
        %v1870 = vunpack.c.l.b16 %v1862
        %v1871 = vunpack.c.l.b16 %v1863
        %v1872 = vpack.c.b16 %v1869, %v1868
        %v1873 = vpack.c.b16 %v1871, %v1870
        %v1877 = vsel %vm1265, %v1858, 0
        %1879 = vmatpush.bf16.msra.mxu0 0
        %1880 = vmatpush.bf16.msra.mxu0 0
        %1881 = vmatpush.bf16.msra.mxu0 0
        %1882 = vmatpush.bf16.msra.mxu0 0
        %1883 = vmatpush.bf16.msra.mxu0 0
        %1884 = vmatpush.bf16.msra.mxu0 0
        %1885 = vmatpush.bf16.msra.mxu0 %v1873
        %1886 = vmatpush.bf16.msra.mxu0 %v1872
        %1887 = vmatmul.bf16.gmra.mxu0 %v1419
        %v1888 = vpop.f32.mrf.mxu0
        %v1889 = vadd.f32 0.0, %v1888
        %v1890 = vpop.f32.mrf.mxu0
        %v1891 = vadd.f32 0.0, %v1890
        %1892 = vmatmul.bf16.gmra.mxu0 %v1422
        %v1893 = vpop.f32.mrf.mxu0
        %v1894 = vadd.f32 0.0, %v1893
        %v1895 = vpop.f32.mrf.mxu0
        %v1896 = vadd.f32 0.0, %v1895
        %1897 = vmatmul.bf16.gmra.mxu0 %v1425
        %v1898 = vpop.f32.mrf.mxu0
        %v1899 = vadd.f32 0.0, %v1898
        %v1900 = vpop.f32.mrf.mxu0
        %v1901 = vadd.f32 0.0, %v1900
        %1902 = vmatmul.bf16.gmra.mxu0 %v1428
        %v1903 = vpop.f32.mrf.mxu0
        %v1904 = vadd.f32 0.0, %v1903
        %v1905 = vpop.f32.mrf.mxu0
        %v1906 = vadd.f32 0.0, %v1905
        %1907 = vmatmul.bf16.gmra.mxu0 %v1431
        %v1908 = vpop.f32.mrf.mxu0
        %v1909 = vadd.f32 0.0, %v1908
        %v1910 = vpop.f32.mrf.mxu0
        %v1911 = vadd.f32 0.0, %v1910
        %1912 = vmatmul.bf16.gmra.mxu0 %v1434
        %v1913 = vpop.f32.mrf.mxu0
        %v1914 = vadd.f32 0.0, %v1913
        %v1915 = vpop.f32.mrf.mxu0
        %v1916 = vadd.f32 0.0, %v1915
        %1917 = vmatmul.bf16.gmra.mxu0 %v1437
        %v1918 = vpop.f32.mrf.mxu0
        %v1919 = vadd.f32 0.0, %v1918
        %v1920 = vpop.f32.mrf.mxu0
        %v1921 = vadd.f32 0.0, %v1920
        %1922 = vmatmul.bf16.gmra.mxu0 %v1440
        %v1923 = vpop.f32.mrf.mxu0
        %v1924 = vadd.f32 0.0, %v1923
        %v1925 = vpop.f32.mrf.mxu0
        %v1926 = vadd.f32 0.0, %v1925
        %1927 = vmatmul.bf16.gmra.mxu0 %v1443
        %v1928 = vpop.f32.mrf.mxu0
        %v1929 = vadd.f32 0.0, %v1928
        %v1930 = vpop.f32.mrf.mxu0
        %v1931 = vadd.f32 0.0, %v1930
        %1932 = vmatmul.bf16.gmra.mxu0 %v1446
        %v1933 = vpop.f32.mrf.mxu0
        %v1934 = vadd.f32 0.0, %v1933
        %v1935 = vpop.f32.mrf.mxu0
        %v1936 = vadd.f32 0.0, %v1935
        %1937 = vmatmul.bf16.gmra.mxu0 %v1449
        %v1938 = vpop.f32.mrf.mxu0
        %v1939 = vadd.f32 0.0, %v1938
        %v1940 = vpop.f32.mrf.mxu0
        %v1941 = vadd.f32 0.0, %v1940
        %1942 = vmatmul.bf16.gmra.mxu0 %v1452
        %v1943 = vpop.f32.mrf.mxu0
        %v1944 = vadd.f32 0.0, %v1943
        %v1945 = vpop.f32.mrf.mxu0
        %v1946 = vadd.f32 0.0, %v1945
        %1947 = vmatmul.bf16.gmra.mxu0 %v1455
        %v1948 = vpop.f32.mrf.mxu0
        %v1949 = vadd.f32 0.0, %v1948
        %v1950 = vpop.f32.mrf.mxu0
        %v1951 = vadd.f32 0.0, %v1950
        %1952 = vmatmul.bf16.gmra.mxu0 %v1458
        %v1953 = vpop.f32.mrf.mxu0
        %v1954 = vadd.f32 0.0, %v1953
        %v1955 = vpop.f32.mrf.mxu0
        %v1956 = vadd.f32 0.0, %v1955
        %1957 = vmatmul.bf16.gmra.mxu0 %v1461
        %v1958 = vpop.f32.mrf.mxu0
        %v1959 = vadd.f32 0.0, %v1958
        %v1960 = vpop.f32.mrf.mxu0
        %v1961 = vadd.f32 0.0, %v1960
        %1962 = vmatmul.bf16.gmra.mxu0 %v1877
        %v1963 = vpop.f32.mrf.mxu0
        %v1964 = vadd.f32 0.0, %v1963
        %v1965 = vpop.f32.mrf.mxu0
        %v1966 = vadd.f32 0.0, %v1965
        %1967 = vdwg.mxu0
        %v1968 = vadd.f32 %v1818, %v1889
        %v1969 = vadd.f32 %v1819, %v1891
        %v1970 = vadd.f32 %v1820, %v1894
        %v1971 = vadd.f32 %v1821, %v1896
        %v1972 = vadd.f32 %v1822, %v1899
        %v1973 = vadd.f32 %v1823, %v1901
        %v1974 = vadd.f32 %v1824, %v1904
        %v1975 = vadd.f32 %v1825, %v1906
        %v1976 = vadd.f32 %v1826, %v1909
        %v1977 = vadd.f32 %v1827, %v1911
        %v1978 = vadd.f32 %v1828, %v1914
        %v1979 = vadd.f32 %v1829, %v1916
        %v1980 = vadd.f32 %v1830, %v1919
        %v1981 = vadd.f32 %v1831, %v1921
        %v1982 = vadd.f32 %v1832, %v1924
        %v1983 = vadd.f32 %v1833, %v1926
        %v1984 = vadd.f32 %v1834, %v1929
        %v1985 = vadd.f32 %v1835, %v1931
        %v1986 = vadd.f32 %v1836, %v1934
        %v1987 = vadd.f32 %v1837, %v1936
        %v1988 = vadd.f32 %v1838, %v1939
        %v1989 = vadd.f32 %v1839, %v1941
        %v1990 = vadd.f32 %v1840, %v1944
        %v1991 = vadd.f32 %v1841, %v1946
        %v1992 = vadd.f32 %v1842, %v1949
        %v1993 = vadd.f32 %v1843, %v1951
        %v1994 = vadd.f32 %v1844, %v1954
        %v1995 = vadd.f32 %v1845, %v1956
        %v1996 = vadd.f32 %v1846, %v1959
        %v1997 = vadd.f32 %v1847, %v1961
        %v1998 = vadd.f32 %v1848, %v1964
        %v1999 = vadd.f32 %v1849, %v1966
        %v2000 = vpack.c.bf16 %v1084, %v1083
        %s2001 = scalar_lea.vmem [#allocation2], 64
        %v2002 = vld [vmem:[%s2001] sm:$0xf]
        %v2003 = vld [vmem:[%s2001 + $0x4] sm:$0xf]
        %v2004 = vld [vmem:[%s2001 + $0x8] sm:$0xf]
        %v2005 = vld [vmem:[%s2001 + $0xc] sm:$0xf]
        %v2010 = vunpack.c.l.b16 %v2002
        %v2011 = vunpack.c.l.b16 %v2003
        %v2012 = vunpack.c.l.b16 %v2004
        %v2013 = vunpack.c.l.b16 %v2005
        %v2014 = vpack.c.b16 %v2011, %v2010
        %v2015 = vpack.c.b16 %v2013, %v2012
        %v2019 = vsel %vm1265, %v2000, 0
        %2021 = vmatpush.bf16.msra.mxu0 0
        %2022 = vmatpush.bf16.msra.mxu0 0
        %2023 = vmatpush.bf16.msra.mxu0 0
        %2024 = vmatpush.bf16.msra.mxu0 0
        %2025 = vmatpush.bf16.msra.mxu0 0
        %2026 = vmatpush.bf16.msra.mxu0 0
        %2027 = vmatpush.bf16.msra.mxu0 %v2015
        %2028 = vmatpush.bf16.msra.mxu0 %v2014
        %2029 = vmatmul.bf16.gmra.mxu0 %v1270
        %v2030 = vpop.f32.mrf.mxu0
        %v2031 = vadd.f32 0.0, %v2030
        %v2032 = vpop.f32.mrf.mxu0
        %v2033 = vadd.f32 0.0, %v2032
        %2034 = vmatmul.bf16.gmra.mxu0 %v1273
        %v2035 = vpop.f32.mrf.mxu0
        %v2036 = vadd.f32 0.0, %v2035
        %v2037 = vpop.f32.mrf.mxu0
        %v2038 = vadd.f32 0.0, %v2037
        %2039 = vmatmul.bf16.gmra.mxu0 %v1276
        %v2040 = vpop.f32.mrf.mxu0
        %v2041 = vadd.f32 0.0, %v2040
        %v2042 = vpop.f32.mrf.mxu0
        %v2043 = vadd.f32 0.0, %v2042
        %2044 = vmatmul.bf16.gmra.mxu0 %v1279
        %v2045 = vpop.f32.mrf.mxu0
        %v2046 = vadd.f32 0.0, %v2045
        %v2047 = vpop.f32.mrf.mxu0
        %v2048 = vadd.f32 0.0, %v2047
        %2049 = vmatmul.bf16.gmra.mxu0 %v1282
        %v2050 = vpop.f32.mrf.mxu0
        %v2051 = vadd.f32 0.0, %v2050
        %v2052 = vpop.f32.mrf.mxu0
        %v2053 = vadd.f32 0.0, %v2052
        %2054 = vmatmul.bf16.gmra.mxu0 %v1285
        %v2055 = vpop.f32.mrf.mxu0
        %v2056 = vadd.f32 0.0, %v2055
        %v2057 = vpop.f32.mrf.mxu0
        %v2058 = vadd.f32 0.0, %v2057
        %2059 = vmatmul.bf16.gmra.mxu0 %v1288
        %v2060 = vpop.f32.mrf.mxu0
        %v2061 = vadd.f32 0.0, %v2060
        %v2062 = vpop.f32.mrf.mxu0
        %v2063 = vadd.f32 0.0, %v2062
        %2064 = vmatmul.bf16.gmra.mxu0 %v1291
        %v2065 = vpop.f32.mrf.mxu0
        %v2066 = vadd.f32 0.0, %v2065
        %v2067 = vpop.f32.mrf.mxu0
        %v2068 = vadd.f32 0.0, %v2067
        %2069 = vmatmul.bf16.gmra.mxu0 %v1294
        %v2070 = vpop.f32.mrf.mxu0
        %v2071 = vadd.f32 0.0, %v2070
        %v2072 = vpop.f32.mrf.mxu0
        %v2073 = vadd.f32 0.0, %v2072
        %2074 = vmatmul.bf16.gmra.mxu0 %v1297
        %v2075 = vpop.f32.mrf.mxu0
        %v2076 = vadd.f32 0.0, %v2075
        %v2077 = vpop.f32.mrf.mxu0
        %v2078 = vadd.f32 0.0, %v2077
        %2079 = vmatmul.bf16.gmra.mxu0 %v1300
        %v2080 = vpop.f32.mrf.mxu0
        %v2081 = vadd.f32 0.0, %v2080
        %v2082 = vpop.f32.mrf.mxu0
        %v2083 = vadd.f32 0.0, %v2082
        %2084 = vmatmul.bf16.gmra.mxu0 %v1303
        %v2085 = vpop.f32.mrf.mxu0
        %v2086 = vadd.f32 0.0, %v2085
        %v2087 = vpop.f32.mrf.mxu0
        %v2088 = vadd.f32 0.0, %v2087
        %2089 = vmatmul.bf16.gmra.mxu0 %v1306
        %v2090 = vpop.f32.mrf.mxu0
        %v2091 = vadd.f32 0.0, %v2090
        %v2092 = vpop.f32.mrf.mxu0
        %v2093 = vadd.f32 0.0, %v2092
        %2094 = vmatmul.bf16.gmra.mxu0 %v1309
        %v2095 = vpop.f32.mrf.mxu0
        %v2096 = vadd.f32 0.0, %v2095
        %v2097 = vpop.f32.mrf.mxu0
        %v2098 = vadd.f32 0.0, %v2097
        %2099 = vmatmul.bf16.gmra.mxu0 %v1312
        %v2100 = vpop.f32.mrf.mxu0
        %v2101 = vadd.f32 0.0, %v2100
        %v2102 = vpop.f32.mrf.mxu0
        %v2103 = vadd.f32 0.0, %v2102
        %2104 = vmatmul.bf16.gmra.mxu0 %v2019
        %v2105 = vpop.f32.mrf.mxu0
        %v2106 = vadd.f32 0.0, %v2105
        %v2107 = vpop.f32.mrf.mxu0
        %v2108 = vadd.f32 0.0, %v2107
        %2109 = vdwg.mxu0
        %v2110 = vadd.f32 %v1968, %v2031
        %v2111 = vadd.f32 %v1969, %v2033
        %v2112 = vadd.f32 %v1970, %v2036
        %v2113 = vadd.f32 %v1971, %v2038
        %v2114 = vadd.f32 %v1972, %v2041
        %v2115 = vadd.f32 %v1973, %v2043
        %v2116 = vadd.f32 %v1974, %v2046
        %v2117 = vadd.f32 %v1975, %v2048
        %v2118 = vadd.f32 %v1976, %v2051
        %v2119 = vadd.f32 %v1977, %v2053
        %v2120 = vadd.f32 %v1978, %v2056
        %v2121 = vadd.f32 %v1979, %v2058
        %v2122 = vadd.f32 %v1980, %v2061
        %v2123 = vadd.f32 %v1981, %v2063
        %v2124 = vadd.f32 %v1982, %v2066
        %v2125 = vadd.f32 %v1983, %v2068
        %v2126 = vadd.f32 %v1984, %v2071
        %v2127 = vadd.f32 %v1985, %v2073
        %v2128 = vadd.f32 %v1986, %v2076
        %v2129 = vadd.f32 %v1987, %v2078
        %v2130 = vadd.f32 %v1988, %v2081
        %v2131 = vadd.f32 %v1989, %v2083
        %v2132 = vadd.f32 %v1990, %v2086
        %v2133 = vadd.f32 %v1991, %v2088
        %v2134 = vadd.f32 %v1992, %v2091
        %v2135 = vadd.f32 %v1993, %v2093
        %v2136 = vadd.f32 %v1994, %v2096
        %v2137 = vadd.f32 %v1995, %v2098
        %v2138 = vadd.f32 %v1996, %v2101
        %v2139 = vadd.f32 %v1997, %v2103
        %v2140 = vadd.f32 %v1998, %v2106
        %v2141 = vadd.f32 %v1999, %v2108
        %v2142 = vrot.slane %v1083, 1
        %v2143 = vrot.slane %v1084, 1
        %v2144 = vsel %vm1552, %v2142, %v2143
        %v2147 = vsel %vm1552, %v2143, 0.0
        %v2148 = vpack.c.bf16 %v2147, %v2144
        %s2149 = scalar_lea.vmem [#allocation2], 80
        %v2150 = vld [vmem:[%s2149] sm:$0xf]
        %v2151 = vld [vmem:[%s2149 + $0x4] sm:$0xf]
        %v2152 = vld [vmem:[%s2149 + $0x8] sm:$0xf]
        %v2153 = vld [vmem:[%s2149 + $0xc] sm:$0xf]
        %v2158 = vunpack.c.l.b16 %v2150
        %v2159 = vunpack.c.l.b16 %v2151
        %v2160 = vunpack.c.l.b16 %v2152
        %v2161 = vunpack.c.l.b16 %v2153
        %v2162 = vpack.c.b16 %v2159, %v2158
        %v2163 = vpack.c.b16 %v2161, %v2160
        %v2167 = vsel %vm1265, %v2148, 0
        %2169 = vmatpush.bf16.msra.mxu0 0
        %2170 = vmatpush.bf16.msra.mxu0 0
        %2171 = vmatpush.bf16.msra.mxu0 0
        %2172 = vmatpush.bf16.msra.mxu0 0
        %2173 = vmatpush.bf16.msra.mxu0 0
        %2174 = vmatpush.bf16.msra.mxu0 0
        %2175 = vmatpush.bf16.msra.mxu0 %v2163
        %2176 = vmatpush.bf16.msra.mxu0 %v2162
        %2177 = vmatmul.bf16.gmra.mxu0 %v1685
        %v2178 = vpop.f32.mrf.mxu0
        %v2179 = vadd.f32 0.0, %v2178
        %v2180 = vpop.f32.mrf.mxu0
        %v2181 = vadd.f32 0.0, %v2180
        %2182 = vmatmul.bf16.gmra.mxu0 %v1688
        %v2183 = vpop.f32.mrf.mxu0
        %v2184 = vadd.f32 0.0, %v2183
        %v2185 = vpop.f32.mrf.mxu0
        %v2186 = vadd.f32 0.0, %v2185
        %2187 = vmatmul.bf16.gmra.mxu0 %v1691
        %v2188 = vpop.f32.mrf.mxu0
        %v2189 = vadd.f32 0.0, %v2188
        %v2190 = vpop.f32.mrf.mxu0
        %v2191 = vadd.f32 0.0, %v2190
        %2192 = vmatmul.bf16.gmra.mxu0 %v1694
        %v2193 = vpop.f32.mrf.mxu0
        %v2194 = vadd.f32 0.0, %v2193
        %v2195 = vpop.f32.mrf.mxu0
        %v2196 = vadd.f32 0.0, %v2195
        %2197 = vmatmul.bf16.gmra.mxu0 %v1697
        %v2198 = vpop.f32.mrf.mxu0
        %v2199 = vadd.f32 0.0, %v2198
        %v2200 = vpop.f32.mrf.mxu0
        %v2201 = vadd.f32 0.0, %v2200
        %2202 = vmatmul.bf16.gmra.mxu0 %v1700
        %v2203 = vpop.f32.mrf.mxu0
        %v2204 = vadd.f32 0.0, %v2203
        %v2205 = vpop.f32.mrf.mxu0
        %v2206 = vadd.f32 0.0, %v2205
        %2207 = vmatmul.bf16.gmra.mxu0 %v1703
        %v2208 = vpop.f32.mrf.mxu0
        %v2209 = vadd.f32 0.0, %v2208
        %v2210 = vpop.f32.mrf.mxu0
        %v2211 = vadd.f32 0.0, %v2210
        %2212 = vmatmul.bf16.gmra.mxu0 %v1706
        %v2213 = vpop.f32.mrf.mxu0
        %v2214 = vadd.f32 0.0, %v2213
        %v2215 = vpop.f32.mrf.mxu0
        %v2216 = vadd.f32 0.0, %v2215
        %2217 = vmatmul.bf16.gmra.mxu0 %v1709
        %v2218 = vpop.f32.mrf.mxu0
        %v2219 = vadd.f32 0.0, %v2218
        %v2220 = vpop.f32.mrf.mxu0
        %v2221 = vadd.f32 0.0, %v2220
        %2222 = vmatmul.bf16.gmra.mxu0 %v1712
        %v2223 = vpop.f32.mrf.mxu0
        %v2224 = vadd.f32 0.0, %v2223
        %v2225 = vpop.f32.mrf.mxu0
        %v2226 = vadd.f32 0.0, %v2225
        %2227 = vmatmul.bf16.gmra.mxu0 %v1715
        %v2228 = vpop.f32.mrf.mxu0
        %v2229 = vadd.f32 0.0, %v2228
        %v2230 = vpop.f32.mrf.mxu0
        %v2231 = vadd.f32 0.0, %v2230
        %2232 = vmatmul.bf16.gmra.mxu0 %v1718
        %v2233 = vpop.f32.mrf.mxu0
        %v2234 = vadd.f32 0.0, %v2233
        %v2235 = vpop.f32.mrf.mxu0
        %v2236 = vadd.f32 0.0, %v2235
        %2237 = vmatmul.bf16.gmra.mxu0 %v1721
        %v2238 = vpop.f32.mrf.mxu0
        %v2239 = vadd.f32 0.0, %v2238
        %v2240 = vpop.f32.mrf.mxu0
        %v2241 = vadd.f32 0.0, %v2240
        %2242 = vmatmul.bf16.gmra.mxu0 %v1724
        %v2243 = vpop.f32.mrf.mxu0
        %v2244 = vadd.f32 0.0, %v2243
        %v2245 = vpop.f32.mrf.mxu0
        %v2246 = vadd.f32 0.0, %v2245
        %2247 = vmatmul.bf16.gmra.mxu0 %v1727
        %v2248 = vpop.f32.mrf.mxu0
        %v2249 = vadd.f32 0.0, %v2248
        %v2250 = vpop.f32.mrf.mxu0
        %v2251 = vadd.f32 0.0, %v2250
        %2252 = vmatmul.bf16.gmra.mxu0 %v2167
        %v2253 = vpop.f32.mrf.mxu0
        %v2254 = vadd.f32 0.0, %v2253
        %v2255 = vpop.f32.mrf.mxu0
        %v2256 = vadd.f32 0.0, %v2255
        %2257 = vdwg.mxu0
        %v2258 = vadd.f32 %v2110, %v2179
        %v2259 = vadd.f32 %v2111, %v2181
        %v2260 = vadd.f32 %v2112, %v2184
        %v2261 = vadd.f32 %v2113, %v2186
        %v2262 = vadd.f32 %v2114, %v2189
        %v2263 = vadd.f32 %v2115, %v2191
        %v2264 = vadd.f32 %v2116, %v2194
        %v2265 = vadd.f32 %v2117, %v2196
        %v2266 = vadd.f32 %v2118, %v2199
        %v2267 = vadd.f32 %v2119, %v2201
        %v2268 = vadd.f32 %v2120, %v2204
        %v2269 = vadd.f32 %v2121, %v2206
        %v2270 = vadd.f32 %v2122, %v2209
        %v2271 = vadd.f32 %v2123, %v2211
        %v2272 = vadd.f32 %v2124, %v2214
        %v2273 = vadd.f32 %v2125, %v2216
        %v2274 = vadd.f32 %v2126, %v2219
        %v2275 = vadd.f32 %v2127, %v2221
        %v2276 = vadd.f32 %v2128, %v2224
        %v2277 = vadd.f32 %v2129, %v2226
        %v2278 = vadd.f32 %v2130, %v2229
        %v2279 = vadd.f32 %v2131, %v2231
        %v2280 = vadd.f32 %v2132, %v2234
        %v2281 = vadd.f32 %v2133, %v2236
        %v2282 = vadd.f32 %v2134, %v2239
        %v2283 = vadd.f32 %v2135, %v2241
        %v2284 = vadd.f32 %v2136, %v2244
        %v2285 = vadd.f32 %v2137, %v2246
        %v2286 = vadd.f32 %v2138, %v2249
        %v2287 = vadd.f32 %v2139, %v2251
        %v2288 = vadd.f32 %v2140, %v2254
        %v2289 = vadd.f32 %v2141, %v2256
        %s2290 = scalar_lea.vmem [#allocation2], 96
        %v2291 = vld [vmem:[%s2290] sm:$0xf]
        %v2292 = vld [vmem:[%s2290 + $0x4] sm:$0xf]
        %v2293 = vld [vmem:[%s2290 + $0x8] sm:$0xf]
        %v2294 = vld [vmem:[%s2290 + $0xc] sm:$0xf]
        %v2299 = vunpack.c.l.b16 %v2291
        %v2300 = vunpack.c.l.b16 %v2292
        %v2301 = vunpack.c.l.b16 %v2293
        %v2302 = vunpack.c.l.b16 %v2294
        %v2303 = vpack.c.b16 %v2300, %v2299
        %v2304 = vpack.c.b16 %v2302, %v2301
        %2307 = vmatpush.bf16.msra.mxu0 0
        %2308 = vmatpush.bf16.msra.mxu0 0
        %2309 = vmatpush.bf16.msra.mxu0 0
        %2310 = vmatpush.bf16.msra.mxu0 0
        %2311 = vmatpush.bf16.msra.mxu0 0
        %2312 = vmatpush.bf16.msra.mxu0 0
        %2313 = vmatpush.bf16.msra.mxu0 %v2304
        %2314 = vmatpush.bf16.msra.mxu0 %v2303
        %2315 = vmatmul.bf16.gmra.mxu0 %v1422
        %v2316 = vpop.f32.mrf.mxu0
        %v2317 = vadd.f32 0.0, %v2316
        %v2318 = vpop.f32.mrf.mxu0
        %v2319 = vadd.f32 0.0, %v2318
        %2320 = vmatmul.bf16.gmra.mxu0 %v1425
        %v2321 = vpop.f32.mrf.mxu0
        %v2322 = vadd.f32 0.0, %v2321
        %v2323 = vpop.f32.mrf.mxu0
        %v2324 = vadd.f32 0.0, %v2323
        %2325 = vmatmul.bf16.gmra.mxu0 %v1428
        %v2326 = vpop.f32.mrf.mxu0
        %v2327 = vadd.f32 0.0, %v2326
        %v2328 = vpop.f32.mrf.mxu0
        %v2329 = vadd.f32 0.0, %v2328
        %2330 = vmatmul.bf16.gmra.mxu0 %v1431
        %v2331 = vpop.f32.mrf.mxu0
        %v2332 = vadd.f32 0.0, %v2331
        %v2333 = vpop.f32.mrf.mxu0
        %v2334 = vadd.f32 0.0, %v2333
        %2335 = vmatmul.bf16.gmra.mxu0 %v1434
        %v2336 = vpop.f32.mrf.mxu0
        %v2337 = vadd.f32 0.0, %v2336
        %v2338 = vpop.f32.mrf.mxu0
        %v2339 = vadd.f32 0.0, %v2338
        %2340 = vmatmul.bf16.gmra.mxu0 %v1437
        %v2341 = vpop.f32.mrf.mxu0
        %v2342 = vadd.f32 0.0, %v2341
        %v2343 = vpop.f32.mrf.mxu0
        %v2344 = vadd.f32 0.0, %v2343
        %2345 = vmatmul.bf16.gmra.mxu0 %v1440
        %v2346 = vpop.f32.mrf.mxu0
        %v2347 = vadd.f32 0.0, %v2346
        %v2348 = vpop.f32.mrf.mxu0
        %v2349 = vadd.f32 0.0, %v2348
        %2350 = vmatmul.bf16.gmra.mxu0 %v1443
        %v2351 = vpop.f32.mrf.mxu0
        %v2352 = vadd.f32 0.0, %v2351
        %v2353 = vpop.f32.mrf.mxu0
        %v2354 = vadd.f32 0.0, %v2353
        %2355 = vmatmul.bf16.gmra.mxu0 %v1446
        %v2356 = vpop.f32.mrf.mxu0
        %v2357 = vadd.f32 0.0, %v2356
        %v2358 = vpop.f32.mrf.mxu0
        %v2359 = vadd.f32 0.0, %v2358
        %2360 = vmatmul.bf16.gmra.mxu0 %v1449
        %v2361 = vpop.f32.mrf.mxu0
        %v2362 = vadd.f32 0.0, %v2361
        %v2363 = vpop.f32.mrf.mxu0
        %v2364 = vadd.f32 0.0, %v2363
        %2365 = vmatmul.bf16.gmra.mxu0 %v1452
        %v2366 = vpop.f32.mrf.mxu0
        %v2367 = vadd.f32 0.0, %v2366
        %v2368 = vpop.f32.mrf.mxu0
        %v2369 = vadd.f32 0.0, %v2368
        %2370 = vmatmul.bf16.gmra.mxu0 %v1455
        %v2371 = vpop.f32.mrf.mxu0
        %v2372 = vadd.f32 0.0, %v2371
        %v2373 = vpop.f32.mrf.mxu0
        %v2374 = vadd.f32 0.0, %v2373
        %2375 = vmatmul.bf16.gmra.mxu0 %v1458
        %v2376 = vpop.f32.mrf.mxu0
        %v2377 = vadd.f32 0.0, %v2376
        %v2378 = vpop.f32.mrf.mxu0
        %v2379 = vadd.f32 0.0, %v2378
        %2380 = vmatmul.bf16.gmra.mxu0 %v1461
        %v2381 = vpop.f32.mrf.mxu0
        %v2382 = vadd.f32 0.0, %v2381
        %v2383 = vpop.f32.mrf.mxu0
        %v2384 = vadd.f32 0.0, %v2383
        %2385 = vmatmul.bf16.gmra.mxu0 %v1877
        %v2386 = vpop.f32.mrf.mxu0
        %v2387 = vadd.f32 0.0, %v2386
        %v2388 = vpop.f32.mrf.mxu0
        %v2389 = vadd.f32 0.0, %v2388
        %2390 = vmatmul.bf16.gmra.mxu0 %v1416
        %v2391 = vpop.f32.mrf.mxu0
        %v2392 = vadd.f32 0.0, %v2391
        %v2393 = vpop.f32.mrf.mxu0
        %v2394 = vadd.f32 0.0, %v2393
        %2395 = vdwg.mxu0
        %v2396 = vadd.f32 %v2258, %v2317
        %v2397 = vadd.f32 %v2259, %v2319
        %v2398 = vadd.f32 %v2260, %v2322
        %v2399 = vadd.f32 %v2261, %v2324
        %v2400 = vadd.f32 %v2262, %v2327
        %v2401 = vadd.f32 %v2263, %v2329
        %v2402 = vadd.f32 %v2264, %v2332
        %v2403 = vadd.f32 %v2265, %v2334
        %v2404 = vadd.f32 %v2266, %v2337
        %v2405 = vadd.f32 %v2267, %v2339
        %v2406 = vadd.f32 %v2268, %v2342
        %v2407 = vadd.f32 %v2269, %v2344
        %v2408 = vadd.f32 %v2270, %v2347
        %v2409 = vadd.f32 %v2271, %v2349
        %v2410 = vadd.f32 %v2272, %v2352
        %v2411 = vadd.f32 %v2273, %v2354
        %v2412 = vadd.f32 %v2274, %v2357
        %v2413 = vadd.f32 %v2275, %v2359
        %v2414 = vadd.f32 %v2276, %v2362
        %v2415 = vadd.f32 %v2277, %v2364
        %v2416 = vadd.f32 %v2278, %v2367
        %v2417 = vadd.f32 %v2279, %v2369
        %v2418 = vadd.f32 %v2280, %v2372
        %v2419 = vadd.f32 %v2281, %v2374
        %v2420 = vadd.f32 %v2282, %v2377
        %v2421 = vadd.f32 %v2283, %v2379
        %v2422 = vadd.f32 %v2284, %v2382
        %v2423 = vadd.f32 %v2285, %v2384
        %v2424 = vadd.f32 %v2286, %v2387
        %v2425 = vadd.f32 %v2287, %v2389
        %v2426 = vadd.f32 %v2288, %v2392
        %v2427 = vadd.f32 %v2289, %v2394
        %s2428 = scalar_lea.vmem [#allocation2], 112
        %v2429 = vld [vmem:[%s2428] sm:$0xf]
        %v2430 = vld [vmem:[%s2428 + $0x4] sm:$0xf]
        %v2431 = vld [vmem:[%s2428 + $0x8] sm:$0xf]
        %v2432 = vld [vmem:[%s2428 + $0xc] sm:$0xf]
        %v2437 = vunpack.c.l.b16 %v2429
        %v2438 = vunpack.c.l.b16 %v2430
        %v2439 = vunpack.c.l.b16 %v2431
        %v2440 = vunpack.c.l.b16 %v2432
        %v2441 = vpack.c.b16 %v2438, %v2437
        %v2442 = vpack.c.b16 %v2440, %v2439
        %2445 = vmatpush.bf16.msra.mxu0 0
        %2446 = vmatpush.bf16.msra.mxu0 0
        %2447 = vmatpush.bf16.msra.mxu0 0
        %2448 = vmatpush.bf16.msra.mxu0 0
        %2449 = vmatpush.bf16.msra.mxu0 0
        %2450 = vmatpush.bf16.msra.mxu0 0
        %2451 = vmatpush.bf16.msra.mxu0 %v2442
        %2452 = vmatpush.bf16.msra.mxu0 %v2441
        %2453 = vmatmul.bf16.gmra.mxu0 %v1273
        %v2454 = vpop.f32.mrf.mxu0
        %v2455 = vadd.f32 0.0, %v2454
        %v2456 = vpop.f32.mrf.mxu0
        %v2457 = vadd.f32 0.0, %v2456
        %2458 = vmatmul.bf16.gmra.mxu0 %v1276
        %v2459 = vpop.f32.mrf.mxu0
        %v2460 = vadd.f32 0.0, %v2459
        %v2461 = vpop.f32.mrf.mxu0
        %v2462 = vadd.f32 0.0, %v2461
        %2463 = vmatmul.bf16.gmra.mxu0 %v1279
        %v2464 = vpop.f32.mrf.mxu0
        %v2465 = vadd.f32 0.0, %v2464
        %v2466 = vpop.f32.mrf.mxu0
        %v2467 = vadd.f32 0.0, %v2466
        %2468 = vmatmul.bf16.gmra.mxu0 %v1282
        %v2469 = vpop.f32.mrf.mxu0
        %v2470 = vadd.f32 0.0, %v2469
        %v2471 = vpop.f32.mrf.mxu0
        %v2472 = vadd.f32 0.0, %v2471
        %2473 = vmatmul.bf16.gmra.mxu0 %v1285
        %v2474 = vpop.f32.mrf.mxu0
        %v2475 = vadd.f32 0.0, %v2474
        %v2476 = vpop.f32.mrf.mxu0
        %v2477 = vadd.f32 0.0, %v2476
        %2478 = vmatmul.bf16.gmra.mxu0 %v1288
        %v2479 = vpop.f32.mrf.mxu0
        %v2480 = vadd.f32 0.0, %v2479
        %v2481 = vpop.f32.mrf.mxu0
        %v2482 = vadd.f32 0.0, %v2481
        %2483 = vmatmul.bf16.gmra.mxu0 %v1291
        %v2484 = vpop.f32.mrf.mxu0
        %v2485 = vadd.f32 0.0, %v2484
        %v2486 = vpop.f32.mrf.mxu0
        %v2487 = vadd.f32 0.0, %v2486
        %2488 = vmatmul.bf16.gmra.mxu0 %v1294
        %v2489 = vpop.f32.mrf.mxu0
        %v2490 = vadd.f32 0.0, %v2489
        %v2491 = vpop.f32.mrf.mxu0
        %v2492 = vadd.f32 0.0, %v2491
        %2493 = vmatmul.bf16.gmra.mxu0 %v1297
        %v2494 = vpop.f32.mrf.mxu0
        %v2495 = vadd.f32 0.0, %v2494
        %v2496 = vpop.f32.mrf.mxu0
        %v2497 = vadd.f32 0.0, %v2496
        %2498 = vmatmul.bf16.gmra.mxu0 %v1300
        %v2499 = vpop.f32.mrf.mxu0
        %v2500 = vadd.f32 0.0, %v2499
        %v2501 = vpop.f32.mrf.mxu0
        %v2502 = vadd.f32 0.0, %v2501
        %2503 = vmatmul.bf16.gmra.mxu0 %v1303
        %v2504 = vpop.f32.mrf.mxu0
        %v2505 = vadd.f32 0.0, %v2504
        %v2506 = vpop.f32.mrf.mxu0
        %v2507 = vadd.f32 0.0, %v2506
        %2508 = vmatmul.bf16.gmra.mxu0 %v1306
        %v2509 = vpop.f32.mrf.mxu0
        %v2510 = vadd.f32 0.0, %v2509
        %v2511 = vpop.f32.mrf.mxu0
        %v2512 = vadd.f32 0.0, %v2511
        %2513 = vmatmul.bf16.gmra.mxu0 %v1309
        %v2514 = vpop.f32.mrf.mxu0
        %v2515 = vadd.f32 0.0, %v2514
        %v2516 = vpop.f32.mrf.mxu0
        %v2517 = vadd.f32 0.0, %v2516
        %2518 = vmatmul.bf16.gmra.mxu0 %v1312
        %v2519 = vpop.f32.mrf.mxu0
        %v2520 = vadd.f32 0.0, %v2519
        %v2521 = vpop.f32.mrf.mxu0
        %v2522 = vadd.f32 0.0, %v2521
        %2523 = vmatmul.bf16.gmra.mxu0 %v2019
        %v2524 = vpop.f32.mrf.mxu0
        %v2525 = vadd.f32 0.0, %v2524
        %v2526 = vpop.f32.mrf.mxu0
        %v2527 = vadd.f32 0.0, %v2526
        %2528 = vmatmul.bf16.gmra.mxu0 %v1267
        %v2529 = vpop.f32.mrf.mxu0
        %v2530 = vadd.f32 0.0, %v2529
        %v2531 = vpop.f32.mrf.mxu0
        %v2532 = vadd.f32 0.0, %v2531
        %2533 = vdwg.mxu0
        %v2534 = vadd.f32 %v2396, %v2455
        %v2535 = vadd.f32 %v2397, %v2457
        %v2536 = vadd.f32 %v2398, %v2460
        %v2537 = vadd.f32 %v2399, %v2462
        %v2538 = vadd.f32 %v2400, %v2465
        %v2539 = vadd.f32 %v2401, %v2467
        %v2540 = vadd.f32 %v2402, %v2470
        %v2541 = vadd.f32 %v2403, %v2472
        %v2542 = vadd.f32 %v2404, %v2475
        %v2543 = vadd.f32 %v2405, %v2477
        %v2544 = vadd.f32 %v2406, %v2480
        %v2545 = vadd.f32 %v2407, %v2482
        %v2546 = vadd.f32 %v2408, %v2485
        %v2547 = vadd.f32 %v2409, %v2487
        %v2548 = vadd.f32 %v2410, %v2490
        %v2549 = vadd.f32 %v2411, %v2492
        %v2550 = vadd.f32 %v2412, %v2495
        %v2551 = vadd.f32 %v2413, %v2497
        %v2552 = vadd.f32 %v2414, %v2500
        %v2553 = vadd.f32 %v2415, %v2502
        %v2554 = vadd.f32 %v2416, %v2505
        %v2555 = vadd.f32 %v2417, %v2507
        %v2556 = vadd.f32 %v2418, %v2510
        %v2557 = vadd.f32 %v2419, %v2512
        %v2558 = vadd.f32 %v2420, %v2515
        %v2559 = vadd.f32 %v2421, %v2517
        %v2560 = vadd.f32 %v2422, %v2520
        %v2561 = vadd.f32 %v2423, %v2522
        %v2562 = vadd.f32 %v2424, %v2525
        %v2563 = vadd.f32 %v2425, %v2527
        %v2564 = vadd.f32 %v2426, %v2530
        %v2565 = vadd.f32 %v2427, %v2532
        %s2566 = scalar_lea.vmem [#allocation2], 128
        %v2567 = vld [vmem:[%s2566] sm:$0xf]
        %v2568 = vld [vmem:[%s2566 + $0x4] sm:$0xf]
        %v2569 = vld [vmem:[%s2566 + $0x8] sm:$0xf]
        %v2570 = vld [vmem:[%s2566 + $0xc] sm:$0xf]
        %v2575 = vunpack.c.l.b16 %v2567
        %v2576 = vunpack.c.l.b16 %v2568
        %v2577 = vunpack.c.l.b16 %v2569
        %v2578 = vunpack.c.l.b16 %v2570
        %v2579 = vpack.c.b16 %v2576, %v2575
        %v2580 = vpack.c.b16 %v2578, %v2577
        %2583 = vmatpush.bf16.msra.mxu0 0
        %2584 = vmatpush.bf16.msra.mxu0 0
        %2585 = vmatpush.bf16.msra.mxu0 0
        %2586 = vmatpush.bf16.msra.mxu0 0
        %2587 = vmatpush.bf16.msra.mxu0 0
        %2588 = vmatpush.bf16.msra.mxu0 0
        %2589 = vmatpush.bf16.msra.mxu0 %v2580
        %2590 = vmatpush.bf16.msra.mxu0 %v2579
        %2591 = vmatmul.bf16.gmra.mxu0 %v1688
        %v2592 = vpop.f32.mrf.mxu0
        %v2593 = vadd.f32 0.0, %v2592
        %v2594 = vpop.f32.mrf.mxu0
        %v2595 = vadd.f32 0.0, %v2594
        %2596 = vmatmul.bf16.gmra.mxu0 %v1691
        %v2597 = vpop.f32.mrf.mxu0
        %v2598 = vadd.f32 0.0, %v2597
        %v2599 = vpop.f32.mrf.mxu0
        %v2600 = vadd.f32 0.0, %v2599
        %2601 = vmatmul.bf16.gmra.mxu0 %v1694
        %v2602 = vpop.f32.mrf.mxu0
        %v2603 = vadd.f32 0.0, %v2602
        %v2604 = vpop.f32.mrf.mxu0
        %v2605 = vadd.f32 0.0, %v2604
        %2606 = vmatmul.bf16.gmra.mxu0 %v1697
        %v2607 = vpop.f32.mrf.mxu0
        %v2608 = vadd.f32 0.0, %v2607
        %v2609 = vpop.f32.mrf.mxu0
        %v2610 = vadd.f32 0.0, %v2609
        %2611 = vmatmul.bf16.gmra.mxu0 %v1700
        %v2612 = vpop.f32.mrf.mxu0
        %v2613 = vadd.f32 0.0, %v2612
        %v2614 = vpop.f32.mrf.mxu0
        %v2615 = vadd.f32 0.0, %v2614
        %2616 = vmatmul.bf16.gmra.mxu0 %v1703
        %v2617 = vpop.f32.mrf.mxu0
        %v2618 = vadd.f32 0.0, %v2617
        %v2619 = vpop.f32.mrf.mxu0
        %v2620 = vadd.f32 0.0, %v2619
        %2621 = vmatmul.bf16.gmra.mxu0 %v1706
        %v2622 = vpop.f32.mrf.mxu0
        %v2623 = vadd.f32 0.0, %v2622
        %v2624 = vpop.f32.mrf.mxu0
        %v2625 = vadd.f32 0.0, %v2624
        %2626 = vmatmul.bf16.gmra.mxu0 %v1709
        %v2627 = vpop.f32.mrf.mxu0
        %v2628 = vadd.f32 0.0, %v2627
        %v2629 = vpop.f32.mrf.mxu0
        %v2630 = vadd.f32 0.0, %v2629
        %2631 = vmatmul.bf16.gmra.mxu0 %v1712
        %v2632 = vpop.f32.mrf.mxu0
        %v2633 = vadd.f32 0.0, %v2632
        %v2634 = vpop.f32.mrf.mxu0
        %v2635 = vadd.f32 0.0, %v2634
        %2636 = vmatmul.bf16.gmra.mxu0 %v1715
        %v2637 = vpop.f32.mrf.mxu0
        %v2638 = vadd.f32 0.0, %v2637
        %v2639 = vpop.f32.mrf.mxu0
        %v2640 = vadd.f32 0.0, %v2639
        %2641 = vmatmul.bf16.gmra.mxu0 %v1718
        %v2642 = vpop.f32.mrf.mxu0
        %v2643 = vadd.f32 0.0, %v2642
        %v2644 = vpop.f32.mrf.mxu0
        %v2645 = vadd.f32 0.0, %v2644
        %2646 = vmatmul.bf16.gmra.mxu0 %v1721
        %v2647 = vpop.f32.mrf.mxu0
        %v2648 = vadd.f32 0.0, %v2647
        %v2649 = vpop.f32.mrf.mxu0
        %v2650 = vadd.f32 0.0, %v2649
        %2651 = vmatmul.bf16.gmra.mxu0 %v1724
        %v2652 = vpop.f32.mrf.mxu0
        %v2653 = vadd.f32 0.0, %v2652
        %v2654 = vpop.f32.mrf.mxu0
        %v2655 = vadd.f32 0.0, %v2654
        %2656 = vmatmul.bf16.gmra.mxu0 %v1727
        %v2657 = vpop.f32.mrf.mxu0
        %v2658 = vadd.f32 0.0, %v2657
        %v2659 = vpop.f32.mrf.mxu0
        %v2660 = vadd.f32 0.0, %v2659
        %2661 = vmatmul.bf16.gmra.mxu0 %v2167
        %v2662 = vpop.f32.mrf.mxu0
        %v2663 = vadd.f32 0.0, %v2662
        %v2664 = vpop.f32.mrf.mxu0
        %v2665 = vadd.f32 0.0, %v2664
        %2666 = vmatmul.bf16.gmra.mxu0 %v1682
        %v2667 = vpop.f32.mrf.mxu0
        %v2668 = vadd.f32 0.0, %v2667
        %v2669 = vpop.f32.mrf.mxu0
        %v2670 = vadd.f32 0.0, %v2669
        %2671 = vdwg.mxu0
        %v2672 = vadd.f32 %v2534, %v2593
        %v2673 = vadd.f32 %v2535, %v2595
        %v2674 = vadd.f32 %v2536, %v2598
        %v2675 = vadd.f32 %v2537, %v2600
        %v2676 = vadd.f32 %v2538, %v2603
        %v2677 = vadd.f32 %v2539, %v2605
        %v2678 = vadd.f32 %v2540, %v2608
        %v2679 = vadd.f32 %v2541, %v2610
        %v2680 = vadd.f32 %v2542, %v2613
        %v2681 = vadd.f32 %v2543, %v2615
        %v2682 = vadd.f32 %v2544, %v2618
        %v2683 = vadd.f32 %v2545, %v2620
        %v2684 = vadd.f32 %v2546, %v2623
        %v2685 = vadd.f32 %v2547, %v2625
        %v2686 = vadd.f32 %v2548, %v2628
        %v2687 = vadd.f32 %v2549, %v2630
        %v2688 = vadd.f32 %v2550, %v2633
        %v2689 = vadd.f32 %v2551, %v2635
        %v2690 = vadd.f32 %v2552, %v2638
        %v2691 = vadd.f32 %v2553, %v2640
        %v2692 = vadd.f32 %v2554, %v2643
        %v2693 = vadd.f32 %v2555, %v2645
        %v2694 = vadd.f32 %v2556, %v2648
        %v2695 = vadd.f32 %v2557, %v2650
        %v2696 = vadd.f32 %v2558, %v2653
        %v2697 = vadd.f32 %v2559, %v2655
        %v2698 = vadd.f32 %v2560, %v2658
        %v2699 = vadd.f32 %v2561, %v2660
        %v2700 = vadd.f32 %v2562, %v2663
        %v2701 = vadd.f32 %v2563, %v2665
        %v2702 = vadd.f32 %v2564, %v2668
        %v2703 = vadd.f32 %v2565, %v2670
        %v2704 = vld [vmem:[%s6] sm:$0x1]
        %v2706 = vperm.slane %v2704, 0
        %v2708 = vmul.f32 %v2672, %v2706
        %v2709 = vmul.f32 %v2673, %v2706
        %v2710 = vmul.f32 %v2674, %v2706
        %v2711 = vmul.f32 %v2675, %v2706
        %v2712 = vmul.f32 %v2676, %v2706
        %v2713 = vmul.f32 %v2677, %v2706
        %v2714 = vmul.f32 %v2678, %v2706
        %v2715 = vmul.f32 %v2679, %v2706
        %v2716 = vmul.f32 %v2680, %v2706
        %v2717 = vmul.f32 %v2681, %v2706
        %v2718 = vmul.f32 %v2682, %v2706
        %v2719 = vmul.f32 %v2683, %v2706
        %v2720 = vmul.f32 %v2684, %v2706
        %v2721 = vmul.f32 %v2685, %v2706
        %v2722 = vmul.f32 %v2686, %v2706
        %v2723 = vmul.f32 %v2687, %v2706
        %v2724 = vmul.f32 %v2688, %v2706
        %v2725 = vmul.f32 %v2689, %v2706
        %v2726 = vmul.f32 %v2690, %v2706
        %v2727 = vmul.f32 %v2691, %v2706
        %v2728 = vmul.f32 %v2692, %v2706
        %v2729 = vmul.f32 %v2693, %v2706
        %v2730 = vmul.f32 %v2694, %v2706
        %v2731 = vmul.f32 %v2695, %v2706
        %v2732 = vmul.f32 %v2696, %v2706
        %v2733 = vmul.f32 %v2697, %v2706
        %v2734 = vmul.f32 %v2698, %v2706
        %v2735 = vmul.f32 %v2699, %v2706
        %v2736 = vmul.f32 %v2700, %v2706
        %v2737 = vmul.f32 %v2701, %v2706
        %v2738 = vmul.f32 %v2702, %v2706
        %v2739 = vmul.f32 %v2703, %v2706
        %v2740 = vld [vmem:[%s7] sm:$0x1]
        %v2742 = vperm.slane %v2740, 0
        %v2744 = vadd.f32 %v2708, %v2742
        %v2745 = vadd.f32 %v2709, %v2742
        %v2746 = vadd.f32 %v2710, %v2742
        %v2747 = vadd.f32 %v2711, %v2742
        %v2748 = vadd.f32 %v2712, %v2742
        %v2749 = vadd.f32 %v2713, %v2742
        %v2750 = vadd.f32 %v2714, %v2742
        %v2751 = vadd.f32 %v2715, %v2742
        %v2752 = vadd.f32 %v2716, %v2742
        %v2753 = vadd.f32 %v2717, %v2742
        %v2754 = vadd.f32 %v2718, %v2742
        %v2755 = vadd.f32 %v2719, %v2742
        %v2756 = vadd.f32 %v2720, %v2742
        %v2757 = vadd.f32 %v2721, %v2742
        %v2758 = vadd.f32 %v2722, %v2742
        %v2759 = vadd.f32 %v2723, %v2742
        %v2760 = vadd.f32 %v2724, %v2742
        %v2761 = vadd.f32 %v2725, %v2742
        %v2762 = vadd.f32 %v2726, %v2742
        %v2763 = vadd.f32 %v2727, %v2742
        %v2764 = vadd.f32 %v2728, %v2742
        %v2765 = vadd.f32 %v2729, %v2742
        %v2766 = vadd.f32 %v2730, %v2742
        %v2767 = vadd.f32 %v2731, %v2742
        %v2768 = vadd.f32 %v2732, %v2742
        %v2769 = vadd.f32 %v2733, %v2742
        %v2770 = vadd.f32 %v2734, %v2742
        %v2771 = vadd.f32 %v2735, %v2742
        %v2772 = vadd.f32 %v2736, %v2742
        %v2773 = vadd.f32 %v2737, %v2742
        %v2774 = vadd.f32 %v2738, %v2742
        %v2775 = vadd.f32 %v2739, %v2742
        %v2776 = vmin.f32 %v2744, 20.0
        %v2777 = vmin.f32 %v2745, 20.0
        %v2778 = vmin.f32 %v2746, 20.0
        %v2779 = vmin.f32 %v2747, 20.0
        %v2780 = vmin.f32 %v2748, 20.0
        %v2781 = vmin.f32 %v2749, 20.0
        %v2782 = vmin.f32 %v2750, 20.0
        %v2783 = vmin.f32 %v2751, 20.0
        %v2784 = vmin.f32 %v2752, 20.0
        %v2785 = vmin.f32 %v2753, 20.0
        %v2786 = vmin.f32 %v2754, 20.0
        %v2787 = vmin.f32 %v2755, 20.0
        %v2788 = vmin.f32 %v2756, 20.0
        %v2789 = vmin.f32 %v2757, 20.0
        %v2790 = vmin.f32 %v2758, 20.0
        %v2791 = vmin.f32 %v2759, 20.0
        %v2792 = vmin.f32 %v2760, 20.0
        %v2793 = vmin.f32 %v2761, 20.0
        %v2794 = vmin.f32 %v2762, 20.0
        %v2795 = vmin.f32 %v2763, 20.0
        %v2796 = vmin.f32 %v2764, 20.0
        %v2797 = vmin.f32 %v2765, 20.0
        %v2798 = vmin.f32 %v2766, 20.0
        %v2799 = vmin.f32 %v2767, 20.0
        %v2800 = vmin.f32 %v2768, 20.0
        %v2801 = vmin.f32 %v2769, 20.0
        %v2802 = vmin.f32 %v2770, 20.0
        %v2803 = vmin.f32 %v2771, 20.0
        %v2804 = vmin.f32 %v2772, 20.0
        %v2805 = vmin.f32 %v2773, 20.0
        %v2806 = vmin.f32 %v2774, 20.0
        %v2807 = vmin.f32 %v2775, 20.0
        %v2808 = vmul.f32 %v2776, 1.442695
        %v2809 = vpow.pop %v2808
        %v2810 = vmul.f32 %v2777, 1.442695
        %v2811 = vpow.pop %v2810
        %v2812 = vmul.f32 %v2778, 1.442695
        %v2813 = vpow.pop %v2812
        %v2814 = vmul.f32 %v2779, 1.442695
        %v2815 = vpow.pop %v2814
        %v2816 = vmul.f32 %v2780, 1.442695
        %v2817 = vpow.pop %v2816
        %v2818 = vmul.f32 %v2781, 1.442695
        %v2819 = vpow.pop %v2818
        %v2820 = vmul.f32 %v2782, 1.442695
        %v2821 = vpow.pop %v2820
        %v2822 = vmul.f32 %v2783, 1.442695
        %v2823 = vpow.pop %v2822
        %v2824 = vmul.f32 %v2784, 1.442695
        %v2825 = vpow.pop %v2824
        %v2826 = vmul.f32 %v2785, 1.442695
        %v2827 = vpow.pop %v2826
        %v2828 = vmul.f32 %v2786, 1.442695
        %v2829 = vpow.pop %v2828
        %v2830 = vmul.f32 %v2787, 1.442695
        %v2831 = vpow.pop %v2830
        %v2832 = vmul.f32 %v2788, 1.442695
        %v2833 = vpow.pop %v2832
        %v2834 = vmul.f32 %v2789, 1.442695
        %v2835 = vpow.pop %v2834
        %v2836 = vmul.f32 %v2790, 1.442695
        %v2837 = vpow.pop %v2836
        %v2838 = vmul.f32 %v2791, 1.442695
        %v2839 = vpow.pop %v2838
        %v2840 = vmul.f32 %v2792, 1.442695
        %v2841 = vpow.pop %v2840
        %v2842 = vmul.f32 %v2793, 1.442695
        %v2843 = vpow.pop %v2842
        %v2844 = vmul.f32 %v2794, 1.442695
        %v2845 = vpow.pop %v2844
        %v2846 = vmul.f32 %v2795, 1.442695
        %v2847 = vpow.pop %v2846
        %v2848 = vmul.f32 %v2796, 1.442695
        %v2849 = vpow.pop %v2848
        %v2850 = vmul.f32 %v2797, 1.442695
        %v2851 = vpow.pop %v2850
        %v2852 = vmul.f32 %v2798, 1.442695
        %v2853 = vpow.pop %v2852
        %v2854 = vmul.f32 %v2799, 1.442695
        %v2855 = vpow.pop %v2854
        %v2856 = vmul.f32 %v2800, 1.442695
        %v2857 = vpow.pop %v2856
        %v2858 = vmul.f32 %v2801, 1.442695
        %v2859 = vpow.pop %v2858
        %v2860 = vmul.f32 %v2802, 1.442695
        %v2861 = vpow.pop %v2860
        %v2862 = vmul.f32 %v2803, 1.442695
        %v2863 = vpow.pop %v2862
        %v2864 = vmul.f32 %v2804, 1.442695
        %v2865 = vpow.pop %v2864
        %v2866 = vmul.f32 %v2805, 1.442695
        %v2867 = vpow.pop %v2866
        %v2868 = vmul.f32 %v2806, 1.442695
        %v2869 = vpow.pop %v2868
        %v2870 = vmul.f32 %v2807, 1.442695
        %v2871 = vpow.pop %v2870
        %v2872 = vadd.f32 %v2809, 2.0
        %v2873 = vadd.f32 %v2811, 2.0
        %v2874 = vadd.f32 %v2813, 2.0
        %v2875 = vadd.f32 %v2815, 2.0
        %v2876 = vadd.f32 %v2817, 2.0
        %v2877 = vadd.f32 %v2819, 2.0
        %v2878 = vadd.f32 %v2821, 2.0
        %v2879 = vadd.f32 %v2823, 2.0
        %v2880 = vadd.f32 %v2825, 2.0
        %v2881 = vadd.f32 %v2827, 2.0
        %v2882 = vadd.f32 %v2829, 2.0
        %v2883 = vadd.f32 %v2831, 2.0
        %v2884 = vadd.f32 %v2833, 2.0
        %v2885 = vadd.f32 %v2835, 2.0
        %v2886 = vadd.f32 %v2837, 2.0
        %v2887 = vadd.f32 %v2839, 2.0
        %v2888 = vadd.f32 %v2841, 2.0
        %v2889 = vadd.f32 %v2843, 2.0
        %v2890 = vadd.f32 %v2845, 2.0
        %v2891 = vadd.f32 %v2847, 2.0
        %v2892 = vadd.f32 %v2849, 2.0
        %v2893 = vadd.f32 %v2851, 2.0
        %v2894 = vadd.f32 %v2853, 2.0
        %v2895 = vadd.f32 %v2855, 2.0
        %v2896 = vadd.f32 %v2857, 2.0
        %v2897 = vadd.f32 %v2859, 2.0
        %v2898 = vadd.f32 %v2861, 2.0
        %v2899 = vadd.f32 %v2863, 2.0
        %v2900 = vadd.f32 %v2865, 2.0
        %v2901 = vadd.f32 %v2867, 2.0
        %v2902 = vadd.f32 %v2869, 2.0
        %v2903 = vadd.f32 %v2871, 2.0
        %v2904 = vmul.f32 %v2809, %v2872
        %v2905 = vmul.f32 %v2811, %v2873
        %v2906 = vmul.f32 %v2813, %v2874
        %v2907 = vmul.f32 %v2815, %v2875
        %v2908 = vmul.f32 %v2817, %v2876
        %v2909 = vmul.f32 %v2819, %v2877
        %v2910 = vmul.f32 %v2821, %v2878
        %v2911 = vmul.f32 %v2823, %v2879
        %v2912 = vmul.f32 %v2825, %v2880
        %v2913 = vmul.f32 %v2827, %v2881
        %v2914 = vmul.f32 %v2829, %v2882
        %v2915 = vmul.f32 %v2831, %v2883
        %v2916 = vmul.f32 %v2833, %v2884
        %v2917 = vmul.f32 %v2835, %v2885
        %v2918 = vmul.f32 %v2837, %v2886
        %v2919 = vmul.f32 %v2839, %v2887
        %v2920 = vmul.f32 %v2841, %v2888
        %v2921 = vmul.f32 %v2843, %v2889
        %v2922 = vmul.f32 %v2845, %v2890
        %v2923 = vmul.f32 %v2847, %v2891
        %v2924 = vmul.f32 %v2849, %v2892
        %v2925 = vmul.f32 %v2851, %v2893
        %v2926 = vmul.f32 %v2853, %v2894
        %v2927 = vmul.f32 %v2855, %v2895
        %v2928 = vmul.f32 %v2857, %v2896
        %v2929 = vmul.f32 %v2859, %v2897
        %v2930 = vmul.f32 %v2861, %v2898
        %v2931 = vmul.f32 %v2863, %v2899
        %v2932 = vmul.f32 %v2865, %v2900
        %v2933 = vmul.f32 %v2867, %v2901
        %v2934 = vmul.f32 %v2869, %v2902
        %v2935 = vmul.f32 %v2871, %v2903
        %v2936 = vmul.f32 %v2744, %v2904
        %v2937 = vmul.f32 %v2745, %v2905
        %v2938 = vmul.f32 %v2746, %v2906
        %v2939 = vmul.f32 %v2747, %v2907
        %v2940 = vmul.f32 %v2748, %v2908
        %v2941 = vmul.f32 %v2749, %v2909
        %v2942 = vmul.f32 %v2750, %v2910
        %v2943 = vmul.f32 %v2751, %v2911
        %v2944 = vmul.f32 %v2752, %v2912
        %v2945 = vmul.f32 %v2753, %v2913
        %v2946 = vmul.f32 %v2754, %v2914
        %v2947 = vmul.f32 %v2755, %v2915
        %v2948 = vmul.f32 %v2756, %v2916
        %v2949 = vmul.f32 %v2757, %v2917
        %v2950 = vmul.f32 %v2758, %v2918
        %v2951 = vmul.f32 %v2759, %v2919
        %v2952 = vmul.f32 %v2760, %v2920
        %v2953 = vmul.f32 %v2761, %v2921
        %v2954 = vmul.f32 %v2762, %v2922
        %v2955 = vmul.f32 %v2763, %v2923
        %v2956 = vmul.f32 %v2764, %v2924
        %v2957 = vmul.f32 %v2765, %v2925
        %v2958 = vmul.f32 %v2766, %v2926
        %v2959 = vmul.f32 %v2767, %v2927
        %v2960 = vmul.f32 %v2768, %v2928
        %v2961 = vmul.f32 %v2769, %v2929
        %v2962 = vmul.f32 %v2770, %v2930
        %v2963 = vmul.f32 %v2771, %v2931
        %v2964 = vmul.f32 %v2772, %v2932
        %v2965 = vmul.f32 %v2773, %v2933
        %v2966 = vmul.f32 %v2774, %v2934
        %v2967 = vmul.f32 %v2775, %v2935
        %v2968 = vadd.f32 %v2904, 2.0
        %v2969 = vadd.f32 %v2905, 2.0
        %v2970 = vadd.f32 %v2906, 2.0
        %v2971 = vadd.f32 %v2907, 2.0
        %v2972 = vadd.f32 %v2908, 2.0
        %v2973 = vadd.f32 %v2909, 2.0
        %v2974 = vadd.f32 %v2910, 2.0
        %v2975 = vadd.f32 %v2911, 2.0
        %v2976 = vadd.f32 %v2912, 2.0
        %v2977 = vadd.f32 %v2913, 2.0
        %v2978 = vadd.f32 %v2914, 2.0
        %v2979 = vadd.f32 %v2915, 2.0
        %v2980 = vadd.f32 %v2916, 2.0
        %v2981 = vadd.f32 %v2917, 2.0
        %v2982 = vadd.f32 %v2918, 2.0
        %v2983 = vadd.f32 %v2919, 2.0
        %v2984 = vadd.f32 %v2920, 2.0
        %v2985 = vadd.f32 %v2921, 2.0
        %v2986 = vadd.f32 %v2922, 2.0
        %v2987 = vadd.f32 %v2923, 2.0
        %v2988 = vadd.f32 %v2924, 2.0
        %v2989 = vadd.f32 %v2925, 2.0
        %v2990 = vadd.f32 %v2926, 2.0
        %v2991 = vadd.f32 %v2927, 2.0
        %v2992 = vadd.f32 %v2928, 2.0
        %v2993 = vadd.f32 %v2929, 2.0
        %v2994 = vadd.f32 %v2930, 2.0
        %v2995 = vadd.f32 %v2931, 2.0
        %v2996 = vadd.f32 %v2932, 2.0
        %v2997 = vadd.f32 %v2933, 2.0
        %v2998 = vadd.f32 %v2934, 2.0
        %v2999 = vadd.f32 %v2935, 2.0
        %v3000 = vrcp.pop %v2968
        %v3001 = vrcp.pop %v2969
        %v3002 = vrcp.pop %v2970
        %v3003 = vrcp.pop %v2971
        %v3004 = vrcp.pop %v2972
        %v3005 = vrcp.pop %v2973
        %v3006 = vrcp.pop %v2974
        %v3007 = vrcp.pop %v2975
        %v3008 = vrcp.pop %v2976
        %v3009 = vrcp.pop %v2977
        %v3010 = vrcp.pop %v2978
        %v3011 = vrcp.pop %v2979
        %v3012 = vrcp.pop %v2980
        %v3013 = vrcp.pop %v2981
        %v3014 = vrcp.pop %v2982
        %v3015 = vrcp.pop %v2983
        %v3016 = vrcp.pop %v2984
        %v3017 = vrcp.pop %v2985
        %v3018 = vrcp.pop %v2986
        %v3019 = vrcp.pop %v2987
        %v3020 = vrcp.pop %v2988
        %v3021 = vrcp.pop %v2989
        %v3022 = vrcp.pop %v2990
        %v3023 = vrcp.pop %v2991
        %v3024 = vrcp.pop %v2992
        %v3025 = vrcp.pop %v2993
        %v3026 = vrcp.pop %v2994
        %v3027 = vrcp.pop %v2995
        %v3028 = vrcp.pop %v2996
        %v3029 = vrcp.pop %v2997
        %v3030 = vrcp.pop %v2998
        %v3031 = vrcp.pop %v2999
        %v3032 = vmul.f32 %v2936, %v3000
        %v3033 = vmul.f32 %v2937, %v3001
        %v3034 = vmul.f32 %v2938, %v3002
        %v3035 = vmul.f32 %v2939, %v3003
        %v3036 = vmul.f32 %v2940, %v3004
        %v3037 = vmul.f32 %v2941, %v3005
        %v3038 = vmul.f32 %v2942, %v3006
        %v3039 = vmul.f32 %v2943, %v3007
        %v3040 = vmul.f32 %v2944, %v3008
        %v3041 = vmul.f32 %v2945, %v3009
        %v3042 = vmul.f32 %v2946, %v3010
        %v3043 = vmul.f32 %v2947, %v3011
        %v3044 = vmul.f32 %v2948, %v3012
        %v3045 = vmul.f32 %v2949, %v3013
        %v3046 = vmul.f32 %v2950, %v3014
        %v3047 = vmul.f32 %v2951, %v3015
        %v3048 = vmul.f32 %v2952, %v3016
        %v3049 = vmul.f32 %v2953, %v3017
        %v3050 = vmul.f32 %v2954, %v3018
        %v3051 = vmul.f32 %v2955, %v3019
        %v3052 = vmul.f32 %v2956, %v3020
        %v3053 = vmul.f32 %v2957, %v3021
        %v3054 = vmul.f32 %v2958, %v3022
        %v3055 = vmul.f32 %v2959, %v3023
        %v3056 = vmul.f32 %v2960, %v3024
        %v3057 = vmul.f32 %v2961, %v3025
        %v3058 = vmul.f32 %v2962, %v3026
        %v3059 = vmul.f32 %v2963, %v3027
        %v3060 = vmul.f32 %v2964, %v3028
        %v3061 = vmul.f32 %v2965, %v3029
        %v3062 = vmul.f32 %v2966, %v3030
        %v3063 = vmul.f32 %v2967, %v3031
        %vm3064 = vcmp.gt.f32.partialorder %v2744, 20.0
        %vm3065 = vcmp.gt.f32.partialorder %v2745, 20.0
        %vm3066 = vcmp.gt.f32.partialorder %v2746, 20.0
        %vm3067 = vcmp.gt.f32.partialorder %v2747, 20.0
        %vm3068 = vcmp.gt.f32.partialorder %v2748, 20.0
        %vm3069 = vcmp.gt.f32.partialorder %v2749, 20.0
        %vm3070 = vcmp.gt.f32.partialorder %v2750, 20.0
        %vm3071 = vcmp.gt.f32.partialorder %v2751, 20.0
        %vm3072 = vcmp.gt.f32.partialorder %v2752, 20.0
        %vm3073 = vcmp.gt.f32.partialorder %v2753, 20.0
        %vm3074 = vcmp.gt.f32.partialorder %v2754, 20.0
        %vm3075 = vcmp.gt.f32.partialorder %v2755, 20.0
        %vm3076 = vcmp.gt.f32.partialorder %v2756, 20.0
        %vm3077 = vcmp.gt.f32.partialorder %v2757, 20.0
        %vm3078 = vcmp.gt.f32.partialorder %v2758, 20.0
        %vm3079 = vcmp.gt.f32.partialorder %v2759, 20.0
        %vm3080 = vcmp.gt.f32.partialorder %v2760, 20.0
        %vm3081 = vcmp.gt.f32.partialorder %v2761, 20.0
        %vm3082 = vcmp.gt.f32.partialorder %v2762, 20.0
        %vm3083 = vcmp.gt.f32.partialorder %v2763, 20.0
        %vm3084 = vcmp.gt.f32.partialorder %v2764, 20.0
        %vm3085 = vcmp.gt.f32.partialorder %v2765, 20.0
        %vm3086 = vcmp.gt.f32.partialorder %v2766, 20.0
        %vm3087 = vcmp.gt.f32.partialorder %v2767, 20.0
        %vm3088 = vcmp.gt.f32.partialorder %v2768, 20.0
        %vm3089 = vcmp.gt.f32.partialorder %v2769, 20.0
        %vm3090 = vcmp.gt.f32.partialorder %v2770, 20.0
        %vm3091 = vcmp.gt.f32.partialorder %v2771, 20.0
        %vm3092 = vcmp.gt.f32.partialorder %v2772, 20.0
        %vm3093 = vcmp.gt.f32.partialorder %v2773, 20.0
        %vm3094 = vcmp.gt.f32.partialorder %v2774, 20.0
        %vm3095 = vcmp.gt.f32.partialorder %v2775, 20.0
        %v3096 = vsel %vm3064, %v2744, %v3032
        %v3097 = vsel %vm3065, %v2745, %v3033
        %v3098 = vsel %vm3066, %v2746, %v3034
        %v3099 = vsel %vm3067, %v2747, %v3035
        %v3100 = vsel %vm3068, %v2748, %v3036
        %v3101 = vsel %vm3069, %v2749, %v3037
        %v3102 = vsel %vm3070, %v2750, %v3038
        %v3103 = vsel %vm3071, %v2751, %v3039
        %v3104 = vsel %vm3072, %v2752, %v3040
        %v3105 = vsel %vm3073, %v2753, %v3041
        %v3106 = vsel %vm3074, %v2754, %v3042
        %v3107 = vsel %vm3075, %v2755, %v3043
        %v3108 = vsel %vm3076, %v2756, %v3044
        %v3109 = vsel %vm3077, %v2757, %v3045
        %v3110 = vsel %vm3078, %v2758, %v3046
        %v3111 = vsel %vm3079, %v2759, %v3047
        %v3112 = vsel %vm3080, %v2760, %v3048
        %v3113 = vsel %vm3081, %v2761, %v3049
        %v3114 = vsel %vm3082, %v2762, %v3050
        %v3115 = vsel %vm3083, %v2763, %v3051
        %v3116 = vsel %vm3084, %v2764, %v3052
        %v3117 = vsel %vm3085, %v2765, %v3053
        %v3118 = vsel %vm3086, %v2766, %v3054
        %v3119 = vsel %vm3087, %v2767, %v3055
        %v3120 = vsel %vm3088, %v2768, %v3056
        %v3121 = vsel %vm3089, %v2769, %v3057
        %v3122 = vsel %vm3090, %v2770, %v3058
        %v3123 = vsel %vm3091, %v2771, %v3059
        %v3124 = vsel %vm3092, %v2772, %v3060
        %v3125 = vsel %vm3093, %v2773, %v3061
        %v3126 = vsel %vm3094, %v2774, %v3062
        %v3127 = vsel %vm3095, %v2775, %v3063
        %v3128 = vpack.c.bf16 %v3097, %v3096
        %v3129 = vpack.c.bf16 %v3099, %v3098
        %v3130 = vpack.c.bf16 %v3101, %v3100
        %v3131 = vpack.c.bf16 %v3103, %v3102
        %v3132 = vpack.c.bf16 %v3105, %v3104
        %v3133 = vpack.c.bf16 %v3107, %v3106
        %v3134 = vpack.c.bf16 %v3109, %v3108
        %v3135 = vpack.c.bf16 %v3111, %v3110
        %v3136 = vpack.c.bf16 %v3113, %v3112
        %v3137 = vpack.c.bf16 %v3115, %v3114
        %v3138 = vpack.c.bf16 %v3117, %v3116
        %v3139 = vpack.c.bf16 %v3119, %v3118
        %v3140 = vpack.c.bf16 %v3121, %v3120
        %v3141 = vpack.c.bf16 %v3123, %v3122
        %v3142 = vpack.c.bf16 %v3125, %v3124
        %v3143 = vpack.c.bf16 %v3127, %v3126
        %v3144 = vld [vmem:[%s8] sm:$0xf]
        %v3145 = vld [vmem:[%s8 + $0x4] sm:$0xf]
        %v3146 = vld [vmem:[%s8 + $0x8] sm:$0xf]
        %v3147 = vld [vmem:[%s8 + $0xc] sm:$0xf]
        %v3152 = vunpack.c.l.b16 %v3144
        %v3153 = vunpack.c.l.b16 %v3145
        %v3154 = vunpack.c.l.b16 %v3146
        %v3155 = vunpack.c.l.b16 %v3147
        %v3156 = vpack.c.b16 %v3153, %v3152
        %v3157 = vpack.c.b16 %v3155, %v3154
        %v3161 = vsel %vm1265, %v3128, 0
        %v3164 = vsel %vm1265, %v3129, 0
        %v3167 = vsel %vm1265, %v3130, 0
        %v3170 = vsel %vm1265, %v3131, 0
        %v3173 = vsel %vm1265, %v3132, 0
        %v3176 = vsel %vm1265, %v3133, 0
        %v3179 = vsel %vm1265, %v3134, 0
        %v3182 = vsel %vm1265, %v3135, 0
        %v3185 = vsel %vm1265, %v3136, 0
        %v3188 = vsel %vm1265, %v3137, 0
        %v3191 = vsel %vm1265, %v3138, 0
        %v3194 = vsel %vm1265, %v3139, 0
        %v3197 = vsel %vm1265, %v3140, 0
        %v3200 = vsel %vm1265, %v3141, 0
        %v3203 = vsel %vm1265, %v3142, 0
        %v3206 = vsel %vm1265, %v3143, 0
        %3208 = vmatpush.bf16.msra.mxu0 0
        %3209 = vmatpush.bf16.msra.mxu0 0
        %3210 = vmatpush.bf16.msra.mxu0 0
        %3211 = vmatpush.bf16.msra.mxu0 0
        %3212 = vmatpush.bf16.msra.mxu0 0
        %3213 = vmatpush.bf16.msra.mxu0 0
        %3214 = vmatpush.bf16.msra.mxu0 %v3157
        %3215 = vmatpush.bf16.msra.mxu0 %v3156
        %3216 = vmatmul.bf16.gmra.mxu0 %v3161
        %v3217 = vpop.f32.mrf.mxu0
        %v3218 = vadd.f32 0.0, %v3217
        %v3219 = vpop.f32.mrf.mxu0
        %v3220 = vadd.f32 0.0, %v3219
        %3221 = vmatmul.bf16.gmra.mxu0 %v3164
        %v3222 = vpop.f32.mrf.mxu0
        %v3223 = vadd.f32 0.0, %v3222
        %v3224 = vpop.f32.mrf.mxu0
        %v3225 = vadd.f32 0.0, %v3224
        %3226 = vmatmul.bf16.gmra.mxu0 %v3167
        %v3227 = vpop.f32.mrf.mxu0
        %v3228 = vadd.f32 0.0, %v3227
        %v3229 = vpop.f32.mrf.mxu0
        %v3230 = vadd.f32 0.0, %v3229
        %3231 = vmatmul.bf16.gmra.mxu0 %v3170
        %v3232 = vpop.f32.mrf.mxu0
        %v3233 = vadd.f32 0.0, %v3232
        %v3234 = vpop.f32.mrf.mxu0
        %v3235 = vadd.f32 0.0, %v3234
        %3236 = vmatmul.bf16.gmra.mxu0 %v3173
        %v3237 = vpop.f32.mrf.mxu0
        %v3238 = vadd.f32 0.0, %v3237
        %v3239 = vpop.f32.mrf.mxu0
        %v3240 = vadd.f32 0.0, %v3239
        %3241 = vmatmul.bf16.gmra.mxu0 %v3176
        %v3242 = vpop.f32.mrf.mxu0
        %v3243 = vadd.f32 0.0, %v3242
        %v3244 = vpop.f32.mrf.mxu0
        %v3245 = vadd.f32 0.0, %v3244
        %3246 = vmatmul.bf16.gmra.mxu0 %v3179
        %v3247 = vpop.f32.mrf.mxu0
        %v3248 = vadd.f32 0.0, %v3247
        %v3249 = vpop.f32.mrf.mxu0
        %v3250 = vadd.f32 0.0, %v3249
        %3251 = vmatmul.bf16.gmra.mxu0 %v3182
        %v3252 = vpop.f32.mrf.mxu0
        %v3253 = vadd.f32 0.0, %v3252
        %v3254 = vpop.f32.mrf.mxu0
        %v3255 = vadd.f32 0.0, %v3254
        %3256 = vmatmul.bf16.gmra.mxu0 %v3185
        %v3257 = vpop.f32.mrf.mxu0
        %v3258 = vadd.f32 0.0, %v3257
        %v3259 = vpop.f32.mrf.mxu0
        %v3260 = vadd.f32 0.0, %v3259
        %3261 = vmatmul.bf16.gmra.mxu0 %v3188
        %v3262 = vpop.f32.mrf.mxu0
        %v3263 = vadd.f32 0.0, %v3262
        %v3264 = vpop.f32.mrf.mxu0
        %v3265 = vadd.f32 0.0, %v3264
        %3266 = vmatmul.bf16.gmra.mxu0 %v3191
        %v3267 = vpop.f32.mrf.mxu0
        %v3268 = vadd.f32 0.0, %v3267
        %v3269 = vpop.f32.mrf.mxu0
        %v3270 = vadd.f32 0.0, %v3269
        %3271 = vmatmul.bf16.gmra.mxu0 %v3194
        %v3272 = vpop.f32.mrf.mxu0
        %v3273 = vadd.f32 0.0, %v3272
        %v3274 = vpop.f32.mrf.mxu0
        %v3275 = vadd.f32 0.0, %v3274
        %3276 = vmatmul.bf16.gmra.mxu0 %v3197
        %v3277 = vpop.f32.mrf.mxu0
        %v3278 = vadd.f32 0.0, %v3277
        %v3279 = vpop.f32.mrf.mxu0
        %v3280 = vadd.f32 0.0, %v3279
        %3281 = vmatmul.bf16.gmra.mxu0 %v3200
        %v3282 = vpop.f32.mrf.mxu0
        %v3283 = vadd.f32 0.0, %v3282
        %v3284 = vpop.f32.mrf.mxu0
        %v3285 = vadd.f32 0.0, %v3284
        %3286 = vmatmul.bf16.gmra.mxu0 %v3203
        %v3287 = vpop.f32.mrf.mxu0
        %v3288 = vadd.f32 0.0, %v3287
        %v3289 = vpop.f32.mrf.mxu0
        %v3290 = vadd.f32 0.0, %v3289
        %3291 = vmatmul.bf16.gmra.mxu0 %v3206
        %v3292 = vpop.f32.mrf.mxu0
        %v3293 = vadd.f32 0.0, %v3292
        %v3294 = vpop.f32.mrf.mxu0
        %v3295 = vadd.f32 0.0, %v3294
        %3296 = vdwg.mxu0
        %v3297 = vld [vmem:[%s9] sm:$0x1]
        %v3299 = vperm.slane %v3297, 0
        %v3301 = vmul.f32 %v3218, %v3299
        %v3302 = vmul.f32 %v3220, %v3299
        %v3303 = vmul.f32 %v3223, %v3299
        %v3304 = vmul.f32 %v3225, %v3299
        %v3305 = vmul.f32 %v3228, %v3299
        %v3306 = vmul.f32 %v3230, %v3299
        %v3307 = vmul.f32 %v3233, %v3299
        %v3308 = vmul.f32 %v3235, %v3299
        %v3309 = vmul.f32 %v3238, %v3299
        %v3310 = vmul.f32 %v3240, %v3299
        %v3311 = vmul.f32 %v3243, %v3299
        %v3312 = vmul.f32 %v3245, %v3299
        %v3313 = vmul.f32 %v3248, %v3299
        %v3314 = vmul.f32 %v3250, %v3299
        %v3315 = vmul.f32 %v3253, %v3299
        %v3316 = vmul.f32 %v3255, %v3299
        %v3317 = vmul.f32 %v3258, %v3299
        %v3318 = vmul.f32 %v3260, %v3299
        %v3319 = vmul.f32 %v3263, %v3299
        %v3320 = vmul.f32 %v3265, %v3299
        %v3321 = vmul.f32 %v3268, %v3299
        %v3322 = vmul.f32 %v3270, %v3299
        %v3323 = vmul.f32 %v3273, %v3299
        %v3324 = vmul.f32 %v3275, %v3299
        %v3325 = vmul.f32 %v3278, %v3299
        %v3326 = vmul.f32 %v3280, %v3299
        %v3327 = vmul.f32 %v3283, %v3299
        %v3328 = vmul.f32 %v3285, %v3299
        %v3329 = vmul.f32 %v3288, %v3299
        %v3330 = vmul.f32 %v3290, %v3299
        %v3331 = vmul.f32 %v3293, %v3299
        %v3332 = vmul.f32 %v3295, %v3299
        %v3333 = vld [vmem:[%s10] sm:$0x1]
        %v3335 = vperm.slane %v3333, 0
        %v3337 = vadd.f32 %v3301, %v3335
        %v3338 = vadd.f32 %v3302, %v3335
        %v3339 = vadd.f32 %v3303, %v3335
        %v3340 = vadd.f32 %v3304, %v3335
        %v3341 = vadd.f32 %v3305, %v3335
        %v3342 = vadd.f32 %v3306, %v3335
        %v3343 = vadd.f32 %v3307, %v3335
        %v3344 = vadd.f32 %v3308, %v3335
        %v3345 = vadd.f32 %v3309, %v3335
        %v3346 = vadd.f32 %v3310, %v3335
        %v3347 = vadd.f32 %v3311, %v3335
        %v3348 = vadd.f32 %v3312, %v3335
        %v3349 = vadd.f32 %v3313, %v3335
        %v3350 = vadd.f32 %v3314, %v3335
        %v3351 = vadd.f32 %v3315, %v3335
        %v3352 = vadd.f32 %v3316, %v3335
        %v3353 = vadd.f32 %v3317, %v3335
        %v3354 = vadd.f32 %v3318, %v3335
        %v3355 = vadd.f32 %v3319, %v3335
        %v3356 = vadd.f32 %v3320, %v3335
        %v3357 = vadd.f32 %v3321, %v3335
        %v3358 = vadd.f32 %v3322, %v3335
        %v3359 = vadd.f32 %v3323, %v3335
        %v3360 = vadd.f32 %v3324, %v3335
        %v3361 = vadd.f32 %v3325, %v3335
        %v3362 = vadd.f32 %v3326, %v3335
        %v3363 = vadd.f32 %v3327, %v3335
        %v3364 = vadd.f32 %v3328, %v3335
        %v3365 = vadd.f32 %v3329, %v3335
        %v3366 = vadd.f32 %v3330, %v3335
        %v3367 = vadd.f32 %v3331, %v3335
        %v3368 = vadd.f32 %v3332, %v3335
        %v3369 = vmin.f32 %v3337, 20.0
        %v3370 = vmin.f32 %v3338, 20.0
        %v3371 = vmin.f32 %v3339, 20.0
        %v3372 = vmin.f32 %v3340, 20.0
        %v3373 = vmin.f32 %v3341, 20.0
        %v3374 = vmin.f32 %v3342, 20.0
        %v3375 = vmin.f32 %v3343, 20.0
        %v3376 = vmin.f32 %v3344, 20.0
        %v3377 = vmin.f32 %v3345, 20.0
        %v3378 = vmin.f32 %v3346, 20.0
        %v3379 = vmin.f32 %v3347, 20.0
        %v3380 = vmin.f32 %v3348, 20.0
        %v3381 = vmin.f32 %v3349, 20.0
        %v3382 = vmin.f32 %v3350, 20.0
        %v3383 = vmin.f32 %v3351, 20.0
        %v3384 = vmin.f32 %v3352, 20.0
        %v3385 = vmin.f32 %v3353, 20.0
        %v3386 = vmin.f32 %v3354, 20.0
        %v3387 = vmin.f32 %v3355, 20.0
        %v3388 = vmin.f32 %v3356, 20.0
        %v3389 = vmin.f32 %v3357, 20.0
        %v3390 = vmin.f32 %v3358, 20.0
        %v3391 = vmin.f32 %v3359, 20.0
        %v3392 = vmin.f32 %v3360, 20.0
        %v3393 = vmin.f32 %v3361, 20.0
        %v3394 = vmin.f32 %v3362, 20.0
        %v3395 = vmin.f32 %v3363, 20.0
        %v3396 = vmin.f32 %v3364, 20.0
        %v3397 = vmin.f32 %v3365, 20.0
        %v3398 = vmin.f32 %v3366, 20.0
        %v3399 = vmin.f32 %v3367, 20.0
        %v3400 = vmin.f32 %v3368, 20.0
        %v3401 = vmul.f32 %v3369, 1.442695
        %v3402 = vpow.pop %v3401
        %v3403 = vmul.f32 %v3370, 1.442695
        %v3404 = vpow.pop %v3403
        %v3405 = vmul.f32 %v3371, 1.442695
        %v3406 = vpow.pop %v3405
        %v3407 = vmul.f32 %v3372, 1.442695
        %v3408 = vpow.pop %v3407
        %v3409 = vmul.f32 %v3373, 1.442695
        %v3410 = vpow.pop %v3409
        %v3411 = vmul.f32 %v3374, 1.442695
        %v3412 = vpow.pop %v3411
        %v3413 = vmul.f32 %v3375, 1.442695
        %v3414 = vpow.pop %v3413
        %v3415 = vmul.f32 %v3376, 1.442695
        %v3416 = vpow.pop %v3415
        %v3417 = vmul.f32 %v3377, 1.442695
        %v3418 = vpow.pop %v3417
        %v3419 = vmul.f32 %v3378, 1.442695
        %v3420 = vpow.pop %v3419
        %v3421 = vmul.f32 %v3379, 1.442695
        %v3422 = vpow.pop %v3421
        %v3423 = vmul.f32 %v3380, 1.442695
        %v3424 = vpow.pop %v3423
        %v3425 = vmul.f32 %v3381, 1.442695
        %v3426 = vpow.pop %v3425
        %v3427 = vmul.f32 %v3382, 1.442695
        %v3428 = vpow.pop %v3427
        %v3429 = vmul.f32 %v3383, 1.442695
        %v3430 = vpow.pop %v3429
        %v3431 = vmul.f32 %v3384, 1.442695
        %v3432 = vpow.pop %v3431
        %v3433 = vmul.f32 %v3385, 1.442695
        %v3434 = vpow.pop %v3433
        %v3435 = vmul.f32 %v3386, 1.442695
        %v3436 = vpow.pop %v3435
        %v3437 = vmul.f32 %v3387, 1.442695
        %v3438 = vpow.pop %v3437
        %v3439 = vmul.f32 %v3388, 1.442695
        %v3440 = vpow.pop %v3439
        %v3441 = vmul.f32 %v3389, 1.442695
        %v3442 = vpow.pop %v3441
        %v3443 = vmul.f32 %v3390, 1.442695
        %v3444 = vpow.pop %v3443
        %v3445 = vmul.f32 %v3391, 1.442695
        %v3446 = vpow.pop %v3445
        %v3447 = vmul.f32 %v3392, 1.442695
        %v3448 = vpow.pop %v3447
        %v3449 = vmul.f32 %v3393, 1.442695
        %v3450 = vpow.pop %v3449
        %v3451 = vmul.f32 %v3394, 1.442695
        %v3452 = vpow.pop %v3451
        %v3453 = vmul.f32 %v3395, 1.442695
        %v3454 = vpow.pop %v3453
        %v3455 = vmul.f32 %v3396, 1.442695
        %v3456 = vpow.pop %v3455
        %v3457 = vmul.f32 %v3397, 1.442695
        %v3458 = vpow.pop %v3457
        %v3459 = vmul.f32 %v3398, 1.442695
        %v3460 = vpow.pop %v3459
        %v3461 = vmul.f32 %v3399, 1.442695
        %v3462 = vpow.pop %v3461
        %v3463 = vmul.f32 %v3400, 1.442695
        %v3464 = vpow.pop %v3463
        %v3465 = vadd.f32 %v3402, 2.0
        %v3466 = vadd.f32 %v3404, 2.0
        %v3467 = vadd.f32 %v3406, 2.0
        %v3468 = vadd.f32 %v3408, 2.0
        %v3469 = vadd.f32 %v3410, 2.0
        %v3470 = vadd.f32 %v3412, 2.0
        %v3471 = vadd.f32 %v3414, 2.0
        %v3472 = vadd.f32 %v3416, 2.0
        %v3473 = vadd.f32 %v3418, 2.0
        %v3474 = vadd.f32 %v3420, 2.0
        %v3475 = vadd.f32 %v3422, 2.0
        %v3476 = vadd.f32 %v3424, 2.0
        %v3477 = vadd.f32 %v3426, 2.0
        %v3478 = vadd.f32 %v3428, 2.0
        %v3479 = vadd.f32 %v3430, 2.0
        %v3480 = vadd.f32 %v3432, 2.0
        %v3481 = vadd.f32 %v3434, 2.0
        %v3482 = vadd.f32 %v3436, 2.0
        %v3483 = vadd.f32 %v3438, 2.0
        %v3484 = vadd.f32 %v3440, 2.0
        %v3485 = vadd.f32 %v3442, 2.0
        %v3486 = vadd.f32 %v3444, 2.0
        %v3487 = vadd.f32 %v3446, 2.0
        %v3488 = vadd.f32 %v3448, 2.0
        %v3489 = vadd.f32 %v3450, 2.0
        %v3490 = vadd.f32 %v3452, 2.0
        %v3491 = vadd.f32 %v3454, 2.0
        %v3492 = vadd.f32 %v3456, 2.0
        %v3493 = vadd.f32 %v3458, 2.0
        %v3494 = vadd.f32 %v3460, 2.0
        %v3495 = vadd.f32 %v3462, 2.0
        %v3496 = vadd.f32 %v3464, 2.0
        %v3497 = vmul.f32 %v3402, %v3465
        %v3498 = vmul.f32 %v3404, %v3466
        %v3499 = vmul.f32 %v3406, %v3467
        %v3500 = vmul.f32 %v3408, %v3468
        %v3501 = vmul.f32 %v3410, %v3469
        %v3502 = vmul.f32 %v3412, %v3470
        %v3503 = vmul.f32 %v3414, %v3471
        %v3504 = vmul.f32 %v3416, %v3472
        %v3505 = vmul.f32 %v3418, %v3473
        %v3506 = vmul.f32 %v3420, %v3474
        %v3507 = vmul.f32 %v3422, %v3475
        %v3508 = vmul.f32 %v3424, %v3476
        %v3509 = vmul.f32 %v3426, %v3477
        %v3510 = vmul.f32 %v3428, %v3478
        %v3511 = vmul.f32 %v3430, %v3479
        %v3512 = vmul.f32 %v3432, %v3480
        %v3513 = vmul.f32 %v3434, %v3481
        %v3514 = vmul.f32 %v3436, %v3482
        %v3515 = vmul.f32 %v3438, %v3483
        %v3516 = vmul.f32 %v3440, %v3484
        %v3517 = vmul.f32 %v3442, %v3485
        %v3518 = vmul.f32 %v3444, %v3486
        %v3519 = vmul.f32 %v3446, %v3487
        %v3520 = vmul.f32 %v3448, %v3488
        %v3521 = vmul.f32 %v3450, %v3489
        %v3522 = vmul.f32 %v3452, %v3490
        %v3523 = vmul.f32 %v3454, %v3491
        %v3524 = vmul.f32 %v3456, %v3492
        %v3525 = vmul.f32 %v3458, %v3493
        %v3526 = vmul.f32 %v3460, %v3494
        %v3527 = vmul.f32 %v3462, %v3495
        %v3528 = vmul.f32 %v3464, %v3496
        %v3529 = vmul.f32 %v3337, %v3497
        %v3530 = vmul.f32 %v3338, %v3498
        %v3531 = vmul.f32 %v3339, %v3499
        %v3532 = vmul.f32 %v3340, %v3500
        %v3533 = vmul.f32 %v3341, %v3501
        %v3534 = vmul.f32 %v3342, %v3502
        %v3535 = vmul.f32 %v3343, %v3503
        %v3536 = vmul.f32 %v3344, %v3504
        %v3537 = vmul.f32 %v3345, %v3505
        %v3538 = vmul.f32 %v3346, %v3506
        %v3539 = vmul.f32 %v3347, %v3507
        %v3540 = vmul.f32 %v3348, %v3508
        %v3541 = vmul.f32 %v3349, %v3509
        %v3542 = vmul.f32 %v3350, %v3510
        %v3543 = vmul.f32 %v3351, %v3511
        %v3544 = vmul.f32 %v3352, %v3512
        %v3545 = vmul.f32 %v3353, %v3513
        %v3546 = vmul.f32 %v3354, %v3514
        %v3547 = vmul.f32 %v3355, %v3515
        %v3548 = vmul.f32 %v3356, %v3516
        %v3549 = vmul.f32 %v3357, %v3517
        %v3550 = vmul.f32 %v3358, %v3518
        %v3551 = vmul.f32 %v3359, %v3519
        %v3552 = vmul.f32 %v3360, %v3520
        %v3553 = vmul.f32 %v3361, %v3521
        %v3554 = vmul.f32 %v3362, %v3522
        %v3555 = vmul.f32 %v3363, %v3523
        %v3556 = vmul.f32 %v3364, %v3524
        %v3557 = vmul.f32 %v3365, %v3525
        %v3558 = vmul.f32 %v3366, %v3526
        %v3559 = vmul.f32 %v3367, %v3527
        %v3560 = vmul.f32 %v3368, %v3528
        %v3561 = vadd.f32 %v3497, 2.0
        %v3562 = vadd.f32 %v3498, 2.0
        %v3563 = vadd.f32 %v3499, 2.0
        %v3564 = vadd.f32 %v3500, 2.0
        %v3565 = vadd.f32 %v3501, 2.0
        %v3566 = vadd.f32 %v3502, 2.0
        %v3567 = vadd.f32 %v3503, 2.0
        %v3568 = vadd.f32 %v3504, 2.0
        %v3569 = vadd.f32 %v3505, 2.0
        %v3570 = vadd.f32 %v3506, 2.0
        %v3571 = vadd.f32 %v3507, 2.0
        %v3572 = vadd.f32 %v3508, 2.0
        %v3573 = vadd.f32 %v3509, 2.0
        %v3574 = vadd.f32 %v3510, 2.0
        %v3575 = vadd.f32 %v3511, 2.0
        %v3576 = vadd.f32 %v3512, 2.0
        %v3577 = vadd.f32 %v3513, 2.0
        %v3578 = vadd.f32 %v3514, 2.0
        %v3579 = vadd.f32 %v3515, 2.0
        %v3580 = vadd.f32 %v3516, 2.0
        %v3581 = vadd.f32 %v3517, 2.0
        %v3582 = vadd.f32 %v3518, 2.0
        %v3583 = vadd.f32 %v3519, 2.0
        %v3584 = vadd.f32 %v3520, 2.0
        %v3585 = vadd.f32 %v3521, 2.0
        %v3586 = vadd.f32 %v3522, 2.0
        %v3587 = vadd.f32 %v3523, 2.0
        %v3588 = vadd.f32 %v3524, 2.0
        %v3589 = vadd.f32 %v3525, 2.0
        %v3590 = vadd.f32 %v3526, 2.0
        %v3591 = vadd.f32 %v3527, 2.0
        %v3592 = vadd.f32 %v3528, 2.0
        %v3593 = vrcp.pop %v3561
        %v3594 = vrcp.pop %v3562
        %v3595 = vrcp.pop %v3563
        %v3596 = vrcp.pop %v3564
        %v3597 = vrcp.pop %v3565
        %v3598 = vrcp.pop %v3566
        %v3599 = vrcp.pop %v3567
        %v3600 = vrcp.pop %v3568
        %v3601 = vrcp.pop %v3569
        %v3602 = vrcp.pop %v3570
        %v3603 = vrcp.pop %v3571
        %v3604 = vrcp.pop %v3572
        %v3605 = vrcp.pop %v3573
        %v3606 = vrcp.pop %v3574
        %v3607 = vrcp.pop %v3575
        %v3608 = vrcp.pop %v3576
        %v3609 = vrcp.pop %v3577
        %v3610 = vrcp.pop %v3578
        %v3611 = vrcp.pop %v3579
        %v3612 = vrcp.pop %v3580
        %v3613 = vrcp.pop %v3581
        %v3614 = vrcp.pop %v3582
        %v3615 = vrcp.pop %v3583
        %v3616 = vrcp.pop %v3584
        %v3617 = vrcp.pop %v3585
        %v3618 = vrcp.pop %v3586
        %v3619 = vrcp.pop %v3587
        %v3620 = vrcp.pop %v3588
        %v3621 = vrcp.pop %v3589
        %v3622 = vrcp.pop %v3590
        %v3623 = vrcp.pop %v3591
        %v3624 = vrcp.pop %v3592
        %v3625 = vmul.f32 %v3529, %v3593
        %v3626 = vmul.f32 %v3530, %v3594
        %v3627 = vmul.f32 %v3531, %v3595
        %v3628 = vmul.f32 %v3532, %v3596
        %v3629 = vmul.f32 %v3533, %v3597
        %v3630 = vmul.f32 %v3534, %v3598
        %v3631 = vmul.f32 %v3535, %v3599
        %v3632 = vmul.f32 %v3536, %v3600
        %v3633 = vmul.f32 %v3537, %v3601
        %v3634 = vmul.f32 %v3538, %v3602
        %v3635 = vmul.f32 %v3539, %v3603
        %v3636 = vmul.f32 %v3540, %v3604
        %v3637 = vmul.f32 %v3541, %v3605
        %v3638 = vmul.f32 %v3542, %v3606
        %v3639 = vmul.f32 %v3543, %v3607
        %v3640 = vmul.f32 %v3544, %v3608
        %v3641 = vmul.f32 %v3545, %v3609
        %v3642 = vmul.f32 %v3546, %v3610
        %v3643 = vmul.f32 %v3547, %v3611
        %v3644 = vmul.f32 %v3548, %v3612
        %v3645 = vmul.f32 %v3549, %v3613
        %v3646 = vmul.f32 %v3550, %v3614
        %v3647 = vmul.f32 %v3551, %v3615
        %v3648 = vmul.f32 %v3552, %v3616
        %v3649 = vmul.f32 %v3553, %v3617
        %v3650 = vmul.f32 %v3554, %v3618
        %v3651 = vmul.f32 %v3555, %v3619
        %v3652 = vmul.f32 %v3556, %v3620
        %v3653 = vmul.f32 %v3557, %v3621
        %v3654 = vmul.f32 %v3558, %v3622
        %v3655 = vmul.f32 %v3559, %v3623
        %v3656 = vmul.f32 %v3560, %v3624
        %vm3657 = vcmp.gt.f32.partialorder %v3337, 20.0
        %vm3658 = vcmp.gt.f32.partialorder %v3338, 20.0
        %vm3659 = vcmp.gt.f32.partialorder %v3339, 20.0
        %vm3660 = vcmp.gt.f32.partialorder %v3340, 20.0
        %vm3661 = vcmp.gt.f32.partialorder %v3341, 20.0
        %vm3662 = vcmp.gt.f32.partialorder %v3342, 20.0
        %vm3663 = vcmp.gt.f32.partialorder %v3343, 20.0
        %vm3664 = vcmp.gt.f32.partialorder %v3344, 20.0
        %vm3665 = vcmp.gt.f32.partialorder %v3345, 20.0
        %vm3666 = vcmp.gt.f32.partialorder %v3346, 20.0
        %vm3667 = vcmp.gt.f32.partialorder %v3347, 20.0
        %vm3668 = vcmp.gt.f32.partialorder %v3348, 20.0
        %vm3669 = vcmp.gt.f32.partialorder %v3349, 20.0
        %vm3670 = vcmp.gt.f32.partialorder %v3350, 20.0
        %vm3671 = vcmp.gt.f32.partialorder %v3351, 20.0
        %vm3672 = vcmp.gt.f32.partialorder %v3352, 20.0
        %vm3673 = vcmp.gt.f32.partialorder %v3353, 20.0
        %vm3674 = vcmp.gt.f32.partialorder %v3354, 20.0
        %vm3675 = vcmp.gt.f32.partialorder %v3355, 20.0
        %vm3676 = vcmp.gt.f32.partialorder %v3356, 20.0
        %vm3677 = vcmp.gt.f32.partialorder %v3357, 20.0
        %vm3678 = vcmp.gt.f32.partialorder %v3358, 20.0
        %vm3679 = vcmp.gt.f32.partialorder %v3359, 20.0
        %vm3680 = vcmp.gt.f32.partialorder %v3360, 20.0
        %vm3681 = vcmp.gt.f32.partialorder %v3361, 20.0
        %vm3682 = vcmp.gt.f32.partialorder %v3362, 20.0
        %vm3683 = vcmp.gt.f32.partialorder %v3363, 20.0
        %vm3684 = vcmp.gt.f32.partialorder %v3364, 20.0
        %vm3685 = vcmp.gt.f32.partialorder %v3365, 20.0
        %vm3686 = vcmp.gt.f32.partialorder %v3366, 20.0
        %vm3687 = vcmp.gt.f32.partialorder %v3367, 20.0
        %vm3688 = vcmp.gt.f32.partialorder %v3368, 20.0
        %v3689 = vsel %vm3657, %v3337, %v3625
        %v3690 = vsel %vm3658, %v3338, %v3626
        %v3691 = vsel %vm3659, %v3339, %v3627
        %v3692 = vsel %vm3660, %v3340, %v3628
        %v3693 = vsel %vm3661, %v3341, %v3629
        %v3694 = vsel %vm3662, %v3342, %v3630
        %v3695 = vsel %vm3663, %v3343, %v3631
        %v3696 = vsel %vm3664, %v3344, %v3632
        %v3697 = vsel %vm3665, %v3345, %v3633
        %v3698 = vsel %vm3666, %v3346, %v3634
        %v3699 = vsel %vm3667, %v3347, %v3635
        %v3700 = vsel %vm3668, %v3348, %v3636
        %v3701 = vsel %vm3669, %v3349, %v3637
        %v3702 = vsel %vm3670, %v3350, %v3638
        %v3703 = vsel %vm3671, %v3351, %v3639
        %v3704 = vsel %vm3672, %v3352, %v3640
        %v3705 = vsel %vm3673, %v3353, %v3641
        %v3706 = vsel %vm3674, %v3354, %v3642
        %v3707 = vsel %vm3675, %v3355, %v3643
        %v3708 = vsel %vm3676, %v3356, %v3644
        %v3709 = vsel %vm3677, %v3357, %v3645
        %v3710 = vsel %vm3678, %v3358, %v3646
        %v3711 = vsel %vm3679, %v3359, %v3647
        %v3712 = vsel %vm3680, %v3360, %v3648
        %v3713 = vsel %vm3681, %v3361, %v3649
        %v3714 = vsel %vm3682, %v3362, %v3650
        %v3715 = vsel %vm3683, %v3363, %v3651
        %v3716 = vsel %vm3684, %v3364, %v3652
        %v3717 = vsel %vm3685, %v3365, %v3653
        %v3718 = vsel %vm3686, %v3366, %v3654
        %v3719 = vsel %vm3687, %v3367, %v3655
        %v3720 = vsel %vm3688, %v3368, %v3656
        %v3721 = vpack.c.bf16 %v3690, %v3689
        %v3722 = vpack.c.bf16 %v3692, %v3691
        %v3723 = vpack.c.bf16 %v3694, %v3693
        %v3724 = vpack.c.bf16 %v3696, %v3695
        %v3725 = vpack.c.bf16 %v3698, %v3697
        %v3726 = vpack.c.bf16 %v3700, %v3699
        %v3727 = vpack.c.bf16 %v3702, %v3701
        %v3728 = vpack.c.bf16 %v3704, %v3703
        %v3729 = vpack.c.bf16 %v3706, %v3705
        %v3730 = vpack.c.bf16 %v3708, %v3707
        %v3731 = vpack.c.bf16 %v3710, %v3709
        %v3732 = vpack.c.bf16 %v3712, %v3711
        %v3733 = vpack.c.bf16 %v3714, %v3713
        %v3734 = vpack.c.bf16 %v3716, %v3715
        %v3735 = vpack.c.bf16 %v3718, %v3717
        %v3736 = vpack.c.bf16 %v3720, %v3719
        %v3737 = vld [vmem:[%s11] sm:$0xf]
        %v3738 = vld [vmem:[%s11 + $0x4] sm:$0xf]
        %v3739 = vld [vmem:[%s11 + $0x8] sm:$0xf]
        %v3740 = vld [vmem:[%s11 + $0xc] sm:$0xf]
        %vm3773 = vcmask 1041408
        %v3774 = vrot.slane %v3689, 6
        %v3775 = vrot.slane %v3690, 6
        %v3776 = vsel %vm3773, %v3774, %v3775
        %v3777 = vrot.slane %v3691, 6
        %v3778 = vrot.slane %v3692, 6
        %v3779 = vsel %vm3773, %v3777, %v3778
        %v3780 = vrot.slane %v3693, 6
        %v3781 = vrot.slane %v3694, 6
        %v3782 = vsel %vm3773, %v3780, %v3781
        %v3783 = vrot.slane %v3695, 6
        %v3784 = vrot.slane %v3696, 6
        %v3785 = vsel %vm3773, %v3783, %v3784
        %v3786 = vrot.slane %v3697, 6
        %v3787 = vrot.slane %v3698, 6
        %v3788 = vsel %vm3773, %v3786, %v3787
        %v3789 = vrot.slane %v3699, 6
        %v3790 = vrot.slane %v3700, 6
        %v3791 = vsel %vm3773, %v3789, %v3790
        %v3792 = vrot.slane %v3701, 6
        %v3793 = vrot.slane %v3702, 6
        %v3794 = vsel %vm3773, %v3792, %v3793
        %v3795 = vrot.slane %v3703, 6
        %v3796 = vrot.slane %v3704, 6
        %v3797 = vsel %vm3773, %v3795, %v3796
        %v3798 = vrot.slane %v3705, 6
        %v3799 = vrot.slane %v3706, 6
        %v3800 = vsel %vm3773, %v3798, %v3799
        %v3801 = vrot.slane %v3707, 6
        %v3802 = vrot.slane %v3708, 6
        %v3803 = vsel %vm3773, %v3801, %v3802
        %v3804 = vrot.slane %v3709, 6
        %v3805 = vrot.slane %v3710, 6
        %v3806 = vsel %vm3773, %v3804, %v3805
        %v3807 = vrot.slane %v3711, 6
        %v3808 = vrot.slane %v3712, 6
        %v3809 = vsel %vm3773, %v3807, %v3808
        %v3810 = vrot.slane %v3713, 6
        %v3811 = vrot.slane %v3714, 6
        %v3812 = vsel %vm3773, %v3810, %v3811
        %v3813 = vrot.slane %v3715, 6
        %v3814 = vrot.slane %v3716, 6
        %v3815 = vsel %vm3773, %v3813, %v3814
        %v3816 = vrot.slane %v3717, 6
        %v3817 = vrot.slane %v3718, 6
        %v3818 = vsel %vm3773, %v3816, %v3817
        %v3819 = vrot.slane %v3719, 6
        %v3820 = vrot.slane %v3720, 6
        %v3821 = vsel %vm3773, %v3819, %v3820
        %v3854 = vsel %vm3773, -inf, %v3774
        %v3855 = vsel %vm3773, -inf, %v3777
        %v3856 = vsel %vm3773, -inf, %v3780
        %v3857 = vsel %vm3773, -inf, %v3783
        %v3858 = vsel %vm3773, -inf, %v3786
        %v3859 = vsel %vm3773, -inf, %v3789
        %v3860 = vsel %vm3773, -inf, %v3792
        %v3861 = vsel %vm3773, -inf, %v3795
        %v3862 = vsel %vm3773, -inf, %v3798
        %v3863 = vsel %vm3773, -inf, %v3801
        %v3864 = vsel %vm3773, -inf, %v3804
        %v3865 = vsel %vm3773, -inf, %v3807
        %v3866 = vsel %vm3773, -inf, %v3810
        %v3867 = vsel %vm3773, -inf, %v3813
        %v3868 = vsel %vm3773, -inf, %v3816
        %v3869 = vsel %vm3773, -inf, %v3819
        %v3870 = vmax.f32 %v3689, %v3854
        %v3871 = vmax.f32 %v3690, %v3776
        %v3872 = vmax.f32 %v3691, %v3855
        %v3873 = vmax.f32 %v3692, %v3779
        %v3874 = vmax.f32 %v3693, %v3856
        %v3875 = vmax.f32 %v3694, %v3782
        %v3876 = vmax.f32 %v3695, %v3857
        %v3877 = vmax.f32 %v3696, %v3785
        %v3878 = vmax.f32 %v3697, %v3858
        %v3879 = vmax.f32 %v3698, %v3788
        %v3880 = vmax.f32 %v3699, %v3859
        %v3881 = vmax.f32 %v3700, %v3791
        %v3882 = vmax.f32 %v3701, %v3860
        %v3883 = vmax.f32 %v3702, %v3794
        %v3884 = vmax.f32 %v3703, %v3861
        %v3885 = vmax.f32 %v3704, %v3797
        %v3886 = vmax.f32 %v3705, %v3862
        %v3887 = vmax.f32 %v3706, %v3800
        %v3888 = vmax.f32 %v3707, %v3863
        %v3889 = vmax.f32 %v3708, %v3803
        %v3890 = vmax.f32 %v3709, %v3864
        %v3891 = vmax.f32 %v3710, %v3806
        %v3892 = vmax.f32 %v3711, %v3865
        %v3893 = vmax.f32 %v3712, %v3809
        %v3894 = vmax.f32 %v3713, %v3866
        %v3895 = vmax.f32 %v3714, %v3812
        %v3896 = vmax.f32 %v3715, %v3867
        %v3897 = vmax.f32 %v3716, %v3815
        %v3898 = vmax.f32 %v3717, %v3868
        %v3899 = vmax.f32 %v3718, %v3818
        %v3900 = vmax.f32 %v3719, %v3869
        %v3901 = vmax.f32 %v3720, %v3821
        %v3902 = vrot.slane %v3689, 7
        %v3903 = vrot.slane %v3690, 7
        %v3904 = vsel %vm1116, %v3902, %v3903
        %v3905 = vrot.slane %v3691, 7
        %v3906 = vrot.slane %v3692, 7
        %v3907 = vsel %vm1116, %v3905, %v3906
        %v3908 = vrot.slane %v3693, 7
        %v3909 = vrot.slane %v3694, 7
        %v3910 = vsel %vm1116, %v3908, %v3909
        %v3911 = vrot.slane %v3695, 7
        %v3912 = vrot.slane %v3696, 7
        %v3913 = vsel %vm1116, %v3911, %v3912
        %v3914 = vrot.slane %v3697, 7
        %v3915 = vrot.slane %v3698, 7
        %v3916 = vsel %vm1116, %v3914, %v3915
        %v3917 = vrot.slane %v3699, 7
        %v3918 = vrot.slane %v3700, 7
        %v3919 = vsel %vm1116, %v3917, %v3918
        %v3920 = vrot.slane %v3701, 7
        %v3921 = vrot.slane %v3702, 7
        %v3922 = vsel %vm1116, %v3920, %v3921
        %v3923 = vrot.slane %v3703, 7
        %v3924 = vrot.slane %v3704, 7
        %v3925 = vsel %vm1116, %v3923, %v3924
        %v3926 = vrot.slane %v3705, 7
        %v3927 = vrot.slane %v3706, 7
        %v3928 = vsel %vm1116, %v3926, %v3927
        %v3929 = vrot.slane %v3707, 7
        %v3930 = vrot.slane %v3708, 7
        %v3931 = vsel %vm1116, %v3929, %v3930
        %v3932 = vrot.slane %v3709, 7
        %v3933 = vrot.slane %v3710, 7
        %v3934 = vsel %vm1116, %v3932, %v3933
        %v3935 = vrot.slane %v3711, 7
        %v3936 = vrot.slane %v3712, 7
        %v3937 = vsel %vm1116, %v3935, %v3936
        %v3938 = vrot.slane %v3713, 7
        %v3939 = vrot.slane %v3714, 7
        %v3940 = vsel %vm1116, %v3938, %v3939
        %v3941 = vrot.slane %v3715, 7
        %v3942 = vrot.slane %v3716, 7
        %v3943 = vsel %vm1116, %v3941, %v3942
        %v3944 = vrot.slane %v3717, 7
        %v3945 = vrot.slane %v3718, 7
        %v3946 = vsel %vm1116, %v3944, %v3945
        %v3947 = vrot.slane %v3719, 7
        %v3948 = vrot.slane %v3720, 7
        %v3949 = vsel %vm1116, %v3947, %v3948
        %v3982 = vsel %vm1116, -inf, %v3902
        %v3983 = vsel %vm1116, -inf, %v3905
        %v3984 = vsel %vm1116, -inf, %v3908
        %v3985 = vsel %vm1116, -inf, %v3911
        %v3986 = vsel %vm1116, -inf, %v3914
        %v3987 = vsel %vm1116, -inf, %v3917
        %v3988 = vsel %vm1116, -inf, %v3920
        %v3989 = vsel %vm1116, -inf, %v3923
        %v3990 = vsel %vm1116, -inf, %v3926
        %v3991 = vsel %vm1116, -inf, %v3929
        %v3992 = vsel %vm1116, -inf, %v3932
        %v3993 = vsel %vm1116, -inf, %v3935
        %v3994 = vsel %vm1116, -inf, %v3938
        %v3995 = vsel %vm1116, -inf, %v3941
        %v3996 = vsel %vm1116, -inf, %v3944
        %v3997 = vsel %vm1116, -inf, %v3947
        %v3998 = vmax.f32 %v3870, %v3982
        %v3999 = vmax.f32 %v3871, %v3904
        %v4000 = vmax.f32 %v3872, %v3983
        %v4001 = vmax.f32 %v3873, %v3907
        %v4002 = vmax.f32 %v3874, %v3984
        %v4003 = vmax.f32 %v3875, %v3910
        %v4004 = vmax.f32 %v3876, %v3985
        %v4005 = vmax.f32 %v3877, %v3913
        %v4006 = vmax.f32 %v3878, %v3986
        %v4007 = vmax.f32 %v3879, %v3916
        %v4008 = vmax.f32 %v3880, %v3987
        %v4009 = vmax.f32 %v3881, %v3919
        %v4010 = vmax.f32 %v3882, %v3988
        %v4011 = vmax.f32 %v3883, %v3922
        %v4012 = vmax.f32 %v3884, %v3989
        %v4013 = vmax.f32 %v3885, %v3925
        %v4014 = vmax.f32 %v3886, %v3990
        %v4015 = vmax.f32 %v3887, %v3928
        %v4016 = vmax.f32 %v3888, %v3991
        %v4017 = vmax.f32 %v3889, %v3931
        %v4018 = vmax.f32 %v3890, %v3992
        %v4019 = vmax.f32 %v3891, %v3934
        %v4020 = vmax.f32 %v3892, %v3993
        %v4021 = vmax.f32 %v3893, %v3937
        %v4022 = vmax.f32 %v3894, %v3994
        %v4023 = vmax.f32 %v3895, %v3940
        %v4024 = vmax.f32 %v3896, %v3995
        %v4025 = vmax.f32 %v3897, %v3943
        %v4026 = vmax.f32 %v3898, %v3996
        %v4027 = vmax.f32 %v3899, %v3946
        %v4028 = vmax.f32 %v3900, %v3997
        %v4029 = vmax.f32 %v3901, %v3949
        %v4030 = vrot.slane %v3689, 1
        %v4031 = vrot.slane %v3690, 1
        %v4032 = vsel %vm1552, %v4030, %v4031
        %v4033 = vrot.slane %v3691, 1
        %v4034 = vrot.slane %v3692, 1
        %v4035 = vsel %vm1552, %v4033, %v4034
        %v4036 = vrot.slane %v3693, 1
        %v4037 = vrot.slane %v3694, 1
        %v4038 = vsel %vm1552, %v4036, %v4037
        %v4039 = vrot.slane %v3695, 1
        %v4040 = vrot.slane %v3696, 1
        %v4041 = vsel %vm1552, %v4039, %v4040
        %v4042 = vrot.slane %v3697, 1
        %v4043 = vrot.slane %v3698, 1
        %v4044 = vsel %vm1552, %v4042, %v4043
        %v4045 = vrot.slane %v3699, 1
        %v4046 = vrot.slane %v3700, 1
        %v4047 = vsel %vm1552, %v4045, %v4046
        %v4048 = vrot.slane %v3701, 1
        %v4049 = vrot.slane %v3702, 1
        %v4050 = vsel %vm1552, %v4048, %v4049
        %v4051 = vrot.slane %v3703, 1
        %v4052 = vrot.slane %v3704, 1
        %v4053 = vsel %vm1552, %v4051, %v4052
        %v4054 = vrot.slane %v3705, 1
        %v4055 = vrot.slane %v3706, 1
        %v4056 = vsel %vm1552, %v4054, %v4055
        %v4057 = vrot.slane %v3707, 1
        %v4058 = vrot.slane %v3708, 1
        %v4059 = vsel %vm1552, %v4057, %v4058
        %v4060 = vrot.slane %v3709, 1
        %v4061 = vrot.slane %v3710, 1
        %v4062 = vsel %vm1552, %v4060, %v4061
        %v4063 = vrot.slane %v3711, 1
        %v4064 = vrot.slane %v3712, 1
        %v4065 = vsel %vm1552, %v4063, %v4064
        %v4066 = vrot.slane %v3713, 1
        %v4067 = vrot.slane %v3714, 1
        %v4068 = vsel %vm1552, %v4066, %v4067
        %v4069 = vrot.slane %v3715, 1
        %v4070 = vrot.slane %v3716, 1
        %v4071 = vsel %vm1552, %v4069, %v4070
        %v4072 = vrot.slane %v3717, 1
        %v4073 = vrot.slane %v3718, 1
        %v4074 = vsel %vm1552, %v4072, %v4073
        %v4075 = vrot.slane %v3719, 1
        %v4076 = vrot.slane %v3720, 1
        %v4077 = vsel %vm1552, %v4075, %v4076
        %v4110 = vsel %vm1552, %v4031, -inf
        %v4111 = vsel %vm1552, %v4034, -inf
        %v4112 = vsel %vm1552, %v4037, -inf
        %v4113 = vsel %vm1552, %v4040, -inf
        %v4114 = vsel %vm1552, %v4043, -inf
        %v4115 = vsel %vm1552, %v4046, -inf
        %v4116 = vsel %vm1552, %v4049, -inf
        %v4117 = vsel %vm1552, %v4052, -inf
        %v4118 = vsel %vm1552, %v4055, -inf
        %v4119 = vsel %vm1552, %v4058, -inf
        %v4120 = vsel %vm1552, %v4061, -inf
        %v4121 = vsel %vm1552, %v4064, -inf
        %v4122 = vsel %vm1552, %v4067, -inf
        %v4123 = vsel %vm1552, %v4070, -inf
        %v4124 = vsel %vm1552, %v4073, -inf
        %v4125 = vsel %vm1552, %v4076, -inf
        %v4126 = vmax.f32 %v3998, %v4032
        %v4127 = vmax.f32 %v3999, %v4110
        %v4128 = vmax.f32 %v4000, %v4035
        %v4129 = vmax.f32 %v4001, %v4111
        %v4130 = vmax.f32 %v4002, %v4038
        %v4131 = vmax.f32 %v4003, %v4112
        %v4132 = vmax.f32 %v4004, %v4041
        %v4133 = vmax.f32 %v4005, %v4113
        %v4134 = vmax.f32 %v4006, %v4044
        %v4135 = vmax.f32 %v4007, %v4114
        %v4136 = vmax.f32 %v4008, %v4047
        %v4137 = vmax.f32 %v4009, %v4115
        %v4138 = vmax.f32 %v4010, %v4050
        %v4139 = vmax.f32 %v4011, %v4116
        %v4140 = vmax.f32 %v4012, %v4053
        %v4141 = vmax.f32 %v4013, %v4117
        %v4142 = vmax.f32 %v4014, %v4056
        %v4143 = vmax.f32 %v4015, %v4118
        %v4144 = vmax.f32 %v4016, %v4059
        %v4145 = vmax.f32 %v4017, %v4119
        %v4146 = vmax.f32 %v4018, %v4062
        %v4147 = vmax.f32 %v4019, %v4120
        %v4148 = vmax.f32 %v4020, %v4065
        %v4149 = vmax.f32 %v4021, %v4121
        %v4150 = vmax.f32 %v4022, %v4068
        %v4151 = vmax.f32 %v4023, %v4122
        %v4152 = vmax.f32 %v4024, %v4071
        %v4153 = vmax.f32 %v4025, %v4123
        %v4154 = vmax.f32 %v4026, %v4074
        %v4155 = vmax.f32 %v4027, %v4124
        %v4156 = vmax.f32 %v4028, %v4077
        %v4157 = vmax.f32 %v4029, %v4125
        %vm4158 = vcmask 1045504
        %v4159 = vrot.slane %v3689, 2
        %v4160 = vrot.slane %v3690, 2
        %v4161 = vsel %vm4158, %v4159, %v4160
        %v4162 = vrot.slane %v3691, 2
        %v4163 = vrot.slane %v3692, 2
        %v4164 = vsel %vm4158, %v4162, %v4163
        %v4165 = vrot.slane %v3693, 2
        %v4166 = vrot.slane %v3694, 2
        %v4167 = vsel %vm4158, %v4165, %v4166
        %v4168 = vrot.slane %v3695, 2
        %v4169 = vrot.slane %v3696, 2
        %v4170 = vsel %vm4158, %v4168, %v4169
        %v4171 = vrot.slane %v3697, 2
        %v4172 = vrot.slane %v3698, 2
        %v4173 = vsel %vm4158, %v4171, %v4172
        %v4174 = vrot.slane %v3699, 2
        %v4175 = vrot.slane %v3700, 2
        %v4176 = vsel %vm4158, %v4174, %v4175
        %v4177 = vrot.slane %v3701, 2
        %v4178 = vrot.slane %v3702, 2
        %v4179 = vsel %vm4158, %v4177, %v4178
        %v4180 = vrot.slane %v3703, 2
        %v4181 = vrot.slane %v3704, 2
        %v4182 = vsel %vm4158, %v4180, %v4181
        %v4183 = vrot.slane %v3705, 2
        %v4184 = vrot.slane %v3706, 2
        %v4185 = vsel %vm4158, %v4183, %v4184
        %v4186 = vrot.slane %v3707, 2
        %v4187 = vrot.slane %v3708, 2
        %v4188 = vsel %vm4158, %v4186, %v4187
        %v4189 = vrot.slane %v3709, 2
        %v4190 = vrot.slane %v3710, 2
        %v4191 = vsel %vm4158, %v4189, %v4190
        %v4192 = vrot.slane %v3711, 2
        %v4193 = vrot.slane %v3712, 2
        %v4194 = vsel %vm4158, %v4192, %v4193
        %v4195 = vrot.slane %v3713, 2
        %v4196 = vrot.slane %v3714, 2
        %v4197 = vsel %vm4158, %v4195, %v4196
        %v4198 = vrot.slane %v3715, 2
        %v4199 = vrot.slane %v3716, 2
        %v4200 = vsel %vm4158, %v4198, %v4199
        %v4201 = vrot.slane %v3717, 2
        %v4202 = vrot.slane %v3718, 2
        %v4203 = vsel %vm4158, %v4201, %v4202
        %v4204 = vrot.slane %v3719, 2
        %v4205 = vrot.slane %v3720, 2
        %v4206 = vsel %vm4158, %v4204, %v4205
        %v4239 = vsel %vm4158, %v4160, -inf
        %v4240 = vsel %vm4158, %v4163, -inf
        %v4241 = vsel %vm4158, %v4166, -inf
        %v4242 = vsel %vm4158, %v4169, -inf
        %v4243 = vsel %vm4158, %v4172, -inf
        %v4244 = vsel %vm4158, %v4175, -inf
        %v4245 = vsel %vm4158, %v4178, -inf
        %v4246 = vsel %vm4158, %v4181, -inf
        %v4247 = vsel %vm4158, %v4184, -inf
        %v4248 = vsel %vm4158, %v4187, -inf
        %v4249 = vsel %vm4158, %v4190, -inf
        %v4250 = vsel %vm4158, %v4193, -inf
        %v4251 = vsel %vm4158, %v4196, -inf
        %v4252 = vsel %vm4158, %v4199, -inf
        %v4253 = vsel %vm4158, %v4202, -inf
        %v4254 = vsel %vm4158, %v4205, -inf
        %v4255 = vmax.f32 %v4126, %v4161
        %v4256 = vmax.f32 %v4127, %v4239
        %v4257 = vmax.f32 %v4128, %v4164
        %v4258 = vmax.f32 %v4129, %v4240
        %v4259 = vmax.f32 %v4130, %v4167
        %v4260 = vmax.f32 %v4131, %v4241
        %v4261 = vmax.f32 %v4132, %v4170
        %v4262 = vmax.f32 %v4133, %v4242
        %v4263 = vmax.f32 %v4134, %v4173
        %v4264 = vmax.f32 %v4135, %v4243
        %v4265 = vmax.f32 %v4136, %v4176
        %v4266 = vmax.f32 %v4137, %v4244
        %v4267 = vmax.f32 %v4138, %v4179
        %v4268 = vmax.f32 %v4139, %v4245
        %v4269 = vmax.f32 %v4140, %v4182
        %v4270 = vmax.f32 %v4141, %v4246
        %v4271 = vmax.f32 %v4142, %v4185
        %v4272 = vmax.f32 %v4143, %v4247
        %v4273 = vmax.f32 %v4144, %v4188
        %v4274 = vmax.f32 %v4145, %v4248
        %v4275 = vmax.f32 %v4146, %v4191
        %v4276 = vmax.f32 %v4147, %v4249
        %v4277 = vmax.f32 %v4148, %v4194
        %v4278 = vmax.f32 %v4149, %v4250
        %v4279 = vmax.f32 %v4150, %v4197
        %v4280 = vmax.f32 %v4151, %v4251
        %v4281 = vmax.f32 %v4152, %v4200
        %v4282 = vmax.f32 %v4153, %v4252
        %v4283 = vmax.f32 %v4154, %v4203
        %v4284 = vmax.f32 %v4155, %v4253
        %v4285 = vmax.f32 %v4156, %v4206
        %v4286 = vmax.f32 %v4157, %v4254
        %v4287 = vmax.f32 %v4259, %v4255
        %v4288 = vmax.f32 %v4260, %v4256
        %v4289 = vmax.f32 %v4261, %v4257
        %v4290 = vmax.f32 %v4262, %v4258
        %v4291 = vmax.f32 %v4263, %v4259
        %v4292 = vmax.f32 %v4264, %v4260
        %v4293 = vmax.f32 %v4265, %v4261
        %v4294 = vmax.f32 %v4266, %v4262
        %v4295 = vmax.f32 %v4267, %v4263
        %v4296 = vmax.f32 %v4268, %v4264
        %v4297 = vmax.f32 %v4269, %v4265
        %v4298 = vmax.f32 %v4270, %v4266
        %v4299 = vmax.f32 %v4271, %v4267
        %v4300 = vmax.f32 %v4272, %v4268
        %v4301 = vmax.f32 %v4273, %v4269
        %v4302 = vmax.f32 %v4274, %v4270
        %v4303 = vmax.f32 %v4275, %v4271
        %v4304 = vmax.f32 %v4276, %v4272
        %v4305 = vmax.f32 %v4277, %v4273
        %v4306 = vmax.f32 %v4278, %v4274
        %v4307 = vmax.f32 %v4279, %v4275
        %v4308 = vmax.f32 %v4280, %v4276
        %v4309 = vmax.f32 %v4281, %v4277
        %v4310 = vmax.f32 %v4282, %v4278
        %v4311 = vmax.f32 %v4283, %v4279
        %v4312 = vmax.f32 %v4284, %v4280
        %v4313 = vmax.f32 %v4285, %v4281
        %v4314 = vmax.f32 %v4286, %v4282
        %v4315 = vmax.f32 %v4257, %v4255
        %v4316 = vmax.f32 %v4258, %v4256
        %v4317 = vmax.f32 %v4287, %v4257
        %v4318 = vmax.f32 %v4288, %v4258
        %v4319 = vmax.f32 %v4289, %v4259
        %v4320 = vmax.f32 %v4290, %v4260
        %v4321 = vmax.f32 %v4291, %v4261
        %v4322 = vmax.f32 %v4292, %v4262
        %v4323 = vmax.f32 %v4293, %v4263
        %v4324 = vmax.f32 %v4294, %v4264
        %v4325 = vmax.f32 %v4295, %v4265
        %v4326 = vmax.f32 %v4296, %v4266
        %v4327 = vmax.f32 %v4297, %v4267
        %v4328 = vmax.f32 %v4298, %v4268
        %v4329 = vmax.f32 %v4299, %v4269
        %v4330 = vmax.f32 %v4300, %v4270
        %v4331 = vmax.f32 %v4301, %v4271
        %v4332 = vmax.f32 %v4302, %v4272
        %v4333 = vmax.f32 %v4303, %v4273
        %v4334 = vmax.f32 %v4304, %v4274
        %v4335 = vmax.f32 %v4305, %v4275
        %v4336 = vmax.f32 %v4306, %v4276
        %v4337 = vmax.f32 %v4307, %v4277
        %v4338 = vmax.f32 %v4308, %v4278
        %v4339 = vmax.f32 %v4309, %v4279
        %v4340 = vmax.f32 %v4310, %v4280
        %v4341 = vmax.f32 %v4311, %v4281
        %v4342 = vmax.f32 %v4312, %v4282
        %v4343 = vmax.f32 %v4313, %v4283
        %v4344 = vmax.f32 %v4314, %v4284
        %v4345 = vmax.f32 %v4315, %v4259
        %v4346 = vmax.f32 %v4316, %v4260
        %v4347 = vmax.f32 %v4317, %v4261
        %v4348 = vmax.f32 %v4318, %v4262
        %v4349 = vmax.f32 %v4319, %v4263
        %v4350 = vmax.f32 %v4320, %v4264
        %v4351 = vmax.f32 %v4321, %v4265
        %v4352 = vmax.f32 %v4322, %v4266
        %v4353 = vmax.f32 %v4323, %v4267
        %v4354 = vmax.f32 %v4324, %v4268
        %v4355 = vmax.f32 %v4325, %v4269
        %v4356 = vmax.f32 %v4326, %v4270
        %v4357 = vmax.f32 %v4327, %v4271
        %v4358 = vmax.f32 %v4328, %v4272
        %v4359 = vmax.f32 %v4329, %v4273
        %v4360 = vmax.f32 %v4330, %v4274
        %v4361 = vmax.f32 %v4331, %v4275
        %v4362 = vmax.f32 %v4332, %v4276
        %v4363 = vmax.f32 %v4333, %v4277
        %v4364 = vmax.f32 %v4334, %v4278
        %v4365 = vmax.f32 %v4335, %v4279
        %v4366 = vmax.f32 %v4336, %v4280
        %v4367 = vmax.f32 %v4337, %v4281
        %v4368 = vmax.f32 %v4338, %v4282
        %v4369 = vmax.f32 %v4339, %v4283
        %v4370 = vmax.f32 %v4340, %v4284
        %v4371 = vmax.f32 %v4341, %v4285
        %v4372 = vmax.f32 %v4342, %v4286
        %v4373 = vmax.f32 %v4345, %v4261
        %v4374 = vmax.f32 %v4346, %v4262
        %v4375 = vmax.f32 %v4347, %v4263
        %v4376 = vmax.f32 %v4348, %v4264
        %v4377 = vmax.f32 %v4349, %v4265
        %v4378 = vmax.f32 %v4350, %v4266
        %v4379 = vmax.f32 %v4351, %v4267
        %v4380 = vmax.f32 %v4352, %v4268
        %v4381 = vmax.f32 %v4353, %v4269
        %v4382 = vmax.f32 %v4354, %v4270
        %v4383 = vmax.f32 %v4355, %v4271
        %v4384 = vmax.f32 %v4356, %v4272
        %v4385 = vmax.f32 %v4357, %v4273
        %v4386 = vmax.f32 %v4358, %v4274
        %v4387 = vmax.f32 %v4359, %v4275
        %v4388 = vmax.f32 %v4360, %v4276
        %v4389 = vmax.f32 %v4361, %v4277
        %v4390 = vmax.f32 %v4362, %v4278
        %v4391 = vmax.f32 %v4363, %v4279
        %v4392 = vmax.f32 %v4364, %v4280
        %v4393 = vmax.f32 %v4365, %v4281
        %v4394 = vmax.f32 %v4366, %v4282
        %v4395 = vmax.f32 %v4367, %v4283
        %v4396 = vmax.f32 %v4368, %v4284
        %v4397 = vmax.f32 %v4369, %v4285
        %v4398 = vmax.f32 %v4370, %v4286
        %v4399 = vpack.c.bf16 %v4346, %v4345
        %v4400 = vpack.c.bf16 %v4374, %v4373
        %v4401 = vpack.c.bf16 %v4376, %v4375
        %v4402 = vpack.c.bf16 %v4378, %v4377
        %v4403 = vpack.c.bf16 %v4380, %v4379
        %v4404 = vpack.c.bf16 %v4382, %v4381
        %v4405 = vpack.c.bf16 %v4384, %v4383
        %v4406 = vpack.c.bf16 %v4386, %v4385
        %v4407 = vpack.c.bf16 %v4388, %v4387
        %v4408 = vpack.c.bf16 %v4390, %v4389
        %v4409 = vpack.c.bf16 %v4392, %v4391
        %v4410 = vpack.c.bf16 %v4394, %v4393
        %v4411 = vpack.c.bf16 %v4396, %v4395
        %v4412 = vpack.c.bf16 %v4398, %v4397
        %v4413 = vpack.c.bf16 %v4372, %v4371
        %v4414 = vpack.c.bf16 %v4344, %v4343
        %v4415 = vld [vmem:[%s11 + $0x10] sm:$0xf]
        %v4416 = vld [vmem:[%s11 + $0x14] sm:$0xf]
        %v4417 = vld [vmem:[%s11 + $0x18] sm:$0xf]
        %v4418 = vld [vmem:[%s11 + $0x1c] sm:$0xf]
        %v4423 = vunpack.c.l.b16 %v4415
        %v4424 = vunpack.c.l.b16 %v4416
        %v4425 = vunpack.c.l.b16 %v4417
        %v4426 = vunpack.c.l.b16 %v4418
        %v4427 = vpack.c.b16 %v4424, %v4423
        %v4428 = vpack.c.b16 %v4426, %v4425
        %v4432 = vsel %vm1265, %v4399, 0
        %v4435 = vsel %vm1265, %v4400, 0
        %v4438 = vsel %vm1265, %v4401, 0
        %v4441 = vsel %vm1265, %v4402, 0
        %v4444 = vsel %vm1265, %v4403, 0
        %v4447 = vsel %vm1265, %v4404, 0
        %v4450 = vsel %vm1265, %v4405, 0
        %v4453 = vsel %vm1265, %v4406, 0
        %v4456 = vsel %vm1265, %v4407, 0
        %v4459 = vsel %vm1265, %v4408, 0
        %v4462 = vsel %vm1265, %v4409, 0
        %v4465 = vsel %vm1265, %v4410, 0
        %v4468 = vsel %vm1265, %v4411, 0
        %v4471 = vsel %vm1265, %v4412, 0
        %v4474 = vsel %vm1265, %v4413, 0
        %v4477 = vsel %vm1265, %v4414, 0
        %4479 = vmatpush.bf16.msra.mxu0 0
        %4480 = vmatpush.bf16.msra.mxu0 0
        %4481 = vmatpush.bf16.msra.mxu0 0
        %4482 = vmatpush.bf16.msra.mxu0 0
        %4483 = vmatpush.bf16.msra.mxu0 0
        %4484 = vmatpush.bf16.msra.mxu0 0
        %4485 = vmatpush.bf16.msra.mxu0 %v4428
        %4486 = vmatpush.bf16.msra.mxu0 %v4427
        %4487 = vmatmul.bf16.gmra.mxu0 %v4432
        %v4488 = vpop.f32.mrf.mxu0
        %v4489 = vadd.f32 0.0, %v4488
        %v4490 = vpop.f32.mrf.mxu0
        %v4491 = vadd.f32 0.0, %v4490
        %4492 = vmatmul.bf16.gmra.mxu0 %v4435
        %v4493 = vpop.f32.mrf.mxu0
        %v4494 = vadd.f32 0.0, %v4493
        %v4495 = vpop.f32.mrf.mxu0
        %v4496 = vadd.f32 0.0, %v4495
        %4497 = vmatmul.bf16.gmra.mxu0 %v4438
        %v4498 = vpop.f32.mrf.mxu0
        %v4499 = vadd.f32 0.0, %v4498
        %v4500 = vpop.f32.mrf.mxu0
        %v4501 = vadd.f32 0.0, %v4500
        %4502 = vmatmul.bf16.gmra.mxu0 %v4441
        %v4503 = vpop.f32.mrf.mxu0
        %v4504 = vadd.f32 0.0, %v4503
        %v4505 = vpop.f32.mrf.mxu0
        %v4506 = vadd.f32 0.0, %v4505
        %4507 = vmatmul.bf16.gmra.mxu0 %v4444
        %v4508 = vpop.f32.mrf.mxu0
        %v4509 = vadd.f32 0.0, %v4508
        %v4510 = vpop.f32.mrf.mxu0
        %v4511 = vadd.f32 0.0, %v4510
        %4512 = vmatmul.bf16.gmra.mxu0 %v4447
        %v4513 = vpop.f32.mrf.mxu0
        %v4514 = vadd.f32 0.0, %v4513
        %v4515 = vpop.f32.mrf.mxu0
        %v4516 = vadd.f32 0.0, %v4515
        %4517 = vmatmul.bf16.gmra.mxu0 %v4450
        %v4518 = vpop.f32.mrf.mxu0
        %v4519 = vadd.f32 0.0, %v4518
        %v4520 = vpop.f32.mrf.mxu0
        %v4521 = vadd.f32 0.0, %v4520
        %4522 = vmatmul.bf16.gmra.mxu0 %v4453
        %v4523 = vpop.f32.mrf.mxu0
        %v4524 = vadd.f32 0.0, %v4523
        %v4525 = vpop.f32.mrf.mxu0
        %v4526 = vadd.f32 0.0, %v4525
        %4527 = vmatmul.bf16.gmra.mxu0 %v4456
        %v4528 = vpop.f32.mrf.mxu0
        %v4529 = vadd.f32 0.0, %v4528
        %v4530 = vpop.f32.mrf.mxu0
        %v4531 = vadd.f32 0.0, %v4530
        %4532 = vmatmul.bf16.gmra.mxu0 %v4459
        %v4533 = vpop.f32.mrf.mxu0
        %v4534 = vadd.f32 0.0, %v4533
        %v4535 = vpop.f32.mrf.mxu0
        %v4536 = vadd.f32 0.0, %v4535
        %4537 = vmatmul.bf16.gmra.mxu0 %v4462
        %v4538 = vpop.f32.mrf.mxu0
        %v4539 = vadd.f32 0.0, %v4538
        %v4540 = vpop.f32.mrf.mxu0
        %v4541 = vadd.f32 0.0, %v4540
        %4542 = vmatmul.bf16.gmra.mxu0 %v4465
        %v4543 = vpop.f32.mrf.mxu0
        %v4544 = vadd.f32 0.0, %v4543
        %v4545 = vpop.f32.mrf.mxu0
        %v4546 = vadd.f32 0.0, %v4545
        %4547 = vmatmul.bf16.gmra.mxu0 %v4468
        %v4548 = vpop.f32.mrf.mxu0
        %v4549 = vadd.f32 0.0, %v4548
        %v4550 = vpop.f32.mrf.mxu0
        %v4551 = vadd.f32 0.0, %v4550
        %4552 = vmatmul.bf16.gmra.mxu0 %v4471
        %v4553 = vpop.f32.mrf.mxu0
        %v4554 = vadd.f32 0.0, %v4553
        %v4555 = vpop.f32.mrf.mxu0
        %v4556 = vadd.f32 0.0, %v4555
        %4557 = vmatmul.bf16.gmra.mxu0 %v4474
        %v4558 = vpop.f32.mrf.mxu0
        %v4559 = vadd.f32 0.0, %v4558
        %v4560 = vpop.f32.mrf.mxu0
        %v4561 = vadd.f32 0.0, %v4560
        %4562 = vmatmul.bf16.gmra.mxu0 %v4477
        %v4563 = vpop.f32.mrf.mxu0
        %v4564 = vadd.f32 0.0, %v4563
        %v4565 = vpop.f32.mrf.mxu0
        %v4566 = vadd.f32 0.0, %v4565
        %4567 = vdwg.mxu0
        %v4572 = vunpack.c.l.b16 %v3737
        %v4573 = vunpack.c.l.b16 %v3738
        %v4574 = vunpack.c.l.b16 %v3739
        %v4575 = vunpack.c.l.b16 %v3740
        %v4576 = vpack.c.b16 %v4573, %v4572
        %v4577 = vpack.c.b16 %v4575, %v4574
        %v4581 = vsel %vm1265, %v3721, 0
        %v4584 = vsel %vm1265, %v3722, 0
        %v4587 = vsel %vm1265, %v3723, 0
        %v4590 = vsel %vm1265, %v3724, 0
        %v4593 = vsel %vm1265, %v3725, 0
        %v4596 = vsel %vm1265, %v3726, 0
        %v4599 = vsel %vm1265, %v3727, 0
        %v4602 = vsel %vm1265, %v3728, 0
        %v4605 = vsel %vm1265, %v3729, 0
        %v4608 = vsel %vm1265, %v3730, 0
        %v4611 = vsel %vm1265, %v3731, 0
        %v4614 = vsel %vm1265, %v3732, 0
        %v4617 = vsel %vm1265, %v3733, 0
        %v4620 = vsel %vm1265, %v3734, 0
        %v4623 = vsel %vm1265, %v3735, 0
        %v4626 = vsel %vm1265, %v3736, 0
        %4628 = vmatpush.bf16.msra.mxu0 0
        %4629 = vmatpush.bf16.msra.mxu0 0
        %4630 = vmatpush.bf16.msra.mxu0 0
        %4631 = vmatpush.bf16.msra.mxu0 0
        %4632 = vmatpush.bf16.msra.mxu0 0
        %4633 = vmatpush.bf16.msra.mxu0 0
        %4634 = vmatpush.bf16.msra.mxu0 %v4577
        %4635 = vmatpush.bf16.msra.mxu0 %v4576
        %4636 = vmatmul.bf16.gmra.mxu0 %v4581
        %v4637 = vpop.f32.mrf.mxu0
        %v4638 = vadd.f32 %v4489, %v4637
        %v4639 = vpop.f32.mrf.mxu0
        %v4640 = vadd.f32 %v4491, %v4639
        %4641 = vmatmul.bf16.gmra.mxu0 %v4584
        %v4642 = vpop.f32.mrf.mxu0
        %v4643 = vadd.f32 %v4494, %v4642
        %v4644 = vpop.f32.mrf.mxu0
        %v4645 = vadd.f32 %v4496, %v4644
        %4646 = vmatmul.bf16.gmra.mxu0 %v4587
        %v4647 = vpop.f32.mrf.mxu0
        %v4648 = vadd.f32 %v4499, %v4647
        %v4649 = vpop.f32.mrf.mxu0
        %v4650 = vadd.f32 %v4501, %v4649
        %4651 = vmatmul.bf16.gmra.mxu0 %v4590
        %v4652 = vpop.f32.mrf.mxu0
        %v4653 = vadd.f32 %v4504, %v4652
        %v4654 = vpop.f32.mrf.mxu0
        %v4655 = vadd.f32 %v4506, %v4654
        %4656 = vmatmul.bf16.gmra.mxu0 %v4593
        %v4657 = vpop.f32.mrf.mxu0
        %v4658 = vadd.f32 %v4509, %v4657
        %v4659 = vpop.f32.mrf.mxu0
        %v4660 = vadd.f32 %v4511, %v4659
        %4661 = vmatmul.bf16.gmra.mxu0 %v4596
        %v4662 = vpop.f32.mrf.mxu0
        %v4663 = vadd.f32 %v4514, %v4662
        %v4664 = vpop.f32.mrf.mxu0
        %v4665 = vadd.f32 %v4516, %v4664
        %4666 = vmatmul.bf16.gmra.mxu0 %v4599
        %v4667 = vpop.f32.mrf.mxu0
        %v4668 = vadd.f32 %v4519, %v4667
        %v4669 = vpop.f32.mrf.mxu0
        %v4670 = vadd.f32 %v4521, %v4669
        %4671 = vmatmul.bf16.gmra.mxu0 %v4602
        %v4672 = vpop.f32.mrf.mxu0
        %v4673 = vadd.f32 %v4524, %v4672
        %v4674 = vpop.f32.mrf.mxu0
        %v4675 = vadd.f32 %v4526, %v4674
        %4676 = vmatmul.bf16.gmra.mxu0 %v4605
        %v4677 = vpop.f32.mrf.mxu0
        %v4678 = vadd.f32 %v4529, %v4677
        %v4679 = vpop.f32.mrf.mxu0
        %v4680 = vadd.f32 %v4531, %v4679
        %4681 = vmatmul.bf16.gmra.mxu0 %v4608
        %v4682 = vpop.f32.mrf.mxu0
        %v4683 = vadd.f32 %v4534, %v4682
        %v4684 = vpop.f32.mrf.mxu0
        %v4685 = vadd.f32 %v4536, %v4684
        %4686 = vmatmul.bf16.gmra.mxu0 %v4611
        %v4687 = vpop.f32.mrf.mxu0
        %v4688 = vadd.f32 %v4539, %v4687
        %v4689 = vpop.f32.mrf.mxu0
        %v4690 = vadd.f32 %v4541, %v4689
        %4691 = vmatmul.bf16.gmra.mxu0 %v4614
        %v4692 = vpop.f32.mrf.mxu0
        %v4693 = vadd.f32 %v4544, %v4692
        %v4694 = vpop.f32.mrf.mxu0
        %v4695 = vadd.f32 %v4546, %v4694
        %4696 = vmatmul.bf16.gmra.mxu0 %v4617
        %v4697 = vpop.f32.mrf.mxu0
        %v4698 = vadd.f32 %v4549, %v4697
        %v4699 = vpop.f32.mrf.mxu0
        %v4700 = vadd.f32 %v4551, %v4699
        %4701 = vmatmul.bf16.gmra.mxu0 %v4620
        %v4702 = vpop.f32.mrf.mxu0
        %v4703 = vadd.f32 %v4554, %v4702
        %v4704 = vpop.f32.mrf.mxu0
        %v4705 = vadd.f32 %v4556, %v4704
        %4706 = vmatmul.bf16.gmra.mxu0 %v4623
        %v4707 = vpop.f32.mrf.mxu0
        %v4708 = vadd.f32 %v4559, %v4707
        %v4709 = vpop.f32.mrf.mxu0
        %v4710 = vadd.f32 %v4561, %v4709
        %4711 = vmatmul.bf16.gmra.mxu0 %v4626
        %v4712 = vpop.f32.mrf.mxu0
        %v4713 = vadd.f32 %v4564, %v4712
        %v4714 = vpop.f32.mrf.mxu0
        %v4715 = vadd.f32 %v4566, %v4714
        %4716 = vdwg.mxu0
        %v4749 = vrot.slane %v4345, 6
        %v4750 = vrot.slane %v4346, 6
        %v4751 = vsel %vm3773, %v4749, %v4750
        %v4752 = vrot.slane %v4373, 6
        %v4753 = vrot.slane %v4374, 6
        %v4754 = vsel %vm3773, %v4752, %v4753
        %v4755 = vrot.slane %v4375, 6
        %v4756 = vrot.slane %v4376, 6
        %v4757 = vsel %vm3773, %v4755, %v4756
        %v4758 = vrot.slane %v4377, 6
        %v4759 = vrot.slane %v4378, 6
        %v4760 = vsel %vm3773, %v4758, %v4759
        %v4761 = vrot.slane %v4379, 6
        %v4762 = vrot.slane %v4380, 6
        %v4763 = vsel %vm3773, %v4761, %v4762
        %v4764 = vrot.slane %v4381, 6
        %v4765 = vrot.slane %v4382, 6
        %v4766 = vsel %vm3773, %v4764, %v4765
        %v4767 = vrot.slane %v4383, 6
        %v4768 = vrot.slane %v4384, 6
        %v4769 = vsel %vm3773, %v4767, %v4768
        %v4770 = vrot.slane %v4385, 6
        %v4771 = vrot.slane %v4386, 6
        %v4772 = vsel %vm3773, %v4770, %v4771
        %v4773 = vrot.slane %v4387, 6
        %v4774 = vrot.slane %v4388, 6
        %v4775 = vsel %vm3773, %v4773, %v4774
        %v4776 = vrot.slane %v4389, 6
        %v4777 = vrot.slane %v4390, 6
        %v4778 = vsel %vm3773, %v4776, %v4777
        %v4779 = vrot.slane %v4391, 6
        %v4780 = vrot.slane %v4392, 6
        %v4781 = vsel %vm3773, %v4779, %v4780
        %v4782 = vrot.slane %v4393, 6
        %v4783 = vrot.slane %v4394, 6
        %v4784 = vsel %vm3773, %v4782, %v4783
        %v4785 = vrot.slane %v4395, 6
        %v4786 = vrot.slane %v4396, 6
        %v4787 = vsel %vm3773, %v4785, %v4786
        %v4788 = vrot.slane %v4397, 6
        %v4789 = vrot.slane %v4398, 6
        %v4790 = vsel %vm3773, %v4788, %v4789
        %v4791 = vrot.slane %v4371, 6
        %v4792 = vrot.slane %v4372, 6
        %v4793 = vsel %vm3773, %v4791, %v4792
        %v4794 = vrot.slane %v4343, 6
        %v4795 = vrot.slane %v4344, 6
        %v4796 = vsel %vm3773, %v4794, %v4795
        %v4829 = vsel %vm3773, -inf, %v4749
        %v4830 = vsel %vm3773, -inf, %v4752
        %v4831 = vsel %vm3773, -inf, %v4755
        %v4832 = vsel %vm3773, -inf, %v4758
        %v4833 = vsel %vm3773, -inf, %v4761
        %v4834 = vsel %vm3773, -inf, %v4764
        %v4835 = vsel %vm3773, -inf, %v4767
        %v4836 = vsel %vm3773, -inf, %v4770
        %v4837 = vsel %vm3773, -inf, %v4773
        %v4838 = vsel %vm3773, -inf, %v4776
        %v4839 = vsel %vm3773, -inf, %v4779
        %v4840 = vsel %vm3773, -inf, %v4782
        %v4841 = vsel %vm3773, -inf, %v4785
        %v4842 = vsel %vm3773, -inf, %v4788
        %v4843 = vsel %vm3773, -inf, %v4791
        %v4844 = vsel %vm3773, -inf, %v4794
        %v4845 = vmax.f32 %v4345, %v4829
        %v4846 = vmax.f32 %v4346, %v4751
        %v4847 = vmax.f32 %v4373, %v4830
        %v4848 = vmax.f32 %v4374, %v4754
        %v4849 = vmax.f32 %v4375, %v4831
        %v4850 = vmax.f32 %v4376, %v4757
        %v4851 = vmax.f32 %v4377, %v4832
        %v4852 = vmax.f32 %v4378, %v4760
        %v4853 = vmax.f32 %v4379, %v4833
        %v4854 = vmax.f32 %v4380, %v4763
        %v4855 = vmax.f32 %v4381, %v4834
        %v4856 = vmax.f32 %v4382, %v4766
        %v4857 = vmax.f32 %v4383, %v4835
        %v4858 = vmax.f32 %v4384, %v4769
        %v4859 = vmax.f32 %v4385, %v4836
        %v4860 = vmax.f32 %v4386, %v4772
        %v4861 = vmax.f32 %v4387, %v4837
        %v4862 = vmax.f32 %v4388, %v4775
        %v4863 = vmax.f32 %v4389, %v4838
        %v4864 = vmax.f32 %v4390, %v4778
        %v4865 = vmax.f32 %v4391, %v4839
        %v4866 = vmax.f32 %v4392, %v4781
        %v4867 = vmax.f32 %v4393, %v4840
        %v4868 = vmax.f32 %v4394, %v4784
        %v4869 = vmax.f32 %v4395, %v4841
        %v4870 = vmax.f32 %v4396, %v4787
        %v4871 = vmax.f32 %v4397, %v4842
        %v4872 = vmax.f32 %v4398, %v4790
        %v4873 = vmax.f32 %v4371, %v4843
        %v4874 = vmax.f32 %v4372, %v4793
        %v4875 = vmax.f32 %v4343, %v4844
        %v4876 = vmax.f32 %v4344, %v4796
        %v4877 = vrot.slane %v4345, 7
        %v4878 = vrot.slane %v4346, 7
        %v4879 = vsel %vm1116, %v4877, %v4878
        %v4880 = vrot.slane %v4373, 7
        %v4881 = vrot.slane %v4374, 7
        %v4882 = vsel %vm1116, %v4880, %v4881
        %v4883 = vrot.slane %v4375, 7
        %v4884 = vrot.slane %v4376, 7
        %v4885 = vsel %vm1116, %v4883, %v4884
        %v4886 = vrot.slane %v4377, 7
        %v4887 = vrot.slane %v4378, 7
        %v4888 = vsel %vm1116, %v4886, %v4887
        %v4889 = vrot.slane %v4379, 7
        %v4890 = vrot.slane %v4380, 7
        %v4891 = vsel %vm1116, %v4889, %v4890
        %v4892 = vrot.slane %v4381, 7
        %v4893 = vrot.slane %v4382, 7
        %v4894 = vsel %vm1116, %v4892, %v4893
        %v4895 = vrot.slane %v4383, 7
        %v4896 = vrot.slane %v4384, 7
        %v4897 = vsel %vm1116, %v4895, %v4896
        %v4898 = vrot.slane %v4385, 7
        %v4899 = vrot.slane %v4386, 7
        %v4900 = vsel %vm1116, %v4898, %v4899
        %v4901 = vrot.slane %v4387, 7
        %v4902 = vrot.slane %v4388, 7
        %v4903 = vsel %vm1116, %v4901, %v4902
        %v4904 = vrot.slane %v4389, 7
        %v4905 = vrot.slane %v4390, 7
        %v4906 = vsel %vm1116, %v4904, %v4905
        %v4907 = vrot.slane %v4391, 7
        %v4908 = vrot.slane %v4392, 7
        %v4909 = vsel %vm1116, %v4907, %v4908
        %v4910 = vrot.slane %v4393, 7
        %v4911 = vrot.slane %v4394, 7
        %v4912 = vsel %vm1116, %v4910, %v4911
        %v4913 = vrot.slane %v4395, 7
        %v4914 = vrot.slane %v4396, 7
        %v4915 = vsel %vm1116, %v4913, %v4914
        %v4916 = vrot.slane %v4397, 7
        %v4917 = vrot.slane %v4398, 7
        %v4918 = vsel %vm1116, %v4916, %v4917
        %v4919 = vrot.slane %v4371, 7
        %v4920 = vrot.slane %v4372, 7
        %v4921 = vsel %vm1116, %v4919, %v4920
        %v4922 = vrot.slane %v4343, 7
        %v4923 = vrot.slane %v4344, 7
        %v4924 = vsel %vm1116, %v4922, %v4923
        %v4957 = vsel %vm1116, -inf, %v4877
        %v4958 = vsel %vm1116, -inf, %v4880
        %v4959 = vsel %vm1116, -inf, %v4883
        %v4960 = vsel %vm1116, -inf, %v4886
        %v4961 = vsel %vm1116, -inf, %v4889
        %v4962 = vsel %vm1116, -inf, %v4892
        %v4963 = vsel %vm1116, -inf, %v4895
        %v4964 = vsel %vm1116, -inf, %v4898
        %v4965 = vsel %vm1116, -inf, %v4901
        %v4966 = vsel %vm1116, -inf, %v4904
        %v4967 = vsel %vm1116, -inf, %v4907
        %v4968 = vsel %vm1116, -inf, %v4910
        %v4969 = vsel %vm1116, -inf, %v4913
        %v4970 = vsel %vm1116, -inf, %v4916
        %v4971 = vsel %vm1116, -inf, %v4919
        %v4972 = vsel %vm1116, -inf, %v4922
        %v4973 = vmax.f32 %v4845, %v4957
        %v4974 = vmax.f32 %v4846, %v4879
        %v4975 = vmax.f32 %v4847, %v4958
        %v4976 = vmax.f32 %v4848, %v4882
        %v4977 = vmax.f32 %v4849, %v4959
        %v4978 = vmax.f32 %v4850, %v4885
        %v4979 = vmax.f32 %v4851, %v4960
        %v4980 = vmax.f32 %v4852, %v4888
        %v4981 = vmax.f32 %v4853, %v4961
        %v4982 = vmax.f32 %v4854, %v4891
        %v4983 = vmax.f32 %v4855, %v4962
        %v4984 = vmax.f32 %v4856, %v4894
        %v4985 = vmax.f32 %v4857, %v4963
        %v4986 = vmax.f32 %v4858, %v4897
        %v4987 = vmax.f32 %v4859, %v4964
        %v4988 = vmax.f32 %v4860, %v4900
        %v4989 = vmax.f32 %v4861, %v4965
        %v4990 = vmax.f32 %v4862, %v4903
        %v4991 = vmax.f32 %v4863, %v4966
        %v4992 = vmax.f32 %v4864, %v4906
        %v4993 = vmax.f32 %v4865, %v4967
        %v4994 = vmax.f32 %v4866, %v4909
        %v4995 = vmax.f32 %v4867, %v4968
        %v4996 = vmax.f32 %v4868, %v4912
        %v4997 = vmax.f32 %v4869, %v4969
        %v4998 = vmax.f32 %v4870, %v4915
        %v4999 = vmax.f32 %v4871, %v4970
        %v5000 = vmax.f32 %v4872, %v4918
        %v5001 = vmax.f32 %v4873, %v4971
        %v5002 = vmax.f32 %v4874, %v4921
        %v5003 = vmax.f32 %v4875, %v4972
        %v5004 = vmax.f32 %v4876, %v4924
        %v5005 = vrot.slane %v4345, 1
        %v5006 = vrot.slane %v4346, 1
        %v5007 = vsel %vm1552, %v5005, %v5006
        %v5008 = vrot.slane %v4373, 1
        %v5009 = vrot.slane %v4374, 1
        %v5010 = vsel %vm1552, %v5008, %v5009
        %v5011 = vrot.slane %v4375, 1
        %v5012 = vrot.slane %v4376, 1
        %v5013 = vsel %vm1552, %v5011, %v5012
        %v5014 = vrot.slane %v4377, 1
        %v5015 = vrot.slane %v4378, 1
        %v5016 = vsel %vm1552, %v5014, %v5015
        %v5017 = vrot.slane %v4379, 1
        %v5018 = vrot.slane %v4380, 1
        %v5019 = vsel %vm1552, %v5017, %v5018
        %v5020 = vrot.slane %v4381, 1
        %v5021 = vrot.slane %v4382, 1
        %v5022 = vsel %vm1552, %v5020, %v5021
        %v5023 = vrot.slane %v4383, 1
        %v5024 = vrot.slane %v4384, 1
        %v5025 = vsel %vm1552, %v5023, %v5024
        %v5026 = vrot.slane %v4385, 1
        %v5027 = vrot.slane %v4386, 1
        %v5028 = vsel %vm1552, %v5026, %v5027
        %v5029 = vrot.slane %v4387, 1
        %v5030 = vrot.slane %v4388, 1
        %v5031 = vsel %vm1552, %v5029, %v5030
        %v5032 = vrot.slane %v4389, 1
        %v5033 = vrot.slane %v4390, 1
        %v5034 = vsel %vm1552, %v5032, %v5033
        %v5035 = vrot.slane %v4391, 1
        %v5036 = vrot.slane %v4392, 1
        %v5037 = vsel %vm1552, %v5035, %v5036
        %v5038 = vrot.slane %v4393, 1
        %v5039 = vrot.slane %v4394, 1
        %v5040 = vsel %vm1552, %v5038, %v5039
        %v5041 = vrot.slane %v4395, 1
        %v5042 = vrot.slane %v4396, 1
        %v5043 = vsel %vm1552, %v5041, %v5042
        %v5044 = vrot.slane %v4397, 1
        %v5045 = vrot.slane %v4398, 1
        %v5046 = vsel %vm1552, %v5044, %v5045
        %v5047 = vrot.slane %v4371, 1
        %v5048 = vrot.slane %v4372, 1
        %v5049 = vsel %vm1552, %v5047, %v5048
        %v5050 = vrot.slane %v4343, 1
        %v5051 = vrot.slane %v4344, 1
        %v5052 = vsel %vm1552, %v5050, %v5051
        %v5085 = vsel %vm1552, %v5006, -inf
        %v5086 = vsel %vm1552, %v5009, -inf
        %v5087 = vsel %vm1552, %v5012, -inf
        %v5088 = vsel %vm1552, %v5015, -inf
        %v5089 = vsel %vm1552, %v5018, -inf
        %v5090 = vsel %vm1552, %v5021, -inf
        %v5091 = vsel %vm1552, %v5024, -inf
        %v5092 = vsel %vm1552, %v5027, -inf
        %v5093 = vsel %vm1552, %v5030, -inf
        %v5094 = vsel %vm1552, %v5033, -inf
        %v5095 = vsel %vm1552, %v5036, -inf
        %v5096 = vsel %vm1552, %v5039, -inf
        %v5097 = vsel %vm1552, %v5042, -inf
        %v5098 = vsel %vm1552, %v5045, -inf
        %v5099 = vsel %vm1552, %v5048, -inf
        %v5100 = vsel %vm1552, %v5051, -inf
        %v5101 = vmax.f32 %v4973, %v5007
        %v5102 = vmax.f32 %v4974, %v5085
        %v5103 = vmax.f32 %v4975, %v5010
        %v5104 = vmax.f32 %v4976, %v5086
        %v5105 = vmax.f32 %v4977, %v5013
        %v5106 = vmax.f32 %v4978, %v5087
        %v5107 = vmax.f32 %v4979, %v5016
        %v5108 = vmax.f32 %v4980, %v5088
        %v5109 = vmax.f32 %v4981, %v5019
        %v5110 = vmax.f32 %v4982, %v5089
        %v5111 = vmax.f32 %v4983, %v5022
        %v5112 = vmax.f32 %v4984, %v5090
        %v5113 = vmax.f32 %v4985, %v5025
        %v5114 = vmax.f32 %v4986, %v5091
        %v5115 = vmax.f32 %v4987, %v5028
        %v5116 = vmax.f32 %v4988, %v5092
        %v5117 = vmax.f32 %v4989, %v5031
        %v5118 = vmax.f32 %v4990, %v5093
        %v5119 = vmax.f32 %v4991, %v5034
        %v5120 = vmax.f32 %v4992, %v5094
        %v5121 = vmax.f32 %v4993, %v5037
        %v5122 = vmax.f32 %v4994, %v5095
        %v5123 = vmax.f32 %v4995, %v5040
        %v5124 = vmax.f32 %v4996, %v5096
        %v5125 = vmax.f32 %v4997, %v5043
        %v5126 = vmax.f32 %v4998, %v5097
        %v5127 = vmax.f32 %v4999, %v5046
        %v5128 = vmax.f32 %v5000, %v5098
        %v5129 = vmax.f32 %v5001, %v5049
        %v5130 = vmax.f32 %v5002, %v5099
        %v5131 = vmax.f32 %v5003, %v5052
        %v5132 = vmax.f32 %v5004, %v5100
        %v5133 = vrot.slane %v4345, 2
        %v5134 = vrot.slane %v4346, 2
        %v5135 = vsel %vm4158, %v5133, %v5134
        %v5136 = vrot.slane %v4373, 2
        %v5137 = vrot.slane %v4374, 2
        %v5138 = vsel %vm4158, %v5136, %v5137
        %v5139 = vrot.slane %v4375, 2
        %v5140 = vrot.slane %v4376, 2
        %v5141 = vsel %vm4158, %v5139, %v5140
        %v5142 = vrot.slane %v4377, 2
        %v5143 = vrot.slane %v4378, 2
        %v5144 = vsel %vm4158, %v5142, %v5143
        %v5145 = vrot.slane %v4379, 2
        %v5146 = vrot.slane %v4380, 2
        %v5147 = vsel %vm4158, %v5145, %v5146
        %v5148 = vrot.slane %v4381, 2
        %v5149 = vrot.slane %v4382, 2
        %v5150 = vsel %vm4158, %v5148, %v5149
        %v5151 = vrot.slane %v4383, 2
        %v5152 = vrot.slane %v4384, 2
        %v5153 = vsel %vm4158, %v5151, %v5152
        %v5154 = vrot.slane %v4385, 2
        %v5155 = vrot.slane %v4386, 2
        %v5156 = vsel %vm4158, %v5154, %v5155
        %v5157 = vrot.slane %v4387, 2
        %v5158 = vrot.slane %v4388, 2
        %v5159 = vsel %vm4158, %v5157, %v5158
        %v5160 = vrot.slane %v4389, 2
        %v5161 = vrot.slane %v4390, 2
        %v5162 = vsel %vm4158, %v5160, %v5161
        %v5163 = vrot.slane %v4391, 2
        %v5164 = vrot.slane %v4392, 2
        %v5165 = vsel %vm4158, %v5163, %v5164
        %v5166 = vrot.slane %v4393, 2
        %v5167 = vrot.slane %v4394, 2
        %v5168 = vsel %vm4158, %v5166, %v5167
        %v5169 = vrot.slane %v4395, 2
        %v5170 = vrot.slane %v4396, 2
        %v5171 = vsel %vm4158, %v5169, %v5170
        %v5172 = vrot.slane %v4397, 2
        %v5173 = vrot.slane %v4398, 2
        %v5174 = vsel %vm4158, %v5172, %v5173
        %v5175 = vrot.slane %v4371, 2
        %v5176 = vrot.slane %v4372, 2
        %v5177 = vsel %vm4158, %v5175, %v5176
        %v5178 = vrot.slane %v4343, 2
        %v5179 = vrot.slane %v4344, 2
        %v5180 = vsel %vm4158, %v5178, %v5179
        %v5213 = vsel %vm4158, %v5134, -inf
        %v5214 = vsel %vm4158, %v5137, -inf
        %v5215 = vsel %vm4158, %v5140, -inf
        %v5216 = vsel %vm4158, %v5143, -inf
        %v5217 = vsel %vm4158, %v5146, -inf
        %v5218 = vsel %vm4158, %v5149, -inf
        %v5219 = vsel %vm4158, %v5152, -inf
        %v5220 = vsel %vm4158, %v5155, -inf
        %v5221 = vsel %vm4158, %v5158, -inf
        %v5222 = vsel %vm4158, %v5161, -inf
        %v5223 = vsel %vm4158, %v5164, -inf
        %v5224 = vsel %vm4158, %v5167, -inf
        %v5225 = vsel %vm4158, %v5170, -inf
        %v5226 = vsel %vm4158, %v5173, -inf
        %v5227 = vsel %vm4158, %v5176, -inf
        %v5228 = vsel %vm4158, %v5179, -inf
        %v5229 = vmax.f32 %v5101, %v5135
        %v5230 = vmax.f32 %v5102, %v5213
        %v5231 = vmax.f32 %v5103, %v5138
        %v5232 = vmax.f32 %v5104, %v5214
        %v5233 = vmax.f32 %v5105, %v5141
        %v5234 = vmax.f32 %v5106, %v5215
        %v5235 = vmax.f32 %v5107, %v5144
        %v5236 = vmax.f32 %v5108, %v5216
        %v5237 = vmax.f32 %v5109, %v5147
        %v5238 = vmax.f32 %v5110, %v5217
        %v5239 = vmax.f32 %v5111, %v5150
        %v5240 = vmax.f32 %v5112, %v5218
        %v5241 = vmax.f32 %v5113, %v5153
        %v5242 = vmax.f32 %v5114, %v5219
        %v5243 = vmax.f32 %v5115, %v5156
        %v5244 = vmax.f32 %v5116, %v5220
        %v5245 = vmax.f32 %v5117, %v5159
        %v5246 = vmax.f32 %v5118, %v5221
        %v5247 = vmax.f32 %v5119, %v5162
        %v5248 = vmax.f32 %v5120, %v5222
        %v5249 = vmax.f32 %v5121, %v5165
        %v5250 = vmax.f32 %v5122, %v5223
        %v5251 = vmax.f32 %v5123, %v5168
        %v5252 = vmax.f32 %v5124, %v5224
        %v5253 = vmax.f32 %v5125, %v5171
        %v5254 = vmax.f32 %v5126, %v5225
        %v5255 = vmax.f32 %v5127, %v5174
        %v5256 = vmax.f32 %v5128, %v5226
        %v5257 = vmax.f32 %v5129, %v5177
        %v5258 = vmax.f32 %v5130, %v5227
        %v5259 = vmax.f32 %v5131, %v5180
        %v5260 = vmax.f32 %v5132, %v5228
        %v5261 = vmax.f32 %v5233, %v5229
        %v5262 = vmax.f32 %v5234, %v5230
        %v5263 = vmax.f32 %v5235, %v5231
        %v5264 = vmax.f32 %v5236, %v5232
        %v5265 = vmax.f32 %v5237, %v5233
        %v5266 = vmax.f32 %v5238, %v5234
        %v5267 = vmax.f32 %v5239, %v5235
        %v5268 = vmax.f32 %v5240, %v5236
        %v5269 = vmax.f32 %v5241, %v5237
        %v5270 = vmax.f32 %v5242, %v5238
        %v5271 = vmax.f32 %v5243, %v5239
        %v5272 = vmax.f32 %v5244, %v5240
        %v5273 = vmax.f32 %v5245, %v5241
        %v5274 = vmax.f32 %v5246, %v5242
        %v5275 = vmax.f32 %v5247, %v5243
        %v5276 = vmax.f32 %v5248, %v5244
        %v5277 = vmax.f32 %v5249, %v5245
        %v5278 = vmax.f32 %v5250, %v5246
        %v5279 = vmax.f32 %v5251, %v5247
        %v5280 = vmax.f32 %v5252, %v5248
        %v5281 = vmax.f32 %v5253, %v5249
        %v5282 = vmax.f32 %v5254, %v5250
        %v5283 = vmax.f32 %v5255, %v5251
        %v5284 = vmax.f32 %v5256, %v5252
        %v5285 = vmax.f32 %v5257, %v5253
        %v5286 = vmax.f32 %v5258, %v5254
        %v5287 = vmax.f32 %v5259, %v5255
        %v5288 = vmax.f32 %v5260, %v5256
        %v5289 = vmax.f32 %v5231, %v5229
        %v5290 = vmax.f32 %v5232, %v5230
        %v5291 = vmax.f32 %v5261, %v5231
        %v5292 = vmax.f32 %v5262, %v5232
        %v5293 = vmax.f32 %v5263, %v5233
        %v5294 = vmax.f32 %v5264, %v5234
        %v5295 = vmax.f32 %v5265, %v5235
        %v5296 = vmax.f32 %v5266, %v5236
        %v5297 = vmax.f32 %v5267, %v5237
        %v5298 = vmax.f32 %v5268, %v5238
        %v5299 = vmax.f32 %v5269, %v5239
        %v5300 = vmax.f32 %v5270, %v5240
        %v5301 = vmax.f32 %v5271, %v5241
        %v5302 = vmax.f32 %v5272, %v5242
        %v5303 = vmax.f32 %v5273, %v5243
        %v5304 = vmax.f32 %v5274, %v5244
        %v5305 = vmax.f32 %v5275, %v5245
        %v5306 = vmax.f32 %v5276, %v5246
        %v5307 = vmax.f32 %v5277, %v5247
        %v5308 = vmax.f32 %v5278, %v5248
        %v5309 = vmax.f32 %v5279, %v5249
        %v5310 = vmax.f32 %v5280, %v5250
        %v5311 = vmax.f32 %v5281, %v5251
        %v5312 = vmax.f32 %v5282, %v5252
        %v5313 = vmax.f32 %v5283, %v5253
        %v5314 = vmax.f32 %v5284, %v5254
        %v5315 = vmax.f32 %v5285, %v5255
        %v5316 = vmax.f32 %v5286, %v5256
        %v5317 = vmax.f32 %v5287, %v5257
        %v5318 = vmax.f32 %v5288, %v5258
        %v5319 = vmax.f32 %v5289, %v5233
        %v5320 = vmax.f32 %v5290, %v5234
        %v5321 = vmax.f32 %v5291, %v5235
        %v5322 = vmax.f32 %v5292, %v5236
        %v5323 = vmax.f32 %v5293, %v5237
        %v5324 = vmax.f32 %v5294, %v5238
        %v5325 = vmax.f32 %v5295, %v5239
        %v5326 = vmax.f32 %v5296, %v5240
        %v5327 = vmax.f32 %v5297, %v5241
        %v5328 = vmax.f32 %v5298, %v5242
        %v5329 = vmax.f32 %v5299, %v5243
        %v5330 = vmax.f32 %v5300, %v5244
        %v5331 = vmax.f32 %v5301, %v5245
        %v5332 = vmax.f32 %v5302, %v5246
        %v5333 = vmax.f32 %v5303, %v5247
        %v5334 = vmax.f32 %v5304, %v5248
        %v5335 = vmax.f32 %v5305, %v5249
        %v5336 = vmax.f32 %v5306, %v5250
        %v5337 = vmax.f32 %v5307, %v5251
        %v5338 = vmax.f32 %v5308, %v5252
        %v5339 = vmax.f32 %v5309, %v5253
        %v5340 = vmax.f32 %v5310, %v5254
        %v5341 = vmax.f32 %v5311, %v5255
        %v5342 = vmax.f32 %v5312, %v5256
        %v5343 = vmax.f32 %v5313, %v5257
        %v5344 = vmax.f32 %v5314, %v5258
        %v5345 = vmax.f32 %v5315, %v5259
        %v5346 = vmax.f32 %v5316, %v5260
        %v5347 = vmax.f32 %v5319, %v5235
        %v5348 = vmax.f32 %v5320, %v5236
        %v5349 = vmax.f32 %v5321, %v5237
        %v5350 = vmax.f32 %v5322, %v5238
        %v5351 = vmax.f32 %v5323, %v5239
        %v5352 = vmax.f32 %v5324, %v5240
        %v5353 = vmax.f32 %v5325, %v5241
        %v5354 = vmax.f32 %v5326, %v5242
        %v5355 = vmax.f32 %v5327, %v5243
        %v5356 = vmax.f32 %v5328, %v5244
        %v5357 = vmax.f32 %v5329, %v5245
        %v5358 = vmax.f32 %v5330, %v5246
        %v5359 = vmax.f32 %v5331, %v5247
        %v5360 = vmax.f32 %v5332, %v5248
        %v5361 = vmax.f32 %v5333, %v5249
        %v5362 = vmax.f32 %v5334, %v5250
        %v5363 = vmax.f32 %v5335, %v5251
        %v5364 = vmax.f32 %v5336, %v5252
        %v5365 = vmax.f32 %v5337, %v5253
        %v5366 = vmax.f32 %v5338, %v5254
        %v5367 = vmax.f32 %v5339, %v5255
        %v5368 = vmax.f32 %v5340, %v5256
        %v5369 = vmax.f32 %v5341, %v5257
        %v5370 = vmax.f32 %v5342, %v5258
        %v5371 = vmax.f32 %v5343, %v5259
        %v5372 = vmax.f32 %v5344, %v5260
        %v5373 = vpack.c.bf16 %v5320, %v5319
        %v5374 = vpack.c.bf16 %v5348, %v5347
        %v5375 = vpack.c.bf16 %v5350, %v5349
        %v5376 = vpack.c.bf16 %v5352, %v5351
        %v5377 = vpack.c.bf16 %v5354, %v5353
        %v5378 = vpack.c.bf16 %v5356, %v5355
        %v5379 = vpack.c.bf16 %v5358, %v5357
        %v5380 = vpack.c.bf16 %v5360, %v5359
        %v5381 = vpack.c.bf16 %v5362, %v5361
        %v5382 = vpack.c.bf16 %v5364, %v5363
        %v5383 = vpack.c.bf16 %v5366, %v5365
        %v5384 = vpack.c.bf16 %v5368, %v5367
        %v5385 = vpack.c.bf16 %v5370, %v5369
        %v5386 = vpack.c.bf16 %v5372, %v5371
        %v5387 = vpack.c.bf16 %v5346, %v5345
        %v5388 = vpack.c.bf16 %v5318, %v5317
        %v5389 = vld [vmem:[%s11 + $0x20] sm:$0xf]
        %v5390 = vld [vmem:[%s11 + $0x24] sm:$0xf]
        %v5391 = vld [vmem:[%s11 + $0x28] sm:$0xf]
        %v5392 = vld [vmem:[%s11 + $0x2c] sm:$0xf]
        %v5397 = vunpack.c.l.b16 %v5389
        %v5398 = vunpack.c.l.b16 %v5390
        %v5399 = vunpack.c.l.b16 %v5391
        %v5400 = vunpack.c.l.b16 %v5392
        %v5401 = vpack.c.b16 %v5398, %v5397
        %v5402 = vpack.c.b16 %v5400, %v5399
        %v5406 = vsel %vm1265, %v5373, 0
        %v5409 = vsel %vm1265, %v5374, 0
        %v5412 = vsel %vm1265, %v5375, 0
        %v5415 = vsel %vm1265, %v5376, 0
        %v5418 = vsel %vm1265, %v5377, 0
        %v5421 = vsel %vm1265, %v5378, 0
        %v5424 = vsel %vm1265, %v5379, 0
        %v5427 = vsel %vm1265, %v5380, 0
        %v5430 = vsel %vm1265, %v5381, 0
        %v5433 = vsel %vm1265, %v5382, 0
        %v5436 = vsel %vm1265, %v5383, 0
        %v5439 = vsel %vm1265, %v5384, 0
        %v5442 = vsel %vm1265, %v5385, 0
        %v5445 = vsel %vm1265, %v5386, 0
        %v5448 = vsel %vm1265, %v5387, 0
        %v5451 = vsel %vm1265, %v5388, 0
        %5453 = vmatpush.bf16.msra.mxu0 0
        %5454 = vmatpush.bf16.msra.mxu0 0
        %5455 = vmatpush.bf16.msra.mxu0 0
        %5456 = vmatpush.bf16.msra.mxu0 0
        %5457 = vmatpush.bf16.msra.mxu0 0
        %5458 = vmatpush.bf16.msra.mxu0 0
        %5459 = vmatpush.bf16.msra.mxu0 %v5402
        %5460 = vmatpush.bf16.msra.mxu0 %v5401
        %5461 = vmatmul.bf16.gmra.mxu0 %v5406
        %v5462 = vpop.f32.mrf.mxu0
        %v5463 = vadd.f32 0.0, %v5462
        %v5464 = vpop.f32.mrf.mxu0
        %v5465 = vadd.f32 0.0, %v5464
        %5466 = vmatmul.bf16.gmra.mxu0 %v5409
        %v5467 = vpop.f32.mrf.mxu0
        %v5468 = vadd.f32 0.0, %v5467
        %v5469 = vpop.f32.mrf.mxu0
        %v5470 = vadd.f32 0.0, %v5469
        %5471 = vmatmul.bf16.gmra.mxu0 %v5412
        %v5472 = vpop.f32.mrf.mxu0
        %v5473 = vadd.f32 0.0, %v5472
        %v5474 = vpop.f32.mrf.mxu0
        %v5475 = vadd.f32 0.0, %v5474
        %5476 = vmatmul.bf16.gmra.mxu0 %v5415
        %v5477 = vpop.f32.mrf.mxu0
        %v5478 = vadd.f32 0.0, %v5477
        %v5479 = vpop.f32.mrf.mxu0
        %v5480 = vadd.f32 0.0, %v5479
        %5481 = vmatmul.bf16.gmra.mxu0 %v5418
        %v5482 = vpop.f32.mrf.mxu0
        %v5483 = vadd.f32 0.0, %v5482
        %v5484 = vpop.f32.mrf.mxu0
        %v5485 = vadd.f32 0.0, %v5484
        %5486 = vmatmul.bf16.gmra.mxu0 %v5421
        %v5487 = vpop.f32.mrf.mxu0
        %v5488 = vadd.f32 0.0, %v5487
        %v5489 = vpop.f32.mrf.mxu0
        %v5490 = vadd.f32 0.0, %v5489
        %5491 = vmatmul.bf16.gmra.mxu0 %v5424
        %v5492 = vpop.f32.mrf.mxu0
        %v5493 = vadd.f32 0.0, %v5492
        %v5494 = vpop.f32.mrf.mxu0
        %v5495 = vadd.f32 0.0, %v5494
        %5496 = vmatmul.bf16.gmra.mxu0 %v5427
        %v5497 = vpop.f32.mrf.mxu0
        %v5498 = vadd.f32 0.0, %v5497
        %v5499 = vpop.f32.mrf.mxu0
        %v5500 = vadd.f32 0.0, %v5499
        %5501 = vmatmul.bf16.gmra.mxu0 %v5430
        %v5502 = vpop.f32.mrf.mxu0
        %v5503 = vadd.f32 0.0, %v5502
        %v5504 = vpop.f32.mrf.mxu0
        %v5505 = vadd.f32 0.0, %v5504
        %5506 = vmatmul.bf16.gmra.mxu0 %v5433
        %v5507 = vpop.f32.mrf.mxu0
        %v5508 = vadd.f32 0.0, %v5507
        %v5509 = vpop.f32.mrf.mxu0
        %v5510 = vadd.f32 0.0, %v5509
        %5511 = vmatmul.bf16.gmra.mxu0 %v5436
        %v5512 = vpop.f32.mrf.mxu0
        %v5513 = vadd.f32 0.0, %v5512
        %v5514 = vpop.f32.mrf.mxu0
        %v5515 = vadd.f32 0.0, %v5514
        %5516 = vmatmul.bf16.gmra.mxu0 %v5439
        %v5517 = vpop.f32.mrf.mxu0
        %v5518 = vadd.f32 0.0, %v5517
        %v5519 = vpop.f32.mrf.mxu0
        %v5520 = vadd.f32 0.0, %v5519
        %5521 = vmatmul.bf16.gmra.mxu0 %v5442
        %v5522 = vpop.f32.mrf.mxu0
        %v5523 = vadd.f32 0.0, %v5522
        %v5524 = vpop.f32.mrf.mxu0
        %v5525 = vadd.f32 0.0, %v5524
        %5526 = vmatmul.bf16.gmra.mxu0 %v5445
        %v5527 = vpop.f32.mrf.mxu0
        %v5528 = vadd.f32 0.0, %v5527
        %v5529 = vpop.f32.mrf.mxu0
        %v5530 = vadd.f32 0.0, %v5529
        %5531 = vmatmul.bf16.gmra.mxu0 %v5448
        %v5532 = vpop.f32.mrf.mxu0
        %v5533 = vadd.f32 0.0, %v5532
        %v5534 = vpop.f32.mrf.mxu0
        %v5535 = vadd.f32 0.0, %v5534
        %5536 = vmatmul.bf16.gmra.mxu0 %v5451
        %v5537 = vpop.f32.mrf.mxu0
        %v5538 = vadd.f32 0.0, %v5537
        %v5539 = vpop.f32.mrf.mxu0
        %v5540 = vadd.f32 0.0, %v5539
        %5541 = vdwg.mxu0
        %v5542 = vadd.f32 %v4638, %v5463
        %v5543 = vadd.f32 %v4640, %v5465
        %v5544 = vadd.f32 %v4643, %v5468
        %v5545 = vadd.f32 %v4645, %v5470
        %v5546 = vadd.f32 %v4648, %v5473
        %v5547 = vadd.f32 %v4650, %v5475
        %v5548 = vadd.f32 %v4653, %v5478
        %v5549 = vadd.f32 %v4655, %v5480
        %v5550 = vadd.f32 %v4658, %v5483
        %v5551 = vadd.f32 %v4660, %v5485
        %v5552 = vadd.f32 %v4663, %v5488
        %v5553 = vadd.f32 %v4665, %v5490
        %v5554 = vadd.f32 %v4668, %v5493
        %v5555 = vadd.f32 %v4670, %v5495
        %v5556 = vadd.f32 %v4673, %v5498
        %v5557 = vadd.f32 %v4675, %v5500
        %v5558 = vadd.f32 %v4678, %v5503
        %v5559 = vadd.f32 %v4680, %v5505
        %v5560 = vadd.f32 %v4683, %v5508
        %v5561 = vadd.f32 %v4685, %v5510
        %v5562 = vadd.f32 %v4688, %v5513
        %v5563 = vadd.f32 %v4690, %v5515
        %v5564 = vadd.f32 %v4693, %v5518
        %v5565 = vadd.f32 %v4695, %v5520
        %v5566 = vadd.f32 %v4698, %v5523
        %v5567 = vadd.f32 %v4700, %v5525
        %v5568 = vadd.f32 %v4703, %v5528
        %v5569 = vadd.f32 %v4705, %v5530
        %v5570 = vadd.f32 %v4708, %v5533
        %v5571 = vadd.f32 %v4710, %v5535
        %v5572 = vadd.f32 %v4713, %v5538
        %v5573 = vadd.f32 %v4715, %v5540
        %v5606 = vrot.slane %v5319, 6
        %v5607 = vrot.slane %v5320, 6
        %v5608 = vsel %vm3773, %v5606, %v5607
        %v5609 = vrot.slane %v5347, 6
        %v5610 = vrot.slane %v5348, 6
        %v5611 = vsel %vm3773, %v5609, %v5610
        %v5612 = vrot.slane %v5349, 6
        %v5613 = vrot.slane %v5350, 6
        %v5614 = vsel %vm3773, %v5612, %v5613
        %v5615 = vrot.slane %v5351, 6
        %v5616 = vrot.slane %v5352, 6
        %v5617 = vsel %vm3773, %v5615, %v5616
        %v5618 = vrot.slane %v5353, 6
        %v5619 = vrot.slane %v5354, 6
        %v5620 = vsel %vm3773, %v5618, %v5619
        %v5621 = vrot.slane %v5355, 6
        %v5622 = vrot.slane %v5356, 6
        %v5623 = vsel %vm3773, %v5621, %v5622
        %v5624 = vrot.slane %v5357, 6
        %v5625 = vrot.slane %v5358, 6
        %v5626 = vsel %vm3773, %v5624, %v5625
        %v5627 = vrot.slane %v5359, 6
        %v5628 = vrot.slane %v5360, 6
        %v5629 = vsel %vm3773, %v5627, %v5628
        %v5630 = vrot.slane %v5361, 6
        %v5631 = vrot.slane %v5362, 6
        %v5632 = vsel %vm3773, %v5630, %v5631
        %v5633 = vrot.slane %v5363, 6
        %v5634 = vrot.slane %v5364, 6
        %v5635 = vsel %vm3773, %v5633, %v5634
        %v5636 = vrot.slane %v5365, 6
        %v5637 = vrot.slane %v5366, 6
        %v5638 = vsel %vm3773, %v5636, %v5637
        %v5639 = vrot.slane %v5367, 6
        %v5640 = vrot.slane %v5368, 6
        %v5641 = vsel %vm3773, %v5639, %v5640
        %v5642 = vrot.slane %v5369, 6
        %v5643 = vrot.slane %v5370, 6
        %v5644 = vsel %vm3773, %v5642, %v5643
        %v5645 = vrot.slane %v5371, 6
        %v5646 = vrot.slane %v5372, 6
        %v5647 = vsel %vm3773, %v5645, %v5646
        %v5648 = vrot.slane %v5345, 6
        %v5649 = vrot.slane %v5346, 6
        %v5650 = vsel %vm3773, %v5648, %v5649
        %v5651 = vrot.slane %v5317, 6
        %v5652 = vrot.slane %v5318, 6
        %v5653 = vsel %vm3773, %v5651, %v5652
        %v5686 = vsel %vm3773, -inf, %v5606
        %v5687 = vsel %vm3773, -inf, %v5609
        %v5688 = vsel %vm3773, -inf, %v5612
        %v5689 = vsel %vm3773, -inf, %v5615
        %v5690 = vsel %vm3773, -inf, %v5618
        %v5691 = vsel %vm3773, -inf, %v5621
        %v5692 = vsel %vm3773, -inf, %v5624
        %v5693 = vsel %vm3773, -inf, %v5627
        %v5694 = vsel %vm3773, -inf, %v5630
        %v5695 = vsel %vm3773, -inf, %v5633
        %v5696 = vsel %vm3773, -inf, %v5636
        %v5697 = vsel %vm3773, -inf, %v5639
        %v5698 = vsel %vm3773, -inf, %v5642
        %v5699 = vsel %vm3773, -inf, %v5645
        %v5700 = vsel %vm3773, -inf, %v5648
        %v5701 = vsel %vm3773, -inf, %v5651
        %v5702 = vmax.f32 %v5319, %v5686
        %v5703 = vmax.f32 %v5320, %v5608
        %v5704 = vmax.f32 %v5347, %v5687
        %v5705 = vmax.f32 %v5348, %v5611
        %v5706 = vmax.f32 %v5349, %v5688
        %v5707 = vmax.f32 %v5350, %v5614
        %v5708 = vmax.f32 %v5351, %v5689
        %v5709 = vmax.f32 %v5352, %v5617
        %v5710 = vmax.f32 %v5353, %v5690
        %v5711 = vmax.f32 %v5354, %v5620
        %v5712 = vmax.f32 %v5355, %v5691
        %v5713 = vmax.f32 %v5356, %v5623
        %v5714 = vmax.f32 %v5357, %v5692
        %v5715 = vmax.f32 %v5358, %v5626
        %v5716 = vmax.f32 %v5359, %v5693
        %v5717 = vmax.f32 %v5360, %v5629
        %v5718 = vmax.f32 %v5361, %v5694
        %v5719 = vmax.f32 %v5362, %v5632
        %v5720 = vmax.f32 %v5363, %v5695
        %v5721 = vmax.f32 %v5364, %v5635
        %v5722 = vmax.f32 %v5365, %v5696
        %v5723 = vmax.f32 %v5366, %v5638
        %v5724 = vmax.f32 %v5367, %v5697
        %v5725 = vmax.f32 %v5368, %v5641
        %v5726 = vmax.f32 %v5369, %v5698
        %v5727 = vmax.f32 %v5370, %v5644
        %v5728 = vmax.f32 %v5371, %v5699
        %v5729 = vmax.f32 %v5372, %v5647
        %v5730 = vmax.f32 %v5345, %v5700
        %v5731 = vmax.f32 %v5346, %v5650
        %v5732 = vmax.f32 %v5317, %v5701
        %v5733 = vmax.f32 %v5318, %v5653
        %v5734 = vrot.slane %v5319, 7
        %v5735 = vrot.slane %v5320, 7
        %v5736 = vsel %vm1116, %v5734, %v5735
        %v5737 = vrot.slane %v5347, 7
        %v5738 = vrot.slane %v5348, 7
        %v5739 = vsel %vm1116, %v5737, %v5738
        %v5740 = vrot.slane %v5349, 7
        %v5741 = vrot.slane %v5350, 7
        %v5742 = vsel %vm1116, %v5740, %v5741
        %v5743 = vrot.slane %v5351, 7
        %v5744 = vrot.slane %v5352, 7
        %v5745 = vsel %vm1116, %v5743, %v5744
        %v5746 = vrot.slane %v5353, 7
        %v5747 = vrot.slane %v5354, 7
        %v5748 = vsel %vm1116, %v5746, %v5747
        %v5749 = vrot.slane %v5355, 7
        %v5750 = vrot.slane %v5356, 7
        %v5751 = vsel %vm1116, %v5749, %v5750
        %v5752 = vrot.slane %v5357, 7
        %v5753 = vrot.slane %v5358, 7
        %v5754 = vsel %vm1116, %v5752, %v5753
        %v5755 = vrot.slane %v5359, 7
        %v5756 = vrot.slane %v5360, 7
        %v5757 = vsel %vm1116, %v5755, %v5756
        %v5758 = vrot.slane %v5361, 7
        %v5759 = vrot.slane %v5362, 7
        %v5760 = vsel %vm1116, %v5758, %v5759
        %v5761 = vrot.slane %v5363, 7
        %v5762 = vrot.slane %v5364, 7
        %v5763 = vsel %vm1116, %v5761, %v5762
        %v5764 = vrot.slane %v5365, 7
        %v5765 = vrot.slane %v5366, 7
        %v5766 = vsel %vm1116, %v5764, %v5765
        %v5767 = vrot.slane %v5367, 7
        %v5768 = vrot.slane %v5368, 7
        %v5769 = vsel %vm1116, %v5767, %v5768
        %v5770 = vrot.slane %v5369, 7
        %v5771 = vrot.slane %v5370, 7
        %v5772 = vsel %vm1116, %v5770, %v5771
        %v5773 = vrot.slane %v5371, 7
        %v5774 = vrot.slane %v5372, 7
        %v5775 = vsel %vm1116, %v5773, %v5774
        %v5776 = vrot.slane %v5345, 7
        %v5777 = vrot.slane %v5346, 7
        %v5778 = vsel %vm1116, %v5776, %v5777
        %v5779 = vrot.slane %v5317, 7
        %v5780 = vrot.slane %v5318, 7
        %v5781 = vsel %vm1116, %v5779, %v5780
        %v5814 = vsel %vm1116, -inf, %v5734
        %v5815 = vsel %vm1116, -inf, %v5737
        %v5816 = vsel %vm1116, -inf, %v5740
        %v5817 = vsel %vm1116, -inf, %v5743
        %v5818 = vsel %vm1116, -inf, %v5746
        %v5819 = vsel %vm1116, -inf, %v5749
        %v5820 = vsel %vm1116, -inf, %v5752
        %v5821 = vsel %vm1116, -inf, %v5755
        %v5822 = vsel %vm1116, -inf, %v5758
        %v5823 = vsel %vm1116, -inf, %v5761
        %v5824 = vsel %vm1116, -inf, %v5764
        %v5825 = vsel %vm1116, -inf, %v5767
        %v5826 = vsel %vm1116, -inf, %v5770
        %v5827 = vsel %vm1116, -inf, %v5773
        %v5828 = vsel %vm1116, -inf, %v5776
        %v5829 = vsel %vm1116, -inf, %v5779
        %v5830 = vmax.f32 %v5702, %v5814
        %v5831 = vmax.f32 %v5703, %v5736
        %v5832 = vmax.f32 %v5704, %v5815
        %v5833 = vmax.f32 %v5705, %v5739
        %v5834 = vmax.f32 %v5706, %v5816
        %v5835 = vmax.f32 %v5707, %v5742
        %v5836 = vmax.f32 %v5708, %v5817
        %v5837 = vmax.f32 %v5709, %v5745
        %v5838 = vmax.f32 %v5710, %v5818
        %v5839 = vmax.f32 %v5711, %v5748
        %v5840 = vmax.f32 %v5712, %v5819
        %v5841 = vmax.f32 %v5713, %v5751
        %v5842 = vmax.f32 %v5714, %v5820
        %v5843 = vmax.f32 %v5715, %v5754
        %v5844 = vmax.f32 %v5716, %v5821
        %v5845 = vmax.f32 %v5717, %v5757
        %v5846 = vmax.f32 %v5718, %v5822
        %v5847 = vmax.f32 %v5719, %v5760
        %v5848 = vmax.f32 %v5720, %v5823
        %v5849 = vmax.f32 %v5721, %v5763
        %v5850 = vmax.f32 %v5722, %v5824
        %v5851 = vmax.f32 %v5723, %v5766
        %v5852 = vmax.f32 %v5724, %v5825
        %v5853 = vmax.f32 %v5725, %v5769
        %v5854 = vmax.f32 %v5726, %v5826
        %v5855 = vmax.f32 %v5727, %v5772
        %v5856 = vmax.f32 %v5728, %v5827
        %v5857 = vmax.f32 %v5729, %v5775
        %v5858 = vmax.f32 %v5730, %v5828
        %v5859 = vmax.f32 %v5731, %v5778
        %v5860 = vmax.f32 %v5732, %v5829
        %v5861 = vmax.f32 %v5733, %v5781
        %v5862 = vrot.slane %v5319, 1
        %v5863 = vrot.slane %v5320, 1
        %v5864 = vsel %vm1552, %v5862, %v5863
        %v5865 = vrot.slane %v5347, 1
        %v5866 = vrot.slane %v5348, 1
        %v5867 = vsel %vm1552, %v5865, %v5866
        %v5868 = vrot.slane %v5349, 1
        %v5869 = vrot.slane %v5350, 1
        %v5870 = vsel %vm1552, %v5868, %v5869
        %v5871 = vrot.slane %v5351, 1
        %v5872 = vrot.slane %v5352, 1
        %v5873 = vsel %vm1552, %v5871, %v5872
        %v5874 = vrot.slane %v5353, 1
        %v5875 = vrot.slane %v5354, 1
        %v5876 = vsel %vm1552, %v5874, %v5875
        %v5877 = vrot.slane %v5355, 1
        %v5878 = vrot.slane %v5356, 1
        %v5879 = vsel %vm1552, %v5877, %v5878
        %v5880 = vrot.slane %v5357, 1
        %v5881 = vrot.slane %v5358, 1
        %v5882 = vsel %vm1552, %v5880, %v5881
        %v5883 = vrot.slane %v5359, 1
        %v5884 = vrot.slane %v5360, 1
        %v5885 = vsel %vm1552, %v5883, %v5884
        %v5886 = vrot.slane %v5361, 1
        %v5887 = vrot.slane %v5362, 1
        %v5888 = vsel %vm1552, %v5886, %v5887
        %v5889 = vrot.slane %v5363, 1
        %v5890 = vrot.slane %v5364, 1
        %v5891 = vsel %vm1552, %v5889, %v5890
        %v5892 = vrot.slane %v5365, 1
        %v5893 = vrot.slane %v5366, 1
        %v5894 = vsel %vm1552, %v5892, %v5893
        %v5895 = vrot.slane %v5367, 1
        %v5896 = vrot.slane %v5368, 1
        %v5897 = vsel %vm1552, %v5895, %v5896
        %v5898 = vrot.slane %v5369, 1
        %v5899 = vrot.slane %v5370, 1
        %v5900 = vsel %vm1552, %v5898, %v5899
        %v5901 = vrot.slane %v5371, 1
        %v5902 = vrot.slane %v5372, 1
        %v5903 = vsel %vm1552, %v5901, %v5902
        %v5904 = vrot.slane %v5345, 1
        %v5905 = vrot.slane %v5346, 1
        %v5906 = vsel %vm1552, %v5904, %v5905
        %v5907 = vrot.slane %v5317, 1
        %v5908 = vrot.slane %v5318, 1
        %v5909 = vsel %vm1552, %v5907, %v5908
        %v5942 = vsel %vm1552, %v5863, -inf
        %v5943 = vsel %vm1552, %v5866, -inf
        %v5944 = vsel %vm1552, %v5869, -inf
        %v5945 = vsel %vm1552, %v5872, -inf
        %v5946 = vsel %vm1552, %v5875, -inf
        %v5947 = vsel %vm1552, %v5878, -inf
        %v5948 = vsel %vm1552, %v5881, -inf
        %v5949 = vsel %vm1552, %v5884, -inf
        %v5950 = vsel %vm1552, %v5887, -inf
        %v5951 = vsel %vm1552, %v5890, -inf
        %v5952 = vsel %vm1552, %v5893, -inf
        %v5953 = vsel %vm1552, %v5896, -inf
        %v5954 = vsel %vm1552, %v5899, -inf
        %v5955 = vsel %vm1552, %v5902, -inf
        %v5956 = vsel %vm1552, %v5905, -inf
        %v5957 = vsel %vm1552, %v5908, -inf
        %v5958 = vmax.f32 %v5830, %v5864
        %v5959 = vmax.f32 %v5831, %v5942
        %v5960 = vmax.f32 %v5832, %v5867
        %v5961 = vmax.f32 %v5833, %v5943
        %v5962 = vmax.f32 %v5834, %v5870
        %v5963 = vmax.f32 %v5835, %v5944
        %v5964 = vmax.f32 %v5836, %v5873
        %v5965 = vmax.f32 %v5837, %v5945
        %v5966 = vmax.f32 %v5838, %v5876
        %v5967 = vmax.f32 %v5839, %v5946
        %v5968 = vmax.f32 %v5840, %v5879
        %v5969 = vmax.f32 %v5841, %v5947
        %v5970 = vmax.f32 %v5842, %v5882
        %v5971 = vmax.f32 %v5843, %v5948
        %v5972 = vmax.f32 %v5844, %v5885
        %v5973 = vmax.f32 %v5845, %v5949
        %v5974 = vmax.f32 %v5846, %v5888
        %v5975 = vmax.f32 %v5847, %v5950
        %v5976 = vmax.f32 %v5848, %v5891
        %v5977 = vmax.f32 %v5849, %v5951
        %v5978 = vmax.f32 %v5850, %v5894
        %v5979 = vmax.f32 %v5851, %v5952
        %v5980 = vmax.f32 %v5852, %v5897
        %v5981 = vmax.f32 %v5853, %v5953
        %v5982 = vmax.f32 %v5854, %v5900
        %v5983 = vmax.f32 %v5855, %v5954
        %v5984 = vmax.f32 %v5856, %v5903
        %v5985 = vmax.f32 %v5857, %v5955
        %v5986 = vmax.f32 %v5858, %v5906
        %v5987 = vmax.f32 %v5859, %v5956
        %v5988 = vmax.f32 %v5860, %v5909
        %v5989 = vmax.f32 %v5861, %v5957
        %v5990 = vrot.slane %v5319, 2
        %v5991 = vrot.slane %v5320, 2
        %v5992 = vsel %vm4158, %v5990, %v5991
        %v5993 = vrot.slane %v5347, 2
        %v5994 = vrot.slane %v5348, 2
        %v5995 = vsel %vm4158, %v5993, %v5994
        %v5996 = vrot.slane %v5349, 2
        %v5997 = vrot.slane %v5350, 2
        %v5998 = vsel %vm4158, %v5996, %v5997
        %v5999 = vrot.slane %v5351, 2
        %v6000 = vrot.slane %v5352, 2
        %v6001 = vsel %vm4158, %v5999, %v6000
        %v6002 = vrot.slane %v5353, 2
        %v6003 = vrot.slane %v5354, 2
        %v6004 = vsel %vm4158, %v6002, %v6003
        %v6005 = vrot.slane %v5355, 2
        %v6006 = vrot.slane %v5356, 2
        %v6007 = vsel %vm4158, %v6005, %v6006
        %v6008 = vrot.slane %v5357, 2
        %v6009 = vrot.slane %v5358, 2
        %v6010 = vsel %vm4158, %v6008, %v6009
        %v6011 = vrot.slane %v5359, 2
        %v6012 = vrot.slane %v5360, 2
        %v6013 = vsel %vm4158, %v6011, %v6012
        %v6014 = vrot.slane %v5361, 2
        %v6015 = vrot.slane %v5362, 2
        %v6016 = vsel %vm4158, %v6014, %v6015
        %v6017 = vrot.slane %v5363, 2
        %v6018 = vrot.slane %v5364, 2
        %v6019 = vsel %vm4158, %v6017, %v6018
        %v6020 = vrot.slane %v5365, 2
        %v6021 = vrot.slane %v5366, 2
        %v6022 = vsel %vm4158, %v6020, %v6021
        %v6023 = vrot.slane %v5367, 2
        %v6024 = vrot.slane %v5368, 2
        %v6025 = vsel %vm4158, %v6023, %v6024
        %v6026 = vrot.slane %v5369, 2
        %v6027 = vrot.slane %v5370, 2
        %v6028 = vsel %vm4158, %v6026, %v6027
        %v6029 = vrot.slane %v5371, 2
        %v6030 = vrot.slane %v5372, 2
        %v6031 = vsel %vm4158, %v6029, %v6030
        %v6032 = vrot.slane %v5345, 2
        %v6033 = vrot.slane %v5346, 2
        %v6034 = vsel %vm4158, %v6032, %v6033
        %v6035 = vrot.slane %v5317, 2
        %v6036 = vrot.slane %v5318, 2
        %v6037 = vsel %vm4158, %v6035, %v6036
        %v6070 = vsel %vm4158, %v5991, -inf
        %v6071 = vsel %vm4158, %v5994, -inf
        %v6072 = vsel %vm4158, %v5997, -inf
        %v6073 = vsel %vm4158, %v6000, -inf
        %v6074 = vsel %vm4158, %v6003, -inf
        %v6075 = vsel %vm4158, %v6006, -inf
        %v6076 = vsel %vm4158, %v6009, -inf
        %v6077 = vsel %vm4158, %v6012, -inf
        %v6078 = vsel %vm4158, %v6015, -inf
        %v6079 = vsel %vm4158, %v6018, -inf
        %v6080 = vsel %vm4158, %v6021, -inf
        %v6081 = vsel %vm4158, %v6024, -inf
        %v6082 = vsel %vm4158, %v6027, -inf
        %v6083 = vsel %vm4158, %v6030, -inf
        %v6084 = vsel %vm4158, %v6033, -inf
        %v6085 = vsel %vm4158, %v6036, -inf
        %v6086 = vmax.f32 %v5958, %v5992
        %v6087 = vmax.f32 %v5959, %v6070
        %v6088 = vmax.f32 %v5960, %v5995
        %v6089 = vmax.f32 %v5961, %v6071
        %v6090 = vmax.f32 %v5962, %v5998
        %v6091 = vmax.f32 %v5963, %v6072
        %v6092 = vmax.f32 %v5964, %v6001
        %v6093 = vmax.f32 %v5965, %v6073
        %v6094 = vmax.f32 %v5966, %v6004
        %v6095 = vmax.f32 %v5967, %v6074
        %v6096 = vmax.f32 %v5968, %v6007
        %v6097 = vmax.f32 %v5969, %v6075
        %v6098 = vmax.f32 %v5970, %v6010
        %v6099 = vmax.f32 %v5971, %v6076
        %v6100 = vmax.f32 %v5972, %v6013
        %v6101 = vmax.f32 %v5973, %v6077
        %v6102 = vmax.f32 %v5974, %v6016
        %v6103 = vmax.f32 %v5975, %v6078
        %v6104 = vmax.f32 %v5976, %v6019
        %v6105 = vmax.f32 %v5977, %v6079
        %v6106 = vmax.f32 %v5978, %v6022
        %v6107 = vmax.f32 %v5979, %v6080
        %v6108 = vmax.f32 %v5980, %v6025
        %v6109 = vmax.f32 %v5981, %v6081
        %v6110 = vmax.f32 %v5982, %v6028
        %v6111 = vmax.f32 %v5983, %v6082
        %v6112 = vmax.f32 %v5984, %v6031
        %v6113 = vmax.f32 %v5985, %v6083
        %v6114 = vmax.f32 %v5986, %v6034
        %v6115 = vmax.f32 %v5987, %v6084
        %v6116 = vmax.f32 %v5988, %v6037
        %v6117 = vmax.f32 %v5989, %v6085
        %v6118 = vmax.f32 %v6090, %v6086
        %v6119 = vmax.f32 %v6091, %v6087
        %v6120 = vmax.f32 %v6092, %v6088
        %v6121 = vmax.f32 %v6093, %v6089
        %v6122 = vmax.f32 %v6094, %v6090
        %v6123 = vmax.f32 %v6095, %v6091
        %v6124 = vmax.f32 %v6096, %v6092
        %v6125 = vmax.f32 %v6097, %v6093
        %v6126 = vmax.f32 %v6098, %v6094
        %v6127 = vmax.f32 %v6099, %v6095
        %v6128 = vmax.f32 %v6100, %v6096
        %v6129 = vmax.f32 %v6101, %v6097
        %v6130 = vmax.f32 %v6102, %v6098
        %v6131 = vmax.f32 %v6103, %v6099
        %v6132 = vmax.f32 %v6104, %v6100
        %v6133 = vmax.f32 %v6105, %v6101
        %v6134 = vmax.f32 %v6106, %v6102
        %v6135 = vmax.f32 %v6107, %v6103
        %v6136 = vmax.f32 %v6108, %v6104
        %v6137 = vmax.f32 %v6109, %v6105
        %v6138 = vmax.f32 %v6110, %v6106
        %v6139 = vmax.f32 %v6111, %v6107
        %v6140 = vmax.f32 %v6112, %v6108
        %v6141 = vmax.f32 %v6113, %v6109
        %v6142 = vmax.f32 %v6114, %v6110
        %v6143 = vmax.f32 %v6115, %v6111
        %v6144 = vmax.f32 %v6116, %v6112
        %v6145 = vmax.f32 %v6117, %v6113
        %v6146 = vmax.f32 %v6088, %v6086
        %v6147 = vmax.f32 %v6089, %v6087
        %v6148 = vmax.f32 %v6118, %v6088
        %v6149 = vmax.f32 %v6119, %v6089
        %v6150 = vmax.f32 %v6120, %v6090
        %v6151 = vmax.f32 %v6121, %v6091
        %v6152 = vmax.f32 %v6122, %v6092
        %v6153 = vmax.f32 %v6123, %v6093
        %v6154 = vmax.f32 %v6124, %v6094
        %v6155 = vmax.f32 %v6125, %v6095
        %v6156 = vmax.f32 %v6126, %v6096
        %v6157 = vmax.f32 %v6127, %v6097
        %v6158 = vmax.f32 %v6128, %v6098
        %v6159 = vmax.f32 %v6129, %v6099
        %v6160 = vmax.f32 %v6130, %v6100
        %v6161 = vmax.f32 %v6131, %v6101
        %v6162 = vmax.f32 %v6132, %v6102
        %v6163 = vmax.f32 %v6133, %v6103
        %v6164 = vmax.f32 %v6134, %v6104
        %v6165 = vmax.f32 %v6135, %v6105
        %v6166 = vmax.f32 %v6136, %v6106
        %v6167 = vmax.f32 %v6137, %v6107
        %v6168 = vmax.f32 %v6138, %v6108
        %v6169 = vmax.f32 %v6139, %v6109
        %v6170 = vmax.f32 %v6140, %v6110
        %v6171 = vmax.f32 %v6141, %v6111
        %v6172 = vmax.f32 %v6142, %v6112
        %v6173 = vmax.f32 %v6143, %v6113
        %v6174 = vmax.f32 %v6144, %v6114
        %v6175 = vmax.f32 %v6145, %v6115
        %v6176 = vmax.f32 %v6146, %v6090
        %v6177 = vmax.f32 %v6147, %v6091
        %v6178 = vmax.f32 %v6148, %v6092
        %v6179 = vmax.f32 %v6149, %v6093
        %v6180 = vmax.f32 %v6150, %v6094
        %v6181 = vmax.f32 %v6151, %v6095
        %v6182 = vmax.f32 %v6152, %v6096
        %v6183 = vmax.f32 %v6153, %v6097
        %v6184 = vmax.f32 %v6154, %v6098
        %v6185 = vmax.f32 %v6155, %v6099
        %v6186 = vmax.f32 %v6156, %v6100
        %v6187 = vmax.f32 %v6157, %v6101
        %v6188 = vmax.f32 %v6158, %v6102
        %v6189 = vmax.f32 %v6159, %v6103
        %v6190 = vmax.f32 %v6160, %v6104
        %v6191 = vmax.f32 %v6161, %v6105
        %v6192 = vmax.f32 %v6162, %v6106
        %v6193 = vmax.f32 %v6163, %v6107
        %v6194 = vmax.f32 %v6164, %v6108
        %v6195 = vmax.f32 %v6165, %v6109
        %v6196 = vmax.f32 %v6166, %v6110
        %v6197 = vmax.f32 %v6167, %v6111
        %v6198 = vmax.f32 %v6168, %v6112
        %v6199 = vmax.f32 %v6169, %v6113
        %v6200 = vmax.f32 %v6170, %v6114
        %v6201 = vmax.f32 %v6171, %v6115
        %v6202 = vmax.f32 %v6172, %v6116
        %v6203 = vmax.f32 %v6173, %v6117
        %v6204 = vmax.f32 %v6176, %v6092
        %v6205 = vmax.f32 %v6177, %v6093
        %v6206 = vmax.f32 %v6178, %v6094
        %v6207 = vmax.f32 %v6179, %v6095
        %v6208 = vmax.f32 %v6180, %v6096
        %v6209 = vmax.f32 %v6181, %v6097
        %v6210 = vmax.f32 %v6182, %v6098
        %v6211 = vmax.f32 %v6183, %v6099
        %v6212 = vmax.f32 %v6184, %v6100
        %v6213 = vmax.f32 %v6185, %v6101
        %v6214 = vmax.f32 %v6186, %v6102
        %v6215 = vmax.f32 %v6187, %v6103
        %v6216 = vmax.f32 %v6188, %v6104
        %v6217 = vmax.f32 %v6189, %v6105
        %v6218 = vmax.f32 %v6190, %v6106
        %v6219 = vmax.f32 %v6191, %v6107
        %v6220 = vmax.f32 %v6192, %v6108
        %v6221 = vmax.f32 %v6193, %v6109
        %v6222 = vmax.f32 %v6194, %v6110
        %v6223 = vmax.f32 %v6195, %v6111
        %v6224 = vmax.f32 %v6196, %v6112
        %v6225 = vmax.f32 %v6197, %v6113
        %v6226 = vmax.f32 %v6198, %v6114
        %v6227 = vmax.f32 %v6199, %v6115
        %v6228 = vmax.f32 %v6200, %v6116
        %v6229 = vmax.f32 %v6201, %v6117
        %v6230 = vpack.c.bf16 %v6177, %v6176
        %v6231 = vpack.c.bf16 %v6205, %v6204
        %v6232 = vpack.c.bf16 %v6207, %v6206
        %v6233 = vpack.c.bf16 %v6209, %v6208
        %v6234 = vpack.c.bf16 %v6211, %v6210
        %v6235 = vpack.c.bf16 %v6213, %v6212
        %v6236 = vpack.c.bf16 %v6215, %v6214
        %v6237 = vpack.c.bf16 %v6217, %v6216
        %v6238 = vpack.c.bf16 %v6219, %v6218
        %v6239 = vpack.c.bf16 %v6221, %v6220
        %v6240 = vpack.c.bf16 %v6223, %v6222
        %v6241 = vpack.c.bf16 %v6225, %v6224
        %v6242 = vpack.c.bf16 %v6227, %v6226
        %v6243 = vpack.c.bf16 %v6229, %v6228
        %v6244 = vpack.c.bf16 %v6203, %v6202
        %v6245 = vpack.c.bf16 %v6175, %v6174
        %v6246 = vld [vmem:[%s11 + $0x30] sm:$0xf]
        %v6247 = vld [vmem:[%s11 + $0x34] sm:$0xf]
        %v6248 = vld [vmem:[%s11 + $0x38] sm:$0xf]
        %v6249 = vld [vmem:[%s11 + $0x3c] sm:$0xf]
        %v6254 = vunpack.c.l.b16 %v6246
        %v6255 = vunpack.c.l.b16 %v6247
        %v6256 = vunpack.c.l.b16 %v6248
        %v6257 = vunpack.c.l.b16 %v6249
        %v6258 = vpack.c.b16 %v6255, %v6254
        %v6259 = vpack.c.b16 %v6257, %v6256
        %v6263 = vsel %vm1265, %v6230, 0
        %v6266 = vsel %vm1265, %v6231, 0
        %v6269 = vsel %vm1265, %v6232, 0
        %v6272 = vsel %vm1265, %v6233, 0
        %v6275 = vsel %vm1265, %v6234, 0
        %v6278 = vsel %vm1265, %v6235, 0
        %v6281 = vsel %vm1265, %v6236, 0
        %v6284 = vsel %vm1265, %v6237, 0
        %v6287 = vsel %vm1265, %v6238, 0
        %v6290 = vsel %vm1265, %v6239, 0
        %v6293 = vsel %vm1265, %v6240, 0
        %v6296 = vsel %vm1265, %v6241, 0
        %v6299 = vsel %vm1265, %v6242, 0
        %v6302 = vsel %vm1265, %v6243, 0
        %v6305 = vsel %vm1265, %v6244, 0
        %v6308 = vsel %vm1265, %v6245, 0
        %6310 = vmatpush.bf16.msra.mxu0 0
        %6311 = vmatpush.bf16.msra.mxu0 0
        %6312 = vmatpush.bf16.msra.mxu0 0
        %6313 = vmatpush.bf16.msra.mxu0 0
        %6314 = vmatpush.bf16.msra.mxu0 0
        %6315 = vmatpush.bf16.msra.mxu0 0
        %6316 = vmatpush.bf16.msra.mxu0 %v6259
        %6317 = vmatpush.bf16.msra.mxu0 %v6258
        %6318 = vmatmul.bf16.gmra.mxu0 %v6263
        %v6319 = vpop.f32.mrf.mxu0
        %v6320 = vadd.f32 0.0, %v6319
        %v6321 = vpop.f32.mrf.mxu0
        %v6322 = vadd.f32 0.0, %v6321
        %6323 = vmatmul.bf16.gmra.mxu0 %v6266
        %v6324 = vpop.f32.mrf.mxu0
        %v6325 = vadd.f32 0.0, %v6324
        %v6326 = vpop.f32.mrf.mxu0
        %v6327 = vadd.f32 0.0, %v6326
        %6328 = vmatmul.bf16.gmra.mxu0 %v6269
        %v6329 = vpop.f32.mrf.mxu0
        %v6330 = vadd.f32 0.0, %v6329
        %v6331 = vpop.f32.mrf.mxu0
        %v6332 = vadd.f32 0.0, %v6331
        %6333 = vmatmul.bf16.gmra.mxu0 %v6272
        %v6334 = vpop.f32.mrf.mxu0
        %v6335 = vadd.f32 0.0, %v6334
        %v6336 = vpop.f32.mrf.mxu0
        %v6337 = vadd.f32 0.0, %v6336
        %6338 = vmatmul.bf16.gmra.mxu0 %v6275
        %v6339 = vpop.f32.mrf.mxu0
        %v6340 = vadd.f32 0.0, %v6339
        %v6341 = vpop.f32.mrf.mxu0
        %v6342 = vadd.f32 0.0, %v6341
        %6343 = vmatmul.bf16.gmra.mxu0 %v6278
        %v6344 = vpop.f32.mrf.mxu0
        %v6345 = vadd.f32 0.0, %v6344
        %v6346 = vpop.f32.mrf.mxu0
        %v6347 = vadd.f32 0.0, %v6346
        %6348 = vmatmul.bf16.gmra.mxu0 %v6281
        %v6349 = vpop.f32.mrf.mxu0
        %v6350 = vadd.f32 0.0, %v6349
        %v6351 = vpop.f32.mrf.mxu0
        %v6352 = vadd.f32 0.0, %v6351
        %6353 = vmatmul.bf16.gmra.mxu0 %v6284
        %v6354 = vpop.f32.mrf.mxu0
        %v6355 = vadd.f32 0.0, %v6354
        %v6356 = vpop.f32.mrf.mxu0
        %v6357 = vadd.f32 0.0, %v6356
        %6358 = vmatmul.bf16.gmra.mxu0 %v6287
        %v6359 = vpop.f32.mrf.mxu0
        %v6360 = vadd.f32 0.0, %v6359
        %v6361 = vpop.f32.mrf.mxu0
        %v6362 = vadd.f32 0.0, %v6361
        %6363 = vmatmul.bf16.gmra.mxu0 %v6290
        %v6364 = vpop.f32.mrf.mxu0
        %v6365 = vadd.f32 0.0, %v6364
        %v6366 = vpop.f32.mrf.mxu0
        %v6367 = vadd.f32 0.0, %v6366
        %6368 = vmatmul.bf16.gmra.mxu0 %v6293
        %v6369 = vpop.f32.mrf.mxu0
        %v6370 = vadd.f32 0.0, %v6369
        %v6371 = vpop.f32.mrf.mxu0
        %v6372 = vadd.f32 0.0, %v6371
        %6373 = vmatmul.bf16.gmra.mxu0 %v6296
        %v6374 = vpop.f32.mrf.mxu0
        %v6375 = vadd.f32 0.0, %v6374
        %v6376 = vpop.f32.mrf.mxu0
        %v6377 = vadd.f32 0.0, %v6376
        %6378 = vmatmul.bf16.gmra.mxu0 %v6299
        %v6379 = vpop.f32.mrf.mxu0
        %v6380 = vadd.f32 0.0, %v6379
        %v6381 = vpop.f32.mrf.mxu0
        %v6382 = vadd.f32 0.0, %v6381
        %6383 = vmatmul.bf16.gmra.mxu0 %v6302
        %v6384 = vpop.f32.mrf.mxu0
        %v6385 = vadd.f32 0.0, %v6384
        %v6386 = vpop.f32.mrf.mxu0
        %v6387 = vadd.f32 0.0, %v6386
        %6388 = vmatmul.bf16.gmra.mxu0 %v6305
        %v6389 = vpop.f32.mrf.mxu0
        %v6390 = vadd.f32 0.0, %v6389
        %v6391 = vpop.f32.mrf.mxu0
        %v6392 = vadd.f32 0.0, %v6391
        %6393 = vmatmul.bf16.gmra.mxu0 %v6308
        %v6394 = vpop.f32.mrf.mxu0
        %v6395 = vadd.f32 0.0, %v6394
        %v6396 = vpop.f32.mrf.mxu0
        %v6397 = vadd.f32 0.0, %v6396
        %6398 = vdwg.mxu0
        %v6399 = vadd.f32 %v5542, %v6320
        %v6400 = vadd.f32 %v5543, %v6322
        %v6401 = vadd.f32 %v5544, %v6325
        %v6402 = vadd.f32 %v5545, %v6327
        %v6403 = vadd.f32 %v5546, %v6330
        %v6404 = vadd.f32 %v5547, %v6332
        %v6405 = vadd.f32 %v5548, %v6335
        %v6406 = vadd.f32 %v5549, %v6337
        %v6407 = vadd.f32 %v5550, %v6340
        %v6408 = vadd.f32 %v5551, %v6342
        %v6409 = vadd.f32 %v5552, %v6345
        %v6410 = vadd.f32 %v5553, %v6347
        %v6411 = vadd.f32 %v5554, %v6350
        %v6412 = vadd.f32 %v5555, %v6352
        %v6413 = vadd.f32 %v5556, %v6355
        %v6414 = vadd.f32 %v5557, %v6357
        %v6415 = vadd.f32 %v5558, %v6360
        %v6416 = vadd.f32 %v5559, %v6362
        %v6417 = vadd.f32 %v5560, %v6365
        %v6418 = vadd.f32 %v5561, %v6367
        %v6419 = vadd.f32 %v5562, %v6370
        %v6420 = vadd.f32 %v5563, %v6372
        %v6421 = vadd.f32 %v5564, %v6375
        %v6422 = vadd.f32 %v5565, %v6377
        %v6423 = vadd.f32 %v5566, %v6380
        %v6424 = vadd.f32 %v5567, %v6382
        %v6425 = vadd.f32 %v5568, %v6385
        %v6426 = vadd.f32 %v5569, %v6387
        %v6427 = vadd.f32 %v5570, %v6390
        %v6428 = vadd.f32 %v5571, %v6392
        %v6429 = vadd.f32 %v5572, %v6395
        %v6430 = vadd.f32 %v5573, %v6397
        %v6431 = vld [vmem:[%s12] sm:$0x1]
        %v6433 = vperm.slane %v6431, 0
        %v6435 = vmul.f32 %v6399, %v6433
        %v6436 = vmul.f32 %v6400, %v6433
        %v6437 = vmul.f32 %v6401, %v6433
        %v6438 = vmul.f32 %v6402, %v6433
        %v6439 = vmul.f32 %v6403, %v6433
        %v6440 = vmul.f32 %v6404, %v6433
        %v6441 = vmul.f32 %v6405, %v6433
        %v6442 = vmul.f32 %v6406, %v6433
        %v6443 = vmul.f32 %v6407, %v6433
        %v6444 = vmul.f32 %v6408, %v6433
        %v6445 = vmul.f32 %v6409, %v6433
        %v6446 = vmul.f32 %v6410, %v6433
        %v6447 = vmul.f32 %v6411, %v6433
        %v6448 = vmul.f32 %v6412, %v6433
        %v6449 = vmul.f32 %v6413, %v6433
        %v6450 = vmul.f32 %v6414, %v6433
        %v6451 = vmul.f32 %v6415, %v6433
        %v6452 = vmul.f32 %v6416, %v6433
        %v6453 = vmul.f32 %v6417, %v6433
        %v6454 = vmul.f32 %v6418, %v6433
        %v6455 = vmul.f32 %v6419, %v6433
        %v6456 = vmul.f32 %v6420, %v6433
        %v6457 = vmul.f32 %v6421, %v6433
        %v6458 = vmul.f32 %v6422, %v6433
        %v6459 = vmul.f32 %v6423, %v6433
        %v6460 = vmul.f32 %v6424, %v6433
        %v6461 = vmul.f32 %v6425, %v6433
        %v6462 = vmul.f32 %v6426, %v6433
        %v6463 = vmul.f32 %v6427, %v6433
        %v6464 = vmul.f32 %v6428, %v6433
        %v6465 = vmul.f32 %v6429, %v6433
        %v6466 = vmul.f32 %v6430, %v6433
        %v6467 = vld [vmem:[%s13] sm:$0x1]
        %v6469 = vperm.slane %v6467, 0
        %v6471 = vadd.f32 %v6435, %v6469
        %v6472 = vadd.f32 %v6436, %v6469
        %v6473 = vadd.f32 %v6437, %v6469
        %v6474 = vadd.f32 %v6438, %v6469
        %v6475 = vadd.f32 %v6439, %v6469
        %v6476 = vadd.f32 %v6440, %v6469
        %v6477 = vadd.f32 %v6441, %v6469
        %v6478 = vadd.f32 %v6442, %v6469
        %v6479 = vadd.f32 %v6443, %v6469
        %v6480 = vadd.f32 %v6444, %v6469
        %v6481 = vadd.f32 %v6445, %v6469
        %v6482 = vadd.f32 %v6446, %v6469
        %v6483 = vadd.f32 %v6447, %v6469
        %v6484 = vadd.f32 %v6448, %v6469
        %v6485 = vadd.f32 %v6449, %v6469
        %v6486 = vadd.f32 %v6450, %v6469
        %v6487 = vadd.f32 %v6451, %v6469
        %v6488 = vadd.f32 %v6452, %v6469
        %v6489 = vadd.f32 %v6453, %v6469
        %v6490 = vadd.f32 %v6454, %v6469
        %v6491 = vadd.f32 %v6455, %v6469
        %v6492 = vadd.f32 %v6456, %v6469
        %v6493 = vadd.f32 %v6457, %v6469
        %v6494 = vadd.f32 %v6458, %v6469
        %v6495 = vadd.f32 %v6459, %v6469
        %v6496 = vadd.f32 %v6460, %v6469
        %v6497 = vadd.f32 %v6461, %v6469
        %v6498 = vadd.f32 %v6462, %v6469
        %v6499 = vadd.f32 %v6463, %v6469
        %v6500 = vadd.f32 %v6464, %v6469
        %v6501 = vadd.f32 %v6465, %v6469
        %v6502 = vadd.f32 %v6466, %v6469
        %v6503 = vmin.f32 %v6471, 20.0
        %v6504 = vmin.f32 %v6472, 20.0
        %v6505 = vmin.f32 %v6473, 20.0
        %v6506 = vmin.f32 %v6474, 20.0
        %v6507 = vmin.f32 %v6475, 20.0
        %v6508 = vmin.f32 %v6476, 20.0
        %v6509 = vmin.f32 %v6477, 20.0
        %v6510 = vmin.f32 %v6478, 20.0
        %v6511 = vmin.f32 %v6479, 20.0
        %v6512 = vmin.f32 %v6480, 20.0
        %v6513 = vmin.f32 %v6481, 20.0
        %v6514 = vmin.f32 %v6482, 20.0
        %v6515 = vmin.f32 %v6483, 20.0
        %v6516 = vmin.f32 %v6484, 20.0
        %v6517 = vmin.f32 %v6485, 20.0
        %v6518 = vmin.f32 %v6486, 20.0
        %v6519 = vmin.f32 %v6487, 20.0
        %v6520 = vmin.f32 %v6488, 20.0
        %v6521 = vmin.f32 %v6489, 20.0
        %v6522 = vmin.f32 %v6490, 20.0
        %v6523 = vmin.f32 %v6491, 20.0
        %v6524 = vmin.f32 %v6492, 20.0
        %v6525 = vmin.f32 %v6493, 20.0
        %v6526 = vmin.f32 %v6494, 20.0
        %v6527 = vmin.f32 %v6495, 20.0
        %v6528 = vmin.f32 %v6496, 20.0
        %v6529 = vmin.f32 %v6497, 20.0
        %v6530 = vmin.f32 %v6498, 20.0
        %v6531 = vmin.f32 %v6499, 20.0
        %v6532 = vmin.f32 %v6500, 20.0
        %v6533 = vmin.f32 %v6501, 20.0
        %v6534 = vmin.f32 %v6502, 20.0
        %v6535 = vmul.f32 %v6503, 1.442695
        %v6536 = vpow.pop %v6535
        %v6537 = vmul.f32 %v6504, 1.442695
        %v6538 = vpow.pop %v6537
        %v6539 = vmul.f32 %v6505, 1.442695
        %v6540 = vpow.pop %v6539
        %v6541 = vmul.f32 %v6506, 1.442695
        %v6542 = vpow.pop %v6541
        %v6543 = vmul.f32 %v6507, 1.442695
        %v6544 = vpow.pop %v6543
        %v6545 = vmul.f32 %v6508, 1.442695
        %v6546 = vpow.pop %v6545
        %v6547 = vmul.f32 %v6509, 1.442695
        %v6548 = vpow.pop %v6547
        %v6549 = vmul.f32 %v6510, 1.442695
        %v6550 = vpow.pop %v6549
        %v6551 = vmul.f32 %v6511, 1.442695
        %v6552 = vpow.pop %v6551
        %v6553 = vmul.f32 %v6512, 1.442695
        %v6554 = vpow.pop %v6553
        %v6555 = vmul.f32 %v6513, 1.442695
        %v6556 = vpow.pop %v6555
        %v6557 = vmul.f32 %v6514, 1.442695
        %v6558 = vpow.pop %v6557
        %v6559 = vmul.f32 %v6515, 1.442695
        %v6560 = vpow.pop %v6559
        %v6561 = vmul.f32 %v6516, 1.442695
        %v6562 = vpow.pop %v6561
        %v6563 = vmul.f32 %v6517, 1.442695
        %v6564 = vpow.pop %v6563
        %v6565 = vmul.f32 %v6518, 1.442695
        %v6566 = vpow.pop %v6565
        %v6567 = vmul.f32 %v6519, 1.442695
        %v6568 = vpow.pop %v6567
        %v6569 = vmul.f32 %v6520, 1.442695
        %v6570 = vpow.pop %v6569
        %v6571 = vmul.f32 %v6521, 1.442695
        %v6572 = vpow.pop %v6571
        %v6573 = vmul.f32 %v6522, 1.442695
        %v6574 = vpow.pop %v6573
        %v6575 = vmul.f32 %v6523, 1.442695
        %v6576 = vpow.pop %v6575
        %v6577 = vmul.f32 %v6524, 1.442695
        %v6578 = vpow.pop %v6577
        %v6579 = vmul.f32 %v6525, 1.442695
        %v6580 = vpow.pop %v6579
        %v6581 = vmul.f32 %v6526, 1.442695
        %v6582 = vpow.pop %v6581
        %v6583 = vmul.f32 %v6527, 1.442695
        %v6584 = vpow.pop %v6583
        %v6585 = vmul.f32 %v6528, 1.442695
        %v6586 = vpow.pop %v6585
        %v6587 = vmul.f32 %v6529, 1.442695
        %v6588 = vpow.pop %v6587
        %v6589 = vmul.f32 %v6530, 1.442695
        %v6590 = vpow.pop %v6589
        %v6591 = vmul.f32 %v6531, 1.442695
        %v6592 = vpow.pop %v6591
        %v6593 = vmul.f32 %v6532, 1.442695
        %v6594 = vpow.pop %v6593
        %v6595 = vmul.f32 %v6533, 1.442695
        %v6596 = vpow.pop %v6595
        %v6597 = vmul.f32 %v6534, 1.442695
        %v6598 = vpow.pop %v6597
        %v6599 = vadd.f32 %v6536, 2.0
        %v6600 = vadd.f32 %v6538, 2.0
        %v6601 = vadd.f32 %v6540, 2.0
        %v6602 = vadd.f32 %v6542, 2.0
        %v6603 = vadd.f32 %v6544, 2.0
        %v6604 = vadd.f32 %v6546, 2.0
        %v6605 = vadd.f32 %v6548, 2.0
        %v6606 = vadd.f32 %v6550, 2.0
        %v6607 = vadd.f32 %v6552, 2.0
        %v6608 = vadd.f32 %v6554, 2.0
        %v6609 = vadd.f32 %v6556, 2.0
        %v6610 = vadd.f32 %v6558, 2.0
        %v6611 = vadd.f32 %v6560, 2.0
        %v6612 = vadd.f32 %v6562, 2.0
        %v6613 = vadd.f32 %v6564, 2.0
        %v6614 = vadd.f32 %v6566, 2.0
        %v6615 = vadd.f32 %v6568, 2.0
        %v6616 = vadd.f32 %v6570, 2.0
        %v6617 = vadd.f32 %v6572, 2.0
        %v6618 = vadd.f32 %v6574, 2.0
        %v6619 = vadd.f32 %v6576, 2.0
        %v6620 = vadd.f32 %v6578, 2.0
        %v6621 = vadd.f32 %v6580, 2.0
        %v6622 = vadd.f32 %v6582, 2.0
        %v6623 = vadd.f32 %v6584, 2.0
        %v6624 = vadd.f32 %v6586, 2.0
        %v6625 = vadd.f32 %v6588, 2.0
        %v6626 = vadd.f32 %v6590, 2.0
        %v6627 = vadd.f32 %v6592, 2.0
        %v6628 = vadd.f32 %v6594, 2.0
        %v6629 = vadd.f32 %v6596, 2.0
        %v6630 = vadd.f32 %v6598, 2.0
        %v6631 = vmul.f32 %v6536, %v6599
        %v6632 = vmul.f32 %v6538, %v6600
        %v6633 = vmul.f32 %v6540, %v6601
        %v6634 = vmul.f32 %v6542, %v6602
        %v6635 = vmul.f32 %v6544, %v6603
        %v6636 = vmul.f32 %v6546, %v6604
        %v6637 = vmul.f32 %v6548, %v6605
        %v6638 = vmul.f32 %v6550, %v6606
        %v6639 = vmul.f32 %v6552, %v6607
        %v6640 = vmul.f32 %v6554, %v6608
        %v6641 = vmul.f32 %v6556, %v6609
        %v6642 = vmul.f32 %v6558, %v6610
        %v6643 = vmul.f32 %v6560, %v6611
        %v6644 = vmul.f32 %v6562, %v6612
        %v6645 = vmul.f32 %v6564, %v6613
        %v6646 = vmul.f32 %v6566, %v6614
        %v6647 = vmul.f32 %v6568, %v6615
        %v6648 = vmul.f32 %v6570, %v6616
        %v6649 = vmul.f32 %v6572, %v6617
        %v6650 = vmul.f32 %v6574, %v6618
        %v6651 = vmul.f32 %v6576, %v6619
        %v6652 = vmul.f32 %v6578, %v6620
        %v6653 = vmul.f32 %v6580, %v6621
        %v6654 = vmul.f32 %v6582, %v6622
        %v6655 = vmul.f32 %v6584, %v6623
        %v6656 = vmul.f32 %v6586, %v6624
        %v6657 = vmul.f32 %v6588, %v6625
        %v6658 = vmul.f32 %v6590, %v6626
        %v6659 = vmul.f32 %v6592, %v6627
        %v6660 = vmul.f32 %v6594, %v6628
        %v6661 = vmul.f32 %v6596, %v6629
        %v6662 = vmul.f32 %v6598, %v6630
        %v6663 = vmul.f32 %v6471, %v6631
        %v6664 = vmul.f32 %v6472, %v6632
        %v6665 = vmul.f32 %v6473, %v6633
        %v6666 = vmul.f32 %v6474, %v6634
        %v6667 = vmul.f32 %v6475, %v6635
        %v6668 = vmul.f32 %v6476, %v6636
        %v6669 = vmul.f32 %v6477, %v6637
        %v6670 = vmul.f32 %v6478, %v6638
        %v6671 = vmul.f32 %v6479, %v6639
        %v6672 = vmul.f32 %v6480, %v6640
        %v6673 = vmul.f32 %v6481, %v6641
        %v6674 = vmul.f32 %v6482, %v6642
        %v6675 = vmul.f32 %v6483, %v6643
        %v6676 = vmul.f32 %v6484, %v6644
        %v6677 = vmul.f32 %v6485, %v6645
        %v6678 = vmul.f32 %v6486, %v6646
        %v6679 = vmul.f32 %v6487, %v6647
        %v6680 = vmul.f32 %v6488, %v6648
        %v6681 = vmul.f32 %v6489, %v6649
        %v6682 = vmul.f32 %v6490, %v6650
        %v6683 = vmul.f32 %v6491, %v6651
        %v6684 = vmul.f32 %v6492, %v6652
        %v6685 = vmul.f32 %v6493, %v6653
        %v6686 = vmul.f32 %v6494, %v6654
        %v6687 = vmul.f32 %v6495, %v6655
        %v6688 = vmul.f32 %v6496, %v6656
        %v6689 = vmul.f32 %v6497, %v6657
        %v6690 = vmul.f32 %v6498, %v6658
        %v6691 = vmul.f32 %v6499, %v6659
        %v6692 = vmul.f32 %v6500, %v6660
        %v6693 = vmul.f32 %v6501, %v6661
        %v6694 = vmul.f32 %v6502, %v6662
        %v6695 = vadd.f32 %v6631, 2.0
        %v6696 = vadd.f32 %v6632, 2.0
        %v6697 = vadd.f32 %v6633, 2.0
        %v6698 = vadd.f32 %v6634, 2.0
        %v6699 = vadd.f32 %v6635, 2.0
        %v6700 = vadd.f32 %v6636, 2.0
        %v6701 = vadd.f32 %v6637, 2.0
        %v6702 = vadd.f32 %v6638, 2.0
        %v6703 = vadd.f32 %v6639, 2.0
        %v6704 = vadd.f32 %v6640, 2.0
        %v6705 = vadd.f32 %v6641, 2.0
        %v6706 = vadd.f32 %v6642, 2.0
        %v6707 = vadd.f32 %v6643, 2.0
        %v6708 = vadd.f32 %v6644, 2.0
        %v6709 = vadd.f32 %v6645, 2.0
        %v6710 = vadd.f32 %v6646, 2.0
        %v6711 = vadd.f32 %v6647, 2.0
        %v6712 = vadd.f32 %v6648, 2.0
        %v6713 = vadd.f32 %v6649, 2.0
        %v6714 = vadd.f32 %v6650, 2.0
        %v6715 = vadd.f32 %v6651, 2.0
        %v6716 = vadd.f32 %v6652, 2.0
        %v6717 = vadd.f32 %v6653, 2.0
        %v6718 = vadd.f32 %v6654, 2.0
        %v6719 = vadd.f32 %v6655, 2.0
        %v6720 = vadd.f32 %v6656, 2.0
        %v6721 = vadd.f32 %v6657, 2.0
        %v6722 = vadd.f32 %v6658, 2.0
        %v6723 = vadd.f32 %v6659, 2.0
        %v6724 = vadd.f32 %v6660, 2.0
        %v6725 = vadd.f32 %v6661, 2.0
        %v6726 = vadd.f32 %v6662, 2.0
        %v6727 = vrcp.pop %v6695
        %v6728 = vrcp.pop %v6696
        %v6729 = vrcp.pop %v6697
        %v6730 = vrcp.pop %v6698
        %v6731 = vrcp.pop %v6699
        %v6732 = vrcp.pop %v6700
        %v6733 = vrcp.pop %v6701
        %v6734 = vrcp.pop %v6702
        %v6735 = vrcp.pop %v6703
        %v6736 = vrcp.pop %v6704
        %v6737 = vrcp.pop %v6705
        %v6738 = vrcp.pop %v6706
        %v6739 = vrcp.pop %v6707
        %v6740 = vrcp.pop %v6708
        %v6741 = vrcp.pop %v6709
        %v6742 = vrcp.pop %v6710
        %v6743 = vrcp.pop %v6711
        %v6744 = vrcp.pop %v6712
        %v6745 = vrcp.pop %v6713
        %v6746 = vrcp.pop %v6714
        %v6747 = vrcp.pop %v6715
        %v6748 = vrcp.pop %v6716
        %v6749 = vrcp.pop %v6717
        %v6750 = vrcp.pop %v6718
        %v6751 = vrcp.pop %v6719
        %v6752 = vrcp.pop %v6720
        %v6753 = vrcp.pop %v6721
        %v6754 = vrcp.pop %v6722
        %v6755 = vrcp.pop %v6723
        %v6756 = vrcp.pop %v6724
        %v6757 = vrcp.pop %v6725
        %v6758 = vrcp.pop %v6726
        %v6759 = vmul.f32 %v6663, %v6727
        %v6760 = vmul.f32 %v6664, %v6728
        %v6761 = vmul.f32 %v6665, %v6729
        %v6762 = vmul.f32 %v6666, %v6730
        %v6763 = vmul.f32 %v6667, %v6731
        %v6764 = vmul.f32 %v6668, %v6732
        %v6765 = vmul.f32 %v6669, %v6733
        %v6766 = vmul.f32 %v6670, %v6734
        %v6767 = vmul.f32 %v6671, %v6735
        %v6768 = vmul.f32 %v6672, %v6736
        %v6769 = vmul.f32 %v6673, %v6737
        %v6770 = vmul.f32 %v6674, %v6738
        %v6771 = vmul.f32 %v6675, %v6739
        %v6772 = vmul.f32 %v6676, %v6740
        %v6773 = vmul.f32 %v6677, %v6741
        %v6774 = vmul.f32 %v6678, %v6742
        %v6775 = vmul.f32 %v6679, %v6743
        %v6776 = vmul.f32 %v6680, %v6744
        %v6777 = vmul.f32 %v6681, %v6745
        %v6778 = vmul.f32 %v6682, %v6746
        %v6779 = vmul.f32 %v6683, %v6747
        %v6780 = vmul.f32 %v6684, %v6748
        %v6781 = vmul.f32 %v6685, %v6749
        %v6782 = vmul.f32 %v6686, %v6750
        %v6783 = vmul.f32 %v6687, %v6751
        %v6784 = vmul.f32 %v6688, %v6752
        %v6785 = vmul.f32 %v6689, %v6753
        %v6786 = vmul.f32 %v6690, %v6754
        %v6787 = vmul.f32 %v6691, %v6755
        %v6788 = vmul.f32 %v6692, %v6756
        %v6789 = vmul.f32 %v6693, %v6757
        %v6790 = vmul.f32 %v6694, %v6758
        %vm6791 = vcmp.gt.f32.partialorder %v6471, 20.0
        %vm6792 = vcmp.gt.f32.partialorder %v6472, 20.0
        %vm6793 = vcmp.gt.f32.partialorder %v6473, 20.0
        %vm6794 = vcmp.gt.f32.partialorder %v6474, 20.0
        %vm6795 = vcmp.gt.f32.partialorder %v6475, 20.0
        %vm6796 = vcmp.gt.f32.partialorder %v6476, 20.0
        %vm6797 = vcmp.gt.f32.partialorder %v6477, 20.0
        %vm6798 = vcmp.gt.f32.partialorder %v6478, 20.0
        %vm6799 = vcmp.gt.f32.partialorder %v6479, 20.0
        %vm6800 = vcmp.gt.f32.partialorder %v6480, 20.0
        %vm6801 = vcmp.gt.f32.partialorder %v6481, 20.0
        %vm6802 = vcmp.gt.f32.partialorder %v6482, 20.0
        %vm6803 = vcmp.gt.f32.partialorder %v6483, 20.0
        %vm6804 = vcmp.gt.f32.partialorder %v6484, 20.0
        %vm6805 = vcmp.gt.f32.partialorder %v6485, 20.0
        %vm6806 = vcmp.gt.f32.partialorder %v6486, 20.0
        %vm6807 = vcmp.gt.f32.partialorder %v6487, 20.0
        %vm6808 = vcmp.gt.f32.partialorder %v6488, 20.0
        %vm6809 = vcmp.gt.f32.partialorder %v6489, 20.0
        %vm6810 = vcmp.gt.f32.partialorder %v6490, 20.0
        %vm6811 = vcmp.gt.f32.partialorder %v6491, 20.0
        %vm6812 = vcmp.gt.f32.partialorder %v6492, 20.0
        %vm6813 = vcmp.gt.f32.partialorder %v6493, 20.0
        %vm6814 = vcmp.gt.f32.partialorder %v6494, 20.0
        %vm6815 = vcmp.gt.f32.partialorder %v6495, 20.0
        %vm6816 = vcmp.gt.f32.partialorder %v6496, 20.0
        %vm6817 = vcmp.gt.f32.partialorder %v6497, 20.0
        %vm6818 = vcmp.gt.f32.partialorder %v6498, 20.0
        %vm6819 = vcmp.gt.f32.partialorder %v6499, 20.0
        %vm6820 = vcmp.gt.f32.partialorder %v6500, 20.0
        %vm6821 = vcmp.gt.f32.partialorder %v6501, 20.0
        %vm6822 = vcmp.gt.f32.partialorder %v6502, 20.0
        %v6823 = vsel %vm6791, %v6471, %v6759
        %v6824 = vsel %vm6792, %v6472, %v6760
        %v6825 = vsel %vm6793, %v6473, %v6761
        %v6826 = vsel %vm6794, %v6474, %v6762
        %v6827 = vsel %vm6795, %v6475, %v6763
        %v6828 = vsel %vm6796, %v6476, %v6764
        %v6829 = vsel %vm6797, %v6477, %v6765
        %v6830 = vsel %vm6798, %v6478, %v6766
        %v6831 = vsel %vm6799, %v6479, %v6767
        %v6832 = vsel %vm6800, %v6480, %v6768
        %v6833 = vsel %vm6801, %v6481, %v6769
        %v6834 = vsel %vm6802, %v6482, %v6770
        %v6835 = vsel %vm6803, %v6483, %v6771
        %v6836 = vsel %vm6804, %v6484, %v6772
        %v6837 = vsel %vm6805, %v6485, %v6773
        %v6838 = vsel %vm6806, %v6486, %v6774
        %v6839 = vsel %vm6807, %v6487, %v6775
        %v6840 = vsel %vm6808, %v6488, %v6776
        %v6841 = vsel %vm6809, %v6489, %v6777
        %v6842 = vsel %vm6810, %v6490, %v6778
        %v6843 = vsel %vm6811, %v6491, %v6779
        %v6844 = vsel %vm6812, %v6492, %v6780
        %v6845 = vsel %vm6813, %v6493, %v6781
        %v6846 = vsel %vm6814, %v6494, %v6782
        %v6847 = vsel %vm6815, %v6495, %v6783
        %v6848 = vsel %vm6816, %v6496, %v6784
        %v6849 = vsel %vm6817, %v6497, %v6785
        %v6850 = vsel %vm6818, %v6498, %v6786
        %v6851 = vsel %vm6819, %v6499, %v6787
        %v6852 = vsel %vm6820, %v6500, %v6788
        %v6853 = vsel %vm6821, %v6501, %v6789
        %v6854 = vsel %vm6822, %v6502, %v6790
        %v6885 = vrot.slane %v6823, 7
        %v6886 = vrot.slane %v6824, 7
        %v6887 = vsel %vm1116, %v6885, %v6886
        %v6888 = vrot.slane %v6825, 7
        %v6889 = vrot.slane %v6826, 7
        %v6890 = vsel %vm1116, %v6888, %v6889
        %v6891 = vrot.slane %v6827, 7
        %v6892 = vrot.slane %v6828, 7
        %v6893 = vsel %vm1116, %v6891, %v6892
        %v6894 = vrot.slane %v6829, 7
        %v6895 = vrot.slane %v6830, 7
        %v6896 = vsel %vm1116, %v6894, %v6895
        %v6897 = vrot.slane %v6831, 7
        %v6898 = vrot.slane %v6832, 7
        %v6899 = vsel %vm1116, %v6897, %v6898
        %v6900 = vrot.slane %v6833, 7
        %v6901 = vrot.slane %v6834, 7
        %v6902 = vsel %vm1116, %v6900, %v6901
        %v6903 = vrot.slane %v6835, 7
        %v6904 = vrot.slane %v6836, 7
        %v6905 = vsel %vm1116, %v6903, %v6904
        %v6906 = vrot.slane %v6837, 7
        %v6907 = vrot.slane %v6838, 7
        %v6908 = vsel %vm1116, %v6906, %v6907
        %v6909 = vrot.slane %v6839, 7
        %v6910 = vrot.slane %v6840, 7
        %v6911 = vsel %vm1116, %v6909, %v6910
        %v6912 = vrot.slane %v6841, 7
        %v6913 = vrot.slane %v6842, 7
        %v6914 = vsel %vm1116, %v6912, %v6913
        %v6915 = vrot.slane %v6843, 7
        %v6916 = vrot.slane %v6844, 7
        %v6917 = vsel %vm1116, %v6915, %v6916
        %v6918 = vrot.slane %v6845, 7
        %v6919 = vrot.slane %v6846, 7
        %v6920 = vsel %vm1116, %v6918, %v6919
        %v6921 = vrot.slane %v6847, 7
        %v6922 = vrot.slane %v6848, 7
        %v6923 = vsel %vm1116, %v6921, %v6922
        %v6924 = vrot.slane %v6849, 7
        %v6925 = vrot.slane %v6850, 7
        %v6926 = vsel %vm1116, %v6924, %v6925
        %v6927 = vrot.slane %v6851, 7
        %v6928 = vrot.slane %v6852, 7
        %v6929 = vsel %vm1116, %v6927, %v6928
        %v6960 = vsel %vm1116, 0.0, %v6885
        %v6961 = vsel %vm1116, 0.0, %v6888
        %v6962 = vsel %vm1116, 0.0, %v6891
        %v6963 = vsel %vm1116, 0.0, %v6894
        %v6964 = vsel %vm1116, 0.0, %v6897
        %v6965 = vsel %vm1116, 0.0, %v6900
        %v6966 = vsel %vm1116, 0.0, %v6903
        %v6967 = vsel %vm1116, 0.0, %v6906
        %v6968 = vsel %vm1116, 0.0, %v6909
        %v6969 = vsel %vm1116, 0.0, %v6912
        %v6970 = vsel %vm1116, 0.0, %v6915
        %v6971 = vsel %vm1116, 0.0, %v6918
        %v6972 = vsel %vm1116, 0.0, %v6921
        %v6973 = vsel %vm1116, 0.0, %v6924
        %v6974 = vsel %vm1116, 0.0, %v6927
        %v6975 = vpack.c.bf16 %v6887, %v6960
        %v6976 = vpack.c.bf16 %v6890, %v6961
        %v6977 = vpack.c.bf16 %v6893, %v6962
        %v6978 = vpack.c.bf16 %v6896, %v6963
        %v6979 = vpack.c.bf16 %v6899, %v6964
        %v6980 = vpack.c.bf16 %v6902, %v6965
        %v6981 = vpack.c.bf16 %v6905, %v6966
        %v6982 = vpack.c.bf16 %v6908, %v6967
        %v6983 = vpack.c.bf16 %v6911, %v6968
        %v6984 = vpack.c.bf16 %v6914, %v6969
        %v6985 = vpack.c.bf16 %v6917, %v6970
        %v6986 = vpack.c.bf16 %v6920, %v6971
        %v6987 = vpack.c.bf16 %v6923, %v6972
        %v6988 = vpack.c.bf16 %v6926, %v6973
        %v6989 = vpack.c.bf16 %v6929, %v6974
        %v6990 = vld [vmem:[#allocation5] sm:$0xf]
        %v6991 = vld [vmem:[#allocation5 + $0x4] sm:$0xf]
        %v6992 = vld [vmem:[#allocation5 + $0x8] sm:$0xf]
        %v6993 = vld [vmem:[#allocation5 + $0xc] sm:$0xf]
        %v6994 = vpack.c.bf16 %v6824, %v6823
        %v6995 = vpack.c.bf16 %v6826, %v6825
        %v6996 = vpack.c.bf16 %v6828, %v6827
        %v6997 = vpack.c.bf16 %v6830, %v6829
        %v6998 = vpack.c.bf16 %v6832, %v6831
        %v6999 = vpack.c.bf16 %v6834, %v6833
        %v7000 = vpack.c.bf16 %v6836, %v6835
        %v7001 = vpack.c.bf16 %v6838, %v6837
        %v7002 = vpack.c.bf16 %v6840, %v6839
        %v7003 = vpack.c.bf16 %v6842, %v6841
        %v7004 = vpack.c.bf16 %v6844, %v6843
        %v7005 = vpack.c.bf16 %v6846, %v6845
        %v7006 = vpack.c.bf16 %v6848, %v6847
        %v7007 = vpack.c.bf16 %v6850, %v6849
        %v7008 = vpack.c.bf16 %v6852, %v6851
        %s7009 = scalar_lea.vmem [#allocation5], 16
        %v7010 = vld [vmem:[%s7009] sm:$0xf]
        %v7011 = vld [vmem:[%s7009 + $0x4] sm:$0xf]
        %v7012 = vld [vmem:[%s7009 + $0x8] sm:$0xf]
        %v7013 = vld [vmem:[%s7009 + $0xc] sm:$0xf]
        %v7018 = vunpack.c.l.b16 %v7010
        %v7019 = vunpack.c.l.b16 %v7011
        %v7020 = vunpack.c.l.b16 %v7012
        %v7021 = vunpack.c.l.b16 %v7013
        %v7022 = vpack.c.b16 %v7019, %v7018
        %v7023 = vpack.c.b16 %v7021, %v7020
        %v7027 = vsel %vm1265, %v6994, 0
        %v7030 = vsel %vm1265, %v6995, 0
        %v7033 = vsel %vm1265, %v6996, 0
        %v7036 = vsel %vm1265, %v6997, 0
        %v7039 = vsel %vm1265, %v6998, 0
        %v7042 = vsel %vm1265, %v6999, 0
        %v7045 = vsel %vm1265, %v7000, 0
        %v7048 = vsel %vm1265, %v7001, 0
        %v7051 = vsel %vm1265, %v7002, 0
        %v7054 = vsel %vm1265, %v7003, 0
        %v7057 = vsel %vm1265, %v7004, 0
        %v7060 = vsel %vm1265, %v7005, 0
        %v7063 = vsel %vm1265, %v7006, 0
        %v7066 = vsel %vm1265, %v7007, 0
        %v7069 = vsel %vm1265, %v7008, 0
        %7071 = vmatpush.bf16.msra.mxu0 0
        %7072 = vmatpush.bf16.msra.mxu0 0
        %7073 = vmatpush.bf16.msra.mxu0 0
        %7074 = vmatpush.bf16.msra.mxu0 0
        %7075 = vmatpush.bf16.msra.mxu0 0
        %7076 = vmatpush.bf16.msra.mxu0 0
        %7077 = vmatpush.bf16.msra.mxu0 %v7023
        %7078 = vmatpush.bf16.msra.mxu0 %v7022
        %7079 = vmatmul.bf16.gmra.mxu0 %v1267
        %v7080 = vpop.f32.mrf.mxu0
        %v7081 = vadd.f32 0.0, %v7080
        %v7082 = vpop.f32.mrf.mxu0
        %v7083 = vadd.f32 0.0, %v7082
        %7084 = vmatmul.bf16.gmra.mxu0 %v7027
        %v7085 = vpop.f32.mrf.mxu0
        %v7086 = vadd.f32 0.0, %v7085
        %v7087 = vpop.f32.mrf.mxu0
        %v7088 = vadd.f32 0.0, %v7087
        %7089 = vmatmul.bf16.gmra.mxu0 %v7030
        %v7090 = vpop.f32.mrf.mxu0
        %v7091 = vadd.f32 0.0, %v7090
        %v7092 = vpop.f32.mrf.mxu0
        %v7093 = vadd.f32 0.0, %v7092
        %7094 = vmatmul.bf16.gmra.mxu0 %v7033
        %v7095 = vpop.f32.mrf.mxu0
        %v7096 = vadd.f32 0.0, %v7095
        %v7097 = vpop.f32.mrf.mxu0
        %v7098 = vadd.f32 0.0, %v7097
        %7099 = vmatmul.bf16.gmra.mxu0 %v7036
        %v7100 = vpop.f32.mrf.mxu0
        %v7101 = vadd.f32 0.0, %v7100
        %v7102 = vpop.f32.mrf.mxu0
        %v7103 = vadd.f32 0.0, %v7102
        %7104 = vmatmul.bf16.gmra.mxu0 %v7039
        %v7105 = vpop.f32.mrf.mxu0
        %v7106 = vadd.f32 0.0, %v7105
        %v7107 = vpop.f32.mrf.mxu0
        %v7108 = vadd.f32 0.0, %v7107
        %7109 = vmatmul.bf16.gmra.mxu0 %v7042
        %v7110 = vpop.f32.mrf.mxu0
        %v7111 = vadd.f32 0.0, %v7110
        %v7112 = vpop.f32.mrf.mxu0
        %v7113 = vadd.f32 0.0, %v7112
        %7114 = vmatmul.bf16.gmra.mxu0 %v7045
        %v7115 = vpop.f32.mrf.mxu0
        %v7116 = vadd.f32 0.0, %v7115
        %v7117 = vpop.f32.mrf.mxu0
        %v7118 = vadd.f32 0.0, %v7117
        %7119 = vmatmul.bf16.gmra.mxu0 %v7048
        %v7120 = vpop.f32.mrf.mxu0
        %v7121 = vadd.f32 0.0, %v7120
        %v7122 = vpop.f32.mrf.mxu0
        %v7123 = vadd.f32 0.0, %v7122
        %7124 = vmatmul.bf16.gmra.mxu0 %v7051
        %v7125 = vpop.f32.mrf.mxu0
        %v7126 = vadd.f32 0.0, %v7125
        %v7127 = vpop.f32.mrf.mxu0
        %v7128 = vadd.f32 0.0, %v7127
        %7129 = vmatmul.bf16.gmra.mxu0 %v7054
        %v7130 = vpop.f32.mrf.mxu0
        %v7131 = vadd.f32 0.0, %v7130
        %v7132 = vpop.f32.mrf.mxu0
        %v7133 = vadd.f32 0.0, %v7132
        %7134 = vmatmul.bf16.gmra.mxu0 %v7057
        %v7135 = vpop.f32.mrf.mxu0
        %v7136 = vadd.f32 0.0, %v7135
        %v7137 = vpop.f32.mrf.mxu0
        %v7138 = vadd.f32 0.0, %v7137
        %7139 = vmatmul.bf16.gmra.mxu0 %v7060
        %v7140 = vpop.f32.mrf.mxu0
        %v7141 = vadd.f32 0.0, %v7140
        %v7142 = vpop.f32.mrf.mxu0
        %v7143 = vadd.f32 0.0, %v7142
        %7144 = vmatmul.bf16.gmra.mxu0 %v7063
        %v7145 = vpop.f32.mrf.mxu0
        %v7146 = vadd.f32 0.0, %v7145
        %v7147 = vpop.f32.mrf.mxu0
        %v7148 = vadd.f32 0.0, %v7147
        %7149 = vmatmul.bf16.gmra.mxu0 %v7066
        %v7150 = vpop.f32.mrf.mxu0
        %v7151 = vadd.f32 0.0, %v7150
        %v7152 = vpop.f32.mrf.mxu0
        %v7153 = vadd.f32 0.0, %v7152
        %7154 = vmatmul.bf16.gmra.mxu0 %v7069
        %v7155 = vpop.f32.mrf.mxu0
        %v7156 = vadd.f32 0.0, %v7155
        %v7157 = vpop.f32.mrf.mxu0
        %v7158 = vadd.f32 0.0, %v7157
        %7159 = vdwg.mxu0
        %v7164 = vunpack.c.l.b16 %v6990
        %v7165 = vunpack.c.l.b16 %v6991
        %v7166 = vunpack.c.l.b16 %v6992
        %v7167 = vunpack.c.l.b16 %v6993
        %v7168 = vpack.c.b16 %v7165, %v7164
        %v7169 = vpack.c.b16 %v7167, %v7166
        %v7173 = vsel %vm1265, %v6975, 0
        %v7176 = vsel %vm1265, %v6976, 0
        %v7179 = vsel %vm1265, %v6977, 0
        %v7182 = vsel %vm1265, %v6978, 0
        %v7185 = vsel %vm1265, %v6979, 0
        %v7188 = vsel %vm1265, %v6980, 0
        %v7191 = vsel %vm1265, %v6981, 0
        %v7194 = vsel %vm1265, %v6982, 0
        %v7197 = vsel %vm1265, %v6983, 0
        %v7200 = vsel %vm1265, %v6984, 0
        %v7203 = vsel %vm1265, %v6985, 0
        %v7206 = vsel %vm1265, %v6986, 0
        %v7209 = vsel %vm1265, %v6987, 0
        %v7212 = vsel %vm1265, %v6988, 0
        %v7215 = vsel %vm1265, %v6989, 0
        %7217 = vmatpush.bf16.msra.mxu0 0
        %7218 = vmatpush.bf16.msra.mxu0 0
        %7219 = vmatpush.bf16.msra.mxu0 0
        %7220 = vmatpush.bf16.msra.mxu0 0
        %7221 = vmatpush.bf16.msra.mxu0 0
        %7222 = vmatpush.bf16.msra.mxu0 0
        %7223 = vmatpush.bf16.msra.mxu0 %v7169
        %7224 = vmatpush.bf16.msra.mxu0 %v7168
        %7225 = vmatmul.bf16.gmra.mxu0 %v1416
        %v7226 = vpop.f32.mrf.mxu0
        %v7227 = vadd.f32 %v7081, %v7226
        %v7228 = vpop.f32.mrf.mxu0
        %v7229 = vadd.f32 %v7083, %v7228
        %7230 = vmatmul.bf16.gmra.mxu0 %v7173
        %v7231 = vpop.f32.mrf.mxu0
        %v7232 = vadd.f32 %v7086, %v7231
        %v7233 = vpop.f32.mrf.mxu0
        %v7234 = vadd.f32 %v7088, %v7233
        %7235 = vmatmul.bf16.gmra.mxu0 %v7176
        %v7236 = vpop.f32.mrf.mxu0
        %v7237 = vadd.f32 %v7091, %v7236
        %v7238 = vpop.f32.mrf.mxu0
        %v7239 = vadd.f32 %v7093, %v7238
        %7240 = vmatmul.bf16.gmra.mxu0 %v7179
        %v7241 = vpop.f32.mrf.mxu0
        %v7242 = vadd.f32 %v7096, %v7241
        %v7243 = vpop.f32.mrf.mxu0
        %v7244 = vadd.f32 %v7098, %v7243
        %7245 = vmatmul.bf16.gmra.mxu0 %v7182
        %v7246 = vpop.f32.mrf.mxu0
        %v7247 = vadd.f32 %v7101, %v7246
        %v7248 = vpop.f32.mrf.mxu0
        %v7249 = vadd.f32 %v7103, %v7248
        %7250 = vmatmul.bf16.gmra.mxu0 %v7185
        %v7251 = vpop.f32.mrf.mxu0
        %v7252 = vadd.f32 %v7106, %v7251
        %v7253 = vpop.f32.mrf.mxu0
        %v7254 = vadd.f32 %v7108, %v7253
        %7255 = vmatmul.bf16.gmra.mxu0 %v7188
        %v7256 = vpop.f32.mrf.mxu0
        %v7257 = vadd.f32 %v7111, %v7256
        %v7258 = vpop.f32.mrf.mxu0
        %v7259 = vadd.f32 %v7113, %v7258
        %7260 = vmatmul.bf16.gmra.mxu0 %v7191
        %v7261 = vpop.f32.mrf.mxu0
        %v7262 = vadd.f32 %v7116, %v7261
        %v7263 = vpop.f32.mrf.mxu0
        %v7264 = vadd.f32 %v7118, %v7263
        %7265 = vmatmul.bf16.gmra.mxu0 %v7194
        %v7266 = vpop.f32.mrf.mxu0
        %v7267 = vadd.f32 %v7121, %v7266
        %v7268 = vpop.f32.mrf.mxu0
        %v7269 = vadd.f32 %v7123, %v7268
        %7270 = vmatmul.bf16.gmra.mxu0 %v7197
        %v7271 = vpop.f32.mrf.mxu0
        %v7272 = vadd.f32 %v7126, %v7271
        %v7273 = vpop.f32.mrf.mxu0
        %v7274 = vadd.f32 %v7128, %v7273
        %7275 = vmatmul.bf16.gmra.mxu0 %v7200
        %v7276 = vpop.f32.mrf.mxu0
        %v7277 = vadd.f32 %v7131, %v7276
        %v7278 = vpop.f32.mrf.mxu0
        %v7279 = vadd.f32 %v7133, %v7278
        %7280 = vmatmul.bf16.gmra.mxu0 %v7203
        %v7281 = vpop.f32.mrf.mxu0
        %v7282 = vadd.f32 %v7136, %v7281
        %v7283 = vpop.f32.mrf.mxu0
        %v7284 = vadd.f32 %v7138, %v7283
        %7285 = vmatmul.bf16.gmra.mxu0 %v7206
        %v7286 = vpop.f32.mrf.mxu0
        %v7287 = vadd.f32 %v7141, %v7286
        %v7288 = vpop.f32.mrf.mxu0
        %v7289 = vadd.f32 %v7143, %v7288
        %7290 = vmatmul.bf16.gmra.mxu0 %v7209
        %v7291 = vpop.f32.mrf.mxu0
        %v7292 = vadd.f32 %v7146, %v7291
        %v7293 = vpop.f32.mrf.mxu0
        %v7294 = vadd.f32 %v7148, %v7293
        %7295 = vmatmul.bf16.gmra.mxu0 %v7212
        %v7296 = vpop.f32.mrf.mxu0
        %v7297 = vadd.f32 %v7151, %v7296
        %v7298 = vpop.f32.mrf.mxu0
        %v7299 = vadd.f32 %v7153, %v7298
        %7300 = vmatmul.bf16.gmra.mxu0 %v7215
        %v7301 = vpop.f32.mrf.mxu0
        %v7302 = vadd.f32 %v7156, %v7301
        %v7303 = vpop.f32.mrf.mxu0
        %v7304 = vadd.f32 %v7158, %v7303
        %7305 = vdwg.mxu0
        %v7306 = vrot.slane %v6823, 1
        %v7307 = vrot.slane %v6824, 1
        %v7308 = vsel %vm1552, %v7306, %v7307
        %v7309 = vrot.slane %v6825, 1
        %v7310 = vrot.slane %v6826, 1
        %v7311 = vsel %vm1552, %v7309, %v7310
        %v7312 = vrot.slane %v6827, 1
        %v7313 = vrot.slane %v6828, 1
        %v7314 = vsel %vm1552, %v7312, %v7313
        %v7315 = vrot.slane %v6829, 1
        %v7316 = vrot.slane %v6830, 1
        %v7317 = vsel %vm1552, %v7315, %v7316
        %v7318 = vrot.slane %v6831, 1
        %v7319 = vrot.slane %v6832, 1
        %v7320 = vsel %vm1552, %v7318, %v7319
        %v7321 = vrot.slane %v6833, 1
        %v7322 = vrot.slane %v6834, 1
        %v7323 = vsel %vm1552, %v7321, %v7322
        %v7324 = vrot.slane %v6835, 1
        %v7325 = vrot.slane %v6836, 1
        %v7326 = vsel %vm1552, %v7324, %v7325
        %v7327 = vrot.slane %v6837, 1
        %v7328 = vrot.slane %v6838, 1
        %v7329 = vsel %vm1552, %v7327, %v7328
        %v7330 = vrot.slane %v6839, 1
        %v7331 = vrot.slane %v6840, 1
        %v7332 = vsel %vm1552, %v7330, %v7331
        %v7333 = vrot.slane %v6841, 1
        %v7334 = vrot.slane %v6842, 1
        %v7335 = vsel %vm1552, %v7333, %v7334
        %v7336 = vrot.slane %v6843, 1
        %v7337 = vrot.slane %v6844, 1
        %v7338 = vsel %vm1552, %v7336, %v7337
        %v7339 = vrot.slane %v6845, 1
        %v7340 = vrot.slane %v6846, 1
        %v7341 = vsel %vm1552, %v7339, %v7340
        %v7342 = vrot.slane %v6847, 1
        %v7343 = vrot.slane %v6848, 1
        %v7344 = vsel %vm1552, %v7342, %v7343
        %v7345 = vrot.slane %v6849, 1
        %v7346 = vrot.slane %v6850, 1
        %v7347 = vsel %vm1552, %v7345, %v7346
        %v7348 = vrot.slane %v6851, 1
        %v7349 = vrot.slane %v6852, 1
        %v7350 = vsel %vm1552, %v7348, %v7349
        %v7381 = vsel %vm1552, %v7307, 0.0
        %v7382 = vsel %vm1552, %v7310, 0.0
        %v7383 = vsel %vm1552, %v7313, 0.0
        %v7384 = vsel %vm1552, %v7316, 0.0
        %v7385 = vsel %vm1552, %v7319, 0.0
        %v7386 = vsel %vm1552, %v7322, 0.0
        %v7387 = vsel %vm1552, %v7325, 0.0
        %v7388 = vsel %vm1552, %v7328, 0.0
        %v7389 = vsel %vm1552, %v7331, 0.0
        %v7390 = vsel %vm1552, %v7334, 0.0
        %v7391 = vsel %vm1552, %v7337, 0.0
        %v7392 = vsel %vm1552, %v7340, 0.0
        %v7393 = vsel %vm1552, %v7343, 0.0
        %v7394 = vsel %vm1552, %v7346, 0.0
        %v7395 = vsel %vm1552, %v7349, 0.0
        %v7396 = vpack.c.bf16 %v7381, %v7308
        %v7397 = vpack.c.bf16 %v7382, %v7311
        %v7398 = vpack.c.bf16 %v7383, %v7314
        %v7399 = vpack.c.bf16 %v7384, %v7317
        %v7400 = vpack.c.bf16 %v7385, %v7320
        %v7401 = vpack.c.bf16 %v7386, %v7323
        %v7402 = vpack.c.bf16 %v7387, %v7326
        %v7403 = vpack.c.bf16 %v7388, %v7329
        %v7404 = vpack.c.bf16 %v7389, %v7332
        %v7405 = vpack.c.bf16 %v7390, %v7335
        %v7406 = vpack.c.bf16 %v7391, %v7338
        %v7407 = vpack.c.bf16 %v7392, %v7341
        %v7408 = vpack.c.bf16 %v7393, %v7344
        %v7409 = vpack.c.bf16 %v7394, %v7347
        %v7410 = vpack.c.bf16 %v7395, %v7350
        %s7411 = scalar_lea.vmem [#allocation5], 32
        %v7412 = vld [vmem:[%s7411] sm:$0xf]
        %v7413 = vld [vmem:[%s7411 + $0x4] sm:$0xf]
        %v7414 = vld [vmem:[%s7411 + $0x8] sm:$0xf]
        %v7415 = vld [vmem:[%s7411 + $0xc] sm:$0xf]
        %v7420 = vunpack.c.l.b16 %v7412
        %v7421 = vunpack.c.l.b16 %v7413
        %v7422 = vunpack.c.l.b16 %v7414
        %v7423 = vunpack.c.l.b16 %v7415
        %v7424 = vpack.c.b16 %v7421, %v7420
        %v7425 = vpack.c.b16 %v7423, %v7422
        %v7429 = vsel %vm1265, %v7396, 0
        %v7432 = vsel %vm1265, %v7397, 0
        %v7435 = vsel %vm1265, %v7398, 0
        %v7438 = vsel %vm1265, %v7399, 0
        %v7441 = vsel %vm1265, %v7400, 0
        %v7444 = vsel %vm1265, %v7401, 0
        %v7447 = vsel %vm1265, %v7402, 0
        %v7450 = vsel %vm1265, %v7403, 0
        %v7453 = vsel %vm1265, %v7404, 0
        %v7456 = vsel %vm1265, %v7405, 0
        %v7459 = vsel %vm1265, %v7406, 0
        %v7462 = vsel %vm1265, %v7407, 0
        %v7465 = vsel %vm1265, %v7408, 0
        %v7468 = vsel %vm1265, %v7409, 0
        %v7471 = vsel %vm1265, %v7410, 0
        %7473 = vmatpush.bf16.msra.mxu0 0
        %7474 = vmatpush.bf16.msra.mxu0 0
        %7475 = vmatpush.bf16.msra.mxu0 0
        %7476 = vmatpush.bf16.msra.mxu0 0
        %7477 = vmatpush.bf16.msra.mxu0 0
        %7478 = vmatpush.bf16.msra.mxu0 0
        %7479 = vmatpush.bf16.msra.mxu0 %v7425
        %7480 = vmatpush.bf16.msra.mxu0 %v7424
        %7481 = vmatmul.bf16.gmra.mxu0 %v1682
        %v7482 = vpop.f32.mrf.mxu0
        %v7483 = vadd.f32 0.0, %v7482
        %v7484 = vpop.f32.mrf.mxu0
        %v7485 = vadd.f32 0.0, %v7484
        %7486 = vmatmul.bf16.gmra.mxu0 %v7429
        %v7487 = vpop.f32.mrf.mxu0
        %v7488 = vadd.f32 0.0, %v7487
        %v7489 = vpop.f32.mrf.mxu0
        %v7490 = vadd.f32 0.0, %v7489
        %7491 = vmatmul.bf16.gmra.mxu0 %v7432
        %v7492 = vpop.f32.mrf.mxu0
        %v7493 = vadd.f32 0.0, %v7492
        %v7494 = vpop.f32.mrf.mxu0
        %v7495 = vadd.f32 0.0, %v7494
        %7496 = vmatmul.bf16.gmra.mxu0 %v7435
        %v7497 = vpop.f32.mrf.mxu0
        %v7498 = vadd.f32 0.0, %v7497
        %v7499 = vpop.f32.mrf.mxu0
        %v7500 = vadd.f32 0.0, %v7499
        %7501 = vmatmul.bf16.gmra.mxu0 %v7438
        %v7502 = vpop.f32.mrf.mxu0
        %v7503 = vadd.f32 0.0, %v7502
        %v7504 = vpop.f32.mrf.mxu0
        %v7505 = vadd.f32 0.0, %v7504
        %7506 = vmatmul.bf16.gmra.mxu0 %v7441
        %v7507 = vpop.f32.mrf.mxu0
        %v7508 = vadd.f32 0.0, %v7507
        %v7509 = vpop.f32.mrf.mxu0
        %v7510 = vadd.f32 0.0, %v7509
        %7511 = vmatmul.bf16.gmra.mxu0 %v7444
        %v7512 = vpop.f32.mrf.mxu0
        %v7513 = vadd.f32 0.0, %v7512
        %v7514 = vpop.f32.mrf.mxu0
        %v7515 = vadd.f32 0.0, %v7514
        %7516 = vmatmul.bf16.gmra.mxu0 %v7447
        %v7517 = vpop.f32.mrf.mxu0
        %v7518 = vadd.f32 0.0, %v7517
        %v7519 = vpop.f32.mrf.mxu0
        %v7520 = vadd.f32 0.0, %v7519
        %7521 = vmatmul.bf16.gmra.mxu0 %v7450
        %v7522 = vpop.f32.mrf.mxu0
        %v7523 = vadd.f32 0.0, %v7522
        %v7524 = vpop.f32.mrf.mxu0
        %v7525 = vadd.f32 0.0, %v7524
        %7526 = vmatmul.bf16.gmra.mxu0 %v7453
        %v7527 = vpop.f32.mrf.mxu0
        %v7528 = vadd.f32 0.0, %v7527
        %v7529 = vpop.f32.mrf.mxu0
        %v7530 = vadd.f32 0.0, %v7529
        %7531 = vmatmul.bf16.gmra.mxu0 %v7456
        %v7532 = vpop.f32.mrf.mxu0
        %v7533 = vadd.f32 0.0, %v7532
        %v7534 = vpop.f32.mrf.mxu0
        %v7535 = vadd.f32 0.0, %v7534
        %7536 = vmatmul.bf16.gmra.mxu0 %v7459
        %v7537 = vpop.f32.mrf.mxu0
        %v7538 = vadd.f32 0.0, %v7537
        %v7539 = vpop.f32.mrf.mxu0
        %v7540 = vadd.f32 0.0, %v7539
        %7541 = vmatmul.bf16.gmra.mxu0 %v7462
        %v7542 = vpop.f32.mrf.mxu0
        %v7543 = vadd.f32 0.0, %v7542
        %v7544 = vpop.f32.mrf.mxu0
        %v7545 = vadd.f32 0.0, %v7544
        %7546 = vmatmul.bf16.gmra.mxu0 %v7465
        %v7547 = vpop.f32.mrf.mxu0
        %v7548 = vadd.f32 0.0, %v7547
        %v7549 = vpop.f32.mrf.mxu0
        %v7550 = vadd.f32 0.0, %v7549
        %7551 = vmatmul.bf16.gmra.mxu0 %v7468
        %v7552 = vpop.f32.mrf.mxu0
        %v7553 = vadd.f32 0.0, %v7552
        %v7554 = vpop.f32.mrf.mxu0
        %v7555 = vadd.f32 0.0, %v7554
        %7556 = vmatmul.bf16.gmra.mxu0 %v7471
        %v7557 = vpop.f32.mrf.mxu0
        %v7558 = vadd.f32 0.0, %v7557
        %v7559 = vpop.f32.mrf.mxu0
        %v7560 = vadd.f32 0.0, %v7559
        %7561 = vdwg.mxu0
        %v7562 = vadd.f32 %v7227, %v7483
        %v7563 = vadd.f32 %v7229, %v7485
        %v7564 = vadd.f32 %v7232, %v7488
        %v7565 = vadd.f32 %v7234, %v7490
        %v7566 = vadd.f32 %v7237, %v7493
        %v7567 = vadd.f32 %v7239, %v7495
        %v7568 = vadd.f32 %v7242, %v7498
        %v7569 = vadd.f32 %v7244, %v7500
        %v7570 = vadd.f32 %v7247, %v7503
        %v7571 = vadd.f32 %v7249, %v7505
        %v7572 = vadd.f32 %v7252, %v7508
        %v7573 = vadd.f32 %v7254, %v7510
        %v7574 = vadd.f32 %v7257, %v7513
        %v7575 = vadd.f32 %v7259, %v7515
        %v7576 = vadd.f32 %v7262, %v7518
        %v7577 = vadd.f32 %v7264, %v7520
        %v7578 = vadd.f32 %v7267, %v7523
        %v7579 = vadd.f32 %v7269, %v7525
        %v7580 = vadd.f32 %v7272, %v7528
        %v7581 = vadd.f32 %v7274, %v7530
        %v7582 = vadd.f32 %v7277, %v7533
        %v7583 = vadd.f32 %v7279, %v7535
        %v7584 = vadd.f32 %v7282, %v7538
        %v7585 = vadd.f32 %v7284, %v7540
        %v7586 = vadd.f32 %v7287, %v7543
        %v7587 = vadd.f32 %v7289, %v7545
        %v7588 = vadd.f32 %v7292, %v7548
        %v7589 = vadd.f32 %v7294, %v7550
        %v7590 = vadd.f32 %v7297, %v7553
        %v7591 = vadd.f32 %v7299, %v7555
        %v7592 = vadd.f32 %v7302, %v7558
        %v7593 = vadd.f32 %v7304, %v7560
        %v7596 = vrot.slane %v6853, 7
        %v7597 = vrot.slane %v6854, 7
        %v7598 = vsel %vm1116, %v7596, %v7597
        %v7601 = vsel %vm1116, 0.0, %v7596
        %v7602 = vpack.c.bf16 %v7598, %v7601
        %s7603 = scalar_lea.vmem [#allocation5], 48
        %v7604 = vld [vmem:[%s7603] sm:$0xf]
        %v7605 = vld [vmem:[%s7603 + $0x4] sm:$0xf]
        %v7606 = vld [vmem:[%s7603 + $0x8] sm:$0xf]
        %v7607 = vld [vmem:[%s7603 + $0xc] sm:$0xf]
        %v7612 = vunpack.c.l.b16 %v7604
        %v7613 = vunpack.c.l.b16 %v7605
        %v7614 = vunpack.c.l.b16 %v7606
        %v7615 = vunpack.c.l.b16 %v7607
        %v7616 = vpack.c.b16 %v7613, %v7612
        %v7617 = vpack.c.b16 %v7615, %v7614
        %v7621 = vsel %vm1265, %v7602, 0
        %7623 = vmatpush.bf16.msra.mxu0 0
        %7624 = vmatpush.bf16.msra.mxu0 0
        %7625 = vmatpush.bf16.msra.mxu0 0
        %7626 = vmatpush.bf16.msra.mxu0 0
        %7627 = vmatpush.bf16.msra.mxu0 0
        %7628 = vmatpush.bf16.msra.mxu0 0
        %7629 = vmatpush.bf16.msra.mxu0 %v7617
        %7630 = vmatpush.bf16.msra.mxu0 %v7616
        %7631 = vmatmul.bf16.gmra.mxu0 %v7173
        %v7632 = vpop.f32.mrf.mxu0
        %v7633 = vadd.f32 0.0, %v7632
        %v7634 = vpop.f32.mrf.mxu0
        %v7635 = vadd.f32 0.0, %v7634
        %7636 = vmatmul.bf16.gmra.mxu0 %v7176
        %v7637 = vpop.f32.mrf.mxu0
        %v7638 = vadd.f32 0.0, %v7637
        %v7639 = vpop.f32.mrf.mxu0
        %v7640 = vadd.f32 0.0, %v7639
        %7641 = vmatmul.bf16.gmra.mxu0 %v7179
        %v7642 = vpop.f32.mrf.mxu0
        %v7643 = vadd.f32 0.0, %v7642
        %v7644 = vpop.f32.mrf.mxu0
        %v7645 = vadd.f32 0.0, %v7644
        %7646 = vmatmul.bf16.gmra.mxu0 %v7182
        %v7647 = vpop.f32.mrf.mxu0
        %v7648 = vadd.f32 0.0, %v7647
        %v7649 = vpop.f32.mrf.mxu0
        %v7650 = vadd.f32 0.0, %v7649
        %7651 = vmatmul.bf16.gmra.mxu0 %v7185
        %v7652 = vpop.f32.mrf.mxu0
        %v7653 = vadd.f32 0.0, %v7652
        %v7654 = vpop.f32.mrf.mxu0
        %v7655 = vadd.f32 0.0, %v7654
        %7656 = vmatmul.bf16.gmra.mxu0 %v7188
        %v7657 = vpop.f32.mrf.mxu0
        %v7658 = vadd.f32 0.0, %v7657
        %v7659 = vpop.f32.mrf.mxu0
        %v7660 = vadd.f32 0.0, %v7659
        %7661 = vmatmul.bf16.gmra.mxu0 %v7191
        %v7662 = vpop.f32.mrf.mxu0
        %v7663 = vadd.f32 0.0, %v7662
        %v7664 = vpop.f32.mrf.mxu0
        %v7665 = vadd.f32 0.0, %v7664
        %7666 = vmatmul.bf16.gmra.mxu0 %v7194
        %v7667 = vpop.f32.mrf.mxu0
        %v7668 = vadd.f32 0.0, %v7667
        %v7669 = vpop.f32.mrf.mxu0
        %v7670 = vadd.f32 0.0, %v7669
        %7671 = vmatmul.bf16.gmra.mxu0 %v7197
        %v7672 = vpop.f32.mrf.mxu0
        %v7673 = vadd.f32 0.0, %v7672
        %v7674 = vpop.f32.mrf.mxu0
        %v7675 = vadd.f32 0.0, %v7674
        %7676 = vmatmul.bf16.gmra.mxu0 %v7200
        %v7677 = vpop.f32.mrf.mxu0
        %v7678 = vadd.f32 0.0, %v7677
        %v7679 = vpop.f32.mrf.mxu0
        %v7680 = vadd.f32 0.0, %v7679
        %7681 = vmatmul.bf16.gmra.mxu0 %v7203
        %v7682 = vpop.f32.mrf.mxu0
        %v7683 = vadd.f32 0.0, %v7682
        %v7684 = vpop.f32.mrf.mxu0
        %v7685 = vadd.f32 0.0, %v7684
        %7686 = vmatmul.bf16.gmra.mxu0 %v7206
        %v7687 = vpop.f32.mrf.mxu0
        %v7688 = vadd.f32 0.0, %v7687
        %v7689 = vpop.f32.mrf.mxu0
        %v7690 = vadd.f32 0.0, %v7689
        %7691 = vmatmul.bf16.gmra.mxu0 %v7209
        %v7692 = vpop.f32.mrf.mxu0
        %v7693 = vadd.f32 0.0, %v7692
        %v7694 = vpop.f32.mrf.mxu0
        %v7695 = vadd.f32 0.0, %v7694
        %7696 = vmatmul.bf16.gmra.mxu0 %v7212
        %v7697 = vpop.f32.mrf.mxu0
        %v7698 = vadd.f32 0.0, %v7697
        %v7699 = vpop.f32.mrf.mxu0
        %v7700 = vadd.f32 0.0, %v7699
        %7701 = vmatmul.bf16.gmra.mxu0 %v7215
        %v7702 = vpop.f32.mrf.mxu0
        %v7703 = vadd.f32 0.0, %v7702
        %v7704 = vpop.f32.mrf.mxu0
        %v7705 = vadd.f32 0.0, %v7704
        %7706 = vmatmul.bf16.gmra.mxu0 %v7621
        %v7707 = vpop.f32.mrf.mxu0
        %v7708 = vadd.f32 0.0, %v7707
        %v7709 = vpop.f32.mrf.mxu0
        %v7710 = vadd.f32 0.0, %v7709
        %7711 = vdwg.mxu0
        %v7712 = vadd.f32 %v7562, %v7633
        %v7713 = vadd.f32 %v7563, %v7635
        %v7714 = vadd.f32 %v7564, %v7638
        %v7715 = vadd.f32 %v7565, %v7640
        %v7716 = vadd.f32 %v7566, %v7643
        %v7717 = vadd.f32 %v7567, %v7645
        %v7718 = vadd.f32 %v7568, %v7648
        %v7719 = vadd.f32 %v7569, %v7650
        %v7720 = vadd.f32 %v7570, %v7653
        %v7721 = vadd.f32 %v7571, %v7655
        %v7722 = vadd.f32 %v7572, %v7658
        %v7723 = vadd.f32 %v7573, %v7660
        %v7724 = vadd.f32 %v7574, %v7663
        %v7725 = vadd.f32 %v7575, %v7665
        %v7726 = vadd.f32 %v7576, %v7668
        %v7727 = vadd.f32 %v7577, %v7670
        %v7728 = vadd.f32 %v7578, %v7673
        %v7729 = vadd.f32 %v7579, %v7675
        %v7730 = vadd.f32 %v7580, %v7678
        %v7731 = vadd.f32 %v7581, %v7680
        %v7732 = vadd.f32 %v7582, %v7683
        %v7733 = vadd.f32 %v7583, %v7685
        %v7734 = vadd.f32 %v7584, %v7688
        %v7735 = vadd.f32 %v7585, %v7690
        %v7736 = vadd.f32 %v7586, %v7693
        %v7737 = vadd.f32 %v7587, %v7695
        %v7738 = vadd.f32 %v7588, %v7698
        %v7739 = vadd.f32 %v7589, %v7700
        %v7740 = vadd.f32 %v7590, %v7703
        %v7741 = vadd.f32 %v7591, %v7705
        %v7742 = vadd.f32 %v7592, %v7708
        %v7743 = vadd.f32 %v7593, %v7710
        %v7744 = vpack.c.bf16 %v6854, %v6853
        %s7745 = scalar_lea.vmem [#allocation5], 64
        %v7746 = vld [vmem:[%s7745] sm:$0xf]
        %v7747 = vld [vmem:[%s7745 + $0x4] sm:$0xf]
        %v7748 = vld [vmem:[%s7745 + $0x8] sm:$0xf]
        %v7749 = vld [vmem:[%s7745 + $0xc] sm:$0xf]
        %v7754 = vunpack.c.l.b16 %v7746
        %v7755 = vunpack.c.l.b16 %v7747
        %v7756 = vunpack.c.l.b16 %v7748
        %v7757 = vunpack.c.l.b16 %v7749
        %v7758 = vpack.c.b16 %v7755, %v7754
        %v7759 = vpack.c.b16 %v7757, %v7756
        %v7763 = vsel %vm1265, %v7744, 0
        %7765 = vmatpush.bf16.msra.mxu0 0
        %7766 = vmatpush.bf16.msra.mxu0 0
        %7767 = vmatpush.bf16.msra.mxu0 0
        %7768 = vmatpush.bf16.msra.mxu0 0
        %7769 = vmatpush.bf16.msra.mxu0 0
        %7770 = vmatpush.bf16.msra.mxu0 0
        %7771 = vmatpush.bf16.msra.mxu0 %v7759
        %7772 = vmatpush.bf16.msra.mxu0 %v7758
        %7773 = vmatmul.bf16.gmra.mxu0 %v7027
        %v7774 = vpop.f32.mrf.mxu0
        %v7775 = vadd.f32 0.0, %v7774
        %v7776 = vpop.f32.mrf.mxu0
        %v7777 = vadd.f32 0.0, %v7776
        %7778 = vmatmul.bf16.gmra.mxu0 %v7030
        %v7779 = vpop.f32.mrf.mxu0
        %v7780 = vadd.f32 0.0, %v7779
        %v7781 = vpop.f32.mrf.mxu0
        %v7782 = vadd.f32 0.0, %v7781
        %7783 = vmatmul.bf16.gmra.mxu0 %v7033
        %v7784 = vpop.f32.mrf.mxu0
        %v7785 = vadd.f32 0.0, %v7784
        %v7786 = vpop.f32.mrf.mxu0
        %v7787 = vadd.f32 0.0, %v7786
        %7788 = vmatmul.bf16.gmra.mxu0 %v7036
        %v7789 = vpop.f32.mrf.mxu0
        %v7790 = vadd.f32 0.0, %v7789
        %v7791 = vpop.f32.mrf.mxu0
        %v7792 = vadd.f32 0.0, %v7791
        %7793 = vmatmul.bf16.gmra.mxu0 %v7039
        %v7794 = vpop.f32.mrf.mxu0
        %v7795 = vadd.f32 0.0, %v7794
        %v7796 = vpop.f32.mrf.mxu0
        %v7797 = vadd.f32 0.0, %v7796
        %7798 = vmatmul.bf16.gmra.mxu0 %v7042
        %v7799 = vpop.f32.mrf.mxu0
        %v7800 = vadd.f32 0.0, %v7799
        %v7801 = vpop.f32.mrf.mxu0
        %v7802 = vadd.f32 0.0, %v7801
        %7803 = vmatmul.bf16.gmra.mxu0 %v7045
        %v7804 = vpop.f32.mrf.mxu0
        %v7805 = vadd.f32 0.0, %v7804
        %v7806 = vpop.f32.mrf.mxu0
        %v7807 = vadd.f32 0.0, %v7806
        %7808 = vmatmul.bf16.gmra.mxu0 %v7048
        %v7809 = vpop.f32.mrf.mxu0
        %v7810 = vadd.f32 0.0, %v7809
        %v7811 = vpop.f32.mrf.mxu0
        %v7812 = vadd.f32 0.0, %v7811
        %7813 = vmatmul.bf16.gmra.mxu0 %v7051
        %v7814 = vpop.f32.mrf.mxu0
        %v7815 = vadd.f32 0.0, %v7814
        %v7816 = vpop.f32.mrf.mxu0
        %v7817 = vadd.f32 0.0, %v7816
        %7818 = vmatmul.bf16.gmra.mxu0 %v7054
        %v7819 = vpop.f32.mrf.mxu0
        %v7820 = vadd.f32 0.0, %v7819
        %v7821 = vpop.f32.mrf.mxu0
        %v7822 = vadd.f32 0.0, %v7821
        %7823 = vmatmul.bf16.gmra.mxu0 %v7057
        %v7824 = vpop.f32.mrf.mxu0
        %v7825 = vadd.f32 0.0, %v7824
        %v7826 = vpop.f32.mrf.mxu0
        %v7827 = vadd.f32 0.0, %v7826
        %7828 = vmatmul.bf16.gmra.mxu0 %v7060
        %v7829 = vpop.f32.mrf.mxu0
        %v7830 = vadd.f32 0.0, %v7829
        %v7831 = vpop.f32.mrf.mxu0
        %v7832 = vadd.f32 0.0, %v7831
        %7833 = vmatmul.bf16.gmra.mxu0 %v7063
        %v7834 = vpop.f32.mrf.mxu0
        %v7835 = vadd.f32 0.0, %v7834
        %v7836 = vpop.f32.mrf.mxu0
        %v7837 = vadd.f32 0.0, %v7836
        %7838 = vmatmul.bf16.gmra.mxu0 %v7066
        %v7839 = vpop.f32.mrf.mxu0
        %v7840 = vadd.f32 0.0, %v7839
        %v7841 = vpop.f32.mrf.mxu0
        %v7842 = vadd.f32 0.0, %v7841
        %7843 = vmatmul.bf16.gmra.mxu0 %v7069
        %v7844 = vpop.f32.mrf.mxu0
        %v7845 = vadd.f32 0.0, %v7844
        %v7846 = vpop.f32.mrf.mxu0
        %v7847 = vadd.f32 0.0, %v7846
        %7848 = vmatmul.bf16.gmra.mxu0 %v7763
        %v7849 = vpop.f32.mrf.mxu0
        %v7850 = vadd.f32 0.0, %v7849
        %v7851 = vpop.f32.mrf.mxu0
        %v7852 = vadd.f32 0.0, %v7851
        %7853 = vdwg.mxu0
        %v7854 = vadd.f32 %v7712, %v7775
        %v7855 = vadd.f32 %v7713, %v7777
        %v7856 = vadd.f32 %v7714, %v7780
        %v7857 = vadd.f32 %v7715, %v7782
        %v7858 = vadd.f32 %v7716, %v7785
        %v7859 = vadd.f32 %v7717, %v7787
        %v7860 = vadd.f32 %v7718, %v7790
        %v7861 = vadd.f32 %v7719, %v7792
        %v7862 = vadd.f32 %v7720, %v7795
        %v7863 = vadd.f32 %v7721, %v7797
        %v7864 = vadd.f32 %v7722, %v7800
        %v7865 = vadd.f32 %v7723, %v7802
        %v7866 = vadd.f32 %v7724, %v7805
        %v7867 = vadd.f32 %v7725, %v7807
        %v7868 = vadd.f32 %v7726, %v7810
        %v7869 = vadd.f32 %v7727, %v7812
        %v7870 = vadd.f32 %v7728, %v7815
        %v7871 = vadd.f32 %v7729, %v7817
        %v7872 = vadd.f32 %v7730, %v7820
        %v7873 = vadd.f32 %v7731, %v7822
        %v7874 = vadd.f32 %v7732, %v7825
        %v7875 = vadd.f32 %v7733, %v7827
        %v7876 = vadd.f32 %v7734, %v7830
        %v7877 = vadd.f32 %v7735, %v7832
        %v7878 = vadd.f32 %v7736, %v7835
        %v7879 = vadd.f32 %v7737, %v7837
        %v7880 = vadd.f32 %v7738, %v7840
        %v7881 = vadd.f32 %v7739, %v7842
        %v7882 = vadd.f32 %v7740, %v7845
        %v7883 = vadd.f32 %v7741, %v7847
        %v7884 = vadd.f32 %v7742, %v7850
        %v7885 = vadd.f32 %v7743, %v7852
        %v7886 = vrot.slane %v6853, 1
        %v7887 = vrot.slane %v6854, 1
        %v7888 = vsel %vm1552, %v7886, %v7887
        %v7891 = vsel %vm1552, %v7887, 0.0
        %v7892 = vpack.c.bf16 %v7891, %v7888
        %s7893 = scalar_lea.vmem [#allocation5], 80
        %v7894 = vld [vmem:[%s7893] sm:$0xf]
        %v7895 = vld [vmem:[%s7893 + $0x4] sm:$0xf]
        %v7896 = vld [vmem:[%s7893 + $0x8] sm:$0xf]
        %v7897 = vld [vmem:[%s7893 + $0xc] sm:$0xf]
        %v7902 = vunpack.c.l.b16 %v7894
        %v7903 = vunpack.c.l.b16 %v7895
        %v7904 = vunpack.c.l.b16 %v7896
        %v7905 = vunpack.c.l.b16 %v7897
        %v7906 = vpack.c.b16 %v7903, %v7902
        %v7907 = vpack.c.b16 %v7905, %v7904
        %v7911 = vsel %vm1265, %v7892, 0
        %7913 = vmatpush.bf16.msra.mxu0 0
        %7914 = vmatpush.bf16.msra.mxu0 0
        %7915 = vmatpush.bf16.msra.mxu0 0
        %7916 = vmatpush.bf16.msra.mxu0 0
        %7917 = vmatpush.bf16.msra.mxu0 0
        %7918 = vmatpush.bf16.msra.mxu0 0
        %7919 = vmatpush.bf16.msra.mxu0 %v7907
        %7920 = vmatpush.bf16.msra.mxu0 %v7906
        %7921 = vmatmul.bf16.gmra.mxu0 %v7429
        %v7922 = vpop.f32.mrf.mxu0
        %v7923 = vadd.f32 0.0, %v7922
        %v7924 = vpop.f32.mrf.mxu0
        %v7925 = vadd.f32 0.0, %v7924
        %7926 = vmatmul.bf16.gmra.mxu0 %v7432
        %v7927 = vpop.f32.mrf.mxu0
        %v7928 = vadd.f32 0.0, %v7927
        %v7929 = vpop.f32.mrf.mxu0
        %v7930 = vadd.f32 0.0, %v7929
        %7931 = vmatmul.bf16.gmra.mxu0 %v7435
        %v7932 = vpop.f32.mrf.mxu0
        %v7933 = vadd.f32 0.0, %v7932
        %v7934 = vpop.f32.mrf.mxu0
        %v7935 = vadd.f32 0.0, %v7934
        %7936 = vmatmul.bf16.gmra.mxu0 %v7438
        %v7937 = vpop.f32.mrf.mxu0
        %v7938 = vadd.f32 0.0, %v7937
        %v7939 = vpop.f32.mrf.mxu0
        %v7940 = vadd.f32 0.0, %v7939
        %7941 = vmatmul.bf16.gmra.mxu0 %v7441
        %v7942 = vpop.f32.mrf.mxu0
        %v7943 = vadd.f32 0.0, %v7942
        %v7944 = vpop.f32.mrf.mxu0
        %v7945 = vadd.f32 0.0, %v7944
        %7946 = vmatmul.bf16.gmra.mxu0 %v7444
        %v7947 = vpop.f32.mrf.mxu0
        %v7948 = vadd.f32 0.0, %v7947
        %v7949 = vpop.f32.mrf.mxu0
        %v7950 = vadd.f32 0.0, %v7949
        %7951 = vmatmul.bf16.gmra.mxu0 %v7447
        %v7952 = vpop.f32.mrf.mxu0
        %v7953 = vadd.f32 0.0, %v7952
        %v7954 = vpop.f32.mrf.mxu0
        %v7955 = vadd.f32 0.0, %v7954
        %7956 = vmatmul.bf16.gmra.mxu0 %v7450
        %v7957 = vpop.f32.mrf.mxu0
        %v7958 = vadd.f32 0.0, %v7957
        %v7959 = vpop.f32.mrf.mxu0
        %v7960 = vadd.f32 0.0, %v7959
        %7961 = vmatmul.bf16.gmra.mxu0 %v7453
        %v7962 = vpop.f32.mrf.mxu0
        %v7963 = vadd.f32 0.0, %v7962
        %v7964 = vpop.f32.mrf.mxu0
        %v7965 = vadd.f32 0.0, %v7964
        %7966 = vmatmul.bf16.gmra.mxu0 %v7456
        %v7967 = vpop.f32.mrf.mxu0
        %v7968 = vadd.f32 0.0, %v7967
        %v7969 = vpop.f32.mrf.mxu0
        %v7970 = vadd.f32 0.0, %v7969
        %7971 = vmatmul.bf16.gmra.mxu0 %v7459
        %v7972 = vpop.f32.mrf.mxu0
        %v7973 = vadd.f32 0.0, %v7972
        %v7974 = vpop.f32.mrf.mxu0
        %v7975 = vadd.f32 0.0, %v7974
        %7976 = vmatmul.bf16.gmra.mxu0 %v7462
        %v7977 = vpop.f32.mrf.mxu0
        %v7978 = vadd.f32 0.0, %v7977
        %v7979 = vpop.f32.mrf.mxu0
        %v7980 = vadd.f32 0.0, %v7979
        %7981 = vmatmul.bf16.gmra.mxu0 %v7465
        %v7982 = vpop.f32.mrf.mxu0
        %v7983 = vadd.f32 0.0, %v7982
        %v7984 = vpop.f32.mrf.mxu0
        %v7985 = vadd.f32 0.0, %v7984
        %7986 = vmatmul.bf16.gmra.mxu0 %v7468
        %v7987 = vpop.f32.mrf.mxu0
        %v7988 = vadd.f32 0.0, %v7987
        %v7989 = vpop.f32.mrf.mxu0
        %v7990 = vadd.f32 0.0, %v7989
        %7991 = vmatmul.bf16.gmra.mxu0 %v7471
        %v7992 = vpop.f32.mrf.mxu0
        %v7993 = vadd.f32 0.0, %v7992
        %v7994 = vpop.f32.mrf.mxu0
        %v7995 = vadd.f32 0.0, %v7994
        %7996 = vmatmul.bf16.gmra.mxu0 %v7911
        %v7997 = vpop.f32.mrf.mxu0
        %v7998 = vadd.f32 0.0, %v7997
        %v7999 = vpop.f32.mrf.mxu0
        %v8000 = vadd.f32 0.0, %v7999
        %8001 = vdwg.mxu0
        %v8002 = vadd.f32 %v7854, %v7923
        %v8003 = vadd.f32 %v7855, %v7925
        %v8004 = vadd.f32 %v7856, %v7928
        %v8005 = vadd.f32 %v7857, %v7930
        %v8006 = vadd.f32 %v7858, %v7933
        %v8007 = vadd.f32 %v7859, %v7935
        %v8008 = vadd.f32 %v7860, %v7938
        %v8009 = vadd.f32 %v7861, %v7940
        %v8010 = vadd.f32 %v7862, %v7943
        %v8011 = vadd.f32 %v7863, %v7945
        %v8012 = vadd.f32 %v7864, %v7948
        %v8013 = vadd.f32 %v7865, %v7950
        %v8014 = vadd.f32 %v7866, %v7953
        %v8015 = vadd.f32 %v7867, %v7955
        %v8016 = vadd.f32 %v7868, %v7958
        %v8017 = vadd.f32 %v7869, %v7960
        %v8018 = vadd.f32 %v7870, %v7963
        %v8019 = vadd.f32 %v7871, %v7965
        %v8020 = vadd.f32 %v7872, %v7968
        %v8021 = vadd.f32 %v7873, %v7970
        %v8022 = vadd.f32 %v7874, %v7973
        %v8023 = vadd.f32 %v7875, %v7975
        %v8024 = vadd.f32 %v7876, %v7978
        %v8025 = vadd.f32 %v7877, %v7980
        %v8026 = vadd.f32 %v7878, %v7983
        %v8027 = vadd.f32 %v7879, %v7985
        %v8028 = vadd.f32 %v7880, %v7988
        %v8029 = vadd.f32 %v7881, %v7990
        %v8030 = vadd.f32 %v7882, %v7993
        %v8031 = vadd.f32 %v7883, %v7995
        %v8032 = vadd.f32 %v7884, %v7998
        %v8033 = vadd.f32 %v7885, %v8000
        %s8034 = scalar_lea.vmem [#allocation5], 96
        %v8035 = vld [vmem:[%s8034] sm:$0xf]
        %v8036 = vld [vmem:[%s8034 + $0x4] sm:$0xf]
        %v8037 = vld [vmem:[%s8034 + $0x8] sm:$0xf]
        %v8038 = vld [vmem:[%s8034 + $0xc] sm:$0xf]
        %v8043 = vunpack.c.l.b16 %v8035
        %v8044 = vunpack.c.l.b16 %v8036
        %v8045 = vunpack.c.l.b16 %v8037
        %v8046 = vunpack.c.l.b16 %v8038
        %v8047 = vpack.c.b16 %v8044, %v8043
        %v8048 = vpack.c.b16 %v8046, %v8045
        %8051 = vmatpush.bf16.msra.mxu0 0
        %8052 = vmatpush.bf16.msra.mxu0 0
        %8053 = vmatpush.bf16.msra.mxu0 0
        %8054 = vmatpush.bf16.msra.mxu0 0
        %8055 = vmatpush.bf16.msra.mxu0 0
        %8056 = vmatpush.bf16.msra.mxu0 0
        %8057 = vmatpush.bf16.msra.mxu0 %v8048
        %8058 = vmatpush.bf16.msra.mxu0 %v8047
        %8059 = vmatmul.bf16.gmra.mxu0 %v7176
        %v8060 = vpop.f32.mrf.mxu0
        %v8061 = vadd.f32 0.0, %v8060
        %v8062 = vpop.f32.mrf.mxu0
        %v8063 = vadd.f32 0.0, %v8062
        %8064 = vmatmul.bf16.gmra.mxu0 %v7179
        %v8065 = vpop.f32.mrf.mxu0
        %v8066 = vadd.f32 0.0, %v8065
        %v8067 = vpop.f32.mrf.mxu0
        %v8068 = vadd.f32 0.0, %v8067
        %8069 = vmatmul.bf16.gmra.mxu0 %v7182
        %v8070 = vpop.f32.mrf.mxu0
        %v8071 = vadd.f32 0.0, %v8070
        %v8072 = vpop.f32.mrf.mxu0
        %v8073 = vadd.f32 0.0, %v8072
        %8074 = vmatmul.bf16.gmra.mxu0 %v7185
        %v8075 = vpop.f32.mrf.mxu0
        %v8076 = vadd.f32 0.0, %v8075
        %v8077 = vpop.f32.mrf.mxu0
        %v8078 = vadd.f32 0.0, %v8077
        %8079 = vmatmul.bf16.gmra.mxu0 %v7188
        %v8080 = vpop.f32.mrf.mxu0
        %v8081 = vadd.f32 0.0, %v8080
        %v8082 = vpop.f32.mrf.mxu0
        %v8083 = vadd.f32 0.0, %v8082
        %8084 = vmatmul.bf16.gmra.mxu0 %v7191
        %v8085 = vpop.f32.mrf.mxu0
        %v8086 = vadd.f32 0.0, %v8085
        %v8087 = vpop.f32.mrf.mxu0
        %v8088 = vadd.f32 0.0, %v8087
        %8089 = vmatmul.bf16.gmra.mxu0 %v7194
        %v8090 = vpop.f32.mrf.mxu0
        %v8091 = vadd.f32 0.0, %v8090
        %v8092 = vpop.f32.mrf.mxu0
        %v8093 = vadd.f32 0.0, %v8092
        %8094 = vmatmul.bf16.gmra.mxu0 %v7197
        %v8095 = vpop.f32.mrf.mxu0
        %v8096 = vadd.f32 0.0, %v8095
        %v8097 = vpop.f32.mrf.mxu0
        %v8098 = vadd.f32 0.0, %v8097
        %8099 = vmatmul.bf16.gmra.mxu0 %v7200
        %v8100 = vpop.f32.mrf.mxu0
        %v8101 = vadd.f32 0.0, %v8100
        %v8102 = vpop.f32.mrf.mxu0
        %v8103 = vadd.f32 0.0, %v8102
        %8104 = vmatmul.bf16.gmra.mxu0 %v7203
        %v8105 = vpop.f32.mrf.mxu0
        %v8106 = vadd.f32 0.0, %v8105
        %v8107 = vpop.f32.mrf.mxu0
        %v8108 = vadd.f32 0.0, %v8107
        %8109 = vmatmul.bf16.gmra.mxu0 %v7206
        %v8110 = vpop.f32.mrf.mxu0
        %v8111 = vadd.f32 0.0, %v8110
        %v8112 = vpop.f32.mrf.mxu0
        %v8113 = vadd.f32 0.0, %v8112
        %8114 = vmatmul.bf16.gmra.mxu0 %v7209
        %v8115 = vpop.f32.mrf.mxu0
        %v8116 = vadd.f32 0.0, %v8115
        %v8117 = vpop.f32.mrf.mxu0
        %v8118 = vadd.f32 0.0, %v8117
        %8119 = vmatmul.bf16.gmra.mxu0 %v7212
        %v8120 = vpop.f32.mrf.mxu0
        %v8121 = vadd.f32 0.0, %v8120
        %v8122 = vpop.f32.mrf.mxu0
        %v8123 = vadd.f32 0.0, %v8122
        %8124 = vmatmul.bf16.gmra.mxu0 %v7215
        %v8125 = vpop.f32.mrf.mxu0
        %v8126 = vadd.f32 0.0, %v8125
        %v8127 = vpop.f32.mrf.mxu0
        %v8128 = vadd.f32 0.0, %v8127
        %8129 = vmatmul.bf16.gmra.mxu0 %v7621
        %v8130 = vpop.f32.mrf.mxu0
        %v8131 = vadd.f32 0.0, %v8130
        %v8132 = vpop.f32.mrf.mxu0
        %v8133 = vadd.f32 0.0, %v8132
        %8134 = vmatmul.bf16.gmra.mxu0 %v1416
        %v8135 = vpop.f32.mrf.mxu0
        %v8136 = vadd.f32 0.0, %v8135
        %v8137 = vpop.f32.mrf.mxu0
        %v8138 = vadd.f32 0.0, %v8137
        %8139 = vdwg.mxu0
        %v8140 = vadd.f32 %v8002, %v8061
        %v8141 = vadd.f32 %v8003, %v8063
        %v8142 = vadd.f32 %v8004, %v8066
        %v8143 = vadd.f32 %v8005, %v8068
        %v8144 = vadd.f32 %v8006, %v8071
        %v8145 = vadd.f32 %v8007, %v8073
        %v8146 = vadd.f32 %v8008, %v8076
        %v8147 = vadd.f32 %v8009, %v8078
        %v8148 = vadd.f32 %v8010, %v8081
        %v8149 = vadd.f32 %v8011, %v8083
        %v8150 = vadd.f32 %v8012, %v8086
        %v8151 = vadd.f32 %v8013, %v8088
        %v8152 = vadd.f32 %v8014, %v8091
        %v8153 = vadd.f32 %v8015, %v8093
        %v8154 = vadd.f32 %v8016, %v8096
        %v8155 = vadd.f32 %v8017, %v8098
        %v8156 = vadd.f32 %v8018, %v8101
        %v8157 = vadd.f32 %v8019, %v8103
        %v8158 = vadd.f32 %v8020, %v8106
        %v8159 = vadd.f32 %v8021, %v8108
        %v8160 = vadd.f32 %v8022, %v8111
        %v8161 = vadd.f32 %v8023, %v8113
        %v8162 = vadd.f32 %v8024, %v8116
        %v8163 = vadd.f32 %v8025, %v8118
        %v8164 = vadd.f32 %v8026, %v8121
        %v8165 = vadd.f32 %v8027, %v8123
        %v8166 = vadd.f32 %v8028, %v8126
        %v8167 = vadd.f32 %v8029, %v8128
        %v8168 = vadd.f32 %v8030, %v8131
        %v8169 = vadd.f32 %v8031, %v8133
        %v8170 = vadd.f32 %v8032, %v8136
        %v8171 = vadd.f32 %v8033, %v8138
        %s8172 = scalar_lea.vmem [#allocation5], 112
        %v8173 = vld [vmem:[%s8172] sm:$0xf]
        %v8174 = vld [vmem:[%s8172 + $0x4] sm:$0xf]
        %v8175 = vld [vmem:[%s8172 + $0x8] sm:$0xf]
        %v8176 = vld [vmem:[%s8172 + $0xc] sm:$0xf]
        %v8181 = vunpack.c.l.b16 %v8173
        %v8182 = vunpack.c.l.b16 %v8174
        %v8183 = vunpack.c.l.b16 %v8175
        %v8184 = vunpack.c.l.b16 %v8176
        %v8185 = vpack.c.b16 %v8182, %v8181
        %v8186 = vpack.c.b16 %v8184, %v8183
        %8189 = vmatpush.bf16.msra.mxu0 0
        %8190 = vmatpush.bf16.msra.mxu0 0
        %8191 = vmatpush.bf16.msra.mxu0 0
        %8192 = vmatpush.bf16.msra.mxu0 0
        %8193 = vmatpush.bf16.msra.mxu0 0
        %8194 = vmatpush.bf16.msra.mxu0 0
        %8195 = vmatpush.bf16.msra.mxu0 %v8186
        %8196 = vmatpush.bf16.msra.mxu0 %v8185
        %8197 = vmatmul.bf16.gmra.mxu0 %v7030
        %v8198 = vpop.f32.mrf.mxu0
        %v8199 = vadd.f32 0.0, %v8198
        %v8200 = vpop.f32.mrf.mxu0
        %v8201 = vadd.f32 0.0, %v8200
        %8202 = vmatmul.bf16.gmra.mxu0 %v7033
        %v8203 = vpop.f32.mrf.mxu0
        %v8204 = vadd.f32 0.0, %v8203
        %v8205 = vpop.f32.mrf.mxu0
        %v8206 = vadd.f32 0.0, %v8205
        %8207 = vmatmul.bf16.gmra.mxu0 %v7036
        %v8208 = vpop.f32.mrf.mxu0
        %v8209 = vadd.f32 0.0, %v8208
        %v8210 = vpop.f32.mrf.mxu0
        %v8211 = vadd.f32 0.0, %v8210
        %8212 = vmatmul.bf16.gmra.mxu0 %v7039
        %v8213 = vpop.f32.mrf.mxu0
        %v8214 = vadd.f32 0.0, %v8213
        %v8215 = vpop.f32.mrf.mxu0
        %v8216 = vadd.f32 0.0, %v8215
        %8217 = vmatmul.bf16.gmra.mxu0 %v7042
        %v8218 = vpop.f32.mrf.mxu0
        %v8219 = vadd.f32 0.0, %v8218
        %v8220 = vpop.f32.mrf.mxu0
        %v8221 = vadd.f32 0.0, %v8220
        %8222 = vmatmul.bf16.gmra.mxu0 %v7045
        %v8223 = vpop.f32.mrf.mxu0
        %v8224 = vadd.f32 0.0, %v8223
        %v8225 = vpop.f32.mrf.mxu0
        %v8226 = vadd.f32 0.0, %v8225
        %8227 = vmatmul.bf16.gmra.mxu0 %v7048
        %v8228 = vpop.f32.mrf.mxu0
        %v8229 = vadd.f32 0.0, %v8228
        %v8230 = vpop.f32.mrf.mxu0
        %v8231 = vadd.f32 0.0, %v8230
        %8232 = vmatmul.bf16.gmra.mxu0 %v7051
        %v8233 = vpop.f32.mrf.mxu0
        %v8234 = vadd.f32 0.0, %v8233
        %v8235 = vpop.f32.mrf.mxu0
        %v8236 = vadd.f32 0.0, %v8235
        %8237 = vmatmul.bf16.gmra.mxu0 %v7054
        %v8238 = vpop.f32.mrf.mxu0
        %v8239 = vadd.f32 0.0, %v8238
        %v8240 = vpop.f32.mrf.mxu0
        %v8241 = vadd.f32 0.0, %v8240
        %8242 = vmatmul.bf16.gmra.mxu0 %v7057
        %v8243 = vpop.f32.mrf.mxu0
        %v8244 = vadd.f32 0.0, %v8243
        %v8245 = vpop.f32.mrf.mxu0
        %v8246 = vadd.f32 0.0, %v8245
        %8247 = vmatmul.bf16.gmra.mxu0 %v7060
        %v8248 = vpop.f32.mrf.mxu0
        %v8249 = vadd.f32 0.0, %v8248
        %v8250 = vpop.f32.mrf.mxu0
        %v8251 = vadd.f32 0.0, %v8250
        %8252 = vmatmul.bf16.gmra.mxu0 %v7063
        %v8253 = vpop.f32.mrf.mxu0
        %v8254 = vadd.f32 0.0, %v8253
        %v8255 = vpop.f32.mrf.mxu0
        %v8256 = vadd.f32 0.0, %v8255
        %8257 = vmatmul.bf16.gmra.mxu0 %v7066
        %v8258 = vpop.f32.mrf.mxu0
        %v8259 = vadd.f32 0.0, %v8258
        %v8260 = vpop.f32.mrf.mxu0
        %v8261 = vadd.f32 0.0, %v8260
        %8262 = vmatmul.bf16.gmra.mxu0 %v7069
        %v8263 = vpop.f32.mrf.mxu0
        %v8264 = vadd.f32 0.0, %v8263
        %v8265 = vpop.f32.mrf.mxu0
        %v8266 = vadd.f32 0.0, %v8265
        %8267 = vmatmul.bf16.gmra.mxu0 %v7763
        %v8268 = vpop.f32.mrf.mxu0
        %v8269 = vadd.f32 0.0, %v8268
        %v8270 = vpop.f32.mrf.mxu0
        %v8271 = vadd.f32 0.0, %v8270
        %8272 = vmatmul.bf16.gmra.mxu0 %v1267
        %v8273 = vpop.f32.mrf.mxu0
        %v8274 = vadd.f32 0.0, %v8273
        %v8275 = vpop.f32.mrf.mxu0
        %v8276 = vadd.f32 0.0, %v8275
        %8277 = vdwg.mxu0
        %v8278 = vadd.f32 %v8140, %v8199
        %v8279 = vadd.f32 %v8141, %v8201
        %v8280 = vadd.f32 %v8142, %v8204
        %v8281 = vadd.f32 %v8143, %v8206
        %v8282 = vadd.f32 %v8144, %v8209
        %v8283 = vadd.f32 %v8145, %v8211
        %v8284 = vadd.f32 %v8146, %v8214
        %v8285 = vadd.f32 %v8147, %v8216
        %v8286 = vadd.f32 %v8148, %v8219
        %v8287 = vadd.f32 %v8149, %v8221
        %v8288 = vadd.f32 %v8150, %v8224
        %v8289 = vadd.f32 %v8151, %v8226
        %v8290 = vadd.f32 %v8152, %v8229
        %v8291 = vadd.f32 %v8153, %v8231
        %v8292 = vadd.f32 %v8154, %v8234
        %v8293 = vadd.f32 %v8155, %v8236
        %v8294 = vadd.f32 %v8156, %v8239
        %v8295 = vadd.f32 %v8157, %v8241
        %v8296 = vadd.f32 %v8158, %v8244
        %v8297 = vadd.f32 %v8159, %v8246
        %v8298 = vadd.f32 %v8160, %v8249
        %v8299 = vadd.f32 %v8161, %v8251
        %v8300 = vadd.f32 %v8162, %v8254
        %v8301 = vadd.f32 %v8163, %v8256
        %v8302 = vadd.f32 %v8164, %v8259
        %v8303 = vadd.f32 %v8165, %v8261
        %v8304 = vadd.f32 %v8166, %v8264
        %v8305 = vadd.f32 %v8167, %v8266
        %v8306 = vadd.f32 %v8168, %v8269
        %v8307 = vadd.f32 %v8169, %v8271
        %v8308 = vadd.f32 %v8170, %v8274
        %v8309 = vadd.f32 %v8171, %v8276
        %s8310 = scalar_lea.vmem [#allocation5], 128
        %v8311 = vld [vmem:[%s8310] sm:$0xf]
        %v8312 = vld [vmem:[%s8310 + $0x4] sm:$0xf]
        %v8313 = vld [vmem:[%s8310 + $0x8] sm:$0xf]
        %v8314 = vld [vmem:[%s8310 + $0xc] sm:$0xf]
        %v8319 = vunpack.c.l.b16 %v8311
        %v8320 = vunpack.c.l.b16 %v8312
        %v8321 = vunpack.c.l.b16 %v8313
        %v8322 = vunpack.c.l.b16 %v8314
        %v8323 = vpack.c.b16 %v8320, %v8319
        %v8324 = vpack.c.b16 %v8322, %v8321
        %8327 = vmatpush.bf16.msra.mxu0 0
        %8328 = vmatpush.bf16.msra.mxu0 0
        %8329 = vmatpush.bf16.msra.mxu0 0
        %8330 = vmatpush.bf16.msra.mxu0 0
        %8331 = vmatpush.bf16.msra.mxu0 0
        %8332 = vmatpush.bf16.msra.mxu0 0
        %8333 = vmatpush.bf16.msra.mxu0 %v8324
        %8334 = vmatpush.bf16.msra.mxu0 %v8323
        %8335 = vmatmul.bf16.gmra.mxu0 %v7432
        %v8336 = vpop.f32.mrf.mxu0
        %v8337 = vadd.f32 0.0, %v8336
        %v8338 = vpop.f32.mrf.mxu0
        %v8339 = vadd.f32 0.0, %v8338
        %8340 = vmatmul.bf16.gmra.mxu0 %v7435
        %v8341 = vpop.f32.mrf.mxu0
        %v8342 = vadd.f32 0.0, %v8341
        %v8343 = vpop.f32.mrf.mxu0
        %v8344 = vadd.f32 0.0, %v8343
        %8345 = vmatmul.bf16.gmra.mxu0 %v7438
        %v8346 = vpop.f32.mrf.mxu0
        %v8347 = vadd.f32 0.0, %v8346
        %v8348 = vpop.f32.mrf.mxu0
        %v8349 = vadd.f32 0.0, %v8348
        %8350 = vmatmul.bf16.gmra.mxu0 %v7441
        %v8351 = vpop.f32.mrf.mxu0
        %v8352 = vadd.f32 0.0, %v8351
        %v8353 = vpop.f32.mrf.mxu0
        %v8354 = vadd.f32 0.0, %v8353
        %8355 = vmatmul.bf16.gmra.mxu0 %v7444
        %v8356 = vpop.f32.mrf.mxu0
        %v8357 = vadd.f32 0.0, %v8356
        %v8358 = vpop.f32.mrf.mxu0
        %v8359 = vadd.f32 0.0, %v8358
        %8360 = vmatmul.bf16.gmra.mxu0 %v7447
        %v8361 = vpop.f32.mrf.mxu0
        %v8362 = vadd.f32 0.0, %v8361
        %v8363 = vpop.f32.mrf.mxu0
        %v8364 = vadd.f32 0.0, %v8363
        %8365 = vmatmul.bf16.gmra.mxu0 %v7450
        %v8366 = vpop.f32.mrf.mxu0
        %v8367 = vadd.f32 0.0, %v8366
        %v8368 = vpop.f32.mrf.mxu0
        %v8369 = vadd.f32 0.0, %v8368
        %8370 = vmatmul.bf16.gmra.mxu0 %v7453
        %v8371 = vpop.f32.mrf.mxu0
        %v8372 = vadd.f32 0.0, %v8371
        %v8373 = vpop.f32.mrf.mxu0
        %v8374 = vadd.f32 0.0, %v8373
        %8375 = vmatmul.bf16.gmra.mxu0 %v7456
        %v8376 = vpop.f32.mrf.mxu0
        %v8377 = vadd.f32 0.0, %v8376
        %v8378 = vpop.f32.mrf.mxu0
        %v8379 = vadd.f32 0.0, %v8378
        %8380 = vmatmul.bf16.gmra.mxu0 %v7459
        %v8381 = vpop.f32.mrf.mxu0
        %v8382 = vadd.f32 0.0, %v8381
        %v8383 = vpop.f32.mrf.mxu0
        %v8384 = vadd.f32 0.0, %v8383
        %8385 = vmatmul.bf16.gmra.mxu0 %v7462
        %v8386 = vpop.f32.mrf.mxu0
        %v8387 = vadd.f32 0.0, %v8386
        %v8388 = vpop.f32.mrf.mxu0
        %v8389 = vadd.f32 0.0, %v8388
        %8390 = vmatmul.bf16.gmra.mxu0 %v7465
        %v8391 = vpop.f32.mrf.mxu0
        %v8392 = vadd.f32 0.0, %v8391
        %v8393 = vpop.f32.mrf.mxu0
        %v8394 = vadd.f32 0.0, %v8393
        %8395 = vmatmul.bf16.gmra.mxu0 %v7468
        %v8396 = vpop.f32.mrf.mxu0
        %v8397 = vadd.f32 0.0, %v8396
        %v8398 = vpop.f32.mrf.mxu0
        %v8399 = vadd.f32 0.0, %v8398
        %8400 = vmatmul.bf16.gmra.mxu0 %v7471
        %v8401 = vpop.f32.mrf.mxu0
        %v8402 = vadd.f32 0.0, %v8401
        %v8403 = vpop.f32.mrf.mxu0
        %v8404 = vadd.f32 0.0, %v8403
        %8405 = vmatmul.bf16.gmra.mxu0 %v7911
        %v8406 = vpop.f32.mrf.mxu0
        %v8407 = vadd.f32 0.0, %v8406
        %v8408 = vpop.f32.mrf.mxu0
        %v8409 = vadd.f32 0.0, %v8408
        %8410 = vmatmul.bf16.gmra.mxu0 %v1682
        %v8411 = vpop.f32.mrf.mxu0
        %v8412 = vadd.f32 0.0, %v8411
        %v8413 = vpop.f32.mrf.mxu0
        %v8414 = vadd.f32 0.0, %v8413
        %8415 = vdwg.mxu0
        %v8416 = vadd.f32 %v8278, %v8337
        %v8417 = vadd.f32 %v8279, %v8339
        %v8418 = vadd.f32 %v8280, %v8342
        %v8419 = vadd.f32 %v8281, %v8344
        %v8420 = vadd.f32 %v8282, %v8347
        %v8421 = vadd.f32 %v8283, %v8349
        %v8422 = vadd.f32 %v8284, %v8352
        %v8423 = vadd.f32 %v8285, %v8354
        %v8424 = vadd.f32 %v8286, %v8357
        %v8425 = vadd.f32 %v8287, %v8359
        %v8426 = vadd.f32 %v8288, %v8362
        %v8427 = vadd.f32 %v8289, %v8364
        %v8428 = vadd.f32 %v8290, %v8367
        %v8429 = vadd.f32 %v8291, %v8369
        %v8430 = vadd.f32 %v8292, %v8372
        %v8431 = vadd.f32 %v8293, %v8374
        %v8432 = vadd.f32 %v8294, %v8377
        %v8433 = vadd.f32 %v8295, %v8379
        %v8434 = vadd.f32 %v8296, %v8382
        %v8435 = vadd.f32 %v8297, %v8384
        %v8436 = vadd.f32 %v8298, %v8387
        %v8437 = vadd.f32 %v8299, %v8389
        %v8438 = vadd.f32 %v8300, %v8392
        %v8439 = vadd.f32 %v8301, %v8394
        %v8440 = vadd.f32 %v8302, %v8397
        %v8441 = vadd.f32 %v8303, %v8399
        %v8442 = vadd.f32 %v8304, %v8402
        %v8443 = vadd.f32 %v8305, %v8404
        %v8444 = vadd.f32 %v8306, %v8407
        %v8445 = vadd.f32 %v8307, %v8409
        %v8446 = vadd.f32 %v8308, %v8412
        %v8447 = vadd.f32 %v8309, %v8414
        %v8448 = vld [vmem:[%s15] sm:$0x1]
        %v8450 = vperm.slane %v8448, 0
        %v8452 = vmul.f32 %v8416, %v8450
        %v8453 = vmul.f32 %v8417, %v8450
        %v8454 = vmul.f32 %v8418, %v8450
        %v8455 = vmul.f32 %v8419, %v8450
        %v8456 = vmul.f32 %v8420, %v8450
        %v8457 = vmul.f32 %v8421, %v8450
        %v8458 = vmul.f32 %v8422, %v8450
        %v8459 = vmul.f32 %v8423, %v8450
        %v8460 = vmul.f32 %v8424, %v8450
        %v8461 = vmul.f32 %v8425, %v8450
        %v8462 = vmul.f32 %v8426, %v8450
        %v8463 = vmul.f32 %v8427, %v8450
        %v8464 = vmul.f32 %v8428, %v8450
        %v8465 = vmul.f32 %v8429, %v8450
        %v8466 = vmul.f32 %v8430, %v8450
        %v8467 = vmul.f32 %v8431, %v8450
        %v8468 = vmul.f32 %v8432, %v8450
        %v8469 = vmul.f32 %v8433, %v8450
        %v8470 = vmul.f32 %v8434, %v8450
        %v8471 = vmul.f32 %v8435, %v8450
        %v8472 = vmul.f32 %v8436, %v8450
        %v8473 = vmul.f32 %v8437, %v8450
        %v8474 = vmul.f32 %v8438, %v8450
        %v8475 = vmul.f32 %v8439, %v8450
        %v8476 = vmul.f32 %v8440, %v8450
        %v8477 = vmul.f32 %v8441, %v8450
        %v8478 = vmul.f32 %v8442, %v8450
        %v8479 = vmul.f32 %v8443, %v8450
        %v8480 = vmul.f32 %v8444, %v8450
        %v8481 = vmul.f32 %v8445, %v8450
        %v8482 = vmul.f32 %v8446, %v8450
        %v8483 = vmul.f32 %v8447, %v8450
        %v8484 = vld [vmem:[%s16] sm:$0x1]
        %v8486 = vperm.slane %v8484, 0
        %v8488 = vadd.f32 %v8452, %v8486
        %v8489 = vadd.f32 %v8453, %v8486
        %v8490 = vadd.f32 %v8454, %v8486
        %v8491 = vadd.f32 %v8455, %v8486
        %v8492 = vadd.f32 %v8456, %v8486
        %v8493 = vadd.f32 %v8457, %v8486
        %v8494 = vadd.f32 %v8458, %v8486
        %v8495 = vadd.f32 %v8459, %v8486
        %v8496 = vadd.f32 %v8460, %v8486
        %v8497 = vadd.f32 %v8461, %v8486
        %v8498 = vadd.f32 %v8462, %v8486
        %v8499 = vadd.f32 %v8463, %v8486
        %v8500 = vadd.f32 %v8464, %v8486
        %v8501 = vadd.f32 %v8465, %v8486
        %v8502 = vadd.f32 %v8466, %v8486
        %v8503 = vadd.f32 %v8467, %v8486
        %v8504 = vadd.f32 %v8468, %v8486
        %v8505 = vadd.f32 %v8469, %v8486
        %v8506 = vadd.f32 %v8470, %v8486
        %v8507 = vadd.f32 %v8471, %v8486
        %v8508 = vadd.f32 %v8472, %v8486
        %v8509 = vadd.f32 %v8473, %v8486
        %v8510 = vadd.f32 %v8474, %v8486
        %v8511 = vadd.f32 %v8475, %v8486
        %v8512 = vadd.f32 %v8476, %v8486
        %v8513 = vadd.f32 %v8477, %v8486
        %v8514 = vadd.f32 %v8478, %v8486
        %v8515 = vadd.f32 %v8479, %v8486
        %v8516 = vadd.f32 %v8480, %v8486
        %v8517 = vadd.f32 %v8481, %v8486
        %v8518 = vadd.f32 %v8482, %v8486
        %v8519 = vadd.f32 %v8483, %v8486
        %v8520 = vmin.f32 %v8488, 20.0
        %v8521 = vmin.f32 %v8489, 20.0
        %v8522 = vmin.f32 %v8490, 20.0
        %v8523 = vmin.f32 %v8491, 20.0
        %v8524 = vmin.f32 %v8492, 20.0
        %v8525 = vmin.f32 %v8493, 20.0
        %v8526 = vmin.f32 %v8494, 20.0
        %v8527 = vmin.f32 %v8495, 20.0
        %v8528 = vmin.f32 %v8496, 20.0
        %v8529 = vmin.f32 %v8497, 20.0
        %v8530 = vmin.f32 %v8498, 20.0
        %v8531 = vmin.f32 %v8499, 20.0
        %v8532 = vmin.f32 %v8500, 20.0
        %v8533 = vmin.f32 %v8501, 20.0
        %v8534 = vmin.f32 %v8502, 20.0
        %v8535 = vmin.f32 %v8503, 20.0
        %v8536 = vmin.f32 %v8504, 20.0
        %v8537 = vmin.f32 %v8505, 20.0
        %v8538 = vmin.f32 %v8506, 20.0
        %v8539 = vmin.f32 %v8507, 20.0
        %v8540 = vmin.f32 %v8508, 20.0
        %v8541 = vmin.f32 %v8509, 20.0
        %v8542 = vmin.f32 %v8510, 20.0
        %v8543 = vmin.f32 %v8511, 20.0
        %v8544 = vmin.f32 %v8512, 20.0
        %v8545 = vmin.f32 %v8513, 20.0
        %v8546 = vmin.f32 %v8514, 20.0
        %v8547 = vmin.f32 %v8515, 20.0
        %v8548 = vmin.f32 %v8516, 20.0
        %v8549 = vmin.f32 %v8517, 20.0
        %v8550 = vmin.f32 %v8518, 20.0
        %v8551 = vmin.f32 %v8519, 20.0
        %v8552 = vmul.f32 %v8520, 1.442695
        %v8553 = vpow.pop %v8552
        %v8554 = vmul.f32 %v8521, 1.442695
        %v8555 = vpow.pop %v8554
        %v8556 = vmul.f32 %v8522, 1.442695
        %v8557 = vpow.pop %v8556
        %v8558 = vmul.f32 %v8523, 1.442695
        %v8559 = vpow.pop %v8558
        %v8560 = vmul.f32 %v8524, 1.442695
        %v8561 = vpow.pop %v8560
        %v8562 = vmul.f32 %v8525, 1.442695
        %v8563 = vpow.pop %v8562
        %v8564 = vmul.f32 %v8526, 1.442695
        %v8565 = vpow.pop %v8564
        %v8566 = vmul.f32 %v8527, 1.442695
        %v8567 = vpow.pop %v8566
        %v8568 = vmul.f32 %v8528, 1.442695
        %v8569 = vpow.pop %v8568
        %v8570 = vmul.f32 %v8529, 1.442695
        %v8571 = vpow.pop %v8570
        %v8572 = vmul.f32 %v8530, 1.442695
        %v8573 = vpow.pop %v8572
        %v8574 = vmul.f32 %v8531, 1.442695
        %v8575 = vpow.pop %v8574
        %v8576 = vmul.f32 %v8532, 1.442695
        %v8577 = vpow.pop %v8576
        %v8578 = vmul.f32 %v8533, 1.442695
        %v8579 = vpow.pop %v8578
        %v8580 = vmul.f32 %v8534, 1.442695
        %v8581 = vpow.pop %v8580
        %v8582 = vmul.f32 %v8535, 1.442695
        %v8583 = vpow.pop %v8582
        %v8584 = vmul.f32 %v8536, 1.442695
        %v8585 = vpow.pop %v8584
        %v8586 = vmul.f32 %v8537, 1.442695
        %v8587 = vpow.pop %v8586
        %v8588 = vmul.f32 %v8538, 1.442695
        %v8589 = vpow.pop %v8588
        %v8590 = vmul.f32 %v8539, 1.442695
        %v8591 = vpow.pop %v8590
        %v8592 = vmul.f32 %v8540, 1.442695
        %v8593 = vpow.pop %v8592
        %v8594 = vmul.f32 %v8541, 1.442695
        %v8595 = vpow.pop %v8594
        %v8596 = vmul.f32 %v8542, 1.442695
        %v8597 = vpow.pop %v8596
        %v8598 = vmul.f32 %v8543, 1.442695
        %v8599 = vpow.pop %v8598
        %v8600 = vmul.f32 %v8544, 1.442695
        %v8601 = vpow.pop %v8600
        %v8602 = vmul.f32 %v8545, 1.442695
        %v8603 = vpow.pop %v8602
        %v8604 = vmul.f32 %v8546, 1.442695
        %v8605 = vpow.pop %v8604
        %v8606 = vmul.f32 %v8547, 1.442695
        %v8607 = vpow.pop %v8606
        %v8608 = vmul.f32 %v8548, 1.442695
        %v8609 = vpow.pop %v8608
        %v8610 = vmul.f32 %v8549, 1.442695
        %v8611 = vpow.pop %v8610
        %v8612 = vmul.f32 %v8550, 1.442695
        %v8613 = vpow.pop %v8612
        %v8614 = vmul.f32 %v8551, 1.442695
        %v8615 = vpow.pop %v8614
        %v8616 = vadd.f32 %v8553, 2.0
        %v8617 = vadd.f32 %v8555, 2.0
        %v8618 = vadd.f32 %v8557, 2.0
        %v8619 = vadd.f32 %v8559, 2.0
        %v8620 = vadd.f32 %v8561, 2.0
        %v8621 = vadd.f32 %v8563, 2.0
        %v8622 = vadd.f32 %v8565, 2.0
        %v8623 = vadd.f32 %v8567, 2.0
        %v8624 = vadd.f32 %v8569, 2.0
        %v8625 = vadd.f32 %v8571, 2.0
        %v8626 = vadd.f32 %v8573, 2.0
        %v8627 = vadd.f32 %v8575, 2.0
        %v8628 = vadd.f32 %v8577, 2.0
        %v8629 = vadd.f32 %v8579, 2.0
        %v8630 = vadd.f32 %v8581, 2.0
        %v8631 = vadd.f32 %v8583, 2.0
        %v8632 = vadd.f32 %v8585, 2.0
        %v8633 = vadd.f32 %v8587, 2.0
        %v8634 = vadd.f32 %v8589, 2.0
        %v8635 = vadd.f32 %v8591, 2.0
        %v8636 = vadd.f32 %v8593, 2.0
        %v8637 = vadd.f32 %v8595, 2.0
        %v8638 = vadd.f32 %v8597, 2.0
        %v8639 = vadd.f32 %v8599, 2.0
        %v8640 = vadd.f32 %v8601, 2.0
        %v8641 = vadd.f32 %v8603, 2.0
        %v8642 = vadd.f32 %v8605, 2.0
        %v8643 = vadd.f32 %v8607, 2.0
        %v8644 = vadd.f32 %v8609, 2.0
        %v8645 = vadd.f32 %v8611, 2.0
        %v8646 = vadd.f32 %v8613, 2.0
        %v8647 = vadd.f32 %v8615, 2.0
        %v8648 = vmul.f32 %v8553, %v8616
        %v8649 = vmul.f32 %v8555, %v8617
        %v8650 = vmul.f32 %v8557, %v8618
        %v8651 = vmul.f32 %v8559, %v8619
        %v8652 = vmul.f32 %v8561, %v8620
        %v8653 = vmul.f32 %v8563, %v8621
        %v8654 = vmul.f32 %v8565, %v8622
        %v8655 = vmul.f32 %v8567, %v8623
        %v8656 = vmul.f32 %v8569, %v8624
        %v8657 = vmul.f32 %v8571, %v8625
        %v8658 = vmul.f32 %v8573, %v8626
        %v8659 = vmul.f32 %v8575, %v8627
        %v8660 = vmul.f32 %v8577, %v8628
        %v8661 = vmul.f32 %v8579, %v8629
        %v8662 = vmul.f32 %v8581, %v8630
        %v8663 = vmul.f32 %v8583, %v8631
        %v8664 = vmul.f32 %v8585, %v8632
        %v8665 = vmul.f32 %v8587, %v8633
        %v8666 = vmul.f32 %v8589, %v8634
        %v8667 = vmul.f32 %v8591, %v8635
        %v8668 = vmul.f32 %v8593, %v8636
        %v8669 = vmul.f32 %v8595, %v8637
        %v8670 = vmul.f32 %v8597, %v8638
        %v8671 = vmul.f32 %v8599, %v8639
        %v8672 = vmul.f32 %v8601, %v8640
        %v8673 = vmul.f32 %v8603, %v8641
        %v8674 = vmul.f32 %v8605, %v8642
        %v8675 = vmul.f32 %v8607, %v8643
        %v8676 = vmul.f32 %v8609, %v8644
        %v8677 = vmul.f32 %v8611, %v8645
        %v8678 = vmul.f32 %v8613, %v8646
        %v8679 = vmul.f32 %v8615, %v8647
        %v8680 = vmul.f32 %v8488, %v8648
        %v8681 = vmul.f32 %v8489, %v8649
        %v8682 = vmul.f32 %v8490, %v8650
        %v8683 = vmul.f32 %v8491, %v8651
        %v8684 = vmul.f32 %v8492, %v8652
        %v8685 = vmul.f32 %v8493, %v8653
        %v8686 = vmul.f32 %v8494, %v8654
        %v8687 = vmul.f32 %v8495, %v8655
        %v8688 = vmul.f32 %v8496, %v8656
        %v8689 = vmul.f32 %v8497, %v8657
        %v8690 = vmul.f32 %v8498, %v8658
        %v8691 = vmul.f32 %v8499, %v8659
        %v8692 = vmul.f32 %v8500, %v8660
        %v8693 = vmul.f32 %v8501, %v8661
        %v8694 = vmul.f32 %v8502, %v8662
        %v8695 = vmul.f32 %v8503, %v8663
        %v8696 = vmul.f32 %v8504, %v8664
        %v8697 = vmul.f32 %v8505, %v8665
        %v8698 = vmul.f32 %v8506, %v8666
        %v8699 = vmul.f32 %v8507, %v8667
        %v8700 = vmul.f32 %v8508, %v8668
        %v8701 = vmul.f32 %v8509, %v8669
        %v8702 = vmul.f32 %v8510, %v8670
        %v8703 = vmul.f32 %v8511, %v8671
        %v8704 = vmul.f32 %v8512, %v8672
        %v8705 = vmul.f32 %v8513, %v8673
        %v8706 = vmul.f32 %v8514, %v8674
        %v8707 = vmul.f32 %v8515, %v8675
        %v8708 = vmul.f32 %v8516, %v8676
        %v8709 = vmul.f32 %v8517, %v8677
        %v8710 = vmul.f32 %v8518, %v8678
        %v8711 = vmul.f32 %v8519, %v8679
        %v8712 = vadd.f32 %v8648, 2.0
        %v8713 = vadd.f32 %v8649, 2.0
        %v8714 = vadd.f32 %v8650, 2.0
        %v8715 = vadd.f32 %v8651, 2.0
        %v8716 = vadd.f32 %v8652, 2.0
        %v8717 = vadd.f32 %v8653, 2.0
        %v8718 = vadd.f32 %v8654, 2.0
        %v8719 = vadd.f32 %v8655, 2.0
        %v8720 = vadd.f32 %v8656, 2.0
        %v8721 = vadd.f32 %v8657, 2.0
        %v8722 = vadd.f32 %v8658, 2.0
        %v8723 = vadd.f32 %v8659, 2.0
        %v8724 = vadd.f32 %v8660, 2.0
        %v8725 = vadd.f32 %v8661, 2.0
        %v8726 = vadd.f32 %v8662, 2.0
        %v8727 = vadd.f32 %v8663, 2.0
        %v8728 = vadd.f32 %v8664, 2.0
        %v8729 = vadd.f32 %v8665, 2.0
        %v8730 = vadd.f32 %v8666, 2.0
        %v8731 = vadd.f32 %v8667, 2.0
        %v8732 = vadd.f32 %v8668, 2.0
        %v8733 = vadd.f32 %v8669, 2.0
        %v8734 = vadd.f32 %v8670, 2.0
        %v8735 = vadd.f32 %v8671, 2.0
        %v8736 = vadd.f32 %v8672, 2.0
        %v8737 = vadd.f32 %v8673, 2.0
        %v8738 = vadd.f32 %v8674, 2.0
        %v8739 = vadd.f32 %v8675, 2.0
        %v8740 = vadd.f32 %v8676, 2.0
        %v8741 = vadd.f32 %v8677, 2.0
        %v8742 = vadd.f32 %v8678, 2.0
        %v8743 = vadd.f32 %v8679, 2.0
        %v8744 = vrcp.pop %v8712
        %v8745 = vrcp.pop %v8713
        %v8746 = vrcp.pop %v8714
        %v8747 = vrcp.pop %v8715
        %v8748 = vrcp.pop %v8716
        %v8749 = vrcp.pop %v8717
        %v8750 = vrcp.pop %v8718
        %v8751 = vrcp.pop %v8719
        %v8752 = vrcp.pop %v8720
        %v8753 = vrcp.pop %v8721
        %v8754 = vrcp.pop %v8722
        %v8755 = vrcp.pop %v8723
        %v8756 = vrcp.pop %v8724
        %v8757 = vrcp.pop %v8725
        %v8758 = vrcp.pop %v8726
        %v8759 = vrcp.pop %v8727
        %v8760 = vrcp.pop %v8728
        %v8761 = vrcp.pop %v8729
        %v8762 = vrcp.pop %v8730
        %v8763 = vrcp.pop %v8731
        %v8764 = vrcp.pop %v8732
        %v8765 = vrcp.pop %v8733
        %v8766 = vrcp.pop %v8734
        %v8767 = vrcp.pop %v8735
        %v8768 = vrcp.pop %v8736
        %v8769 = vrcp.pop %v8737
        %v8770 = vrcp.pop %v8738
        %v8771 = vrcp.pop %v8739
        %v8772 = vrcp.pop %v8740
        %v8773 = vrcp.pop %v8741
        %v8774 = vrcp.pop %v8742
        %v8775 = vrcp.pop %v8743
        %v8776 = vmul.f32 %v8680, %v8744
        %v8777 = vmul.f32 %v8681, %v8745
        %v8778 = vmul.f32 %v8682, %v8746
        %v8779 = vmul.f32 %v8683, %v8747
        %v8780 = vmul.f32 %v8684, %v8748
        %v8781 = vmul.f32 %v8685, %v8749
        %v8782 = vmul.f32 %v8686, %v8750
        %v8783 = vmul.f32 %v8687, %v8751
        %v8784 = vmul.f32 %v8688, %v8752
        %v8785 = vmul.f32 %v8689, %v8753
        %v8786 = vmul.f32 %v8690, %v8754
        %v8787 = vmul.f32 %v8691, %v8755
        %v8788 = vmul.f32 %v8692, %v8756
        %v8789 = vmul.f32 %v8693, %v8757
        %v8790 = vmul.f32 %v8694, %v8758
        %v8791 = vmul.f32 %v8695, %v8759
        %v8792 = vmul.f32 %v8696, %v8760
        %v8793 = vmul.f32 %v8697, %v8761
        %v8794 = vmul.f32 %v8698, %v8762
        %v8795 = vmul.f32 %v8699, %v8763
        %v8796 = vmul.f32 %v8700, %v8764
        %v8797 = vmul.f32 %v8701, %v8765
        %v8798 = vmul.f32 %v8702, %v8766
        %v8799 = vmul.f32 %v8703, %v8767
        %v8800 = vmul.f32 %v8704, %v8768
        %v8801 = vmul.f32 %v8705, %v8769
        %v8802 = vmul.f32 %v8706, %v8770
        %v8803 = vmul.f32 %v8707, %v8771
        %v8804 = vmul.f32 %v8708, %v8772
        %v8805 = vmul.f32 %v8709, %v8773
        %v8806 = vmul.f32 %v8710, %v8774
        %v8807 = vmul.f32 %v8711, %v8775
        %vm8808 = vcmp.gt.f32.partialorder %v8488, 20.0
        %vm8809 = vcmp.gt.f32.partialorder %v8489, 20.0
        %vm8810 = vcmp.gt.f32.partialorder %v8490, 20.0
        %vm8811 = vcmp.gt.f32.partialorder %v8491, 20.0
        %vm8812 = vcmp.gt.f32.partialorder %v8492, 20.0
        %vm8813 = vcmp.gt.f32.partialorder %v8493, 20.0
        %vm8814 = vcmp.gt.f32.partialorder %v8494, 20.0
        %vm8815 = vcmp.gt.f32.partialorder %v8495, 20.0
        %vm8816 = vcmp.gt.f32.partialorder %v8496, 20.0
        %vm8817 = vcmp.gt.f32.partialorder %v8497, 20.0
        %vm8818 = vcmp.gt.f32.partialorder %v8498, 20.0
        %vm8819 = vcmp.gt.f32.partialorder %v8499, 20.0
        %vm8820 = vcmp.gt.f32.partialorder %v8500, 20.0
        %vm8821 = vcmp.gt.f32.partialorder %v8501, 20.0
        %vm8822 = vcmp.gt.f32.partialorder %v8502, 20.0
        %vm8823 = vcmp.gt.f32.partialorder %v8503, 20.0
        %vm8824 = vcmp.gt.f32.partialorder %v8504, 20.0
        %vm8825 = vcmp.gt.f32.partialorder %v8505, 20.0
        %vm8826 = vcmp.gt.f32.partialorder %v8506, 20.0
        %vm8827 = vcmp.gt.f32.partialorder %v8507, 20.0
        %vm8828 = vcmp.gt.f32.partialorder %v8508, 20.0
        %vm8829 = vcmp.gt.f32.partialorder %v8509, 20.0
        %vm8830 = vcmp.gt.f32.partialorder %v8510, 20.0
        %vm8831 = vcmp.gt.f32.partialorder %v8511, 20.0
        %vm8832 = vcmp.gt.f32.partialorder %v8512, 20.0
        %vm8833 = vcmp.gt.f32.partialorder %v8513, 20.0
        %vm8834 = vcmp.gt.f32.partialorder %v8514, 20.0
        %vm8835 = vcmp.gt.f32.partialorder %v8515, 20.0
        %vm8836 = vcmp.gt.f32.partialorder %v8516, 20.0
        %vm8837 = vcmp.gt.f32.partialorder %v8517, 20.0
        %vm8838 = vcmp.gt.f32.partialorder %v8518, 20.0
        %vm8839 = vcmp.gt.f32.partialorder %v8519, 20.0
        %v8840 = vsel %vm8808, %v8488, %v8776
        %v8841 = vsel %vm8809, %v8489, %v8777
        %v8842 = vsel %vm8810, %v8490, %v8778
        %v8843 = vsel %vm8811, %v8491, %v8779
        %v8844 = vsel %vm8812, %v8492, %v8780
        %v8845 = vsel %vm8813, %v8493, %v8781
        %v8846 = vsel %vm8814, %v8494, %v8782
        %v8847 = vsel %vm8815, %v8495, %v8783
        %v8848 = vsel %vm8816, %v8496, %v8784
        %v8849 = vsel %vm8817, %v8497, %v8785
        %v8850 = vsel %vm8818, %v8498, %v8786
        %v8851 = vsel %vm8819, %v8499, %v8787
        %v8852 = vsel %vm8820, %v8500, %v8788
        %v8853 = vsel %vm8821, %v8501, %v8789
        %v8854 = vsel %vm8822, %v8502, %v8790
        %v8855 = vsel %vm8823, %v8503, %v8791
        %v8856 = vsel %vm8824, %v8504, %v8792
        %v8857 = vsel %vm8825, %v8505, %v8793
        %v8858 = vsel %vm8826, %v8506, %v8794
        %v8859 = vsel %vm8827, %v8507, %v8795
        %v8860 = vsel %vm8828, %v8508, %v8796
        %v8861 = vsel %vm8829, %v8509, %v8797
        %v8862 = vsel %vm8830, %v8510, %v8798
        %v8863 = vsel %vm8831, %v8511, %v8799
        %v8864 = vsel %vm8832, %v8512, %v8800
        %v8865 = vsel %vm8833, %v8513, %v8801
        %v8866 = vsel %vm8834, %v8514, %v8802
        %v8867 = vsel %vm8835, %v8515, %v8803
        %v8868 = vsel %vm8836, %v8516, %v8804
        %v8869 = vsel %vm8837, %v8517, %v8805
        %v8870 = vsel %vm8838, %v8518, %v8806
        %v8871 = vsel %vm8839, %v8519, %v8807
        %v8872 = vld [vmem:[%s4] sm:$0xf]
        %v8873 = vld [vmem:[%s4 + $0x4] sm:$0xf]
        %v8874 = vld [vmem:[%s4 + $0x8] sm:$0xf]
        %v8875 = vld [vmem:[%s4 + $0xc] sm:$0xf]
        %v8880 = vunpack.c.l.b16 %v8872
        %v8881 = vunpack.c.l.b16 %v8873
        %v8882 = vunpack.c.l.b16 %v8874
        %v8883 = vunpack.c.l.b16 %v8875
        %v8884 = vpack.c.b16 %v8881, %v8880
        %v8885 = vpack.c.b16 %v8883, %v8882
        %v8887 = vsel %vm824, %v8884, 0
        %v8890 = vsel %vm824, %v8885, 0
        %8892 = vmatpush.bf16.msra.mxu0 0
        %8893 = vmatpush.bf16.msra.mxu0 0
        %8894 = vmatpush.bf16.msra.mxu0 0
        %8895 = vmatpush.bf16.msra.mxu0 0
        %8896 = vmatpush.bf16.msra.mxu0 0
        %8897 = vmatpush.bf16.msra.mxu0 0
        %8898 = vmatpush.bf16.msra.mxu0 0
        %8899 = vmatpush.bf16.msra.mxu0 %v820
        %8900 = vmatmul.bf16.gmra.mxu0 %v8887
        %v8901 = vpop.f32.mrf.mxu0
        %v8902 = vadd.f32 0.0, %v8901
        %v8903 = vpop.f32.mrf.mxu0
        %v8904 = vadd.f32 0.0, %v8903
        %8905 = vmatmul.bf16.gmra.mxu0 %v8890
        %v8906 = vpop.f32.mrf.mxu0
        %v8907 = vadd.f32 0.0, %v8906
        %v8908 = vpop.f32.mrf.mxu0
        %v8909 = vadd.f32 0.0, %v8908
        %8910 = vdwg.mxu0
        %8911 = vmatpush.bf16.msra.mxu0 0
        %8912 = vmatpush.bf16.msra.mxu0 0
        %8913 = vmatpush.bf16.msra.mxu0 0
        %8914 = vmatpush.bf16.msra.mxu0 0
        %8915 = vmatpush.bf16.msra.mxu0 0
        %8916 = vmatpush.bf16.msra.mxu0 0
        %8917 = vmatpush.bf16.msra.mxu0 0
        %8918 = vmatpush.bf16.msra.mxu0 %v821
        %8919 = vmatmul.bf16.gmra.mxu0 %v8887
        %v8920 = vpop.f32.mrf.mxu0
        %v8921 = vadd.f32 0.0, %v8920
        %v8922 = vpop.f32.mrf.mxu0
        %v8923 = vadd.f32 0.0, %v8922
        %8924 = vmatmul.bf16.gmra.mxu0 %v8890
        %v8925 = vpop.f32.mrf.mxu0
        %v8926 = vadd.f32 0.0, %v8925
        %v8927 = vpop.f32.mrf.mxu0
        %v8928 = vadd.f32 0.0, %v8927
        %8929 = vdwg.mxu0
        %v8930 = vld [vmem:[%s17] sm:$0x1]
        %v8932 = vperm.slane %v8930, 0
        %v8934 = vmul.f32 %v8840, %v8932
        %v8935 = vmul.f32 %v8841, %v8932
        %v8936 = vmul.f32 %v8842, %v8932
        %v8937 = vmul.f32 %v8843, %v8932
        %v8938 = vmul.f32 %v8844, %v8932
        %v8939 = vmul.f32 %v8845, %v8932
        %v8940 = vmul.f32 %v8846, %v8932
        %v8941 = vmul.f32 %v8847, %v8932
        %v8942 = vmul.f32 %v8848, %v8932
        %v8943 = vmul.f32 %v8849, %v8932
        %v8944 = vmul.f32 %v8850, %v8932
        %v8945 = vmul.f32 %v8851, %v8932
        %v8946 = vmul.f32 %v8852, %v8932
        %v8947 = vmul.f32 %v8853, %v8932
        %v8948 = vmul.f32 %v8854, %v8932
        %v8949 = vmul.f32 %v8855, %v8932
        %v8950 = vmul.f32 %v8856, %v8932
        %v8951 = vmul.f32 %v8857, %v8932
        %v8952 = vmul.f32 %v8858, %v8932
        %v8953 = vmul.f32 %v8859, %v8932
        %v8954 = vmul.f32 %v8860, %v8932
        %v8955 = vmul.f32 %v8861, %v8932
        %v8956 = vmul.f32 %v8862, %v8932
        %v8957 = vmul.f32 %v8863, %v8932
        %v8958 = vmul.f32 %v8864, %v8932
        %v8959 = vmul.f32 %v8865, %v8932
        %v8960 = vmul.f32 %v8866, %v8932
        %v8961 = vmul.f32 %v8867, %v8932
        %v8962 = vmul.f32 %v8868, %v8932
        %v8963 = vmul.f32 %v8869, %v8932
        %v8964 = vmul.f32 %v8870, %v8932
        %v8965 = vmul.f32 %v8871, %v8932
        %v8966 = vld [vmem:[%s18] sm:$0x1]
        %v8968 = vperm.slane %v8966, 0
        %v8970 = vadd.f32 %v8934, %v8968
        %v8971 = vadd.f32 %v8935, %v8968
        %v8972 = vadd.f32 %v8936, %v8968
        %v8973 = vadd.f32 %v8937, %v8968
        %v8974 = vadd.f32 %v8938, %v8968
        %v8975 = vadd.f32 %v8939, %v8968
        %v8976 = vadd.f32 %v8940, %v8968
        %v8977 = vadd.f32 %v8941, %v8968
        %v8978 = vadd.f32 %v8942, %v8968
        %v8979 = vadd.f32 %v8943, %v8968
        %v8980 = vadd.f32 %v8944, %v8968
        %v8981 = vadd.f32 %v8945, %v8968
        %v8982 = vadd.f32 %v8946, %v8968
        %v8983 = vadd.f32 %v8947, %v8968
        %v8984 = vadd.f32 %v8948, %v8968
        %v8985 = vadd.f32 %v8949, %v8968
        %v8986 = vadd.f32 %v8950, %v8968
        %v8987 = vadd.f32 %v8951, %v8968
        %v8988 = vadd.f32 %v8952, %v8968
        %v8989 = vadd.f32 %v8953, %v8968
        %v8990 = vadd.f32 %v8954, %v8968
        %v8991 = vadd.f32 %v8955, %v8968
        %v8992 = vadd.f32 %v8956, %v8968
        %v8993 = vadd.f32 %v8957, %v8968
        %v8994 = vadd.f32 %v8958, %v8968
        %v8995 = vadd.f32 %v8959, %v8968
        %v8996 = vadd.f32 %v8960, %v8968
        %v8997 = vadd.f32 %v8961, %v8968
        %v8998 = vadd.f32 %v8962, %v8968
        %v8999 = vadd.f32 %v8963, %v8968
        %v9000 = vadd.f32 %v8964, %v8968
        %v9001 = vadd.f32 %v8965, %v8968
        %v9002 = vmin.f32 %v8970, 20.0
        %v9003 = vmin.f32 %v8971, 20.0
        %v9004 = vmin.f32 %v8972, 20.0
        %v9005 = vmin.f32 %v8973, 20.0
        %v9006 = vmin.f32 %v8974, 20.0
        %v9007 = vmin.f32 %v8975, 20.0
        %v9008 = vmin.f32 %v8976, 20.0
        %v9009 = vmin.f32 %v8977, 20.0
        %v9010 = vmin.f32 %v8978, 20.0
        %v9011 = vmin.f32 %v8979, 20.0
        %v9012 = vmin.f32 %v8980, 20.0
        %v9013 = vmin.f32 %v8981, 20.0
        %v9014 = vmin.f32 %v8982, 20.0
        %v9015 = vmin.f32 %v8983, 20.0
        %v9016 = vmin.f32 %v8984, 20.0
        %v9017 = vmin.f32 %v8985, 20.0
        %v9018 = vmin.f32 %v8986, 20.0
        %v9019 = vmin.f32 %v8987, 20.0
        %v9020 = vmin.f32 %v8988, 20.0
        %v9021 = vmin.f32 %v8989, 20.0
        %v9022 = vmin.f32 %v8990, 20.0
        %v9023 = vmin.f32 %v8991, 20.0
        %v9024 = vmin.f32 %v8992, 20.0
        %v9025 = vmin.f32 %v8993, 20.0
        %v9026 = vmin.f32 %v8994, 20.0
        %v9027 = vmin.f32 %v8995, 20.0
        %v9028 = vmin.f32 %v8996, 20.0
        %v9029 = vmin.f32 %v8997, 20.0
        %v9030 = vmin.f32 %v8998, 20.0
        %v9031 = vmin.f32 %v8999, 20.0
        %v9032 = vmin.f32 %v9000, 20.0
        %v9033 = vmin.f32 %v9001, 20.0
        %v9034 = vmul.f32 %v9002, 1.442695
        %v9035 = vpow.pop %v9034
        %v9036 = vmul.f32 %v9003, 1.442695
        %v9037 = vpow.pop %v9036
        %v9038 = vmul.f32 %v9004, 1.442695
        %v9039 = vpow.pop %v9038
        %v9040 = vmul.f32 %v9005, 1.442695
        %v9041 = vpow.pop %v9040
        %v9042 = vmul.f32 %v9006, 1.442695
        %v9043 = vpow.pop %v9042
        %v9044 = vmul.f32 %v9007, 1.442695
        %v9045 = vpow.pop %v9044
        %v9046 = vmul.f32 %v9008, 1.442695
        %v9047 = vpow.pop %v9046
        %v9048 = vmul.f32 %v9009, 1.442695
        %v9049 = vpow.pop %v9048
        %v9050 = vmul.f32 %v9010, 1.442695
        %v9051 = vpow.pop %v9050
        %v9052 = vmul.f32 %v9011, 1.442695
        %v9053 = vpow.pop %v9052
        %v9054 = vmul.f32 %v9012, 1.442695
        %v9055 = vpow.pop %v9054
        %v9056 = vmul.f32 %v9013, 1.442695
        %v9057 = vpow.pop %v9056
        %v9058 = vmul.f32 %v9014, 1.442695
        %v9059 = vpow.pop %v9058
        %v9060 = vmul.f32 %v9015, 1.442695
        %v9061 = vpow.pop %v9060
        %v9062 = vmul.f32 %v9016, 1.442695
        %v9063 = vpow.pop %v9062
        %v9064 = vmul.f32 %v9017, 1.442695
        %v9065 = vpow.pop %v9064
        %v9066 = vmul.f32 %v9018, 1.442695
        %v9067 = vpow.pop %v9066
        %v9068 = vmul.f32 %v9019, 1.442695
        %v9069 = vpow.pop %v9068
        %v9070 = vmul.f32 %v9020, 1.442695
        %v9071 = vpow.pop %v9070
        %v9072 = vmul.f32 %v9021, 1.442695
        %v9073 = vpow.pop %v9072
        %v9074 = vmul.f32 %v9022, 1.442695
        %v9075 = vpow.pop %v9074
        %v9076 = vmul.f32 %v9023, 1.442695
        %v9077 = vpow.pop %v9076
        %v9078 = vmul.f32 %v9024, 1.442695
        %v9079 = vpow.pop %v9078
        %v9080 = vmul.f32 %v9025, 1.442695
        %v9081 = vpow.pop %v9080
        %v9082 = vmul.f32 %v9026, 1.442695
        %v9083 = vpow.pop %v9082
        %v9084 = vmul.f32 %v9027, 1.442695
        %v9085 = vpow.pop %v9084
        %v9086 = vmul.f32 %v9028, 1.442695
        %v9087 = vpow.pop %v9086
        %v9088 = vmul.f32 %v9029, 1.442695
        %v9089 = vpow.pop %v9088
        %v9090 = vmul.f32 %v9030, 1.442695
        %v9091 = vpow.pop %v9090
        %v9092 = vmul.f32 %v9031, 1.442695
        %v9093 = vpow.pop %v9092
        %v9094 = vmul.f32 %v9032, 1.442695
        %v9095 = vpow.pop %v9094
        %v9096 = vmul.f32 %v9033, 1.442695
        %v9097 = vpow.pop %v9096
        %v9098 = vadd.f32 %v9035, 2.0
        %v9099 = vadd.f32 %v9037, 2.0
        %v9100 = vadd.f32 %v9039, 2.0
        %v9101 = vadd.f32 %v9041, 2.0
        %v9102 = vadd.f32 %v9043, 2.0
        %v9103 = vadd.f32 %v9045, 2.0
        %v9104 = vadd.f32 %v9047, 2.0
        %v9105 = vadd.f32 %v9049, 2.0
        %v9106 = vadd.f32 %v9051, 2.0
        %v9107 = vadd.f32 %v9053, 2.0
        %v9108 = vadd.f32 %v9055, 2.0
        %v9109 = vadd.f32 %v9057, 2.0
        %v9110 = vadd.f32 %v9059, 2.0
        %v9111 = vadd.f32 %v9061, 2.0
        %v9112 = vadd.f32 %v9063, 2.0
        %v9113 = vadd.f32 %v9065, 2.0
        %v9114 = vadd.f32 %v9067, 2.0
        %v9115 = vadd.f32 %v9069, 2.0
        %v9116 = vadd.f32 %v9071, 2.0
        %v9117 = vadd.f32 %v9073, 2.0
        %v9118 = vadd.f32 %v9075, 2.0
        %v9119 = vadd.f32 %v9077, 2.0
        %v9120 = vadd.f32 %v9079, 2.0
        %v9121 = vadd.f32 %v9081, 2.0
        %v9122 = vadd.f32 %v9083, 2.0
        %v9123 = vadd.f32 %v9085, 2.0
        %v9124 = vadd.f32 %v9087, 2.0
        %v9125 = vadd.f32 %v9089, 2.0
        %v9126 = vadd.f32 %v9091, 2.0
        %v9127 = vadd.f32 %v9093, 2.0
        %v9128 = vadd.f32 %v9095, 2.0
        %v9129 = vadd.f32 %v9097, 2.0
        %v9130 = vmul.f32 %v9035, %v9098
        %v9131 = vmul.f32 %v9037, %v9099
        %v9132 = vmul.f32 %v9039, %v9100
        %v9133 = vmul.f32 %v9041, %v9101
        %v9134 = vmul.f32 %v9043, %v9102
        %v9135 = vmul.f32 %v9045, %v9103
        %v9136 = vmul.f32 %v9047, %v9104
        %v9137 = vmul.f32 %v9049, %v9105
        %v9138 = vmul.f32 %v9051, %v9106
        %v9139 = vmul.f32 %v9053, %v9107
        %v9140 = vmul.f32 %v9055, %v9108
        %v9141 = vmul.f32 %v9057, %v9109
        %v9142 = vmul.f32 %v9059, %v9110
        %v9143 = vmul.f32 %v9061, %v9111
        %v9144 = vmul.f32 %v9063, %v9112
        %v9145 = vmul.f32 %v9065, %v9113
        %v9146 = vmul.f32 %v9067, %v9114
        %v9147 = vmul.f32 %v9069, %v9115
        %v9148 = vmul.f32 %v9071, %v9116
        %v9149 = vmul.f32 %v9073, %v9117
        %v9150 = vmul.f32 %v9075, %v9118
        %v9151 = vmul.f32 %v9077, %v9119
        %v9152 = vmul.f32 %v9079, %v9120
        %v9153 = vmul.f32 %v9081, %v9121
        %v9154 = vmul.f32 %v9083, %v9122
        %v9155 = vmul.f32 %v9085, %v9123
        %v9156 = vmul.f32 %v9087, %v9124
        %v9157 = vmul.f32 %v9089, %v9125
        %v9158 = vmul.f32 %v9091, %v9126
        %v9159 = vmul.f32 %v9093, %v9127
        %v9160 = vmul.f32 %v9095, %v9128
        %v9161 = vmul.f32 %v9097, %v9129
        %v9162 = vmul.f32 %v8970, %v9130
        %v9163 = vmul.f32 %v8971, %v9131
        %v9164 = vmul.f32 %v8972, %v9132
        %v9165 = vmul.f32 %v8973, %v9133
        %v9166 = vmul.f32 %v8974, %v9134
        %v9167 = vmul.f32 %v8975, %v9135
        %v9168 = vmul.f32 %v8976, %v9136
        %v9169 = vmul.f32 %v8977, %v9137
        %v9170 = vmul.f32 %v8978, %v9138
        %v9171 = vmul.f32 %v8979, %v9139
        %v9172 = vmul.f32 %v8980, %v9140
        %v9173 = vmul.f32 %v8981, %v9141
        %v9174 = vmul.f32 %v8982, %v9142
        %v9175 = vmul.f32 %v8983, %v9143
        %v9176 = vmul.f32 %v8984, %v9144
        %v9177 = vmul.f32 %v8985, %v9145
        %v9178 = vmul.f32 %v8986, %v9146
        %v9179 = vmul.f32 %v8987, %v9147
        %v9180 = vmul.f32 %v8988, %v9148
        %v9181 = vmul.f32 %v8989, %v9149
        %v9182 = vmul.f32 %v8990, %v9150
        %v9183 = vmul.f32 %v8991, %v9151
        %v9184 = vmul.f32 %v8992, %v9152
        %v9185 = vmul.f32 %v8993, %v9153
        %v9186 = vmul.f32 %v8994, %v9154
        %v9187 = vmul.f32 %v8995, %v9155
        %v9188 = vmul.f32 %v8996, %v9156
        %v9189 = vmul.f32 %v8997, %v9157
        %v9190 = vmul.f32 %v8998, %v9158
        %v9191 = vmul.f32 %v8999, %v9159
        %v9192 = vmul.f32 %v9000, %v9160
        %v9193 = vmul.f32 %v9001, %v9161
        %v9194 = vadd.f32 %v9130, 2.0
        %v9195 = vadd.f32 %v9131, 2.0
        %v9196 = vadd.f32 %v9132, 2.0
        %v9197 = vadd.f32 %v9133, 2.0
        %v9198 = vadd.f32 %v9134, 2.0
        %v9199 = vadd.f32 %v9135, 2.0
        %v9200 = vadd.f32 %v9136, 2.0
        %v9201 = vadd.f32 %v9137, 2.0
        %v9202 = vadd.f32 %v9138, 2.0
        %v9203 = vadd.f32 %v9139, 2.0
        %v9204 = vadd.f32 %v9140, 2.0
        %v9205 = vadd.f32 %v9141, 2.0
        %v9206 = vadd.f32 %v9142, 2.0
        %v9207 = vadd.f32 %v9143, 2.0
        %v9208 = vadd.f32 %v9144, 2.0
        %v9209 = vadd.f32 %v9145, 2.0
        %v9210 = vadd.f32 %v9146, 2.0
        %v9211 = vadd.f32 %v9147, 2.0
        %v9212 = vadd.f32 %v9148, 2.0
        %v9213 = vadd.f32 %v9149, 2.0
        %v9214 = vadd.f32 %v9150, 2.0
        %v9215 = vadd.f32 %v9151, 2.0
        %v9216 = vadd.f32 %v9152, 2.0
        %v9217 = vadd.f32 %v9153, 2.0
        %v9218 = vadd.f32 %v9154, 2.0
        %v9219 = vadd.f32 %v9155, 2.0
        %v9220 = vadd.f32 %v9156, 2.0
        %v9221 = vadd.f32 %v9157, 2.0
        %v9222 = vadd.f32 %v9158, 2.0
        %v9223 = vadd.f32 %v9159, 2.0
        %v9224 = vadd.f32 %v9160, 2.0
        %v9225 = vadd.f32 %v9161, 2.0
        %v9226 = vrcp.pop %v9194
        %v9227 = vrcp.pop %v9195
        %v9228 = vrcp.pop %v9196
        %v9229 = vrcp.pop %v9197
        %v9230 = vrcp.pop %v9198
        %v9231 = vrcp.pop %v9199
        %v9232 = vrcp.pop %v9200
        %v9233 = vrcp.pop %v9201
        %v9234 = vrcp.pop %v9202
        %v9235 = vrcp.pop %v9203
        %v9236 = vrcp.pop %v9204
        %v9237 = vrcp.pop %v9205
        %v9238 = vrcp.pop %v9206
        %v9239 = vrcp.pop %v9207
        %v9240 = vrcp.pop %v9208
        %v9241 = vrcp.pop %v9209
        %v9242 = vrcp.pop %v9210
        %v9243 = vrcp.pop %v9211
        %v9244 = vrcp.pop %v9212
        %v9245 = vrcp.pop %v9213
        %v9246 = vrcp.pop %v9214
        %v9247 = vrcp.pop %v9215
        %v9248 = vrcp.pop %v9216
        %v9249 = vrcp.pop %v9217
        %v9250 = vrcp.pop %v9218
        %v9251 = vrcp.pop %v9219
        %v9252 = vrcp.pop %v9220
        %v9253 = vrcp.pop %v9221
        %v9254 = vrcp.pop %v9222
        %v9255 = vrcp.pop %v9223
        %v9256 = vrcp.pop %v9224
        %v9257 = vrcp.pop %v9225
        %v9258 = vmul.f32 %v9162, %v9226
        %v9259 = vmul.f32 %v9163, %v9227
        %v9260 = vmul.f32 %v9164, %v9228
        %v9261 = vmul.f32 %v9165, %v9229
        %v9262 = vmul.f32 %v9166, %v9230
        %v9263 = vmul.f32 %v9167, %v9231
        %v9264 = vmul.f32 %v9168, %v9232
        %v9265 = vmul.f32 %v9169, %v9233
        %v9266 = vmul.f32 %v9170, %v9234
        %v9267 = vmul.f32 %v9171, %v9235
        %v9268 = vmul.f32 %v9172, %v9236
        %v9269 = vmul.f32 %v9173, %v9237
        %v9270 = vmul.f32 %v9174, %v9238
        %v9271 = vmul.f32 %v9175, %v9239
        %v9272 = vmul.f32 %v9176, %v9240
        %v9273 = vmul.f32 %v9177, %v9241
        %v9274 = vmul.f32 %v9178, %v9242
        %v9275 = vmul.f32 %v9179, %v9243
        %v9276 = vmul.f32 %v9180, %v9244
        %v9277 = vmul.f32 %v9181, %v9245
        %v9278 = vmul.f32 %v9182, %v9246
        %v9279 = vmul.f32 %v9183, %v9247
        %v9280 = vmul.f32 %v9184, %v9248
        %v9281 = vmul.f32 %v9185, %v9249
        %v9282 = vmul.f32 %v9186, %v9250
        %v9283 = vmul.f32 %v9187, %v9251
        %v9284 = vmul.f32 %v9188, %v9252
        %v9285 = vmul.f32 %v9189, %v9253
        %v9286 = vmul.f32 %v9190, %v9254
        %v9287 = vmul.f32 %v9191, %v9255
        %v9288 = vmul.f32 %v9192, %v9256
        %v9289 = vmul.f32 %v9193, %v9257
        %vm9290 = vcmp.gt.f32.partialorder %v8970, 20.0
        %vm9291 = vcmp.gt.f32.partialorder %v8971, 20.0
        %vm9292 = vcmp.gt.f32.partialorder %v8972, 20.0
        %vm9293 = vcmp.gt.f32.partialorder %v8973, 20.0
        %vm9294 = vcmp.gt.f32.partialorder %v8974, 20.0
        %vm9295 = vcmp.gt.f32.partialorder %v8975, 20.0
        %vm9296 = vcmp.gt.f32.partialorder %v8976, 20.0
        %vm9297 = vcmp.gt.f32.partialorder %v8977, 20.0
        %vm9298 = vcmp.gt.f32.partialorder %v8978, 20.0
        %vm9299 = vcmp.gt.f32.partialorder %v8979, 20.0
        %vm9300 = vcmp.gt.f32.partialorder %v8980, 20.0
        %vm9301 = vcmp.gt.f32.partialorder %v8981, 20.0
        %vm9302 = vcmp.gt.f32.partialorder %v8982, 20.0
        %vm9303 = vcmp.gt.f32.partialorder %v8983, 20.0
        %vm9304 = vcmp.gt.f32.partialorder %v8984, 20.0
        %vm9305 = vcmp.gt.f32.partialorder %v8985, 20.0
        %vm9306 = vcmp.gt.f32.partialorder %v8986, 20.0
        %vm9307 = vcmp.gt.f32.partialorder %v8987, 20.0
        %vm9308 = vcmp.gt.f32.partialorder %v8988, 20.0
        %vm9309 = vcmp.gt.f32.partialorder %v8989, 20.0
        %vm9310 = vcmp.gt.f32.partialorder %v8990, 20.0
        %vm9311 = vcmp.gt.f32.partialorder %v8991, 20.0
        %vm9312 = vcmp.gt.f32.partialorder %v8992, 20.0
        %vm9313 = vcmp.gt.f32.partialorder %v8993, 20.0
        %vm9314 = vcmp.gt.f32.partialorder %v8994, 20.0
        %vm9315 = vcmp.gt.f32.partialorder %v8995, 20.0
        %vm9316 = vcmp.gt.f32.partialorder %v8996, 20.0
        %vm9317 = vcmp.gt.f32.partialorder %v8997, 20.0
        %vm9318 = vcmp.gt.f32.partialorder %v8998, 20.0
        %vm9319 = vcmp.gt.f32.partialorder %v8999, 20.0
        %vm9320 = vcmp.gt.f32.partialorder %v9000, 20.0
        %vm9321 = vcmp.gt.f32.partialorder %v9001, 20.0
        %v9322 = vsel %vm9290, %v8970, %v9258
        %v9323 = vsel %vm9291, %v8971, %v9259
        %v9324 = vsel %vm9292, %v8972, %v9260
        %v9325 = vsel %vm9293, %v8973, %v9261
        %v9326 = vsel %vm9294, %v8974, %v9262
        %v9327 = vsel %vm9295, %v8975, %v9263
        %v9328 = vsel %vm9296, %v8976, %v9264
        %v9329 = vsel %vm9297, %v8977, %v9265
        %v9330 = vsel %vm9298, %v8978, %v9266
        %v9331 = vsel %vm9299, %v8979, %v9267
        %v9332 = vsel %vm9300, %v8980, %v9268
        %v9333 = vsel %vm9301, %v8981, %v9269
        %v9334 = vsel %vm9302, %v8982, %v9270
        %v9335 = vsel %vm9303, %v8983, %v9271
        %v9336 = vsel %vm9304, %v8984, %v9272
        %v9337 = vsel %vm9305, %v8985, %v9273
        %v9338 = vsel %vm9306, %v8986, %v9274
        %v9339 = vsel %vm9307, %v8987, %v9275
        %v9340 = vsel %vm9308, %v8988, %v9276
        %v9341 = vsel %vm9309, %v8989, %v9277
        %v9342 = vsel %vm9310, %v8990, %v9278
        %v9343 = vsel %vm9311, %v8991, %v9279
        %v9344 = vsel %vm9312, %v8992, %v9280
        %v9345 = vsel %vm9313, %v8993, %v9281
        %v9346 = vsel %vm9314, %v8994, %v9282
        %v9347 = vsel %vm9315, %v8995, %v9283
        %v9348 = vsel %vm9316, %v8996, %v9284
        %v9349 = vsel %vm9317, %v8997, %v9285
        %v9350 = vsel %vm9318, %v8998, %v9286
        %v9351 = vsel %vm9319, %v8999, %v9287
        %v9352 = vsel %vm9320, %v9000, %v9288
        %v9353 = vsel %vm9321, %v9001, %v9289
        %v9354 = vld [vmem:[%s19] sm:$0xff]
        %v9355 = vld [vmem:[%s19 + $0x8] sm:$0xff]
        %v9356 = vld [vmem:[%s19 + $0x10] sm:$0xff]
        %v9357 = vld [vmem:[%s19 + $0x18] sm:$0xff]
        %9359 = vset.pattern.permute.xlu0 0
        %9360 = vperm.xlu0 %9359, %v9354
        %v9361 = vpop.permute.xlu0 %9360
        %9364 = vset.pattern.permute.xlu0 0
        %9365 = vperm.xlu0 %9364, %v9355
        %v9366 = vpop.permute.xlu0 %9365
        %9369 = vset.pattern.permute.xlu0 0
        %9370 = vperm.xlu0 %9369, %v9356
        %v9371 = vpop.permute.xlu0 %9370
        %9374 = vset.pattern.permute.xlu0 0
        %9375 = vperm.xlu0 %9374, %v9357
        %v9376 = vpop.permute.xlu0 %9375
        %v9378 = vmul.f32 %v8902, %v9361
        %v9379 = vmul.f32 %v8921, %v9361
        %v9380 = vmul.f32 %v8904, %v9366
        %v9381 = vmul.f32 %v8923, %v9366
        %v9382 = vmul.f32 %v8907, %v9371
        %v9383 = vmul.f32 %v8926, %v9371
        %v9384 = vmul.f32 %v8909, %v9376
        %v9385 = vmul.f32 %v8928, %v9376
        %v9386 = vld [vmem:[%s20] sm:$0xff]
        %v9387 = vld [vmem:[%s20 + $0x8] sm:$0xff]
        %v9388 = vld [vmem:[%s20 + $0x10] sm:$0xff]
        %v9389 = vld [vmem:[%s20 + $0x18] sm:$0xff]
        %9391 = vset.pattern.permute.xlu0 0
        %9392 = vperm.xlu0 %9391, %v9386
        %v9393 = vpop.permute.xlu0 %9392
        %9396 = vset.pattern.permute.xlu0 0
        %9397 = vperm.xlu0 %9396, %v9387
        %v9398 = vpop.permute.xlu0 %9397
        %9401 = vset.pattern.permute.xlu0 0
        %9402 = vperm.xlu0 %9401, %v9388
        %v9403 = vpop.permute.xlu0 %9402
        %9406 = vset.pattern.permute.xlu0 0
        %9407 = vperm.xlu0 %9406, %v9389
        %v9408 = vpop.permute.xlu0 %9407
        %v9410 = vadd.f32 %v9378, %v9393
        %v9411 = vadd.f32 %v9379, %v9393
        %v9412 = vadd.f32 %v9380, %v9398
        %v9413 = vadd.f32 %v9381, %v9398
        %v9414 = vadd.f32 %v9382, %v9403
        %v9415 = vadd.f32 %v9383, %v9403
        %v9416 = vadd.f32 %v9384, %v9408
        %v9417 = vadd.f32 %v9385, %v9408
        %v9418 = vmin.f32 %v9410, 20.0
        %v9419 = vmin.f32 %v9411, 20.0
        %v9420 = vmin.f32 %v9412, 20.0
        %v9421 = vmin.f32 %v9413, 20.0
        %v9422 = vmin.f32 %v9414, 20.0
        %v9423 = vmin.f32 %v9415, 20.0
        %v9424 = vmin.f32 %v9416, 20.0
        %v9425 = vmin.f32 %v9417, 20.0
        %v9426 = vmul.f32 %v9418, 1.442695
        %v9427 = vpow.pop %v9426
        %v9428 = vmul.f32 %v9419, 1.442695
        %v9429 = vpow.pop %v9428
        %v9430 = vmul.f32 %v9420, 1.442695
        %v9431 = vpow.pop %v9430
        %v9432 = vmul.f32 %v9421, 1.442695
        %v9433 = vpow.pop %v9432
        %v9434 = vmul.f32 %v9422, 1.442695
        %v9435 = vpow.pop %v9434
        %v9436 = vmul.f32 %v9423, 1.442695
        %v9437 = vpow.pop %v9436
        %v9438 = vmul.f32 %v9424, 1.442695
        %v9439 = vpow.pop %v9438
        %v9440 = vmul.f32 %v9425, 1.442695
        %v9441 = vpow.pop %v9440
        %v9442 = vadd.f32 %v9427, 2.0
        %v9443 = vadd.f32 %v9429, 2.0
        %v9444 = vadd.f32 %v9431, 2.0
        %v9445 = vadd.f32 %v9433, 2.0
        %v9446 = vadd.f32 %v9435, 2.0
        %v9447 = vadd.f32 %v9437, 2.0
        %v9448 = vadd.f32 %v9439, 2.0
        %v9449 = vadd.f32 %v9441, 2.0
        %v9450 = vmul.f32 %v9427, %v9442
        %v9451 = vmul.f32 %v9429, %v9443
        %v9452 = vmul.f32 %v9431, %v9444
        %v9453 = vmul.f32 %v9433, %v9445
        %v9454 = vmul.f32 %v9435, %v9446
        %v9455 = vmul.f32 %v9437, %v9447
        %v9456 = vmul.f32 %v9439, %v9448
        %v9457 = vmul.f32 %v9441, %v9449
        %v9458 = vmul.f32 %v9410, %v9450
        %v9459 = vmul.f32 %v9411, %v9451
        %v9460 = vmul.f32 %v9412, %v9452
        %v9461 = vmul.f32 %v9413, %v9453
        %v9462 = vmul.f32 %v9414, %v9454
        %v9463 = vmul.f32 %v9415, %v9455
        %v9464 = vmul.f32 %v9416, %v9456
        %v9465 = vmul.f32 %v9417, %v9457
        %v9466 = vadd.f32 %v9450, 2.0
        %v9467 = vadd.f32 %v9451, 2.0
        %v9468 = vadd.f32 %v9452, 2.0
        %v9469 = vadd.f32 %v9453, 2.0
        %v9470 = vadd.f32 %v9454, 2.0
        %v9471 = vadd.f32 %v9455, 2.0
        %v9472 = vadd.f32 %v9456, 2.0
        %v9473 = vadd.f32 %v9457, 2.0
        %v9474 = vrcp.pop %v9466
        %v9475 = vrcp.pop %v9467
        %v9476 = vrcp.pop %v9468
        %v9477 = vrcp.pop %v9469
        %v9478 = vrcp.pop %v9470
        %v9479 = vrcp.pop %v9471
        %v9480 = vrcp.pop %v9472
        %v9481 = vrcp.pop %v9473
        %v9482 = vmul.f32 %v9458, %v9474
        %v9483 = vmul.f32 %v9459, %v9475
        %v9484 = vmul.f32 %v9460, %v9476
        %v9485 = vmul.f32 %v9461, %v9477
        %v9486 = vmul.f32 %v9462, %v9478
        %v9487 = vmul.f32 %v9463, %v9479
        %v9488 = vmul.f32 %v9464, %v9480
        %v9489 = vmul.f32 %v9465, %v9481
        %vm9490 = vcmp.gt.f32.partialorder %v9410, 20.0
        %vm9491 = vcmp.gt.f32.partialorder %v9411, 20.0
        %vm9492 = vcmp.gt.f32.partialorder %v9412, 20.0
        %vm9493 = vcmp.gt.f32.partialorder %v9413, 20.0
        %vm9494 = vcmp.gt.f32.partialorder %v9414, 20.0
        %vm9495 = vcmp.gt.f32.partialorder %v9415, 20.0
        %vm9496 = vcmp.gt.f32.partialorder %v9416, 20.0
        %vm9497 = vcmp.gt.f32.partialorder %v9417, 20.0
        %v9498 = vsel %vm9490, %v9410, %v9482
        %v9499 = vsel %vm9491, %v9411, %v9483
        %v9500 = vsel %vm9492, %v9412, %v9484
        %v9501 = vsel %vm9493, %v9413, %v9485
        %v9502 = vsel %vm9494, %v9414, %v9486
        %v9503 = vsel %vm9495, %v9415, %v9487
        %v9504 = vsel %vm9496, %v9416, %v9488
        %v9505 = vsel %vm9497, %v9417, %v9489
        %9506 = vxpose.xlu0.b32.start [1/16] %v9322, 128
        %9507 = vxpose.xlu0.b32.cont [2/16] %v9323, 128
        %9508 = vxpose.xlu0.b32.cont [3/16] %v9324, 128
        %9509 = vxpose.xlu0.b32.cont [4/16] %v9325, 128
        %9510 = vxpose.xlu0.b32.cont [5/16] %v9326, 128
        %9511 = vxpose.xlu0.b32.cont [6/16] %v9327, 128
        %9512 = vxpose.xlu0.b32.cont [7/16] %v9328, 128
        %9513 = vxpose.xlu0.b32.cont [8/16] %v9329, 128
        %9514 = vxpose.xlu0.b32.cont [9/16] %v9330, 128
        %9515 = vxpose.xlu0.b32.cont [10/16] %v9331, 128
        %9516 = vxpose.xlu0.b32.cont [11/16] %v9332, 128
        %9517 = vxpose.xlu0.b32.cont [12/16] %v9333, 128
        %9518 = vxpose.xlu0.b32.cont [13/16] %v9334, 128
        %9519 = vxpose.xlu0.b32.cont [14/16] %v9335, 128
        %9520 = vxpose.xlu0.b32.cont [15/16] %v9336, 128
        %9521 = vxpose.xlu0.b32.end [16/16] %v9337, 128
        %v9522 = vpop.trf.xlu0
        %v9523 = vpop.trf.xlu0
        %v9524 = vpop.trf.xlu0
        %v9525 = vpop.trf.xlu0
        %v9526 = vpop.trf.xlu0
        %v9527 = vpop.trf.xlu0
        %v9528 = vpop.trf.xlu0
        %v9529 = vpop.trf.xlu0
        %v9530 = vpop.trf.xlu0
        %v9531 = vpop.trf.xlu0
        %v9532 = vpop.trf.xlu0
        %v9533 = vpop.trf.xlu0
        %v9534 = vpop.trf.xlu0
        %v9535 = vpop.trf.xlu0
        %v9536 = vpop.trf.xlu0
        %v9537 = vpop.trf.xlu0
        %9538 = vxpose.xlu0.b32.start [1/16] %v9338, 128
        %9539 = vxpose.xlu0.b32.cont [2/16] %v9339, 128
        %9540 = vxpose.xlu0.b32.cont [3/16] %v9340, 128
        %9541 = vxpose.xlu0.b32.cont [4/16] %v9341, 128
        %9542 = vxpose.xlu0.b32.cont [5/16] %v9342, 128
        %9543 = vxpose.xlu0.b32.cont [6/16] %v9343, 128
        %9544 = vxpose.xlu0.b32.cont [7/16] %v9344, 128
        %9545 = vxpose.xlu0.b32.cont [8/16] %v9345, 128
        %9546 = vxpose.xlu0.b32.cont [9/16] %v9346, 128
        %9547 = vxpose.xlu0.b32.cont [10/16] %v9347, 128
        %9548 = vxpose.xlu0.b32.cont [11/16] %v9348, 128
        %9549 = vxpose.xlu0.b32.cont [12/16] %v9349, 128
        %9550 = vxpose.xlu0.b32.cont [13/16] %v9350, 128
        %9551 = vxpose.xlu0.b32.cont [14/16] %v9351, 128
        %9552 = vxpose.xlu0.b32.cont [15/16] %v9352, 128
        %9553 = vxpose.xlu0.b32.end [16/16] %v9353, 128
        %v9554 = vpop.trf.xlu0
        %v9555 = vpop.trf.xlu0
        %v9556 = vpop.trf.xlu0
        %v9557 = vpop.trf.xlu0
        %v9558 = vpop.trf.xlu0
        %v9559 = vpop.trf.xlu0
        %v9560 = vpop.trf.xlu0
        %v9561 = vpop.trf.xlu0
        %v9562 = vpop.trf.xlu0
        %v9563 = vpop.trf.xlu0
        %v9564 = vpop.trf.xlu0
        %v9565 = vpop.trf.xlu0
        %v9566 = vpop.trf.xlu0
        %v9567 = vpop.trf.xlu0
        %v9568 = vpop.trf.xlu0
        %v9569 = vpop.trf.xlu0
        %v9570 = vld [vmem:[%s21] sm:$0xf]
        %v9571 = vld [vmem:[%s21 + $0x4] sm:$0xf]
        %v9572 = vld [vmem:[%s21 + $0x8] sm:$0xf]
        %v9573 = vld [vmem:[%s21 + $0xc] sm:$0xf]
        %v9574 = vpack.c.bf16 %v9523, %v9522
        %v9575 = vpack.c.bf16 %v9555, %v9554
        %v9576 = vpack.c.bf16 %v9525, %v9524
        %v9577 = vpack.c.bf16 %v9557, %v9556
        %v9578 = vld [vmem:[%s22] sm:$0xf]
        %v9579 = vld [vmem:[%s22 + $0x4] sm:$0xf]
        %v9580 = vld [vmem:[%s22 + $0x8] sm:$0xf]
        %v9581 = vld [vmem:[%s22 + $0xc] sm:$0xf]
        %v9582 = vpack.c.bf16 %v9500, %v9498
        %v9583 = vpack.c.bf16 %v9501, %v9499
        %v9584 = vpack.c.bf16 %v9504, %v9502
        %v9585 = vpack.c.bf16 %v9505, %v9503
        %v9590 = vunpack.c.l.b16 %v9578
        %v9591 = vunpack.c.l.b16 %v9579
        %v9592 = vunpack.c.l.b16 %v9580
        %v9593 = vunpack.c.l.b16 %v9581
        %v9594 = vpack.c.b16 %v9591, %v9590
        %v9595 = vpack.c.b16 %v9593, %v9592
        %v9597 = vsel %vm1265, %v9594, 0
        %v9600 = vsel %vm1265, %v9595, 0
        %9602 = vmatpush.bf16.msra.mxu0 0
        %9603 = vmatpush.bf16.msra.mxu0 0
        %9604 = vmatpush.bf16.msra.mxu0 0
        %9605 = vmatpush.bf16.msra.mxu0 0
        %9606 = vmatpush.bf16.msra.mxu0 0
        %9607 = vmatpush.bf16.msra.mxu0 0
        %9608 = vmatpush.bf16.msra.mxu0 %v9584
        %9609 = vmatpush.bf16.msra.mxu0 %v9582
        %9610 = vmatmul.bf16.gmra.mxu0 %v9597
        %v9611 = vpop.f32.mrf.mxu0
        %v9612 = vadd.f32 0.0, %v9611
        %v9613 = vpop.f32.mrf.mxu0
        %v9614 = vadd.f32 0.0, %v9613
        %9615 = vmatmul.bf16.gmra.mxu0 %v9600
        %v9616 = vpop.f32.mrf.mxu0
        %v9617 = vadd.f32 0.0, %v9616
        %v9618 = vpop.f32.mrf.mxu0
        %v9619 = vadd.f32 0.0, %v9618
        %9620 = vdwg.mxu0
        %9621 = vmatpush.bf16.msra.mxu0 0
        %9622 = vmatpush.bf16.msra.mxu0 0
        %9623 = vmatpush.bf16.msra.mxu0 0
        %9624 = vmatpush.bf16.msra.mxu0 0
        %9625 = vmatpush.bf16.msra.mxu0 0
        %9626 = vmatpush.bf16.msra.mxu0 0
        %9627 = vmatpush.bf16.msra.mxu0 %v9585
        %9628 = vmatpush.bf16.msra.mxu0 %v9583
        %9629 = vmatmul.bf16.gmra.mxu0 %v9597
        %v9630 = vpop.f32.mrf.mxu0
        %v9631 = vadd.f32 0.0, %v9630
        %v9632 = vpop.f32.mrf.mxu0
        %v9633 = vadd.f32 0.0, %v9632
        %9634 = vmatmul.bf16.gmra.mxu0 %v9600
        %v9635 = vpop.f32.mrf.mxu0
        %v9636 = vadd.f32 0.0, %v9635
        %v9637 = vpop.f32.mrf.mxu0
        %v9638 = vadd.f32 0.0, %v9637
        %9639 = vdwg.mxu0
        %v9644 = vunpack.c.l.b16 %v9570
        %v9645 = vunpack.c.l.b16 %v9571
        %v9646 = vunpack.c.l.b16 %v9572
        %v9647 = vunpack.c.l.b16 %v9573
        %v9648 = vpack.c.b16 %v9645, %v9644
        %v9649 = vpack.c.b16 %v9647, %v9646
        %v9651 = vsel %vm1265, %v9648, 0
        %v9654 = vsel %vm1265, %v9649, 0
        %9656 = vmatpush.bf16.msra.mxu0 0
        %9657 = vmatpush.bf16.msra.mxu0 0
        %9658 = vmatpush.bf16.msra.mxu0 0
        %9659 = vmatpush.bf16.msra.mxu0 0
        %9660 = vmatpush.bf16.msra.mxu0 0
        %9661 = vmatpush.bf16.msra.mxu0 0
        %9662 = vmatpush.bf16.msra.mxu0 %v9576
        %9663 = vmatpush.bf16.msra.mxu0 %v9574
        %9664 = vmatmul.bf16.gmra.mxu0 %v9651
        %v9665 = vpop.f32.mrf.mxu0
        %v9666 = vadd.f32 %v9612, %v9665
        %v9667 = vpop.f32.mrf.mxu0
        %v9668 = vadd.f32 %v9614, %v9667
        %9669 = vmatmul.bf16.gmra.mxu0 %v9654
        %v9670 = vpop.f32.mrf.mxu0
        %v9671 = vadd.f32 %v9617, %v9670
        %v9672 = vpop.f32.mrf.mxu0
        %v9673 = vadd.f32 %v9619, %v9672
        %9674 = vdwg.mxu0
        %9675 = vmatpush.bf16.msra.mxu0 0
        %9676 = vmatpush.bf16.msra.mxu0 0
        %9677 = vmatpush.bf16.msra.mxu0 0
        %9678 = vmatpush.bf16.msra.mxu0 0
        %9679 = vmatpush.bf16.msra.mxu0 0
        %9680 = vmatpush.bf16.msra.mxu0 0
        %9681 = vmatpush.bf16.msra.mxu0 %v9577
        %9682 = vmatpush.bf16.msra.mxu0 %v9575
        %9683 = vmatmul.bf16.gmra.mxu0 %v9651
        %v9684 = vpop.f32.mrf.mxu0
        %v9685 = vadd.f32 %v9631, %v9684
        %v9686 = vpop.f32.mrf.mxu0
        %v9687 = vadd.f32 %v9633, %v9686
        %9688 = vmatmul.bf16.gmra.mxu0 %v9654
        %v9689 = vpop.f32.mrf.mxu0
        %v9690 = vadd.f32 %v9636, %v9689
        %v9691 = vpop.f32.mrf.mxu0
        %v9692 = vadd.f32 %v9638, %v9691
        %9693 = vdwg.mxu0
        %v9694 = vld [vmem:[%s23] sm:$0xff]
        %v9695 = vld [vmem:[%s23 + $0x8] sm:$0xff]
        %v9696 = vld [vmem:[%s23 + $0x10] sm:$0xff]
        %v9697 = vld [vmem:[%s23 + $0x18] sm:$0xff]
        %9699 = vset.pattern.permute.xlu0 0
        %9700 = vperm.xlu0 %9699, %v9694
        %v9701 = vpop.permute.xlu0 %9700
        %9704 = vset.pattern.permute.xlu0 0
        %9705 = vperm.xlu0 %9704, %v9695
        %v9706 = vpop.permute.xlu0 %9705
        %9709 = vset.pattern.permute.xlu0 0
        %9710 = vperm.xlu0 %9709, %v9696
        %v9711 = vpop.permute.xlu0 %9710
        %9714 = vset.pattern.permute.xlu0 0
        %9715 = vperm.xlu0 %9714, %v9697
        %v9716 = vpop.permute.xlu0 %9715
        %v9718 = vmul.f32 %v9666, %v9701
        %v9719 = vmul.f32 %v9685, %v9701
        %v9720 = vmul.f32 %v9668, %v9706
        %v9721 = vmul.f32 %v9687, %v9706
        %v9722 = vmul.f32 %v9671, %v9711
        %v9723 = vmul.f32 %v9690, %v9711
        %v9724 = vmul.f32 %v9673, %v9716
        %v9725 = vmul.f32 %v9692, %v9716
        %v9726 = vld [vmem:[%s24] sm:$0xff]
        %v9727 = vld [vmem:[%s24 + $0x8] sm:$0xff]
        %v9728 = vld [vmem:[%s24 + $0x10] sm:$0xff]
        %v9729 = vld [vmem:[%s24 + $0x18] sm:$0xff]
        %9731 = vset.pattern.permute.xlu0 0
        %9732 = vperm.xlu0 %9731, %v9726
        %v9733 = vpop.permute.xlu0 %9732
        %9736 = vset.pattern.permute.xlu0 0
        %9737 = vperm.xlu0 %9736, %v9727
        %v9738 = vpop.permute.xlu0 %9737
        %9741 = vset.pattern.permute.xlu0 0
        %9742 = vperm.xlu0 %9741, %v9728
        %v9743 = vpop.permute.xlu0 %9742
        %9746 = vset.pattern.permute.xlu0 0
        %9747 = vperm.xlu0 %9746, %v9729
        %v9748 = vpop.permute.xlu0 %9747
        %v9750 = vadd.f32 %v9718, %v9733
        %v9751 = vadd.f32 %v9719, %v9733
        %v9752 = vadd.f32 %v9720, %v9738
        %v9753 = vadd.f32 %v9721, %v9738
        %v9754 = vadd.f32 %v9722, %v9743
        %v9755 = vadd.f32 %v9723, %v9743
        %v9756 = vadd.f32 %v9724, %v9748
        %v9757 = vadd.f32 %v9725, %v9748
        %v9758 = vmin.f32 %v9750, 20.0
        %v9759 = vmin.f32 %v9751, 20.0
        %v9760 = vmin.f32 %v9752, 20.0
        %v9761 = vmin.f32 %v9753, 20.0
        %v9762 = vmin.f32 %v9754, 20.0
        %v9763 = vmin.f32 %v9755, 20.0
        %v9764 = vmin.f32 %v9756, 20.0
        %v9765 = vmin.f32 %v9757, 20.0
        %v9766 = vmul.f32 %v9758, 1.442695
        %v9767 = vpow.pop %v9766
        %v9768 = vmul.f32 %v9759, 1.442695
        %v9769 = vpow.pop %v9768
        %v9770 = vmul.f32 %v9760, 1.442695
        %v9771 = vpow.pop %v9770
        %v9772 = vmul.f32 %v9761, 1.442695
        %v9773 = vpow.pop %v9772
        %v9774 = vmul.f32 %v9762, 1.442695
        %v9775 = vpow.pop %v9774
        %v9776 = vmul.f32 %v9763, 1.442695
        %v9777 = vpow.pop %v9776
        %v9778 = vmul.f32 %v9764, 1.442695
        %v9779 = vpow.pop %v9778
        %v9780 = vmul.f32 %v9765, 1.442695
        %v9781 = vpow.pop %v9780
        %v9782 = vadd.f32 %v9767, 2.0
        %v9783 = vadd.f32 %v9769, 2.0
        %v9784 = vadd.f32 %v9771, 2.0
        %v9785 = vadd.f32 %v9773, 2.0
        %v9786 = vadd.f32 %v9775, 2.0
        %v9787 = vadd.f32 %v9777, 2.0
        %v9788 = vadd.f32 %v9779, 2.0
        %v9789 = vadd.f32 %v9781, 2.0
        %v9790 = vmul.f32 %v9767, %v9782
        %v9791 = vmul.f32 %v9769, %v9783
        %v9792 = vmul.f32 %v9771, %v9784
        %v9793 = vmul.f32 %v9773, %v9785
        %v9794 = vmul.f32 %v9775, %v9786
        %v9795 = vmul.f32 %v9777, %v9787
        %v9796 = vmul.f32 %v9779, %v9788
        %v9797 = vmul.f32 %v9781, %v9789
        %v9798 = vmul.f32 %v9750, %v9790
        %v9799 = vmul.f32 %v9751, %v9791
        %v9800 = vmul.f32 %v9752, %v9792
        %v9801 = vmul.f32 %v9753, %v9793
        %v9802 = vmul.f32 %v9754, %v9794
        %v9803 = vmul.f32 %v9755, %v9795
        %v9804 = vmul.f32 %v9756, %v9796
        %v9805 = vmul.f32 %v9757, %v9797
        %v9806 = vadd.f32 %v9790, 2.0
        %v9807 = vadd.f32 %v9791, 2.0
        %v9808 = vadd.f32 %v9792, 2.0
        %v9809 = vadd.f32 %v9793, 2.0
        %v9810 = vadd.f32 %v9794, 2.0
        %v9811 = vadd.f32 %v9795, 2.0
        %v9812 = vadd.f32 %v9796, 2.0
        %v9813 = vadd.f32 %v9797, 2.0
        %v9814 = vrcp.pop %v9806
        %v9815 = vrcp.pop %v9807
        %v9816 = vrcp.pop %v9808
        %v9817 = vrcp.pop %v9809
        %v9818 = vrcp.pop %v9810
        %v9819 = vrcp.pop %v9811
        %v9820 = vrcp.pop %v9812
        %v9821 = vrcp.pop %v9813
        %v9822 = vmul.f32 %v9798, %v9814
        %v9823 = vmul.f32 %v9799, %v9815
        %v9824 = vmul.f32 %v9800, %v9816
        %v9825 = vmul.f32 %v9801, %v9817
        %v9826 = vmul.f32 %v9802, %v9818
        %v9827 = vmul.f32 %v9803, %v9819
        %v9828 = vmul.f32 %v9804, %v9820
        %v9829 = vmul.f32 %v9805, %v9821
        %vm9830 = vcmp.gt.f32.partialorder %v9750, 20.0
        %vm9831 = vcmp.gt.f32.partialorder %v9751, 20.0
        %vm9832 = vcmp.gt.f32.partialorder %v9752, 20.0
        %vm9833 = vcmp.gt.f32.partialorder %v9753, 20.0
        %vm9834 = vcmp.gt.f32.partialorder %v9754, 20.0
        %vm9835 = vcmp.gt.f32.partialorder %v9755, 20.0
        %vm9836 = vcmp.gt.f32.partialorder %v9756, 20.0
        %vm9837 = vcmp.gt.f32.partialorder %v9757, 20.0
        %v9838 = vsel %vm9830, %v9750, %v9822
        %v9839 = vsel %vm9831, %v9751, %v9823
        %v9840 = vsel %vm9832, %v9752, %v9824
        %v9841 = vsel %vm9833, %v9753, %v9825
        %v9842 = vsel %vm9834, %v9754, %v9826
        %v9843 = vsel %vm9835, %v9755, %v9827
        %v9844 = vsel %vm9836, %v9756, %v9828
        %v9845 = vsel %vm9837, %v9757, %v9829
        %9846 = vst [vmem:[%s791] sm:$0xff] %v9838
        %9847 = vst [vmem:[%s791 + $0x8] sm:$0xff] %v9839
        %9848 = vst [vmem:[%s791 + $0x10] sm:$0xff] %v9840
        %9849 = vst [vmem:[%s791 + $0x18] sm:$0xff] %v9841
        %9850 = vst [vmem:[%s791 + $0x20] sm:$0xff] %v9842
        %9851 = vst [vmem:[%s791 + $0x28] sm:$0xff] %v9843
        %9852 = vst [vmem:[%s791 + $0x30] sm:$0xff] %v9844
        %9853 = vst [vmem:[%s791 + $0x38] sm:$0xff] %v9845
        %s9854 = sand.u32 %s579, 1
        %s9855 = scalar_lea.sflag [#allocation4], %s9854
        %s9856 = sand.u32 %s579, 1
        %s9857 = smul.addr %s9856, 64
        %s9858 = scalar_lea.vmem [#allocation7], %s9857
        // Predicated region
        $region129: #{tpu_custom_call.1} parent=119 // pred_check
          %p9859 = pneg %p589
        $region130: #{tpu_custom_call.1} parent=119 // pred_check_branch
          %9861 = sbr.rel (%p9859) target = $region132
        $region131: #{tpu_custom_call.1} parent=119 // pred_region
          %9863 = vsyncadd %s9855, 0
          %s9864 = smul.addr %s41, 8
          %s9865 = smul.addr %s9864, 8
          %s9866 = scalar_lea.hbm %s25, %s9865
          %s9867 = sshll.u32 %s9858, 4
          %s9868 = int_to_ptr.vmem [resolvable:$true] %s9867
          %s9869 = sshll.u32 %s9866, 4
          %s9870 = int_to_ptr.hbm [resolvable:$true] %s9869
          %9875 = dma.vmem_to_hbm [thread:$0]  %s9868, 1024, %s9870, %s9855, 256, 256, 16
        $region132: #{tpu_custom_call.1} parent=119 // pred_fallthru
          _
      $region120: #{tpu_custom_call.1} parent=5 // pred_fallthru
        _
      %p9876 = scmp.le.s32.totalorder 2, %s36
      // Predicated region
      $region133: #{tpu_custom_call.1} parent=5 // pred_check
        %p9877 = pneg %p9876
      $region134: #{tpu_custom_call.1} parent=5 // pred_check_branch
        %9879 = sbr.rel (%p9877) target = $region136
      $region135: #{tpu_custom_call.1} parent=5 // pred_region
        %s9880 = ssub.s32 %s36, 2
        // Predicated region
        $region137: #{tpu_custom_call.1} parent=135 // pred_check
          %p9881 = pneg %p595
        $region138: #{tpu_custom_call.1} parent=135 // pred_check_branch
          %9883 = sbr.rel (%p9881) target = $region140
        $region139: #{tpu_custom_call.1} parent=135 // pred_region
          %s9884 = sand.u32 %s580, 1
          %s9885 = scalar_lea.sflag [#allocation4], %s9884
          %s9886 = sand.u32 %s580, 1
          %s9887 = smul.addr %s9886, 64
          %s9888 = scalar_lea.vmem [#allocation7], %s9887
          %9890 = dma.done %s9885, 1024
        $region140: #{tpu_custom_call.1} parent=135 // pred_fallthru
          _
      $region136: #{tpu_custom_call.1} parent=5 // pred_fallthru
        _
    $region6: #{tpu_custom_call.1} parent=1 // loop_footer
      %s40 = sadd.s32 1, %s36
    $region7: #{tpu_custom_call.1} parent=1 // loop_footer_branch
      %35 = sbr.rel target = $region3
    $region8: #{tpu_custom_call.1} parent=1 // loop_exit
      _
    %9891 = vsyncpa [#allocation3], 1
    %s9892 = scalar_lea.sflag [#allocation3], 1
    %9893 = vsyncpa %s9892, 1
    %9894 = vsyncpa [#allocation6], 1
    %9895 = vsyncpa [#allocation4], 1
    %s9896 = scalar_lea.sflag [#allocation4], 1
    %9897 = vsyncpa %s9896, 1

</llo_original>
